<compile_context>
chip_gen: v7x
topology: tpu7x:2x2x1
jax: 0.10.0
libtpu: 0.0.40
codegen_flags: <defaults>
</compile_context>

<pallas_src>
import jax
import jax.numpy as jnp
from jax.experimental import pallas as pl
from jax.experimental.pallas import tpu as pltpu

EPS_NORM = 1e-12   # F.normalize default eps
EPS_BN = 1e-5      # nn.BatchNorm1d default eps

K_PERT = 10174     # pert_expr feature dim (nn.Linear(10174, 128))
K_PAD = 10240      # padded to a multiple of 128 for clean (8,128) tiling
TK = 2048          # K-tile of the pert matmul -> 10240 / 2048 = 5 grid steps


def _vmem():
    # Whole-array resident in VMEM; index never changes so it is DMA'd once.
    return pl.BlockSpec(memory_space=pltpu.MemorySpace.VMEM)


def _inv_l2(sumsq):
    # 1 / max(||x||, eps)  ==  rsqrt(max(sumsq, eps^2)); rsqrt goes to the EUP.
    return jax.lax.rsqrt(jnp.maximum(sumsq, EPS_NORM * EPS_NORM))


# ---------------------------------------------------------------------------
# Fully-fused MultiSyn forward kernel
#   grid axis 0: K-tiles of the (stacked) pert matmul (reduction, "arbitrary")
# ---------------------------------------------------------------------------
def multisyn_kernel(
    # K-tiled operands (streamed per grid step)
    pert_x_ref,       # [2B, TK]   stacked, normalized-later pert expressions
    pert_w_ref,       # [TK, 128]  pert_proj weight tile (K zero-padded)
    # whole-array VMEM operands (fetched once)
    pert_bias_ref,    # [1, 128]
    fp_ref,           # [2B, 128]  fp_model outputs  (drug A rows 0..B-1, B rows B..2B-1)
    gf_ref,           # [2B, 128]  scage outputs     (same stacking)
    fuser_w1a_ref,    # [128, 128] gate W1 rows for f1
    fuser_w1b_ref,    # [128, 128] gate W1 rows for f2
    fuser_b1_ref,     # [1, 128]
    fuser_w2_ref,     # [128, 1]
    fuser_b2_ref,     # [1, 1]
    cell_ref,         # [B, 768]
    red_w1_ref,       # [768, 1024]
    red_b1_ref,       # [1, 1024]
    red_w2_ref,       # [1024, 512]
    red_b2_ref,       # [1, 512]
    pw1_fa_ref,       # [128, 256] pred W1 rows for feat_a
    pw1_fb_ref,       # [128, 256]               feat_b
    pw1_cell_ref,     # [512, 256]               cell
    pw1_pa_ref,       # [128, 256]               pert_a
    pw1_pb_ref,       # [128, 256]               pert_b
    pred_b1_ref,      # [1, 256]
    bn_g_ref, bn_b_ref, bn_m_ref, bn_v_ref,   # [1, 256] each (eval-mode BN)
    pred_w2_ref,      # [256, n_output]
    pred_b2_ref,      # [1, n_output]
    # output
    out_ref,          # [B, n_output]
    # scratch
    pert_acc_ref,     # [2B, 128] f32 accumulator of (x @ W) over K tiles
    pert_ss_ref,      # [2B, 1]   f32 accumulator of sum(x^2) over K tiles
):
    k = pl.program_id(0)

    @pl.when(k == 0)
    def _init():
        pert_acc_ref[...] = jnp.zeros_like(pert_acc_ref)
        pert_ss_ref[...] = jnp.zeros_like(pert_ss_ref)

    # --- streamed pert matmul: accumulate un-normalized dot and sum-of-squares
    x = pert_x_ref[...]
    pert_acc_ref[...] += jnp.dot(x, pert_w_ref[...],
                                 preferred_element_type=jnp.float32)
    pert_ss_ref[...] += jnp.sum(x * x, axis=1, keepdims=True)

    @pl.when(k == pl.num_programs(0) - 1)
    def _finalize():
        B = out_ref.shape[0]

        # ---- pert_proj: ReLU(Linear(F.normalize(x))) via row-wise rescale ----
        pert = jnp.maximum(
            pert_acc_ref[...] * _inv_l2(pert_ss_ref[...]) + pert_bias_ref[...], 0.0)
        pert_a = pert[:B, :]
        pert_b = pert[B:, :]

        # ---- GatedFusion for both drugs (stacked [2B, 128], concat-free) ----
        f1 = fp_ref[...]
        f2 = gf_ref[...]
        h = jnp.tanh(
            jnp.dot(f1, fuser_w1a_ref[...], preferred_element_type=jnp.float32)
            + jnp.dot(f2, fuser_w1b_ref[...], preferred_element_type=jnp.float32)
            + fuser_b1_ref[...])
        gate = jnp.dot(h, fuser_w2_ref[...],
                       preferred_element_type=jnp.float32) + fuser_b2_ref[...]
        alpha = jax.nn.sigmoid(gate)
        fused = alpha * f1 + (1.0 - alpha) * f2          # [2B, 128]
        feat_a = fused[:B, :]
        feat_b = fused[B:, :]

        # ---- cell path: normalize -> Linear(768,1024) -> ReLU -> Dropout(id)
        #                 -> Linear(1024,512) -> ReLU ----
        c = cell_ref[...]
        c = c * _inv_l2(jnp.sum(c * c, axis=1, keepdims=True))
        h1 = jnp.maximum(
            jnp.dot(c, red_w1_ref[...], preferred_element_type=jnp.float32)
            + red_b1_ref[...], 0.0)
        # TODO(synk): nn.Dropout(p=0.2) is identity in eval/inference mode.
        cell_red = jnp.maximum(
            jnp.dot(h1, red_w2_ref[...], preferred_element_type=jnp.float32)
            + red_b2_ref[...], 0.0)                      # [B, 512]

        # ---- pred head: normalize(cat(feat_a, feat_b, cell, pert_a, pert_b))
        #      done as partial dots + shared row-wise L2 rescale ----
        ss = (jnp.sum(feat_a * feat_a, axis=1, keepdims=True)
              + jnp.sum(feat_b * feat_b, axis=1, keepdims=True)
              + jnp.sum(cell_red * cell_red, axis=1, keepdims=True)
              + jnp.sum(pert_a * pert_a, axis=1, keepdims=True)
              + jnp.sum(pert_b * pert_b, axis=1, keepdims=True))
        h2 = (jnp.dot(feat_a, pw1_fa_ref[...], preferred_element_type=jnp.float32)
              + jnp.dot(feat_b, pw1_fb_ref[...], preferred_element_type=jnp.float32)
              + jnp.dot(cell_red, pw1_cell_ref[...], preferred_element_type=jnp.float32)
              + jnp.dot(pert_a, pw1_pa_ref[...], preferred_element_type=jnp.float32)
              + jnp.dot(pert_b, pw1_pb_ref[...], preferred_element_type=jnp.float32))
        h2 = h2 * _inv_l2(ss) + pred_b1_ref[...]
        # BatchNorm1d (eval): (x - mean) * rsqrt(var + eps) * gamma + beta
        h2 = ((h2 - bn_m_ref[...]) * jax.lax.rsqrt(bn_v_ref[...] + EPS_BN)
              * bn_g_ref[...] + bn_b_ref[...])
        h2 = jnp.maximum(h2, 0.0)
        out = jnp.dot(h2, pred_w2_ref[...],
                      preferred_element_type=jnp.float32) + pred_b2_ref[...]
        out_ref[...] = jnp.maximum(out, 0.0)


# ---------------------------------------------------------------------------
# Wrapper: single pallas_call for the whole forward
# ---------------------------------------------------------------------------
def multisyn_forward(params, fp_a, feature_a, fp_b, feature_b,
                     cell, pert_a_expr, pert_b_expr, n_output=2):
    B = fp_a.shape[0]
    f = params["fuser"]
    r = params["reduction"]
    pp = params["pert_proj"]
    pr = params["pred"]

    # Stack both drugs so the 10240x128 pert weight is streamed once for both,
    # and zero-pad K to 10240 (weight rows are zero-padded too -> same result).
    pert_x = jnp.concatenate([pert_a_expr, pert_b_expr], axis=0)       # [2B, 10174]
    pert_x = jnp.pad(pert_x, ((0, 0), (0, K_PAD - pert_x.shape[1])))   # [2B, 10240]
    fp = jnp.concatenate([fp_a, fp_b], axis=0)                         # [2B, 128]
    gf = jnp.concatenate([feature_a, feature_b], axis=0)               # [2B, 128]

    grid = (K_PAD // TK,)
    tiled_x = pl.BlockSpec((2 * B, TK), lambda k: (0, k))
    tiled_w = pl.BlockSpec((TK, 128), lambda k: (k, 0))

    # TODO(synk): for large B add a "parallel" batch grid axis (esp. v7x, 2 TCs,
    #             64 MiB VMEM); at B=8 whole-array residency is optimal.
    return pl.pallas_call(
        multisyn_kernel,
        out_shape=jax.ShapeDtypeStruct((B, n_output), jnp.float32),
        grid_spec=pltpu.PrefetchScalarGridSpec(
            num_scalar_prefetch=0,
            grid=grid,
            in_specs=[tiled_x, tiled_w] + [_vmem()] * 25,
            out_specs=pl.BlockSpec((B, n_output), lambda k: (0, 0)),
            scratch_shapes=[pltpu.VMEM((2 * B, 128), jnp.float32),
                            pltpu.VMEM((2 * B, 1), jnp.float32)]),
        compiler_params=pltpu.CompilerParams(
            dimension_semantics=("arbitrary",),
            vmem_limit_bytes=40 * 1024 * 1024),
    )(pert_x, pp["w"],
      pp["b"], fp, gf,
      f["w1a"], f["w1b"], f["b1"], f["w2"], f["b2"],
      cell, r["w1"], r["b1"], r["w2"], r["b2"],
      pr["w1_fa"], pr["w1_fb"], pr["w1_cell"], pr["w1_pa"], pr["w1_pb"],
      pr["b1"], pr["bn_g"], pr["bn_b"], pr["bn_m"], pr["bn_v"],
      pr["w2"], pr["b2"])


# ---------------------------------------------------------------------------
# Deterministic parameter init (xavier-normal weights, zero biases,
# identity BatchNorm running stats).  Weights are stored pre-transposed
# ([in, out]) and pre-split along the concat layout the kernel expects.
# ---------------------------------------------------------------------------
def _xavier(key, fan_in, fan_out):
    std = jnp.sqrt(2.0 / (fan_in + fan_out))
    return (std * jax.random.normal(key, (fan_in, fan_out))).astype(jnp.float32)


def init_params(key, n_output=2):
    ks = jax.random.split(key, 8)
    # GatedFusion gate: Linear(256,128) -> Tanh -> Linear(128,1); W1 split into
    # the f1/f2 row-halves so the kernel avoids the lane-axis concat.
    fw1 = _xavier(ks[0], 256, 128)
    fuser = {
        "w1a": fw1[:128], "w1b": fw1[128:],
        "b1": jnp.zeros((1, 128), jnp.float32),
        "w2": _xavier(ks[1], 128, 1), "b2": jnp.zeros((1, 1), jnp.float32),
    }
    reduction = {
        "w1": _xavier(ks[2], 768, 1024), "b1": jnp.zeros((1, 1024), jnp.float32),
        "w2": _xavier(ks[3], 1024, 512), "b2": jnp.zeros((1, 512), jnp.float32),
    }
    # pert_proj weight, K zero-padded 10174 -> 10240 (zeros keep result exact).
    pw = _xavier(ks[4], K_PERT, 128)
    pert = {
        "w": jnp.pad(pw, ((0, K_PAD - K_PERT), (0, 0))),
        "b": jnp.zeros((1, 128), jnp.float32),
    }
    # pred Linear(1024,256) split along the concat layout
    # [feat_a 128 | feat_b 128 | cell 512 | pert_a 128 | pert_b 128]
    pw1 = _xavier(ks[5], 1024, 256)
    pred = {
        "w1_fa": pw1[0:128], "w1_fb": pw1[128:256], "w1_cell": pw1[256:768],
        "w1_pa": pw1[768:896], "w1_pb": pw1[896:1024],
        "b1": jnp.zeros((1, 256), jnp.float32),
        "bn_g": jnp.ones((1, 256), jnp.float32),
        "bn_b": jnp.zeros((1, 256), jnp.float32),
        "bn_m": jnp.zeros((1, 256), jnp.float32),
        "bn_v": jnp.ones((1, 256), jnp.float32),
        "w2": _xavier(ks[6], 256, n_output),
        "b2": jnp.zeros((1, n_output), jnp.float32),
    }
    return {"fuser": fuser, "reduction": reduction, "pert_proj": pert, "pred": pred}


if __name__ == "__main__":
    B = 8
    N_OUTPUT = 2
    key = jax.random.PRNGKey(0)
    kp, k1, k2, k3, k4, k5, k6, k7 = jax.random.split(key, 8)

    params = init_params(kp, n_output=N_OUTPUT)

    # Stand-ins for the external encoder outputs (fp_model / scage), 128-d each.
    fp_a      = jax.random.normal(k1, (B, 128), jnp.float32)
    feature_a = jax.random.normal(k2, (B, 128), jnp.float32)
    fp_b      = jax.random.normal(k3, (B, 128), jnp.float32)
    feature_b = jax.random.normal(k4, (B, 128), jnp.float32)
    # data.cell (768-d, per nn.Linear(768, 1024)) and pert_expr (10174-d).
    cell        = jax.random.normal(k5, (B, 768), jnp.float32)
    pert_a_expr = jax.random.normal(k6, (B, K_PERT), jnp.float32)
    pert_b_expr = jax.random.normal(k7, (B, K_PERT), jnp.float32)

    out = multisyn_forward(params, fp_a, feature_a, fp_b, feature_b,
                           cell, pert_a_expr, pert_b_expr, n_output=N_OUTPUT)
    jax.block_until_ready(out)
    assert out.shape == (B, N_OUTPUT)
    print("KERNEL_OK")
</pallas_src>

<mosaic_0001>
module attributes {stable_mosaic.version = 11 : i64} {
  func.func @multisyn_kernel(%arg0: i32, %arg1: memref<16x2048xf32, #tpu.memory_space<vmem>>, %arg2: memref<2048x128xf32, #tpu.memory_space<vmem>>, %arg3: memref<1x128xf32, #tpu.memory_space<vmem>>, %arg4: memref<16x128xf32, #tpu.memory_space<vmem>>, %arg5: memref<16x128xf32, #tpu.memory_space<vmem>>, %arg6: memref<128x128xf32, #tpu.memory_space<vmem>>, %arg7: memref<128x128xf32, #tpu.memory_space<vmem>>, %arg8: memref<1x128xf32, #tpu.memory_space<vmem>>, %arg9: memref<128x1xf32, #tpu.memory_space<vmem>>, %arg10: memref<1x1xf32, #tpu.memory_space<vmem>>, %arg11: memref<8x768xf32, #tpu.memory_space<vmem>>, %arg12: memref<768x1024xf32, #tpu.memory_space<vmem>>, %arg13: memref<1x1024xf32, #tpu.memory_space<vmem>>, %arg14: memref<1024x512xf32, #tpu.memory_space<vmem>>, %arg15: memref<1x512xf32, #tpu.memory_space<vmem>>, %arg16: memref<128x256xf32, #tpu.memory_space<vmem>>, %arg17: memref<128x256xf32, #tpu.memory_space<vmem>>, %arg18: memref<512x256xf32, #tpu.memory_space<vmem>>, %arg19: memref<128x256xf32, #tpu.memory_space<vmem>>, %arg20: memref<128x256xf32, #tpu.memory_space<vmem>>, %arg21: memref<1x256xf32, #tpu.memory_space<vmem>>, %arg22: memref<1x256xf32, #tpu.memory_space<vmem>>, %arg23: memref<1x256xf32, #tpu.memory_space<vmem>>, %arg24: memref<1x256xf32, #tpu.memory_space<vmem>>, %arg25: memref<1x256xf32, #tpu.memory_space<vmem>>, %arg26: memref<256x2xf32, #tpu.memory_space<vmem>>, %arg27: memref<1x2xf32, #tpu.memory_space<vmem>>, %arg28: memref<8x2xf32, #tpu.memory_space<vmem>>, %arg29: memref<16x128xf32, #tpu.memory_space<vmem>>, %arg30: memref<16x1xf32, #tpu.memory_space<vmem>>) attributes {dimension_semantics = [#tpu.dimension_semantics<arbitrary>], iteration_bounds = array<i64: 5>, scalar_prefetch = 0 : i64, scratch_operands = 2 : i64, tpu.core_type = #tpu.core_type<tc>, window_params = [{transform_indices = @transform_0, window_bounds = array<i64: 16, 2048>}, {transform_indices = @transform_1, window_bounds = array<i64: 2048, 128>}, {pipeline_mode = #tpu.pipeline_mode<synchronous>, transform_indices = @transform_2, window_bounds = array<i64: 1, 128>}, {pipeline_mode = #tpu.pipeline_mode<synchronous>, transform_indices = @transform_3, window_bounds = array<i64: 16, 128>}, {pipeline_mode = #tpu.pipeline_mode<synchronous>, transform_indices = @transform_4, window_bounds = array<i64: 16, 128>}, {pipeline_mode = #tpu.pipeline_mode<synchronous>, transform_indices = @transform_5, window_bounds = array<i64: 128, 128>}, {pipeline_mode = #tpu.pipeline_mode<synchronous>, transform_indices = @transform_6, window_bounds = array<i64: 128, 128>}, {pipeline_mode = #tpu.pipeline_mode<synchronous>, transform_indices = @transform_7, window_bounds = array<i64: 1, 128>}, {pipeline_mode = #tpu.pipeline_mode<synchronous>, transform_indices = @transform_8, window_bounds = array<i64: 128, 1>}, {pipeline_mode = #tpu.pipeline_mode<synchronous>, transform_indices = @transform_9, window_bounds = array<i64: 1, 1>}, {pipeline_mode = #tpu.pipeline_mode<synchronous>, transform_indices = @transform_10, window_bounds = array<i64: 8, 768>}, {pipeline_mode = #tpu.pipeline_mode<synchronous>, transform_indices = @transform_11, window_bounds = array<i64: 768, 1024>}, {pipeline_mode = #tpu.pipeline_mode<synchronous>, transform_indices = @transform_12, window_bounds = array<i64: 1, 1024>}, {pipeline_mode = #tpu.pipeline_mode<synchronous>, transform_indices = @transform_13, window_bounds = array<i64: 1024, 512>}, {pipeline_mode = #tpu.pipeline_mode<synchronous>, transform_indices = @transform_14, window_bounds = array<i64: 1, 512>}, {pipeline_mode = #tpu.pipeline_mode<synchronous>, transform_indices = @transform_15, window_bounds = array<i64: 128, 256>}, {pipeline_mode = #tpu.pipeline_mode<synchronous>, transform_indices = @transform_16, window_bounds = array<i64: 128, 256>}, {pipeline_mode = #tpu.pipeline_mode<synchronous>, transform_indices = @transform_17, window_bounds = array<i64: 512, 256>}, {pipeline_mode = #tpu.pipeline_mode<synchronous>, transform_indices = @transform_18, window_bounds = array<i64: 128, 256>}, {pipeline_mode = #tpu.pipeline_mode<synchronous>, transform_indices = @transform_19, window_bounds = array<i64: 128, 256>}, {pipeline_mode = #tpu.pipeline_mode<synchronous>, transform_indices = @transform_20, window_bounds = array<i64: 1, 256>}, {pipeline_mode = #tpu.pipeline_mode<synchronous>, transform_indices = @transform_21, window_bounds = array<i64: 1, 256>}, {pipeline_mode = #tpu.pipeline_mode<synchronous>, transform_indices = @transform_22, window_bounds = array<i64: 1, 256>}, {pipeline_mode = #tpu.pipeline_mode<synchronous>, transform_indices = @transform_23, window_bounds = array<i64: 1, 256>}, {pipeline_mode = #tpu.pipeline_mode<synchronous>, transform_indices = @transform_24, window_bounds = array<i64: 1, 256>}, {pipeline_mode = #tpu.pipeline_mode<synchronous>, transform_indices = @transform_25, window_bounds = array<i64: 256, 2>}, {pipeline_mode = #tpu.pipeline_mode<synchronous>, transform_indices = @transform_26, window_bounds = array<i64: 1, 2>}, {pipeline_mode = #tpu.pipeline_mode<synchronous>, transform_indices = @transform_27, window_bounds = array<i64: 8, 2>}]} {
    %c0_i32 = arith.constant 0 : i32
    %0 = arith.cmpi eq, %arg0, %c0_i32 : i32
    %1 = arith.extui %0 : i1 to i32
    %c0_i32_0 = arith.constant 0 : i32
    %2 = arith.cmpi ne, %1, %c0_i32_0 : i32
    scf.if %2 {
      %cst_14 = arith.constant 0.000000e+00 : f32
      %18 = vector.broadcast %cst_14 : f32 to vector<16x128xf32>
      %c0_15 = arith.constant 0 : index
      %c0_16 = arith.constant 0 : index
      %19 = vector.load %arg29[%c0_15, %c0_16] : memref<16x128xf32, #tpu.memory_space<vmem>>, vector<16x128xf32>
      tpu.vector_store %arg29[%c0_15, %c0_16], %18 {strides = array<i32>} : memref<16x128xf32, #tpu.memory_space<vmem>>, vector<16x128xf32>,
      %cst_17 = arith.constant 0.000000e+00 : f32
      %20 = vector.broadcast %cst_17 : f32 to vector<16x1xf32>
      %c0_18 = arith.constant 0 : index
      %c0_19 = arith.constant 0 : index
      %21 = vector.load %arg30[%c0_18, %c0_19] : memref<16x1xf32, #tpu.memory_space<vmem>>, vector<16x1xf32>
      tpu.vector_store %arg30[%c0_18, %c0_19], %20 {strides = array<i32>} : memref<16x1xf32, #tpu.memory_space<vmem>>, vector<16x1xf32>,
    } else {
    }
    %c0 = arith.constant 0 : index
    %c0_1 = arith.constant 0 : index
    %3 = vector.load %arg1[%c0, %c0_1] : memref<16x2048xf32, #tpu.memory_space<vmem>>, vector<16x2048xf32>
    %c0_2 = arith.constant 0 : index
    %c0_3 = arith.constant 0 : index
    %4 = vector.load %arg29[%c0_2, %c0_3] : memref<16x128xf32, #tpu.memory_space<vmem>>, vector<16x128xf32>
    %c0_4 = arith.constant 0 : index
    %c0_5 = arith.constant 0 : index
    %5 = vector.load %arg2[%c0_4, %c0_5] : memref<2048x128xf32, #tpu.memory_space<vmem>>, vector<2048x128xf32>
    %cst = arith.constant dense<0.000000e+00> : vector<16x128xf32>
    %6 = tpu.matmul %3, %5, %cst {dimension_numbers = #tpu.dot_dimension_numbers<[1], [0], [0], [1], [0, 0, 1, 1], [], []>} : vector<16x2048xf32>, vector<2048x128xf32>, vector<16x128xf32> -> vector<16x128xf32>
    %7 = arith.addf %4, %6 : vector<16x128xf32>
    %c0_6 = arith.constant 0 : index
    %c0_7 = arith.constant 0 : index
    %8 = vector.load %arg29[%c0_6, %c0_7] : memref<16x128xf32, #tpu.memory_space<vmem>>, vector<16x128xf32>
    tpu.vector_store %arg29[%c0_6, %c0_7], %7 {strides = array<i32>} : memref<16x128xf32, #tpu.memory_space<vmem>>, vector<16x128xf32>,
    %c0_8 = arith.constant 0 : index
    %c0_9 = arith.constant 0 : index
    %9 = vector.load %arg30[%c0_8, %c0_9] : memref<16x1xf32, #tpu.memory_space<vmem>>, vector<16x1xf32>
    %10 = arith.mulf %3, %3 : vector<16x2048xf32>
    %cst_10 = arith.constant dense<0.000000e+00> : vector<16xf32>
    %11 = vector.multi_reduction <add>, %10, %cst_10 [1] : vector<16x2048xf32> to vector<16xf32>
    %12 = vector.shape_cast %11 : vector<16xf32> to vector<16x1xf32>
    %13 = arith.addf %9, %12 : vector<16x1xf32>
    %c0_11 = arith.constant 0 : index
    %c0_12 = arith.constant 0 : index
    %14 = vector.load %arg30[%c0_11, %c0_12] : memref<16x1xf32, #tpu.memory_space<vmem>>, vector<16x1xf32>
    tpu.vector_store %arg30[%c0_11, %c0_12], %13 {strides = array<i32>} : memref<16x1xf32, #tpu.memory_space<vmem>>, vector<16x1xf32>,
    %c4_i32 = arith.constant 4 : i32
    %15 = arith.cmpi eq, %arg0, %c4_i32 : i32
    %16 = arith.extui %15 : i1 to i32
    %c0_i32_13 = arith.constant 0 : i32
    %17 = arith.cmpi ne, %16, %c0_i32_13 : i32
    scf.if %17 {
      %c0_14 = arith.constant 0 : index
      %c0_15 = arith.constant 0 : index
      %18 = vector.load %arg29[%c0_14, %c0_15] : memref<16x128xf32, #tpu.memory_space<vmem>>, vector<16x128xf32>
      %c0_16 = arith.constant 0 : index
      %c0_17 = arith.constant 0 : index
      %19 = vector.load %arg30[%c0_16, %c0_17] : memref<16x1xf32, #tpu.memory_space<vmem>>, vector<16x1xf32>
      %cst_18 = arith.constant 1.000000e-24 : f32
      %20 = vector.broadcast %cst_18 : f32 to vector<16x1xf32>
      %21 = arith.maximumf %19, %20 : vector<16x1xf32>
      %22 = math.rsqrt %21 : vector<16x1xf32>
      %23 = vector.broadcast %22 : vector<16x1xf32> to vector<16x128xf32>
      %24 = arith.mulf %18, %23 : vector<16x128xf32>
      %c0_19 = arith.constant 0 : index
      %c0_20 = arith.constant 0 : index
      %25 = vector.load %arg3[%c0_19, %c0_20] : memref<1x128xf32, #tpu.memory_space<vmem>>, vector<1x128xf32>
      %26 = vector.broadcast %25 : vector<1x128xf32> to vector<16x128xf32>
      %27 = arith.addf %24, %26 : vector<16x128xf32>
      %cst_21 = arith.constant 0.000000e+00 : f32
      %28 = vector.broadcast %cst_21 : f32 to vector<16x128xf32>
      %29 = arith.maximumf %27, %28 : vector<16x128xf32>
      %30 = vector.extract_strided_slice %29 {offsets = [0, 0], sizes = [8, 128], strides = [1, 1]} : vector<16x128xf32> to vector<8x128xf32>
      %31 = vector.extract_strided_slice %29 {offsets = [8, 0], sizes = [8, 128], strides = [1, 1]} : vector<16x128xf32> to vector<8x128xf32>
      %c0_22 = arith.constant 0 : index
      %c0_23 = arith.constant 0 : index
      %32 = vector.load %arg4[%c0_22, %c0_23] : memref<16x128xf32, #tpu.memory_space<vmem>>, vector<16x128xf32>
      %c0_24 = arith.constant 0 : index
      %c0_25 = arith.constant 0 : index
      %33 = vector.load %arg5[%c0_24, %c0_25] : memref<16x128xf32, #tpu.memory_space<vmem>>, vector<16x128xf32>
      %c0_26 = arith.constant 0 : index
      %c0_27 = arith.constant 0 : index
      %34 = vector.load %arg6[%c0_26, %c0_27] : memref<128x128xf32, #tpu.memory_space<vmem>>, vector<128x128xf32>
      %cst_28 = arith.constant dense<0.000000e+00> : vector<16x128xf32>
      %35 = tpu.matmul %32, %34, %cst_28 {dimension_numbers = #tpu.dot_dimension_numbers<[1], [0], [0], [1], [0, 0, 1, 1], [], []>} : vector<16x128xf32>, vector<128x128xf32>, vector<16x128xf32> -> vector<16x128xf32>
      %c0_29 = arith.constant 0 : index
      %c0_30 = arith.constant 0 : index
      %36 = vector.load %arg7[%c0_29, %c0_30] : memref<128x128xf32, #tpu.memory_space<vmem>>, vector<128x128xf32>
      %cst_31 = arith.constant dense<0.000000e+00> : vector<16x128xf32>
      %37 = tpu.matmul %33, %36, %cst_31 {dimension_numbers = #tpu.dot_dimension_numbers<[1], [0], [0], [1], [0, 0, 1, 1], [], []>} : vector<16x128xf32>, vector<128x128xf32>, vector<16x128xf32> -> vector<16x128xf32>
      %38 = arith.addf %35, %37 : vector<16x128xf32>
      %c0_32 = arith.constant 0 : index
      %c0_33 = arith.constant 0 : index
      %39 = vector.load %arg8[%c0_32, %c0_33] : memref<1x128xf32, #tpu.memory_space<vmem>>, vector<1x128xf32>
      %40 = vector.broadcast %39 : vector<1x128xf32> to vector<16x128xf32>
      %41 = arith.addf %38, %40 : vector<16x128xf32>
      %42 = math.tanh %41 : vector<16x128xf32>
      %c0_34 = arith.constant 0 : index
      %c0_35 = arith.constant 0 : index
      %43 = vector.load %arg9[%c0_34, %c0_35] : memref<128x1xf32, #tpu.memory_space<vmem>>, vector<128x1xf32>
      %cst_36 = arith.constant dense<0.000000e+00> : vector<16x1xf32>
      %44 = tpu.matmul %42, %43, %cst_36 {dimension_numbers = #tpu.dot_dimension_numbers<[1], [0], [0], [1], [0, 0, 1, 1], [], []>} : vector<16x128xf32>, vector<128x1xf32>, vector<16x1xf32> -> vector<16x1xf32>
      %c0_37 = arith.constant 0 : index
      %c0_38 = arith.constant 0 : index
      %45 = vector.load %arg10[%c0_37, %c0_38] : memref<1x1xf32, #tpu.memory_space<vmem>>, vector<1x1xf32>
      %46 = vector.broadcast %45 : vector<1x1xf32> to vector<16x1xf32>
      %47 = arith.addf %44, %46 : vector<16x1xf32>
      %48 = arith.negf %47 : vector<16x1xf32>
      %49 = math.exp %48 : vector<16x1xf32>
      %cst_39 = arith.constant 1.000000e+00 : f32
      %50 = vector.broadcast %cst_39 : f32 to vector<16x1xf32>
      %51 = arith.addf %50, %49 : vector<16x1xf32>
      %52 = arith.divf %50, %51 : vector<16x1xf32>
      %53 = vector.broadcast %52 : vector<16x1xf32> to vector<16x128xf32>
      %54 = arith.mulf %53, %32 : vector<16x128xf32>
      %cst_40 = arith.constant 1.000000e+00 : f32
      %55 = vector.broadcast %cst_40 : f32 to vector<16x1xf32>
      %56 = arith.subf %55, %52 : vector<16x1xf32>
      %57 = vector.broadcast %56 : vector<16x1xf32> to vector<16x128xf32>
      %58 = arith.mulf %57, %33 : vector<16x128xf32>
      %59 = arith.addf %54, %58 : vector<16x128xf32>
      %60 = vector.extract_strided_slice %59 {offsets = [0, 0], sizes = [8, 128], strides = [1, 1]} : vector<16x128xf32> to vector<8x128xf32>
      %61 = vector.extract_strided_slice %59 {offsets = [8, 0], sizes = [8, 128], strides = [1, 1]} : vector<16x128xf32> to vector<8x128xf32>
      %c0_41 = arith.constant 0 : index
      %c0_42 = arith.constant 0 : index
      %62 = vector.load %arg11[%c0_41, %c0_42] : memref<8x768xf32, #tpu.memory_space<vmem>>, vector<8x768xf32>
      %63 = arith.mulf %62, %62 : vector<8x768xf32>
      %cst_43 = arith.constant dense<0.000000e+00> : vector<8xf32>
      %64 = vector.multi_reduction <add>, %63, %cst_43 [1] : vector<8x768xf32> to vector<8xf32>
      %65 = vector.shape_cast %64 : vector<8xf32> to vector<8x1xf32>
      %cst_44 = arith.constant 1.000000e-24 : f32
      %66 = vector.broadcast %cst_44 : f32 to vector<8x1xf32>
      %67 = arith.maximumf %65, %66 : vector<8x1xf32>
      %68 = math.rsqrt %67 : vector<8x1xf32>
      %69 = vector.broadcast %68 : vector<8x1xf32> to vector<8x768xf32>
      %70 = arith.mulf %62, %69 : vector<8x768xf32>
      %c0_45 = arith.constant 0 : index
      %c0_46 = arith.constant 0 : index
      %71 = vector.load %arg12[%c0_45, %c0_46] : memref<768x1024xf32, #tpu.memory_space<vmem>>, vector<768x1024xf32>
      %cst_47 = arith.constant dense<0.000000e+00> : vector<8x1024xf32>
      %72 = tpu.matmul %70, %71, %cst_47 {dimension_numbers = #tpu.dot_dimension_numbers<[1], [0], [0], [1], [0, 0, 1, 1], [], []>} : vector<8x768xf32>, vector<768x1024xf32>, vector<8x1024xf32> -> vector<8x1024xf32>
      %c0_48 = arith.constant 0 : index
      %c0_49 = arith.constant 0 : index
      %73 = vector.load %arg13[%c0_48, %c0_49] : memref<1x1024xf32, #tpu.memory_space<vmem>>, vector<1x1024xf32>
      %74 = vector.broadcast %73 : vector<1x1024xf32> to vector<8x1024xf32>
      %75 = arith.addf %72, %74 : vector<8x1024xf32>
      %cst_50 = arith.constant 0.000000e+00 : f32
      %76 = vector.broadcast %cst_50 : f32 to vector<8x1024xf32>
      %77 = arith.maximumf %75, %76 : vector<8x1024xf32>
      %c0_51 = arith.constant 0 : index
      %c0_52 = arith.constant 0 : index
      %78 = vector.load %arg14[%c0_51, %c0_52] : memref<1024x512xf32, #tpu.memory_space<vmem>>, vector<1024x512xf32>
      %cst_53 = arith.constant dense<0.000000e+00> : vector<8x512xf32>
      %79 = tpu.matmul %77, %78, %cst_53 {dimension_numbers = #tpu.dot_dimension_numbers<[1], [0], [0], [1], [0, 0, 1, 1], [], []>} : vector<8x1024xf32>, vector<1024x512xf32>, vector<8x512xf32> -> vector<8x512xf32>
      %c0_54 = arith.constant 0 : index
      %c0_55 = arith.constant 0 : index
      %80 = vector.load %arg15[%c0_54, %c0_55] : memref<1x512xf32, #tpu.memory_space<vmem>>, vector<1x512xf32>
      %81 = vector.broadcast %80 : vector<1x512xf32> to vector<8x512xf32>
      %82 = arith.addf %79, %81 : vector<8x512xf32>
      %cst_56 = arith.constant 0.000000e+00 : f32
      %83 = vector.broadcast %cst_56 : f32 to vector<8x512xf32>
      %84 = arith.maximumf %82, %83 : vector<8x512xf32>
      %85 = arith.mulf %60, %60 : vector<8x128xf32>
      %cst_57 = arith.constant dense<0.000000e+00> : vector<8xf32>
      %86 = vector.multi_reduction <add>, %85, %cst_57 [1] : vector<8x128xf32> to vector<8xf32>
      %87 = vector.shape_cast %86 : vector<8xf32> to vector<8x1xf32>
      %88 = arith.mulf %61, %61 : vector<8x128xf32>
      %cst_58 = arith.constant dense<0.000000e+00> : vector<8xf32>
      %89 = vector.multi_reduction <add>, %88, %cst_58 [1] : vector<8x128xf32> to vector<8xf32>
      %90 = vector.shape_cast %89 : vector<8xf32> to vector<8x1xf32>
      %91 = arith.addf %87, %90 : vector<8x1xf32>
      %92 = arith.mulf %84, %84 : vector<8x512xf32>
      %cst_59 = arith.constant dense<0.000000e+00> : vector<8xf32>
      %93 = vector.multi_reduction <add>, %92, %cst_59 [1] : vector<8x512xf32> to vector<8xf32>
      %94 = vector.shape_cast %93 : vector<8xf32> to vector<8x1xf32>
      %95 = arith.addf %91, %94 : vector<8x1xf32>
      %96 = arith.mulf %30, %30 : vector<8x128xf32>
      %cst_60 = arith.constant dense<0.000000e+00> : vector<8xf32>
      %97 = vector.multi_reduction <add>, %96, %cst_60 [1] : vector<8x128xf32> to vector<8xf32>
      %98 = vector.shape_cast %97 : vector<8xf32> to vector<8x1xf32>
      %99 = arith.addf %95, %98 : vector<8x1xf32>
      %100 = arith.mulf %31, %31 : vector<8x128xf32>
      %cst_61 = arith.constant dense<0.000000e+00> : vector<8xf32>
      %101 = vector.multi_reduction <add>, %100, %cst_61 [1] : vector<8x128xf32> to vector<8xf32>
      %102 = vector.shape_cast %101 : vector<8xf32> to vector<8x1xf32>
      %103 = arith.addf %99, %102 : vector<8x1xf32>
      %c0_62 = arith.constant 0 : index
      %c0_63 = arith.constant 0 : index
      %104 = vector.load %arg16[%c0_62, %c0_63] : memref<128x256xf32, #tpu.memory_space<vmem>>, vector<128x256xf32>
      %cst_64 = arith.constant dense<0.000000e+00> : vector<8x256xf32>
      %105 = tpu.matmul %60, %104, %cst_64 {dimension_numbers = #tpu.dot_dimension_numbers<[1], [0], [0], [1], [0, 0, 1, 1], [], []>} : vector<8x128xf32>, vector<128x256xf32>, vector<8x256xf32> -> vector<8x256xf32>
      %c0_65 = arith.constant 0 : index
      %c0_66 = arith.constant 0 : index
      %106 = vector.load %arg17[%c0_65, %c0_66] : memref<128x256xf32, #tpu.memory_space<vmem>>, vector<128x256xf32>
      %cst_67 = arith.constant dense<0.000000e+00> : vector<8x256xf32>
      %107 = tpu.matmul %61, %106, %cst_67 {dimension_numbers = #tpu.dot_dimension_numbers<[1], [0], [0], [1], [0, 0, 1, 1], [], []>} : vector<8x128xf32>, vector<128x256xf32>, vector<8x256xf32> -> vector<8x256xf32>
      %108 = arith.addf %105, %107 : vector<8x256xf32>
      %c0_68 = arith.constant 0 : index
      %c0_69 = arith.constant 0 : index
      %109 = vector.load %arg18[%c0_68, %c0_69] : memref<512x256xf32, #tpu.memory_space<vmem>>, vector<512x256xf32>
      %cst_70 = arith.constant dense<0.000000e+00> : vector<8x256xf32>
      %110 = tpu.matmul %84, %109, %cst_70 {dimension_numbers = #tpu.dot_dimension_numbers<[1], [0], [0], [1], [0, 0, 1, 1], [], []>} : vector<8x512xf32>, vector<512x256xf32>, vector<8x256xf32> -> vector<8x256xf32>
      %111 = arith.addf %108, %110 : vector<8x256xf32>
      %c0_71 = arith.constant 0 : index
      %c0_72 = arith.constant 0 : index
      %112 = vector.load %arg19[%c0_71, %c0_72] : memref<128x256xf32, #tpu.memory_space<vmem>>, vector<128x256xf32>
      %cst_73 = arith.constant dense<0.000000e+00> : vector<8x256xf32>
      %113 = tpu.matmul %30, %112, %cst_73 {dimension_numbers = #tpu.dot_dimension_numbers<[1], [0], [0], [1], [0, 0, 1, 1], [], []>} : vector<8x128xf32>, vector<128x256xf32>, vector<8x256xf32> -> vector<8x256xf32>
      %114 = arith.addf %111, %113 : vector<8x256xf32>
      %c0_74 = arith.constant 0 : index
      %c0_75 = arith.constant 0 : index
      %115 = vector.load %arg20[%c0_74, %c0_75] : memref<128x256xf32, #tpu.memory_space<vmem>>, vector<128x256xf32>
      %cst_76 = arith.constant dense<0.000000e+00> : vector<8x256xf32>
      %116 = tpu.matmul %31, %115, %cst_76 {dimension_numbers = #tpu.dot_dimension_numbers<[1], [0], [0], [1], [0, 0, 1, 1], [], []>} : vector<8x128xf32>, vector<128x256xf32>, vector<8x256xf32> -> vector<8x256xf32>
      %117 = arith.addf %114, %116 : vector<8x256xf32>
      %cst_77 = arith.constant 1.000000e-24 : f32
      %118 = vector.broadcast %cst_77 : f32 to vector<8x1xf32>
      %119 = arith.maximumf %103, %118 : vector<8x1xf32>
      %120 = math.rsqrt %119 : vector<8x1xf32>
      %121 = vector.broadcast %120 : vector<8x1xf32> to vector<8x256xf32>
      %122 = arith.mulf %117, %121 : vector<8x256xf32>
      %c0_78 = arith.constant 0 : index
      %c0_79 = arith.constant 0 : index
      %123 = vector.load %arg21[%c0_78, %c0_79] : memref<1x256xf32, #tpu.memory_space<vmem>>, vector<1x256xf32>
      %124 = vector.broadcast %123 : vector<1x256xf32> to vector<8x256xf32>
      %125 = arith.addf %122, %124 : vector<8x256xf32>
      %c0_80 = arith.constant 0 : index
      %c0_81 = arith.constant 0 : index
      %126 = vector.load %arg24[%c0_80, %c0_81] : memref<1x256xf32, #tpu.memory_space<vmem>>, vector<1x256xf32>
      %127 = vector.broadcast %126 : vector<1x256xf32> to vector<8x256xf32>
      %128 = arith.subf %125, %127 : vector<8x256xf32>
      %c0_82 = arith.constant 0 : index
      %c0_83 = arith.constant 0 : index
      %129 = vector.load %arg25[%c0_82, %c0_83] : memref<1x256xf32, #tpu.memory_space<vmem>>, vector<1x256xf32>
      %cst_84 = arith.constant 9.99999974E-6 : f32
      %130 = vector.broadcast %cst_84 : f32 to vector<1x256xf32>
      %131 = arith.addf %129, %130 : vector<1x256xf32>
      %132 = math.rsqrt %131 : vector<1x256xf32>
      %133 = vector.broadcast %132 : vector<1x256xf32> to vector<8x256xf32>
      %134 = arith.mulf %128, %133 : vector<8x256xf32>
      %c0_85 = arith.constant 0 : index
      %c0_86 = arith.constant 0 : index
      %135 = vector.load %arg22[%c0_85, %c0_86] : memref<1x256xf32, #tpu.memory_space<vmem>>, vector<1x256xf32>
      %136 = vector.broadcast %135 : vector<1x256xf32> to vector<8x256xf32>
      %137 = arith.mulf %134, %136 : vector<8x256xf32>
      %c0_87 = arith.constant 0 : index
      %c0_88 = arith.constant 0 : index
      %138 = vector.load %arg23[%c0_87, %c0_88] : memref<1x256xf32, #tpu.memory_space<vmem>>, vector<1x256xf32>
      %139 = vector.broadcast %138 : vector<1x256xf32> to vector<8x256xf32>
      %140 = arith.addf %137, %139 : vector<8x256xf32>
      %cst_89 = arith.constant 0.000000e+00 : f32
      %141 = vector.broadcast %cst_89 : f32 to vector<8x256xf32>
      %142 = arith.maximumf %140, %141 : vector<8x256xf32>
      %c0_90 = arith.constant 0 : index
      %c0_91 = arith.constant 0 : index
      %143 = vector.load %arg26[%c0_90, %c0_91] : memref<256x2xf32, #tpu.memory_space<vmem>>, vector<256x2xf32>
      %cst_92 = arith.constant dense<0.000000e+00> : vector<8x2xf32>
      %144 = tpu.matmul %142, %143, %cst_92 {dimension_numbers = #tpu.dot_dimension_numbers<[1], [0], [0], [1], [0, 0, 1, 1], [], []>} : vector<8x256xf32>, vector<256x2xf32>, vector<8x2xf32> -> vector<8x2xf32>
      %c0_93 = arith.constant 0 : index
      %c0_94 = arith.constant 0 : index
      %145 = vector.load %arg27[%c0_93, %c0_94] : memref<1x2xf32, #tpu.memory_space<vmem>>, vector<1x2xf32>
      %146 = vector.broadcast %145 : vector<1x2xf32> to vector<8x2xf32>
      %147 = arith.addf %144, %146 : vector<8x2xf32>
      %cst_95 = arith.constant 0.000000e+00 : f32
      %148 = vector.broadcast %cst_95 : f32 to vector<8x2xf32>
      %149 = arith.maximumf %147, %148 : vector<8x2xf32>
      %c0_96 = arith.constant 0 : index
      %c0_97 = arith.constant 0 : index
      %150 = vector.load %arg28[%c0_96, %c0_97] : memref<8x2xf32, #tpu.memory_space<vmem>>, vector<8x2xf32>
      tpu.vector_store %arg28[%c0_96, %c0_97], %149 {strides = array<i32>} : memref<8x2xf32, #tpu.memory_space<vmem>>, vector<8x2xf32>,
    } else {
    }
    return
  }
  func.func @transform_0(%arg0: i32) -> (i32, i32) {
    %c0_i32 = arith.constant 0 : i32
    %c0_i32_0 = arith.constant 0 : i32
    return %c0_i32, %arg0 : i32, i32
  }
  func.func @transform_1(%arg0: i32) -> (i32, i32) {
    %c0_i32 = arith.constant 0 : i32
    %c0_i32_0 = arith.constant 0 : i32
    return %arg0, %c0_i32 : i32, i32
  }
  func.func @transform_2(%arg0: i32) -> (i32, i32) {
    %c0_i32 = arith.constant 0 : i32
    %c0_i32_0 = arith.constant 0 : i32
    %c0_i32_1 = arith.constant 0 : i32
    return %c0_i32, %c0_i32_0 : i32, i32
  }
  func.func @transform_3(%arg0: i32) -> (i32, i32) {
    %c0_i32 = arith.constant 0 : i32
    %c0_i32_0 = arith.constant 0 : i32
    %c0_i32_1 = arith.constant 0 : i32
    return %c0_i32, %c0_i32_0 : i32, i32
  }
  func.func @transform_4(%arg0: i32) -> (i32, i32) {
    %c0_i32 = arith.constant 0 : i32
    %c0_i32_0 = arith.constant 0 : i32
    %c0_i32_1 = arith.constant 0 : i32
    return %c0_i32, %c0_i32_0 : i32, i32
  }
  func.func @transform_5(%arg0: i32) -> (i32, i32) {
    %c0_i32 = arith.constant 0 : i32
    %c0_i32_0 = arith.constant 0 : i32
    %c0_i32_1 = arith.constant 0 : i32
    return %c0_i32, %c0_i32_0 : i32, i32
  }
  func.func @transform_6(%arg0: i32) -> (i32, i32) {
    %c0_i32 = arith.constant 0 : i32
    %c0_i32_0 = arith.constant 0 : i32
    %c0_i32_1 = arith.constant 0 : i32
    return %c0_i32, %c0_i32_0 : i32, i32
  }
  func.func @transform_7(%arg0: i32) -> (i32, i32) {
    %c0_i32 = arith.constant 0 : i32
    %c0_i32_0 = arith.constant 0 : i32
    %c0_i32_1 = arith.constant 0 : i32
    return %c0_i32, %c0_i32_0 : i32, i32
  }
  func.func @transform_8(%arg0: i32) -> (i32, i32) {
    %c0_i32 = arith.constant 0 : i32
    %c0_i32_0 = arith.constant 0 : i32
    %c0_i32_1 = arith.constant 0 : i32
    return %c0_i32, %c0_i32_0 : i32, i32
  }
  func.func @transform_9(%arg0: i32) -> (i32, i32) {
    %c0_i32 = arith.constant 0 : i32
    %c0_i32_0 = arith.constant 0 : i32
    %c0_i32_1 = arith.constant 0 : i32
    return %c0_i32, %c0_i32_0 : i32, i32
  }
  func.func @transform_10(%arg0: i32) -> (i32, i32) {
    %c0_i32 = arith.constant 0 : i32
    %c0_i32_0 = arith.constant 0 : i32
    %c0_i32_1 = arith.constant 0 : i32
    return %c0_i32, %c0_i32_0 : i32, i32
  }
  func.func @transform_11(%arg0: i32) -> (i32, i32) {
    %c0_i32 = arith.constant 0 : i32
    %c0_i32_0 = arith.constant 0 : i32
    %c0_i32_1 = arith.constant 0 : i32
    return %c0_i32, %c0_i32_0 : i32, i32
  }
  func.func @transform_12(%arg0: i32) -> (i32, i32) {
    %c0_i32 = arith.constant 0 : i32
    %c0_i32_0 = arith.constant 0 : i32
    %c0_i32_1 = arith.constant 0 : i32
    return %c0_i32, %c0_i32_0 : i32, i32
  }
  func.func @transform_13(%arg0: i32) -> (i32, i32) {
    %c0_i32 = arith.constant 0 : i32
    %c0_i32_0 = arith.constant 0 : i32
    %c0_i32_1 = arith.constant 0 : i32
    return %c0_i32, %c0_i32_0 : i32, i32
  }
  func.func @transform_14(%arg0: i32) -> (i32, i32) {
    %c0_i32 = arith.constant 0 : i32
    %c0_i32_0 = arith.constant 0 : i32
    %c0_i32_1 = arith.constant 0 : i32
    return %c0_i32, %c0_i32_0 : i32, i32
  }
  func.func @transform_15(%arg0: i32) -> (i32, i32) {
    %c0_i32 = arith.constant 0 : i32
    %c0_i32_0 = arith.constant 0 : i32
    %c0_i32_1 = arith.constant 0 : i32
    return %c0_i32, %c0_i32_0 : i32, i32
  }
  func.func @transform_16(%arg0: i32) -> (i32, i32) {
    %c0_i32 = arith.constant 0 : i32
    %c0_i32_0 = arith.constant 0 : i32
    %c0_i32_1 = arith.constant 0 : i32
    return %c0_i32, %c0_i32_0 : i32, i32
  }
  func.func @transform_17(%arg0: i32) -> (i32, i32) {
    %c0_i32 = arith.constant 0 : i32
    %c0_i32_0 = arith.constant 0 : i32
    %c0_i32_1 = arith.constant 0 : i32
    return %c0_i32, %c0_i32_0 : i32, i32
  }
  func.func @transform_18(%arg0: i32) -> (i32, i32) {
    %c0_i32 = arith.constant 0 : i32
    %c0_i32_0 = arith.constant 0 : i32
    %c0_i32_1 = arith.constant 0 : i32
    return %c0_i32, %c0_i32_0 : i32, i32
  }
  func.func @transform_19(%arg0: i32) -> (i32, i32) {
    %c0_i32 = arith.constant 0 : i32
    %c0_i32_0 = arith.constant 0 : i32
    %c0_i32_1 = arith.constant 0 : i32
    return %c0_i32, %c0_i32_0 : i32, i32
  }
  func.func @transform_20(%arg0: i32) -> (i32, i32) {
    %c0_i32 = arith.constant 0 : i32
    %c0_i32_0 = arith.constant 0 : i32
    %c0_i32_1 = arith.constant 0 : i32
    return %c0_i32, %c0_i32_0 : i32, i32
  }
  func.func @transform_21(%arg0: i32) -> (i32, i32) {
    %c0_i32 = arith.constant 0 : i32
    %c0_i32_0 = arith.constant 0 : i32
    %c0_i32_1 = arith.constant 0 : i32
    return %c0_i32, %c0_i32_0 : i32, i32
  }
  func.func @transform_22(%arg0: i32) -> (i32, i32) {
    %c0_i32 = arith.constant 0 : i32
    %c0_i32_0 = arith.constant 0 : i32
    %c0_i32_1 = arith.constant 0 : i32
    return %c0_i32, %c0_i32_0 : i32, i32
  }
  func.func @transform_23(%arg0: i32) -> (i32, i32) {
    %c0_i32 = arith.constant 0 : i32
    %c0_i32_0 = arith.constant 0 : i32
    %c0_i32_1 = arith.constant 0 : i32
    return %c0_i32, %c0_i32_0 : i32, i32
  }
  func.func @transform_24(%arg0: i32) -> (i32, i32) {
    %c0_i32 = arith.constant 0 : i32
    %c0_i32_0 = arith.constant 0 : i32
    %c0_i32_1 = arith.constant 0 : i32
    return %c0_i32, %c0_i32_0 : i32, i32
  }
  func.func @transform_25(%arg0: i32) -> (i32, i32) {
    %c0_i32 = arith.constant 0 : i32
    %c0_i32_0 = arith.constant 0 : i32
    %c0_i32_1 = arith.constant 0 : i32
    return %c0_i32, %c0_i32_0 : i32, i32
  }
  func.func @transform_26(%arg0: i32) -> (i32, i32) {
    %c0_i32 = arith.constant 0 : i32
    %c0_i32_0 = arith.constant 0 : i32
    %c0_i32_1 = arith.constant 0 : i32
    return %c0_i32, %c0_i32_0 : i32, i32
  }
  func.func @transform_27(%arg0: i32) -> (i32, i32) {
    %c0_i32 = arith.constant 0 : i32
    %c0_i32_0 = arith.constant 0 : i32
    %c0_i32_1 = arith.constant 0 : i32
    return %c0_i32, %c0_i32_0 : i32, i32
  }
}

</mosaic_0001>

<llo_original>
// kernel: tpu_custom_call.1
$region0: #{tpu_custom_call.1}
  #allocation0 [shape = 'u32[]', space=smem, size = 0x4, offset = 0x4, fixed_abs, tag = 'smem constant byte address 0x4 - core index']
  #allocation1 [shape = 'u32[144,128]{1,0:T(1,128)}', space=vmem, size = 0x12000, scoped, tag = 'internal scratch']
  #allocation2 [shape = 'f32[16,128]{1,0:T(8,128)}', space=vmem, size = 0x2000, scoped, tag = 'scratch operand']
  #allocation3 [shape = 'f32[16,1]{1,0:T(8,128)}', space=vmem, size = 0x2000, scoped, tag = 'scratch operand']
  #allocation4 [shape = 'f32[1,1]{1,0:T(1,128)S(1)}', space=vmem, size = 0x200, scoped, tag = 'scoped memory for tpu_custom_call.1']
  %s0 = inlined_call_operand.hbm [shape: f32[16,10240], index: 0, kind: input, shape index: {}]
  %s1 = inlined_call_operand.hbm [shape: f32[10240,128], index: 1, kind: input, shape index: {}]
  %s2 = inlined_call_operand.hbm [shape: f32[1,128], index: 2, kind: input, shape index: {}]
  %s3 = inlined_call_operand.hbm [shape: f32[16,128], index: 3, kind: input, shape index: {}]
  %s4 = inlined_call_operand.hbm [shape: f32[16,128], index: 4, kind: input, shape index: {}]
  %s5 = inlined_call_operand.hbm [shape: f32[128,128], index: 5, kind: input, shape index: {}]
  %s6 = inlined_call_operand.hbm [shape: f32[128,128], index: 6, kind: input, shape index: {}]
  %s7 = inlined_call_operand.hbm [shape: f32[1,128], index: 7, kind: input, shape index: {}]
  %s8 = inlined_call_operand.vmem [shape: f32[128,1], index: 8, kind: input, shape index: {}]
  %s9 = inlined_call_operand.<no memory space> [shape: f32[1,1], index: 9, kind: input, shape index: {}]
  %s10 = inlined_call_operand.hbm [shape: f32[8,768], index: 10, kind: input, shape index: {}]
  %s11 = inlined_call_operand.hbm [shape: f32[768,1024], index: 11, kind: input, shape index: {}]
  %s12 = inlined_call_operand.hbm [shape: f32[1,1024], index: 12, kind: input, shape index: {}]
  %s13 = inlined_call_operand.hbm [shape: f32[1024,512], index: 13, kind: input, shape index: {}]
  %s14 = inlined_call_operand.hbm [shape: f32[1,512], index: 14, kind: input, shape index: {}]
  %s15 = inlined_call_operand.hbm [shape: f32[128,256], index: 15, kind: input, shape index: {}]
  %s16 = inlined_call_operand.hbm [shape: f32[128,256], index: 16, kind: input, shape index: {}]
  %s17 = inlined_call_operand.hbm [shape: f32[512,256], index: 17, kind: input, shape index: {}]
  %s18 = inlined_call_operand.hbm [shape: f32[128,256], index: 18, kind: input, shape index: {}]
  %s19 = inlined_call_operand.hbm [shape: f32[128,256], index: 19, kind: input, shape index: {}]
  %s20 = inlined_call_operand.hbm [shape: f32[1,256], index: 20, kind: input, shape index: {}]
  %s21 = inlined_call_operand.hbm [shape: f32[1,256], index: 21, kind: input, shape index: {}]
  %s22 = inlined_call_operand.hbm [shape: f32[1,256], index: 22, kind: input, shape index: {}]
  %s23 = inlined_call_operand.hbm [shape: f32[1,256], index: 23, kind: input, shape index: {}]
  %s24 = inlined_call_operand.hbm [shape: f32[1,256], index: 24, kind: input, shape index: {}]
  %s25 = inlined_call_operand.vmem [shape: f32[256,2], index: 25, kind: input, shape index: {}]
  %s26 = inlined_call_operand.hbm [shape: f32[1,2], index: 26, kind: input, shape index: {}]
  %s27 = inlined_call_operand.vmem [shape: f32[8,2], index: 27, kind: output, shape index: {}]
  %s28 = sld [smem:[#allocation0]]
  $region245: #{tpu_custom_call.1} parent=0
    _
  %s30 = ssub.s32 1, %s28
  %s31 = scalar_select 0, %s30, %s28
  %v32 = vstv %s9
  %33 = vst [vmem:[#allocation4] sm:$0x1] %v32
  $region1: #{tpu_custom_call.1} parent=0
    #allocation5 [shape = 'u8[262144]{0}', space=vmem, size = 0x40000, scoped, tag = 'input window, operand 0']
    #allocation6 [shape = 's32[2]{0}', space=sflag, size = 0x8, scoped, tag = 'scoped memory for tpu_custom_call.1']
    #allocation7 [shape = 'u8[2097152]{0}', space=vmem, size = 0x200000, scoped, tag = 'input window, operand 1']
    #allocation8 [shape = 's32[2]{0}', space=sflag, size = 0x8, scoped, tag = 'scoped memory for tpu_custom_call.1']
    #allocation9 [shape = 'u8[512]{0}', space=vmem, size = 0x400, scoped, tag = 'input window, operand 2, single buffered']
    #allocation10 [shape = 'u8[8192]{0}', space=vmem, size = 0x2000, scoped, tag = 'input window, operand 3, single buffered']
    #allocation11 [shape = 's32[1]{0}', space=sflag, size = 0x4, scoped, tag = 'scoped memory for tpu_custom_call.1']
    #allocation12 [shape = 'u8[8192]{0}', space=vmem, size = 0x2000, scoped, tag = 'input window, operand 4, single buffered']
    #allocation13 [shape = 'u8[65536]{0}', space=vmem, size = 0x10000, scoped, tag = 'input window, operand 5, single buffered']
    #allocation14 [shape = 's32[1]{0}', space=sflag, size = 0x4, scoped, tag = 'scoped memory for tpu_custom_call.1']
    #allocation15 [shape = 'u8[65536]{0}', space=vmem, size = 0x10000, scoped, tag = 'input window, operand 6, single buffered']
    #allocation16 [shape = 'u8[512]{0}', space=vmem, size = 0x400, scoped, tag = 'input window, operand 7, single buffered']
    #allocation17 [shape = 's32[1]{0}', space=sflag, size = 0x4, scoped, tag = 'scoped memory for tpu_custom_call.1']
    #allocation18 [shape = 'u8[24576]{0}', space=vmem, size = 0x6000, scoped, tag = 'input window, operand 10, single buffered']
    #allocation19 [shape = 'u8[3145728]{0}', space=vmem, size = 0x300000, scoped, tag = 'input window, operand 11, single buffered']
    #allocation20 [shape = 's32[1]{0}', space=sflag, size = 0x4, scoped, tag = 'scoped memory for tpu_custom_call.1']
    #allocation21 [shape = 'u8[4096]{0}', space=vmem, size = 0x1000, scoped, tag = 'input window, operand 12, single buffered']
    #allocation22 [shape = 'u8[2097152]{0}', space=vmem, size = 0x200000, scoped, tag = 'input window, operand 13, single buffered']
    #allocation23 [shape = 's32[1]{0}', space=sflag, size = 0x4, scoped, tag = 'scoped memory for tpu_custom_call.1']
    #allocation24 [shape = 'u8[2048]{0}', space=vmem, size = 0x800, scoped, tag = 'input window, operand 14, single buffered']
    #allocation25 [shape = 'u8[131072]{0}', space=vmem, size = 0x20000, scoped, tag = 'input window, operand 15, single buffered']
    #allocation26 [shape = 's32[1]{0}', space=sflag, size = 0x4, scoped, tag = 'scoped memory for tpu_custom_call.1']
    #allocation27 [shape = 'u8[131072]{0}', space=vmem, size = 0x20000, scoped, tag = 'input window, operand 16, single buffered']
    #allocation28 [shape = 'u8[524288]{0}', space=vmem, size = 0x80000, scoped, tag = 'input window, operand 17, single buffered']
    #allocation29 [shape = 's32[1]{0}', space=sflag, size = 0x4, scoped, tag = 'scoped memory for tpu_custom_call.1']
    #allocation30 [shape = 'u8[131072]{0}', space=vmem, size = 0x20000, scoped, tag = 'input window, operand 18, single buffered']
    #allocation31 [shape = 'u8[131072]{0}', space=vmem, size = 0x20000, scoped, tag = 'input window, operand 19, single buffered']
    #allocation32 [shape = 's32[1]{0}', space=sflag, size = 0x4, scoped, tag = 'scoped memory for tpu_custom_call.1']
    #allocation33 [shape = 'u8[1024]{0}', space=vmem, size = 0x400, scoped, tag = 'input window, operand 20, single buffered']
    #allocation34 [shape = 'u8[1024]{0}', space=vmem, size = 0x400, scoped, tag = 'input window, operand 21, single buffered']
    #allocation35 [shape = 's32[1]{0}', space=sflag, size = 0x4, scoped, tag = 'scoped memory for tpu_custom_call.1']
    #allocation36 [shape = 'u8[1024]{0}', space=vmem, size = 0x400, scoped, tag = 'input window, operand 22, single buffered']
    #allocation37 [shape = 'u8[1024]{0}', space=vmem, size = 0x400, scoped, tag = 'input window, operand 23, single buffered']
    #allocation38 [shape = 's32[1]{0}', space=sflag, size = 0x4, scoped, tag = 'scoped memory for tpu_custom_call.1']
    #allocation39 [shape = 'u8[1024]{0}', space=vmem, size = 0x400, scoped, tag = 'input window, operand 24, single buffered']
    #allocation40 [shape = 'u8[512]{0}', space=vmem, size = 0x400, scoped, tag = 'input window, operand 26, single buffered']
    #allocation41 [shape = 's32[1]{0}', space=sflag, size = 0x4, scoped, tag = 'scoped memory for tpu_custom_call.1']
    %34 = vsyncpa [#allocation6], 0
    %s35 = scalar_lea.sflag [#allocation6], 1
    %36 = vsyncpa %s35, 0
    %37 = vsyncpa [#allocation8], 0
    %s38 = scalar_lea.sflag [#allocation8], 1
    %39 = vsyncpa %s38, 0
    %40 = vsyncpa [#allocation11], 0
    %41 = vsyncpa [#allocation14], 0
    %42 = vsyncpa [#allocation17], 0
    %43 = vsyncpa [#allocation20], 0
    %44 = vsyncpa [#allocation23], 0
    %45 = vsyncpa [#allocation26], 0
    %46 = vsyncpa [#allocation29], 0
    %47 = vsyncpa [#allocation32], 0
    %48 = vsyncpa [#allocation35], 0
    %49 = vsyncpa [#allocation38], 0
    %50 = vsyncpa [#allocation41], 0
    loop: start=0, step=1, limit=7
    $region2: #{tpu_custom_call.1} parent=1 // loop_pre_header
      _
    $region3: #{tpu_custom_call.1} parent=1 // loop_header
      %s52 = sphi 0, %s56
      %p53 = scmp.ge.s32.totalorder %s52, 7
      %s62 = sphi 0, %s64
      %s65 = sphi 0, %s62
      %s66 = sphi 0, %s65
      %s82 = sphi 0, %s66
      %s88 = sphi 0, %s90
      %s91 = sphi 0, %s88
      %s92 = sphi 0, %s91
      %s108 = sphi 0, %s92
      %s112 = sphi 0, %s112
      %s114 = sphi 0, %s112
      %s115 = sphi 0, %s114
      %s129 = sphi 0, %s115
      %s133 = sphi 0, %s133
      %s135 = sphi 0, %s133
      %s136 = sphi 0, %s135
      %s150 = sphi 0, %s136
      %s154 = sphi 0, %s154
      %s156 = sphi 0, %s154
      %s157 = sphi 0, %s156
      %s171 = sphi 0, %s157
      %s175 = sphi 0, %s175
      %s177 = sphi 0, %s175
      %s178 = sphi 0, %s177
      %s192 = sphi 0, %s178
      %s196 = sphi 0, %s196
      %s198 = sphi 0, %s196
      %s199 = sphi 0, %s198
      %s213 = sphi 0, %s199
      %s217 = sphi 0, %s217
      %s219 = sphi 0, %s217
      %s220 = sphi 0, %s219
      %s234 = sphi 0, %s220
      %s238 = sphi 0, %s238
      %s240 = sphi 0, %s238
      %s241 = sphi 0, %s240
      %s255 = sphi 0, %s241
      %s259 = sphi 0, %s259
      %s261 = sphi 0, %s259
      %s262 = sphi 0, %s261
      %s276 = sphi 0, %s262
      %s280 = sphi 0, %s280
      %s282 = sphi 0, %s280
      %s283 = sphi 0, %s282
      %s297 = sphi 0, %s283
      %s301 = sphi 0, %s301
      %s303 = sphi 0, %s301
      %s304 = sphi 0, %s303
      %s318 = sphi 0, %s304
      %s322 = sphi 0, %s322
      %s324 = sphi 0, %s322
      %s325 = sphi 0, %s324
      %s339 = sphi 0, %s325
      %s343 = sphi 0, %s343
      %s345 = sphi 0, %s343
      %s346 = sphi 0, %s345
      %s360 = sphi 0, %s346
      %s364 = sphi 0, %s364
      %s366 = sphi 0, %s364
      %s367 = sphi 0, %s366
      %s381 = sphi 0, %s367
      %s385 = sphi 0, %s385
      %s387 = sphi 0, %s385
      %s388 = sphi 0, %s387
      %s402 = sphi 0, %s388
      %s406 = sphi 0, %s406
      %s408 = sphi 0, %s406
      %s409 = sphi 0, %s408
      %s423 = sphi 0, %s409
      %s427 = sphi 0, %s427
      %s429 = sphi 0, %s427
      %s430 = sphi 0, %s429
      %s444 = sphi 0, %s430
      %s448 = sphi 0, %s448
      %s450 = sphi 0, %s448
      %s451 = sphi 0, %s450
      %s465 = sphi 0, %s451
      %s469 = sphi 0, %s469
      %s471 = sphi 0, %s469
      %s472 = sphi 0, %s471
      %s486 = sphi 0, %s472
      %s490 = sphi 0, %s490
      %s492 = sphi 0, %s490
      %s493 = sphi 0, %s492
      %s507 = sphi 0, %s493
      %s511 = sphi 0, %s511
      %s513 = sphi 0, %s511
      %s514 = sphi 0, %s513
      %s528 = sphi 0, %s514
      %s532 = sphi 0, %s532
      %s534 = sphi 0, %s532
      %s535 = sphi 0, %s534
      %s549 = sphi 0, %s535
      %s553 = sphi 0, %s553
      %s555 = sphi 0, %s553
      %s556 = sphi 0, %s555
      %s570 = sphi 0, %s556
      %s574 = sphi 0, %s574
      %s576 = sphi 0, %s574
      %s577 = sphi 0, %s576
      %s591 = sphi 0, %s577
      %s595 = sphi 0, %s595
      %s597 = sphi 0, %s595
      %s598 = sphi 0, %s597
      %s612 = sphi 0, %s598
      %s616 = sphi 0, %s616
      %s618 = sphi 0, %s616
      %s619 = sphi 0, %s618
      %s633 = sphi 0, %s619
      %s637 = sphi 0, %s637
      %s639 = sphi 0, %s637
      %s640 = sphi 0, %s639
      %s654 = sphi 0, %s640
    $region4: #{tpu_custom_call.1} parent=1 // loop_header_branch
      %55 = sbr.rel (%p53) target = $region8
    $region5: #{tpu_custom_call.1} parent=1 // loop_body
      %s57 = ssub.s32 %s52, 1
      %s58 = ssub.s32 %s52, 2
      %s59 = sadd.s32 %s52, 1
      %s60 = ssub.s32 %s52, %s59
      %p61 = scmp.eq.s32.totalorder %s60, 0
      %s63 = sadd.s32 %s62, 1
      %s64 = scalar_select %p61, %s62, %s63
      %p67 = pneg %p61
      %p68 = scmp.eq.s32.totalorder %s52, 4
      %p69 = por %p67, %p68
      %p70 = scmp.ne.s32.totalorder %s62, %s65
      %p71 = scmp.eq.s32.totalorder %s52, 0
      %p72 = por %p70, %p71
      %p73 = scmp.ne.s32.totalorder %s62, %s65
      %p74 = scmp.eq.s32.totalorder %s57, 4
      %p75 = por %p73, %p74
      %p76 = scmp.ne.s32.totalorder %s65, %s66
      %p77 = scmp.eq.s32.totalorder %s57, 0
      %p78 = por %p76, %p77
      %p79 = scmp.ne.s32.totalorder %s65, %s66
      %p80 = scmp.eq.s32.totalorder %s58, 4
      %p81 = por %p79, %p80
      %p83 = scmp.ne.s32.totalorder %s66, %s82
      %p84 = scmp.eq.s32.totalorder %s58, 0
      %p85 = por %p83, %p84
      %s86 = ssub.s32 %s52, %s59
      %p87 = scmp.eq.s32.totalorder %s86, 0
      %s89 = sadd.s32 %s88, 1
      %s90 = scalar_select %p87, %s88, %s89
      %p93 = pneg %p87
      %p94 = scmp.eq.s32.totalorder %s52, 4
      %p95 = por %p93, %p94
      %p96 = scmp.ne.s32.totalorder %s88, %s91
      %p97 = scmp.eq.s32.totalorder %s52, 0
      %p98 = por %p96, %p97
      %p99 = scmp.ne.s32.totalorder %s88, %s91
      %p100 = scmp.eq.s32.totalorder %s57, 4
      %p101 = por %p99, %p100
      %p102 = scmp.ne.s32.totalorder %s91, %s92
      %p103 = scmp.eq.s32.totalorder %s57, 0
      %p104 = por %p102, %p103
      %p105 = scmp.ne.s32.totalorder %s91, %s92
      %p106 = scmp.eq.s32.totalorder %s58, 4
      %p107 = por %p105, %p106
      %p109 = scmp.ne.s32.totalorder %s92, %s108
      %p110 = scmp.eq.s32.totalorder %s58, 0
      %p111 = por %p109, %p110
      %s113 = sadd.s32 %s112, 1
      %p116 = scmp.eq.s32.totalorder %s52, 4
      %p117 = scmp.ne.s32.totalorder %s112, %s114
      %p118 = scmp.eq.s32.totalorder %s52, 0
      %p119 = por %p117, %p118
      %p120 = scmp.ne.s32.totalorder %s112, %s114
      %p121 = scmp.eq.s32.totalorder %s57, 4
      %p122 = por %p120, %p121
      %p123 = scmp.ne.s32.totalorder %s114, %s115
      %p124 = scmp.eq.s32.totalorder %s57, 0
      %p125 = por %p123, %p124
      %p126 = scmp.ne.s32.totalorder %s114, %s115
      %p127 = scmp.eq.s32.totalorder %s58, 4
      %p128 = por %p126, %p127
      %p130 = scmp.ne.s32.totalorder %s115, %s129
      %p131 = scmp.eq.s32.totalorder %s58, 0
      %p132 = por %p130, %p131
      %s134 = sadd.s32 %s133, 1
      %p137 = scmp.eq.s32.totalorder %s52, 4
      %p138 = scmp.ne.s32.totalorder %s133, %s135
      %p139 = scmp.eq.s32.totalorder %s52, 0
      %p140 = por %p138, %p139
      %p141 = scmp.ne.s32.totalorder %s133, %s135
      %p142 = scmp.eq.s32.totalorder %s57, 4
      %p143 = por %p141, %p142
      %p144 = scmp.ne.s32.totalorder %s135, %s136
      %p145 = scmp.eq.s32.totalorder %s57, 0
      %p146 = por %p144, %p145
      %p147 = scmp.ne.s32.totalorder %s135, %s136
      %p148 = scmp.eq.s32.totalorder %s58, 4
      %p149 = por %p147, %p148
      %p151 = scmp.ne.s32.totalorder %s136, %s150
      %p152 = scmp.eq.s32.totalorder %s58, 0
      %p153 = por %p151, %p152
      %s155 = sadd.s32 %s154, 1
      %p158 = scmp.eq.s32.totalorder %s52, 4
      %p159 = scmp.ne.s32.totalorder %s154, %s156
      %p160 = scmp.eq.s32.totalorder %s52, 0
      %p161 = por %p159, %p160
      %p162 = scmp.ne.s32.totalorder %s154, %s156
      %p163 = scmp.eq.s32.totalorder %s57, 4
      %p164 = por %p162, %p163
      %p165 = scmp.ne.s32.totalorder %s156, %s157
      %p166 = scmp.eq.s32.totalorder %s57, 0
      %p167 = por %p165, %p166
      %p168 = scmp.ne.s32.totalorder %s156, %s157
      %p169 = scmp.eq.s32.totalorder %s58, 4
      %p170 = por %p168, %p169
      %p172 = scmp.ne.s32.totalorder %s157, %s171
      %p173 = scmp.eq.s32.totalorder %s58, 0
      %p174 = por %p172, %p173
      %s176 = sadd.s32 %s175, 1
      %p179 = scmp.eq.s32.totalorder %s52, 4
      %p180 = scmp.ne.s32.totalorder %s175, %s177
      %p181 = scmp.eq.s32.totalorder %s52, 0
      %p182 = por %p180, %p181
      %p183 = scmp.ne.s32.totalorder %s175, %s177
      %p184 = scmp.eq.s32.totalorder %s57, 4
      %p185 = por %p183, %p184
      %p186 = scmp.ne.s32.totalorder %s177, %s178
      %p187 = scmp.eq.s32.totalorder %s57, 0
      %p188 = por %p186, %p187
      %p189 = scmp.ne.s32.totalorder %s177, %s178
      %p190 = scmp.eq.s32.totalorder %s58, 4
      %p191 = por %p189, %p190
      %p193 = scmp.ne.s32.totalorder %s178, %s192
      %p194 = scmp.eq.s32.totalorder %s58, 0
      %p195 = por %p193, %p194
      %s197 = sadd.s32 %s196, 1
      %p200 = scmp.eq.s32.totalorder %s52, 4
      %p201 = scmp.ne.s32.totalorder %s196, %s198
      %p202 = scmp.eq.s32.totalorder %s52, 0
      %p203 = por %p201, %p202
      %p204 = scmp.ne.s32.totalorder %s196, %s198
      %p205 = scmp.eq.s32.totalorder %s57, 4
      %p206 = por %p204, %p205
      %p207 = scmp.ne.s32.totalorder %s198, %s199
      %p208 = scmp.eq.s32.totalorder %s57, 0
      %p209 = por %p207, %p208
      %p210 = scmp.ne.s32.totalorder %s198, %s199
      %p211 = scmp.eq.s32.totalorder %s58, 4
      %p212 = por %p210, %p211
      %p214 = scmp.ne.s32.totalorder %s199, %s213
      %p215 = scmp.eq.s32.totalorder %s58, 0
      %p216 = por %p214, %p215
      %s218 = sadd.s32 %s217, 1
      %p221 = scmp.eq.s32.totalorder %s52, 4
      %p222 = scmp.ne.s32.totalorder %s217, %s219
      %p223 = scmp.eq.s32.totalorder %s52, 0
      %p224 = por %p222, %p223
      %p225 = scmp.ne.s32.totalorder %s217, %s219
      %p226 = scmp.eq.s32.totalorder %s57, 4
      %p227 = por %p225, %p226
      %p228 = scmp.ne.s32.totalorder %s219, %s220
      %p229 = scmp.eq.s32.totalorder %s57, 0
      %p230 = por %p228, %p229
      %p231 = scmp.ne.s32.totalorder %s219, %s220
      %p232 = scmp.eq.s32.totalorder %s58, 4
      %p233 = por %p231, %p232
      %p235 = scmp.ne.s32.totalorder %s220, %s234
      %p236 = scmp.eq.s32.totalorder %s58, 0
      %p237 = por %p235, %p236
      %s239 = sadd.s32 %s238, 1
      %p242 = scmp.eq.s32.totalorder %s52, 4
      %p243 = scmp.ne.s32.totalorder %s238, %s240
      %p244 = scmp.eq.s32.totalorder %s52, 0
      %p245 = por %p243, %p244
      %p246 = scmp.ne.s32.totalorder %s238, %s240
      %p247 = scmp.eq.s32.totalorder %s57, 4
      %p248 = por %p246, %p247
      %p249 = scmp.ne.s32.totalorder %s240, %s241
      %p250 = scmp.eq.s32.totalorder %s57, 0
      %p251 = por %p249, %p250
      %p252 = scmp.ne.s32.totalorder %s240, %s241
      %p253 = scmp.eq.s32.totalorder %s58, 4
      %p254 = por %p252, %p253
      %p256 = scmp.ne.s32.totalorder %s241, %s255
      %p257 = scmp.eq.s32.totalorder %s58, 0
      %p258 = por %p256, %p257
      %s260 = sadd.s32 %s259, 1
      %p263 = scmp.eq.s32.totalorder %s52, 4
      %p264 = scmp.ne.s32.totalorder %s259, %s261
      %p265 = scmp.eq.s32.totalorder %s52, 0
      %p266 = por %p264, %p265
      %p267 = scmp.ne.s32.totalorder %s259, %s261
      %p268 = scmp.eq.s32.totalorder %s57, 4
      %p269 = por %p267, %p268
      %p270 = scmp.ne.s32.totalorder %s261, %s262
      %p271 = scmp.eq.s32.totalorder %s57, 0
      %p272 = por %p270, %p271
      %p273 = scmp.ne.s32.totalorder %s261, %s262
      %p274 = scmp.eq.s32.totalorder %s58, 4
      %p275 = por %p273, %p274
      %p277 = scmp.ne.s32.totalorder %s262, %s276
      %p278 = scmp.eq.s32.totalorder %s58, 0
      %p279 = por %p277, %p278
      %s281 = sadd.s32 %s280, 1
      %p284 = scmp.eq.s32.totalorder %s52, 4
      %p285 = scmp.ne.s32.totalorder %s280, %s282
      %p286 = scmp.eq.s32.totalorder %s52, 0
      %p287 = por %p285, %p286
      %p288 = scmp.ne.s32.totalorder %s280, %s282
      %p289 = scmp.eq.s32.totalorder %s57, 4
      %p290 = por %p288, %p289
      %p291 = scmp.ne.s32.totalorder %s282, %s283
      %p292 = scmp.eq.s32.totalorder %s57, 0
      %p293 = por %p291, %p292
      %p294 = scmp.ne.s32.totalorder %s282, %s283
      %p295 = scmp.eq.s32.totalorder %s58, 4
      %p296 = por %p294, %p295
      %p298 = scmp.ne.s32.totalorder %s283, %s297
      %p299 = scmp.eq.s32.totalorder %s58, 0
      %p300 = por %p298, %p299
      %s302 = sadd.s32 %s301, 1
      %p305 = scmp.eq.s32.totalorder %s52, 4
      %p306 = scmp.ne.s32.totalorder %s301, %s303
      %p307 = scmp.eq.s32.totalorder %s52, 0
      %p308 = por %p306, %p307
      %p309 = scmp.ne.s32.totalorder %s301, %s303
      %p310 = scmp.eq.s32.totalorder %s57, 4
      %p311 = por %p309, %p310
      %p312 = scmp.ne.s32.totalorder %s303, %s304
      %p313 = scmp.eq.s32.totalorder %s57, 0
      %p314 = por %p312, %p313
      %p315 = scmp.ne.s32.totalorder %s303, %s304
      %p316 = scmp.eq.s32.totalorder %s58, 4
      %p317 = por %p315, %p316
      %p319 = scmp.ne.s32.totalorder %s304, %s318
      %p320 = scmp.eq.s32.totalorder %s58, 0
      %p321 = por %p319, %p320
      %s323 = sadd.s32 %s322, 1
      %p326 = scmp.eq.s32.totalorder %s52, 4
      %p327 = scmp.ne.s32.totalorder %s322, %s324
      %p328 = scmp.eq.s32.totalorder %s52, 0
      %p329 = por %p327, %p328
      %p330 = scmp.ne.s32.totalorder %s322, %s324
      %p331 = scmp.eq.s32.totalorder %s57, 4
      %p332 = por %p330, %p331
      %p333 = scmp.ne.s32.totalorder %s324, %s325
      %p334 = scmp.eq.s32.totalorder %s57, 0
      %p335 = por %p333, %p334
      %p336 = scmp.ne.s32.totalorder %s324, %s325
      %p337 = scmp.eq.s32.totalorder %s58, 4
      %p338 = por %p336, %p337
      %p340 = scmp.ne.s32.totalorder %s325, %s339
      %p341 = scmp.eq.s32.totalorder %s58, 0
      %p342 = por %p340, %p341
      %s344 = sadd.s32 %s343, 1
      %p347 = scmp.eq.s32.totalorder %s52, 4
      %p348 = scmp.ne.s32.totalorder %s343, %s345
      %p349 = scmp.eq.s32.totalorder %s52, 0
      %p350 = por %p348, %p349
      %p351 = scmp.ne.s32.totalorder %s343, %s345
      %p352 = scmp.eq.s32.totalorder %s57, 4
      %p353 = por %p351, %p352
      %p354 = scmp.ne.s32.totalorder %s345, %s346
      %p355 = scmp.eq.s32.totalorder %s57, 0
      %p356 = por %p354, %p355
      %p357 = scmp.ne.s32.totalorder %s345, %s346
      %p358 = scmp.eq.s32.totalorder %s58, 4
      %p359 = por %p357, %p358
      %p361 = scmp.ne.s32.totalorder %s346, %s360
      %p362 = scmp.eq.s32.totalorder %s58, 0
      %p363 = por %p361, %p362
      %s365 = sadd.s32 %s364, 1
      %p368 = scmp.eq.s32.totalorder %s52, 4
      %p369 = scmp.ne.s32.totalorder %s364, %s366
      %p370 = scmp.eq.s32.totalorder %s52, 0
      %p371 = por %p369, %p370
      %p372 = scmp.ne.s32.totalorder %s364, %s366
      %p373 = scmp.eq.s32.totalorder %s57, 4
      %p374 = por %p372, %p373
      %p375 = scmp.ne.s32.totalorder %s366, %s367
      %p376 = scmp.eq.s32.totalorder %s57, 0
      %p377 = por %p375, %p376
      %p378 = scmp.ne.s32.totalorder %s366, %s367
      %p379 = scmp.eq.s32.totalorder %s58, 4
      %p380 = por %p378, %p379
      %p382 = scmp.ne.s32.totalorder %s367, %s381
      %p383 = scmp.eq.s32.totalorder %s58, 0
      %p384 = por %p382, %p383
      %s386 = sadd.s32 %s385, 1
      %p389 = scmp.eq.s32.totalorder %s52, 4
      %p390 = scmp.ne.s32.totalorder %s385, %s387
      %p391 = scmp.eq.s32.totalorder %s52, 0
      %p392 = por %p390, %p391
      %p393 = scmp.ne.s32.totalorder %s385, %s387
      %p394 = scmp.eq.s32.totalorder %s57, 4
      %p395 = por %p393, %p394
      %p396 = scmp.ne.s32.totalorder %s387, %s388
      %p397 = scmp.eq.s32.totalorder %s57, 0
      %p398 = por %p396, %p397
      %p399 = scmp.ne.s32.totalorder %s387, %s388
      %p400 = scmp.eq.s32.totalorder %s58, 4
      %p401 = por %p399, %p400
      %p403 = scmp.ne.s32.totalorder %s388, %s402
      %p404 = scmp.eq.s32.totalorder %s58, 0
      %p405 = por %p403, %p404
      %s407 = sadd.s32 %s406, 1
      %p410 = scmp.eq.s32.totalorder %s52, 4
      %p411 = scmp.ne.s32.totalorder %s406, %s408
      %p412 = scmp.eq.s32.totalorder %s52, 0
      %p413 = por %p411, %p412
      %p414 = scmp.ne.s32.totalorder %s406, %s408
      %p415 = scmp.eq.s32.totalorder %s57, 4
      %p416 = por %p414, %p415
      %p417 = scmp.ne.s32.totalorder %s408, %s409
      %p418 = scmp.eq.s32.totalorder %s57, 0
      %p419 = por %p417, %p418
      %p420 = scmp.ne.s32.totalorder %s408, %s409
      %p421 = scmp.eq.s32.totalorder %s58, 4
      %p422 = por %p420, %p421
      %p424 = scmp.ne.s32.totalorder %s409, %s423
      %p425 = scmp.eq.s32.totalorder %s58, 0
      %p426 = por %p424, %p425
      %s428 = sadd.s32 %s427, 1
      %p431 = scmp.eq.s32.totalorder %s52, 4
      %p432 = scmp.ne.s32.totalorder %s427, %s429
      %p433 = scmp.eq.s32.totalorder %s52, 0
      %p434 = por %p432, %p433
      %p435 = scmp.ne.s32.totalorder %s427, %s429
      %p436 = scmp.eq.s32.totalorder %s57, 4
      %p437 = por %p435, %p436
      %p438 = scmp.ne.s32.totalorder %s429, %s430
      %p439 = scmp.eq.s32.totalorder %s57, 0
      %p440 = por %p438, %p439
      %p441 = scmp.ne.s32.totalorder %s429, %s430
      %p442 = scmp.eq.s32.totalorder %s58, 4
      %p443 = por %p441, %p442
      %p445 = scmp.ne.s32.totalorder %s430, %s444
      %p446 = scmp.eq.s32.totalorder %s58, 0
      %p447 = por %p445, %p446
      %s449 = sadd.s32 %s448, 1
      %p452 = scmp.eq.s32.totalorder %s52, 4
      %p453 = scmp.ne.s32.totalorder %s448, %s450
      %p454 = scmp.eq.s32.totalorder %s52, 0
      %p455 = por %p453, %p454
      %p456 = scmp.ne.s32.totalorder %s448, %s450
      %p457 = scmp.eq.s32.totalorder %s57, 4
      %p458 = por %p456, %p457
      %p459 = scmp.ne.s32.totalorder %s450, %s451
      %p460 = scmp.eq.s32.totalorder %s57, 0
      %p461 = por %p459, %p460
      %p462 = scmp.ne.s32.totalorder %s450, %s451
      %p463 = scmp.eq.s32.totalorder %s58, 4
      %p464 = por %p462, %p463
      %p466 = scmp.ne.s32.totalorder %s451, %s465
      %p467 = scmp.eq.s32.totalorder %s58, 0
      %p468 = por %p466, %p467
      %s470 = sadd.s32 %s469, 1
      %p473 = scmp.eq.s32.totalorder %s52, 4
      %p474 = scmp.ne.s32.totalorder %s469, %s471
      %p475 = scmp.eq.s32.totalorder %s52, 0
      %p476 = por %p474, %p475
      %p477 = scmp.ne.s32.totalorder %s469, %s471
      %p478 = scmp.eq.s32.totalorder %s57, 4
      %p479 = por %p477, %p478
      %p480 = scmp.ne.s32.totalorder %s471, %s472
      %p481 = scmp.eq.s32.totalorder %s57, 0
      %p482 = por %p480, %p481
      %p483 = scmp.ne.s32.totalorder %s471, %s472
      %p484 = scmp.eq.s32.totalorder %s58, 4
      %p485 = por %p483, %p484
      %p487 = scmp.ne.s32.totalorder %s472, %s486
      %p488 = scmp.eq.s32.totalorder %s58, 0
      %p489 = por %p487, %p488
      %s491 = sadd.s32 %s490, 1
      %p494 = scmp.eq.s32.totalorder %s52, 4
      %p495 = scmp.ne.s32.totalorder %s490, %s492
      %p496 = scmp.eq.s32.totalorder %s52, 0
      %p497 = por %p495, %p496
      %p498 = scmp.ne.s32.totalorder %s490, %s492
      %p499 = scmp.eq.s32.totalorder %s57, 4
      %p500 = por %p498, %p499
      %p501 = scmp.ne.s32.totalorder %s492, %s493
      %p502 = scmp.eq.s32.totalorder %s57, 0
      %p503 = por %p501, %p502
      %p504 = scmp.ne.s32.totalorder %s492, %s493
      %p505 = scmp.eq.s32.totalorder %s58, 4
      %p506 = por %p504, %p505
      %p508 = scmp.ne.s32.totalorder %s493, %s507
      %p509 = scmp.eq.s32.totalorder %s58, 0
      %p510 = por %p508, %p509
      %s512 = sadd.s32 %s511, 1
      %p515 = scmp.eq.s32.totalorder %s52, 4
      %p516 = scmp.ne.s32.totalorder %s511, %s513
      %p517 = scmp.eq.s32.totalorder %s52, 0
      %p518 = por %p516, %p517
      %p519 = scmp.ne.s32.totalorder %s511, %s513
      %p520 = scmp.eq.s32.totalorder %s57, 4
      %p521 = por %p519, %p520
      %p522 = scmp.ne.s32.totalorder %s513, %s514
      %p523 = scmp.eq.s32.totalorder %s57, 0
      %p524 = por %p522, %p523
      %p525 = scmp.ne.s32.totalorder %s513, %s514
      %p526 = scmp.eq.s32.totalorder %s58, 4
      %p527 = por %p525, %p526
      %p529 = scmp.ne.s32.totalorder %s514, %s528
      %p530 = scmp.eq.s32.totalorder %s58, 0
      %p531 = por %p529, %p530
      %s533 = sadd.s32 %s532, 1
      %p536 = scmp.eq.s32.totalorder %s52, 4
      %p537 = scmp.ne.s32.totalorder %s532, %s534
      %p538 = scmp.eq.s32.totalorder %s52, 0
      %p539 = por %p537, %p538
      %p540 = scmp.ne.s32.totalorder %s532, %s534
      %p541 = scmp.eq.s32.totalorder %s57, 4
      %p542 = por %p540, %p541
      %p543 = scmp.ne.s32.totalorder %s534, %s535
      %p544 = scmp.eq.s32.totalorder %s57, 0
      %p545 = por %p543, %p544
      %p546 = scmp.ne.s32.totalorder %s534, %s535
      %p547 = scmp.eq.s32.totalorder %s58, 4
      %p548 = por %p546, %p547
      %p550 = scmp.ne.s32.totalorder %s535, %s549
      %p551 = scmp.eq.s32.totalorder %s58, 0
      %p552 = por %p550, %p551
      %s554 = sadd.s32 %s553, 1
      %p557 = scmp.eq.s32.totalorder %s52, 4
      %p558 = scmp.ne.s32.totalorder %s553, %s555
      %p559 = scmp.eq.s32.totalorder %s52, 0
      %p560 = por %p558, %p559
      %p561 = scmp.ne.s32.totalorder %s553, %s555
      %p562 = scmp.eq.s32.totalorder %s57, 4
      %p563 = por %p561, %p562
      %p564 = scmp.ne.s32.totalorder %s555, %s556
      %p565 = scmp.eq.s32.totalorder %s57, 0
      %p566 = por %p564, %p565
      %p567 = scmp.ne.s32.totalorder %s555, %s556
      %p568 = scmp.eq.s32.totalorder %s58, 4
      %p569 = por %p567, %p568
      %p571 = scmp.ne.s32.totalorder %s556, %s570
      %p572 = scmp.eq.s32.totalorder %s58, 0
      %p573 = por %p571, %p572
      %s575 = sadd.s32 %s574, 1
      %p578 = scmp.eq.s32.totalorder %s52, 4
      %p579 = scmp.ne.s32.totalorder %s574, %s576
      %p580 = scmp.eq.s32.totalorder %s52, 0
      %p581 = por %p579, %p580
      %p582 = scmp.ne.s32.totalorder %s574, %s576
      %p583 = scmp.eq.s32.totalorder %s57, 4
      %p584 = por %p582, %p583
      %p585 = scmp.ne.s32.totalorder %s576, %s577
      %p586 = scmp.eq.s32.totalorder %s57, 0
      %p587 = por %p585, %p586
      %p588 = scmp.ne.s32.totalorder %s576, %s577
      %p589 = scmp.eq.s32.totalorder %s58, 4
      %p590 = por %p588, %p589
      %p592 = scmp.ne.s32.totalorder %s577, %s591
      %p593 = scmp.eq.s32.totalorder %s58, 0
      %p594 = por %p592, %p593
      %s596 = sadd.s32 %s595, 1
      %p599 = scmp.eq.s32.totalorder %s52, 4
      %p600 = scmp.ne.s32.totalorder %s595, %s597
      %p601 = scmp.eq.s32.totalorder %s52, 0
      %p602 = por %p600, %p601
      %p603 = scmp.ne.s32.totalorder %s595, %s597
      %p604 = scmp.eq.s32.totalorder %s57, 4
      %p605 = por %p603, %p604
      %p606 = scmp.ne.s32.totalorder %s597, %s598
      %p607 = scmp.eq.s32.totalorder %s57, 0
      %p608 = por %p606, %p607
      %p609 = scmp.ne.s32.totalorder %s597, %s598
      %p610 = scmp.eq.s32.totalorder %s58, 4
      %p611 = por %p609, %p610
      %p613 = scmp.ne.s32.totalorder %s598, %s612
      %p614 = scmp.eq.s32.totalorder %s58, 0
      %p615 = por %p613, %p614
      %s617 = sadd.s32 %s616, 1
      %p620 = scmp.eq.s32.totalorder %s52, 4
      %p621 = scmp.ne.s32.totalorder %s616, %s618
      %p622 = scmp.eq.s32.totalorder %s52, 0
      %p623 = por %p621, %p622
      %p624 = scmp.ne.s32.totalorder %s616, %s618
      %p625 = scmp.eq.s32.totalorder %s57, 4
      %p626 = por %p624, %p625
      %p627 = scmp.ne.s32.totalorder %s618, %s619
      %p628 = scmp.eq.s32.totalorder %s57, 0
      %p629 = por %p627, %p628
      %p630 = scmp.ne.s32.totalorder %s618, %s619
      %p631 = scmp.eq.s32.totalorder %s58, 4
      %p632 = por %p630, %p631
      %p634 = scmp.ne.s32.totalorder %s619, %s633
      %p635 = scmp.eq.s32.totalorder %s58, 0
      %p636 = por %p634, %p635
      %s638 = sadd.s32 %s637, 1
      %p641 = scmp.eq.s32.totalorder %s52, 4
      %p642 = scmp.ne.s32.totalorder %s637, %s639
      %p643 = scmp.eq.s32.totalorder %s52, 0
      %p644 = por %p642, %p643
      %p645 = scmp.ne.s32.totalorder %s637, %s639
      %p646 = scmp.eq.s32.totalorder %s57, 4
      %p647 = por %p645, %p646
      %p648 = scmp.ne.s32.totalorder %s639, %s640
      %p649 = scmp.eq.s32.totalorder %s57, 0
      %p650 = por %p648, %p649
      %p651 = scmp.ne.s32.totalorder %s639, %s640
      %p652 = scmp.eq.s32.totalorder %s58, 4
      %p653 = por %p651, %p652
      %p655 = scmp.ne.s32.totalorder %s640, %s654
      %p656 = scmp.eq.s32.totalorder %s58, 0
      %p657 = por %p655, %p656
      %p658 = scmp.le.s32.totalorder 1, %s52
      %p659 = scmp.lt.s32.totalorder %s52, 6
      %p660 = pnand %p658, %p659
      %p661 = pneg %p660
      // Predicated region
      $region9: #{tpu_custom_call.1} parent=5 // pred_check
        _
      $region10: #{tpu_custom_call.1} parent=5 // pred_check_branch
        %663 = sbr.rel (%p660) target = $region12
      $region11: #{tpu_custom_call.1} parent=5 // pred_region
        %s664 = ssub.s32 %s52, 1
        // Predicated region
        $region13: #{tpu_custom_call.1} parent=11 // pred_check
          %p665 = pneg %p125
        $region14: #{tpu_custom_call.1} parent=11 // pred_check_branch
          %667 = sbr.rel (%p665) target = $region16
        $region15: #{tpu_custom_call.1} parent=11 // pred_region
          %s669 = ssub.s32 16, 16
          %670 = vsyncadd [#allocation8], %s669
          %s672 = sshll.u32 [#allocation9], 4
          %s673 = int_to_ptr.vmem [resolvable:$true] %s672
          %675 = dma.hbm_to_vmem [thread:$0]  %s2, 16, %s673, [#allocation8]
        $region16: #{tpu_custom_call.1} parent=11 // pred_fallthru
          _
        // Predicated region
        $region17: #{tpu_custom_call.1} parent=11 // pred_check
          %p676 = pneg %p146
        $region18: #{tpu_custom_call.1} parent=11 // pred_check_branch
          %678 = sbr.rel (%p676) target = $region20
        $region19: #{tpu_custom_call.1} parent=11 // pred_region
          %s680 = ssub.s32 256, 256
          %681 = vsyncadd [#allocation11], %s680
          %s682 = sshll.u32 [#allocation10], 4
          %s683 = int_to_ptr.vmem [resolvable:$true] %s682
          %688 = dma.hbm_to_vmem [thread:$0]  %s3, 256, %s683, [#allocation11], 128, 128, 8
        $region20: #{tpu_custom_call.1} parent=11 // pred_fallthru
          _
        // Predicated region
        $region21: #{tpu_custom_call.1} parent=11 // pred_check
          %p689 = pneg %p167
        $region22: #{tpu_custom_call.1} parent=11 // pred_check_branch
          %691 = sbr.rel (%p689) target = $region24
        $region23: #{tpu_custom_call.1} parent=11 // pred_region
          %s693 = ssub.s32 256, 256
          %694 = vsyncadd [#allocation11], %s693
          %s695 = sshll.u32 [#allocation12], 4
          %s696 = int_to_ptr.vmem [resolvable:$true] %s695
          %701 = dma.hbm_to_vmem [thread:$0]  %s4, 256, %s696, [#allocation11], 128, 128, 8
        $region24: #{tpu_custom_call.1} parent=11 // pred_fallthru
          _
        // Predicated region
        $region25: #{tpu_custom_call.1} parent=11 // pred_check
          %p702 = pneg %p188
        $region26: #{tpu_custom_call.1} parent=11 // pred_check_branch
          %704 = sbr.rel (%p702) target = $region28
        $region27: #{tpu_custom_call.1} parent=11 // pred_region
          %s706 = ssub.s32 2048, 2048
          %707 = vsyncadd [#allocation14], %s706
          %s708 = sshll.u32 [#allocation13], 4
          %s709 = int_to_ptr.vmem [resolvable:$true] %s708
          %714 = dma.hbm_to_vmem [thread:$0]  %s5, 2048, %s709, [#allocation14], 128, 128, 8
        $region28: #{tpu_custom_call.1} parent=11 // pred_fallthru
          _
        // Predicated region
        $region29: #{tpu_custom_call.1} parent=11 // pred_check
          %p715 = pneg %p209
        $region30: #{tpu_custom_call.1} parent=11 // pred_check_branch
          %717 = sbr.rel (%p715) target = $region32
        $region31: #{tpu_custom_call.1} parent=11 // pred_region
          %s719 = ssub.s32 2048, 2048
          %720 = vsyncadd [#allocation14], %s719
          %s721 = sshll.u32 [#allocation15], 4
          %s722 = int_to_ptr.vmem [resolvable:$true] %s721
          %727 = dma.hbm_to_vmem [thread:$0]  %s6, 2048, %s722, [#allocation14], 128, 128, 8
        $region32: #{tpu_custom_call.1} parent=11 // pred_fallthru
          _
        // Predicated region
        $region33: #{tpu_custom_call.1} parent=11 // pred_check
          %p728 = pneg %p230
        $region34: #{tpu_custom_call.1} parent=11 // pred_check_branch
          %730 = sbr.rel (%p728) target = $region36
        $region35: #{tpu_custom_call.1} parent=11 // pred_region
          %s732 = ssub.s32 16, 16
          %733 = vsyncadd [#allocation17], %s732
          %s735 = sshll.u32 [#allocation16], 4
          %s736 = int_to_ptr.vmem [resolvable:$true] %s735
          %738 = dma.hbm_to_vmem [thread:$0]  %s7, 16, %s736, [#allocation17]
        $region36: #{tpu_custom_call.1} parent=11 // pred_fallthru
          _
        // Predicated region
        $region37: #{tpu_custom_call.1} parent=11 // pred_check
          %p739 = pneg %p251
        $region38: #{tpu_custom_call.1} parent=11 // pred_check_branch
          %741 = sbr.rel (%p739) target = $region40
        $region39: #{tpu_custom_call.1} parent=11 // pred_region
          _
        $region40: #{tpu_custom_call.1} parent=11 // pred_fallthru
          _
        // Predicated region
        $region41: #{tpu_custom_call.1} parent=11 // pred_check
          %p742 = pneg %p272
        $region42: #{tpu_custom_call.1} parent=11 // pred_check_branch
          %744 = sbr.rel (%p742) target = $region44
        $region43: #{tpu_custom_call.1} parent=11 // pred_region
          _
        $region44: #{tpu_custom_call.1} parent=11 // pred_fallthru
          _
        // Predicated region
        $region45: #{tpu_custom_call.1} parent=11 // pred_check
          %p745 = pneg %p293
        $region46: #{tpu_custom_call.1} parent=11 // pred_check_branch
          %747 = sbr.rel (%p745) target = $region48
        $region47: #{tpu_custom_call.1} parent=11 // pred_region
          %s749 = ssub.s32 768, 768
          %750 = vsyncadd [#allocation17], %s749
          %s752 = sshll.u32 [#allocation18], 4
          %s753 = int_to_ptr.vmem [resolvable:$true] %s752
          %755 = dma.hbm_to_vmem [thread:$0]  %s10, 768, %s753, [#allocation17]
        $region48: #{tpu_custom_call.1} parent=11 // pred_fallthru
          _
        // Predicated region
        $region49: #{tpu_custom_call.1} parent=11 // pred_check
          %p756 = pneg %p314
        $region50: #{tpu_custom_call.1} parent=11 // pred_check_branch
          %758 = sbr.rel (%p756) target = $region52
        $region51: #{tpu_custom_call.1} parent=11 // pred_region
          %s760 = ssub.s32 98304, 98304
          %761 = vsyncadd [#allocation20], %s760
          %s762 = sshll.u32 [#allocation19], 4
          %s763 = int_to_ptr.vmem [resolvable:$true] %s762
          %768 = dma.hbm_to_vmem [thread:$0]  %s11, 98304, %s763, [#allocation20], 1024, 1024, 64
        $region52: #{tpu_custom_call.1} parent=11 // pred_fallthru
          _
        // Predicated region
        $region53: #{tpu_custom_call.1} parent=11 // pred_check
          %p769 = pneg %p335
        $region54: #{tpu_custom_call.1} parent=11 // pred_check_branch
          %771 = sbr.rel (%p769) target = $region56
        $region55: #{tpu_custom_call.1} parent=11 // pred_region
          %s773 = ssub.s32 128, 128
          %774 = vsyncadd [#allocation20], %s773
          %s776 = sshll.u32 [#allocation21], 4
          %s777 = int_to_ptr.vmem [resolvable:$true] %s776
          %779 = dma.hbm_to_vmem [thread:$0]  %s12, 128, %s777, [#allocation20]
        $region56: #{tpu_custom_call.1} parent=11 // pred_fallthru
          _
        // Predicated region
        $region57: #{tpu_custom_call.1} parent=11 // pred_check
          %p780 = pneg %p356
        $region58: #{tpu_custom_call.1} parent=11 // pred_check_branch
          %782 = sbr.rel (%p780) target = $region60
        $region59: #{tpu_custom_call.1} parent=11 // pred_region
          %s784 = ssub.s32 65536, 65536
          %785 = vsyncadd [#allocation23], %s784
          %s786 = sshll.u32 [#allocation22], 4
          %s787 = int_to_ptr.vmem [resolvable:$true] %s786
          %792 = dma.hbm_to_vmem [thread:$0]  %s13, 65536, %s787, [#allocation23], 512, 512, 32
        $region60: #{tpu_custom_call.1} parent=11 // pred_fallthru
          _
        // Predicated region
        $region61: #{tpu_custom_call.1} parent=11 // pred_check
          %p793 = pneg %p377
        $region62: #{tpu_custom_call.1} parent=11 // pred_check_branch
          %795 = sbr.rel (%p793) target = $region64
        $region63: #{tpu_custom_call.1} parent=11 // pred_region
          %s797 = ssub.s32 64, 64
          %798 = vsyncadd [#allocation23], %s797
          %s800 = sshll.u32 [#allocation24], 4
          %s801 = int_to_ptr.vmem [resolvable:$true] %s800
          %803 = dma.hbm_to_vmem [thread:$0]  %s14, 64, %s801, [#allocation23]
        $region64: #{tpu_custom_call.1} parent=11 // pred_fallthru
          _
        // Predicated region
        $region65: #{tpu_custom_call.1} parent=11 // pred_check
          %p804 = pneg %p398
        $region66: #{tpu_custom_call.1} parent=11 // pred_check_branch
          %806 = sbr.rel (%p804) target = $region68
        $region67: #{tpu_custom_call.1} parent=11 // pred_region
          %s808 = ssub.s32 4096, 4096
          %809 = vsyncadd [#allocation26], %s808
          %s810 = sshll.u32 [#allocation25], 4
          %s811 = int_to_ptr.vmem [resolvable:$true] %s810
          %816 = dma.hbm_to_vmem [thread:$0]  %s15, 4096, %s811, [#allocation26], 256, 256, 16
        $region68: #{tpu_custom_call.1} parent=11 // pred_fallthru
          _
        // Predicated region
        $region69: #{tpu_custom_call.1} parent=11 // pred_check
          %p817 = pneg %p419
        $region70: #{tpu_custom_call.1} parent=11 // pred_check_branch
          %819 = sbr.rel (%p817) target = $region72
        $region71: #{tpu_custom_call.1} parent=11 // pred_region
          %s821 = ssub.s32 4096, 4096
          %822 = vsyncadd [#allocation26], %s821
          %s823 = sshll.u32 [#allocation27], 4
          %s824 = int_to_ptr.vmem [resolvable:$true] %s823
          %829 = dma.hbm_to_vmem [thread:$0]  %s16, 4096, %s824, [#allocation26], 256, 256, 16
        $region72: #{tpu_custom_call.1} parent=11 // pred_fallthru
          _
        // Predicated region
        $region73: #{tpu_custom_call.1} parent=11 // pred_check
          %p830 = pneg %p440
        $region74: #{tpu_custom_call.1} parent=11 // pred_check_branch
          %832 = sbr.rel (%p830) target = $region76
        $region75: #{tpu_custom_call.1} parent=11 // pred_region
          %s834 = ssub.s32 16384, 16384
          %835 = vsyncadd [#allocation29], %s834
          %s836 = sshll.u32 [#allocation28], 4
          %s837 = int_to_ptr.vmem [resolvable:$true] %s836
          %842 = dma.hbm_to_vmem [thread:$0]  %s17, 16384, %s837, [#allocation29], 256, 256, 16
        $region76: #{tpu_custom_call.1} parent=11 // pred_fallthru
          _
        // Predicated region
        $region77: #{tpu_custom_call.1} parent=11 // pred_check
          %p843 = pneg %p461
        $region78: #{tpu_custom_call.1} parent=11 // pred_check_branch
          %845 = sbr.rel (%p843) target = $region80
        $region79: #{tpu_custom_call.1} parent=11 // pred_region
          %s847 = ssub.s32 4096, 4096
          %848 = vsyncadd [#allocation29], %s847
          %s849 = sshll.u32 [#allocation30], 4
          %s850 = int_to_ptr.vmem [resolvable:$true] %s849
          %855 = dma.hbm_to_vmem [thread:$0]  %s18, 4096, %s850, [#allocation29], 256, 256, 16
        $region80: #{tpu_custom_call.1} parent=11 // pred_fallthru
          _
        // Predicated region
        $region81: #{tpu_custom_call.1} parent=11 // pred_check
          %p856 = pneg %p482
        $region82: #{tpu_custom_call.1} parent=11 // pred_check_branch
          %858 = sbr.rel (%p856) target = $region84
        $region83: #{tpu_custom_call.1} parent=11 // pred_region
          %s860 = ssub.s32 4096, 4096
          %861 = vsyncadd [#allocation32], %s860
          %s862 = sshll.u32 [#allocation31], 4
          %s863 = int_to_ptr.vmem [resolvable:$true] %s862
          %868 = dma.hbm_to_vmem [thread:$0]  %s19, 4096, %s863, [#allocation32], 256, 256, 16
        $region84: #{tpu_custom_call.1} parent=11 // pred_fallthru
          _
        // Predicated region
        $region85: #{tpu_custom_call.1} parent=11 // pred_check
          %p869 = pneg %p503
        $region86: #{tpu_custom_call.1} parent=11 // pred_check_branch
          %871 = sbr.rel (%p869) target = $region88
        $region87: #{tpu_custom_call.1} parent=11 // pred_region
          %s873 = ssub.s32 32, 32
          %874 = vsyncadd [#allocation32], %s873
          %s876 = sshll.u32 [#allocation33], 4
          %s877 = int_to_ptr.vmem [resolvable:$true] %s876
          %879 = dma.hbm_to_vmem [thread:$0]  %s20, 32, %s877, [#allocation32]
        $region88: #{tpu_custom_call.1} parent=11 // pred_fallthru
          _
        // Predicated region
        $region89: #{tpu_custom_call.1} parent=11 // pred_check
          %p880 = pneg %p524
        $region90: #{tpu_custom_call.1} parent=11 // pred_check_branch
          %882 = sbr.rel (%p880) target = $region92
        $region91: #{tpu_custom_call.1} parent=11 // pred_region
          %s884 = ssub.s32 32, 32
          %885 = vsyncadd [#allocation35], %s884
          %s887 = sshll.u32 [#allocation34], 4
          %s888 = int_to_ptr.vmem [resolvable:$true] %s887
          %890 = dma.hbm_to_vmem [thread:$0]  %s21, 32, %s888, [#allocation35]
        $region92: #{tpu_custom_call.1} parent=11 // pred_fallthru
          _
        // Predicated region
        $region93: #{tpu_custom_call.1} parent=11 // pred_check
          %p891 = pneg %p545
        $region94: #{tpu_custom_call.1} parent=11 // pred_check_branch
          %893 = sbr.rel (%p891) target = $region96
        $region95: #{tpu_custom_call.1} parent=11 // pred_region
          %s895 = ssub.s32 32, 32
          %896 = vsyncadd [#allocation35], %s895
          %s898 = sshll.u32 [#allocation36], 4
          %s899 = int_to_ptr.vmem [resolvable:$true] %s898
          %901 = dma.hbm_to_vmem [thread:$0]  %s22, 32, %s899, [#allocation35]
        $region96: #{tpu_custom_call.1} parent=11 // pred_fallthru
          _
        // Predicated region
        $region97: #{tpu_custom_call.1} parent=11 // pred_check
          %p902 = pneg %p566
        $region98: #{tpu_custom_call.1} parent=11 // pred_check_branch
          %904 = sbr.rel (%p902) target = $region100
        $region99: #{tpu_custom_call.1} parent=11 // pred_region
          %s906 = ssub.s32 32, 32
          %907 = vsyncadd [#allocation38], %s906
          %s909 = sshll.u32 [#allocation37], 4
          %s910 = int_to_ptr.vmem [resolvable:$true] %s909
          %912 = dma.hbm_to_vmem [thread:$0]  %s23, 32, %s910, [#allocation38]
        $region100: #{tpu_custom_call.1} parent=11 // pred_fallthru
          _
        // Predicated region
        $region101: #{tpu_custom_call.1} parent=11 // pred_check
          %p913 = pneg %p587
        $region102: #{tpu_custom_call.1} parent=11 // pred_check_branch
          %915 = sbr.rel (%p913) target = $region104
        $region103: #{tpu_custom_call.1} parent=11 // pred_region
          %s917 = ssub.s32 32, 32
          %918 = vsyncadd [#allocation38], %s917
          %s920 = sshll.u32 [#allocation39], 4
          %s921 = int_to_ptr.vmem [resolvable:$true] %s920
          %923 = dma.hbm_to_vmem [thread:$0]  %s24, 32, %s921, [#allocation38]
        $region104: #{tpu_custom_call.1} parent=11 // pred_fallthru
          _
        // Predicated region
        $region105: #{tpu_custom_call.1} parent=11 // pred_check
          %p924 = pneg %p608
        $region106: #{tpu_custom_call.1} parent=11 // pred_check_branch
          %926 = sbr.rel (%p924) target = $region108
        $region107: #{tpu_custom_call.1} parent=11 // pred_region
          _
        $region108: #{tpu_custom_call.1} parent=11 // pred_fallthru
          _
        // Predicated region
        $region109: #{tpu_custom_call.1} parent=11 // pred_check
          %p927 = pneg %p629
        $region110: #{tpu_custom_call.1} parent=11 // pred_check_branch
          %929 = sbr.rel (%p927) target = $region112
        $region111: #{tpu_custom_call.1} parent=11 // pred_region
          %s931 = ssub.s32 16, 16
          %932 = vsyncadd [#allocation41], %s931
          %s934 = sshll.u32 [#allocation40], 4
          %s935 = int_to_ptr.vmem [resolvable:$true] %s934
          %937 = dma.hbm_to_vmem [thread:$0]  %s26, 16, %s935, [#allocation41]
        $region112: #{tpu_custom_call.1} parent=11 // pred_fallthru
          _
      $region12: #{tpu_custom_call.1} parent=5 // pred_fallthru
        _
      %p938 = scmp.lt.s32.totalorder %s52, 5
      // Predicated region
      $region113: #{tpu_custom_call.1} parent=5 // pred_check
        %p939 = pneg %p938
      $region114: #{tpu_custom_call.1} parent=5 // pred_check_branch
        %941 = sbr.rel (%p939) target = $region116
      $region115: #{tpu_custom_call.1} parent=5 // pred_region
        // Predicated region
        $region117: #{tpu_custom_call.1} parent=115 // pred_check
          %p942 = pneg %p72
        $region118: #{tpu_custom_call.1} parent=115 // pred_check_branch
          %944 = sbr.rel (%p942) target = $region120
        $region119: #{tpu_custom_call.1} parent=115 // pred_region
          %s945 = sand.u32 %s62, 1
          %s946 = scalar_lea.sflag [#allocation6], %s945
          %s947 = sand.u32 %s62, 1
          %s948 = smul.addr %s947, 256
          %s949 = scalar_lea.vmem [#allocation5], %s948
          %s950 = smul.u32 16, %s52
          %s952 = ssub.s32 4096, 4096
          %953 = vsyncadd %s946, %s952
          %s954 = smul.addr %s950, 128
          %s955 = scalar_lea.hbm %s0, %s954
          %s956 = sshll.u32 %s949, 4
          %s957 = int_to_ptr.vmem [resolvable:$true] %s956
          %962 = dma.hbm_to_vmem [thread:$0]  %s955, 4096, %s957, %s946, 10240, 2048, 128
        $region120: #{tpu_custom_call.1} parent=115 // pred_fallthru
          _
        // Predicated region
        $region121: #{tpu_custom_call.1} parent=115 // pred_check
          %p963 = pneg %p98
        $region122: #{tpu_custom_call.1} parent=115 // pred_check_branch
          %965 = sbr.rel (%p963) target = $region124
        $region123: #{tpu_custom_call.1} parent=115 // pred_region
          %s966 = sand.u32 %s52, 1
          %s967 = scalar_lea.sflag [#allocation8], %s966
          %s968 = sand.u32 %s88, 1
          %s969 = smul.addr %s968, 2048
          %s970 = scalar_lea.vmem [#allocation7], %s969
          %s971 = smul.u32 256, %s52
          %s973 = ssub.s32 32768, 32768
          %974 = vsyncadd %s967, %s973
          %s975 = smul.addr %s971, 128
          %s976 = scalar_lea.hbm %s1, %s975
          %s977 = sshll.u32 %s970, 4
          %s978 = int_to_ptr.vmem [resolvable:$true] %s977
          %983 = dma.hbm_to_vmem [thread:$0]  %s976, 32768, %s978, %s967, 128, 128, 8
        $region124: #{tpu_custom_call.1} parent=115 // pred_fallthru
          _
      $region116: #{tpu_custom_call.1} parent=5 // pred_fallthru
        _
      %p984 = scmp.le.s32.totalorder 1, %s52
      %p985 = scmp.lt.s32.totalorder %s52, 6
      %p986 = pnand %p984, %p985
      %p987 = pneg %p986
      // Predicated region
      $region125: #{tpu_custom_call.1} parent=5 // pred_check
        _
      $region126: #{tpu_custom_call.1} parent=5 // pred_check_branch
        %989 = sbr.rel (%p986) target = $region128
      $region127: #{tpu_custom_call.1} parent=5 // pred_region
        %s990 = ssub.s32 %s52, 1
        %s991 = sand.u32 %s65, 1
        %s992 = scalar_lea.sflag [#allocation6], %s991
        %s993 = sand.u32 %s65, 1
        %s994 = smul.addr %s993, 256
        %s995 = scalar_lea.vmem [#allocation5], %s994
        // Predicated region
        $region129: #{tpu_custom_call.1} parent=127 // pred_check
          %p996 = pneg %p78
        $region130: #{tpu_custom_call.1} parent=127 // pred_check_branch
          %998 = sbr.rel (%p996) target = $region132
        $region131: #{tpu_custom_call.1} parent=127 // pred_region
          %999 = dma.done %s992, 4096
        $region132: #{tpu_custom_call.1} parent=127 // pred_fallthru
          _
        %s1000 = sand.u32 %s57, 1
        %s1001 = scalar_lea.sflag [#allocation8], %s1000
        %s1002 = sand.u32 %s91, 1
        %s1003 = smul.addr %s1002, 2048
        %s1004 = scalar_lea.vmem [#allocation7], %s1003
        // Predicated region
        $region133: #{tpu_custom_call.1} parent=127 // pred_check
          %p1005 = pneg %p104
        $region134: #{tpu_custom_call.1} parent=127 // pred_check_branch
          %1007 = sbr.rel (%p1005) target = $region136
        $region135: #{tpu_custom_call.1} parent=127 // pred_region
          %1008 = dma.done %s1001, 32768
        $region136: #{tpu_custom_call.1} parent=127 // pred_fallthru
          _
        // Predicated region
        $region137: #{tpu_custom_call.1} parent=127 // pred_check
          %p1009 = pneg %p125
        $region138: #{tpu_custom_call.1} parent=127 // pred_check_branch
          %1011 = sbr.rel (%p1009) target = $region140
        $region139: #{tpu_custom_call.1} parent=127 // pred_region
          %1012 = dma.done [#allocation8], 16
        $region140: #{tpu_custom_call.1} parent=127 // pred_fallthru
          _
        // Predicated region
        $region141: #{tpu_custom_call.1} parent=127 // pred_check
          %p1013 = pneg %p146
        $region142: #{tpu_custom_call.1} parent=127 // pred_check_branch
          %1015 = sbr.rel (%p1013) target = $region144
        $region143: #{tpu_custom_call.1} parent=127 // pred_region
          %1016 = dma.done [#allocation11], 256
        $region144: #{tpu_custom_call.1} parent=127 // pred_fallthru
          _
        // Predicated region
        $region145: #{tpu_custom_call.1} parent=127 // pred_check
          %p1017 = pneg %p167
        $region146: #{tpu_custom_call.1} parent=127 // pred_check_branch
          %1019 = sbr.rel (%p1017) target = $region148
        $region147: #{tpu_custom_call.1} parent=127 // pred_region
          %1020 = dma.done [#allocation11], 256
        $region148: #{tpu_custom_call.1} parent=127 // pred_fallthru
          _
        // Predicated region
        $region149: #{tpu_custom_call.1} parent=127 // pred_check
          %p1021 = pneg %p188
        $region150: #{tpu_custom_call.1} parent=127 // pred_check_branch
          %1023 = sbr.rel (%p1021) target = $region152
        $region151: #{tpu_custom_call.1} parent=127 // pred_region
          %1024 = dma.done [#allocation14], 2048
        $region152: #{tpu_custom_call.1} parent=127 // pred_fallthru
          _
        // Predicated region
        $region153: #{tpu_custom_call.1} parent=127 // pred_check
          %p1025 = pneg %p209
        $region154: #{tpu_custom_call.1} parent=127 // pred_check_branch
          %1027 = sbr.rel (%p1025) target = $region156
        $region155: #{tpu_custom_call.1} parent=127 // pred_region
          %1028 = dma.done [#allocation14], 2048
        $region156: #{tpu_custom_call.1} parent=127 // pred_fallthru
          _
        // Predicated region
        $region157: #{tpu_custom_call.1} parent=127 // pred_check
          %p1029 = pneg %p230
        $region158: #{tpu_custom_call.1} parent=127 // pred_check_branch
          %1031 = sbr.rel (%p1029) target = $region160
        $region159: #{tpu_custom_call.1} parent=127 // pred_region
          %1032 = dma.done [#allocation17], 16
        $region160: #{tpu_custom_call.1} parent=127 // pred_fallthru
          _
        // Predicated region
        $region161: #{tpu_custom_call.1} parent=127 // pred_check
          %p1033 = pneg %p293
        $region162: #{tpu_custom_call.1} parent=127 // pred_check_branch
          %1035 = sbr.rel (%p1033) target = $region164
        $region163: #{tpu_custom_call.1} parent=127 // pred_region
          %1036 = dma.done [#allocation17], 768
        $region164: #{tpu_custom_call.1} parent=127 // pred_fallthru
          _
        // Predicated region
        $region165: #{tpu_custom_call.1} parent=127 // pred_check
          %p1037 = pneg %p314
        $region166: #{tpu_custom_call.1} parent=127 // pred_check_branch
          %1039 = sbr.rel (%p1037) target = $region168
        $region167: #{tpu_custom_call.1} parent=127 // pred_region
          %1040 = dma.done [#allocation20], 98304
        $region168: #{tpu_custom_call.1} parent=127 // pred_fallthru
          _
        // Predicated region
        $region169: #{tpu_custom_call.1} parent=127 // pred_check
          %p1041 = pneg %p335
        $region170: #{tpu_custom_call.1} parent=127 // pred_check_branch
          %1043 = sbr.rel (%p1041) target = $region172
        $region171: #{tpu_custom_call.1} parent=127 // pred_region
          %1044 = dma.done [#allocation20], 128
        $region172: #{tpu_custom_call.1} parent=127 // pred_fallthru
          _
        // Predicated region
        $region173: #{tpu_custom_call.1} parent=127 // pred_check
          %p1045 = pneg %p356
        $region174: #{tpu_custom_call.1} parent=127 // pred_check_branch
          %1047 = sbr.rel (%p1045) target = $region176
        $region175: #{tpu_custom_call.1} parent=127 // pred_region
          %1048 = dma.done [#allocation23], 65536
        $region176: #{tpu_custom_call.1} parent=127 // pred_fallthru
          _
        // Predicated region
        $region177: #{tpu_custom_call.1} parent=127 // pred_check
          %p1049 = pneg %p377
        $region178: #{tpu_custom_call.1} parent=127 // pred_check_branch
          %1051 = sbr.rel (%p1049) target = $region180
        $region179: #{tpu_custom_call.1} parent=127 // pred_region
          %1052 = dma.done [#allocation23], 64
        $region180: #{tpu_custom_call.1} parent=127 // pred_fallthru
          _
        // Predicated region
        $region181: #{tpu_custom_call.1} parent=127 // pred_check
          %p1053 = pneg %p398
        $region182: #{tpu_custom_call.1} parent=127 // pred_check_branch
          %1055 = sbr.rel (%p1053) target = $region184
        $region183: #{tpu_custom_call.1} parent=127 // pred_region
          %1056 = dma.done [#allocation26], 4096
        $region184: #{tpu_custom_call.1} parent=127 // pred_fallthru
          _
        // Predicated region
        $region185: #{tpu_custom_call.1} parent=127 // pred_check
          %p1057 = pneg %p419
        $region186: #{tpu_custom_call.1} parent=127 // pred_check_branch
          %1059 = sbr.rel (%p1057) target = $region188
        $region187: #{tpu_custom_call.1} parent=127 // pred_region
          %1060 = dma.done [#allocation26], 4096
        $region188: #{tpu_custom_call.1} parent=127 // pred_fallthru
          _
        // Predicated region
        $region189: #{tpu_custom_call.1} parent=127 // pred_check
          %p1061 = pneg %p440
        $region190: #{tpu_custom_call.1} parent=127 // pred_check_branch
          %1063 = sbr.rel (%p1061) target = $region192
        $region191: #{tpu_custom_call.1} parent=127 // pred_region
          %1064 = dma.done [#allocation29], 16384
        $region192: #{tpu_custom_call.1} parent=127 // pred_fallthru
          _
        // Predicated region
        $region193: #{tpu_custom_call.1} parent=127 // pred_check
          %p1065 = pneg %p461
        $region194: #{tpu_custom_call.1} parent=127 // pred_check_branch
          %1067 = sbr.rel (%p1065) target = $region196
        $region195: #{tpu_custom_call.1} parent=127 // pred_region
          %1068 = dma.done [#allocation29], 4096
        $region196: #{tpu_custom_call.1} parent=127 // pred_fallthru
          _
        // Predicated region
        $region197: #{tpu_custom_call.1} parent=127 // pred_check
          %p1069 = pneg %p482
        $region198: #{tpu_custom_call.1} parent=127 // pred_check_branch
          %1071 = sbr.rel (%p1069) target = $region200
        $region199: #{tpu_custom_call.1} parent=127 // pred_region
          %1072 = dma.done [#allocation32], 4096
        $region200: #{tpu_custom_call.1} parent=127 // pred_fallthru
          _
        // Predicated region
        $region201: #{tpu_custom_call.1} parent=127 // pred_check
          %p1073 = pneg %p503
        $region202: #{tpu_custom_call.1} parent=127 // pred_check_branch
          %1075 = sbr.rel (%p1073) target = $region204
        $region203: #{tpu_custom_call.1} parent=127 // pred_region
          %1076 = dma.done [#allocation32], 32
        $region204: #{tpu_custom_call.1} parent=127 // pred_fallthru
          _
        // Predicated region
        $region205: #{tpu_custom_call.1} parent=127 // pred_check
          %p1077 = pneg %p524
        $region206: #{tpu_custom_call.1} parent=127 // pred_check_branch
          %1079 = sbr.rel (%p1077) target = $region208
        $region207: #{tpu_custom_call.1} parent=127 // pred_region
          %1080 = dma.done [#allocation35], 32
        $region208: #{tpu_custom_call.1} parent=127 // pred_fallthru
          _
        // Predicated region
        $region209: #{tpu_custom_call.1} parent=127 // pred_check
          %p1081 = pneg %p545
        $region210: #{tpu_custom_call.1} parent=127 // pred_check_branch
          %1083 = sbr.rel (%p1081) target = $region212
        $region211: #{tpu_custom_call.1} parent=127 // pred_region
          %1084 = dma.done [#allocation35], 32
        $region212: #{tpu_custom_call.1} parent=127 // pred_fallthru
          _
        // Predicated region
        $region213: #{tpu_custom_call.1} parent=127 // pred_check
          %p1085 = pneg %p566
        $region214: #{tpu_custom_call.1} parent=127 // pred_check_branch
          %1087 = sbr.rel (%p1085) target = $region216
        $region215: #{tpu_custom_call.1} parent=127 // pred_region
          %1088 = dma.done [#allocation38], 32
        $region216: #{tpu_custom_call.1} parent=127 // pred_fallthru
          _
        // Predicated region
        $region217: #{tpu_custom_call.1} parent=127 // pred_check
          %p1089 = pneg %p587
        $region218: #{tpu_custom_call.1} parent=127 // pred_check_branch
          %1091 = sbr.rel (%p1089) target = $region220
        $region219: #{tpu_custom_call.1} parent=127 // pred_region
          %1092 = dma.done [#allocation38], 32
        $region220: #{tpu_custom_call.1} parent=127 // pred_fallthru
          _
        // Predicated region
        $region221: #{tpu_custom_call.1} parent=127 // pred_check
          %p1093 = pneg %p629
        $region222: #{tpu_custom_call.1} parent=127 // pred_check_branch
          %1095 = sbr.rel (%p1093) target = $region224
        $region223: #{tpu_custom_call.1} parent=127 // pred_region
          %1096 = dma.done [#allocation41], 16
        $region224: #{tpu_custom_call.1} parent=127 // pred_fallthru
          _
        %s1097 = sand.u32 %s65, 1
        %s1098 = scalar_lea.sflag [#allocation6], %s1097
        %s1099 = sand.u32 %s65, 1
        %s1100 = smul.addr %s1099, 256
        %s1101 = scalar_lea.vmem [#allocation5], %s1100
        %p1102 = pneg %p78
        %p1103 = pneg %p75
        %s1104 = sand.u32 %s57, 1
        %s1105 = scalar_lea.sflag [#allocation8], %s1104
        %s1106 = sand.u32 %s91, 1
        %s1107 = smul.addr %s1106, 2048
        %s1108 = scalar_lea.vmem [#allocation7], %s1107
        %p1109 = pneg %p104
        %p1110 = pneg %p101
        %p1111 = pneg %p125
        %p1112 = pneg %p122
        %p1113 = pneg %p146
        %p1114 = pneg %p143
        %p1115 = pneg %p167
        %p1116 = pneg %p164
        %p1117 = pneg %p188
        %p1118 = pneg %p185
        %p1119 = pneg %p209
        %p1120 = pneg %p206
        %p1121 = pneg %p230
        %p1122 = pneg %p227
        %p1123 = pneg %p251
        %p1124 = pneg %p248
        %p1125 = pneg %p272
        %p1126 = pneg %p269
        %p1127 = pneg %p293
        %p1128 = pneg %p290
        %p1129 = pneg %p314
        %p1130 = pneg %p311
        %p1131 = pneg %p335
        %p1132 = pneg %p332
        %p1133 = pneg %p356
        %p1134 = pneg %p353
        %p1135 = pneg %p377
        %p1136 = pneg %p374
        %p1137 = pneg %p398
        %p1138 = pneg %p395
        %p1139 = pneg %p419
        %p1140 = pneg %p416
        %p1141 = pneg %p440
        %p1142 = pneg %p437
        %p1143 = pneg %p461
        %p1144 = pneg %p458
        %p1145 = pneg %p482
        %p1146 = pneg %p479
        %p1147 = pneg %p503
        %p1148 = pneg %p500
        %p1149 = pneg %p524
        %p1150 = pneg %p521
        %p1151 = pneg %p545
        %p1152 = pneg %p542
        %p1153 = pneg %p566
        %p1154 = pneg %p563
        %p1155 = pneg %p587
        %p1156 = pneg %p584
        %p1157 = pneg %p608
        %p1158 = pneg %p605
        %p1159 = pneg %p629
        %p1160 = pneg %p626
        %p1161 = pneg %p650
        %p1162 = pneg %p647
        %s1163 = smul.u32 16, %s57
        %s1164 = smul.u32 256, %s57
        %p1165 = scmp.eq.s32.totalorder %s57, 0
        // Predicated region
        $region225: #{tpu_custom_call.1} parent=127 // pred_check
          %p1166 = pneg %p1165
        $region226: #{tpu_custom_call.1} parent=127 // pred_check_branch
          %1168 = sbr.rel (%p1166) target = $region228
        $region227: #{tpu_custom_call.1} parent=127 // pred_region
          %1169 = vst [vmem:[#allocation2] sm:$0xff] 0.0
          %1170 = vst [vmem:[#allocation2 + $0x8] sm:$0xff] 0.0
          %vm1171 = vcmask 7168
          %1172 = vst.msk [vmem:[#allocation3] sm:$0xff] %vm1171, 0.0
          %1173 = vst.msk [vmem:[#allocation3 + $0x8] sm:$0xff] %vm1171, 0.0
        $region228: #{tpu_custom_call.1} parent=127 // pred_fallthru
          _
        %v1174 = vld [vmem:[%s995] sm:$0xff]
        %v1175 = vld [vmem:[%s995 + $0x8] sm:$0xff]
        %v1176 = vld [vmem:[%s995 + $0x10] sm:$0xff]
        %v1177 = vld [vmem:[%s995 + $0x18] sm:$0xff]
        %v1178 = vld [vmem:[%s995 + $0x20] sm:$0xff]
        %v1179 = vld [vmem:[%s995 + $0x28] sm:$0xff]
        %v1180 = vld [vmem:[%s995 + $0x30] sm:$0xff]
        %v1181 = vld [vmem:[%s995 + $0x38] sm:$0xff]
        %v1182 = vld [vmem:[%s995 + $0x40] sm:$0xff]
        %v1183 = vld [vmem:[%s995 + $0x48] sm:$0xff]
        %v1184 = vld [vmem:[%s995 + $0x50] sm:$0xff]
        %v1185 = vld [vmem:[%s995 + $0x58] sm:$0xff]
        %v1186 = vld [vmem:[%s995 + $0x60] sm:$0xff]
        %v1187 = vld [vmem:[%s995 + $0x68] sm:$0xff]
        %v1188 = vld [vmem:[%s995 + $0x70] sm:$0xff]
        %v1189 = vld [vmem:[%s995 + $0x78] sm:$0xff]
        %v1190 = vld [vmem:[%s995 + $0x80] sm:$0xff]
        %v1191 = vld [vmem:[%s995 + $0x88] sm:$0xff]
        %v1192 = vld [vmem:[%s995 + $0x90] sm:$0xff]
        %v1193 = vld [vmem:[%s995 + $0x98] sm:$0xff]
        %v1194 = vld [vmem:[%s995 + $0xa0] sm:$0xff]
        %v1195 = vld [vmem:[%s995 + $0xa8] sm:$0xff]
        %v1196 = vld [vmem:[%s995 + $0xb0] sm:$0xff]
        %v1197 = vld [vmem:[%s995 + $0xb8] sm:$0xff]
        %v1198 = vld [vmem:[%s995 + $0xc0] sm:$0xff]
        %v1199 = vld [vmem:[%s995 + $0xc8] sm:$0xff]
        %v1200 = vld [vmem:[%s995 + $0xd0] sm:$0xff]
        %v1201 = vld [vmem:[%s995 + $0xd8] sm:$0xff]
        %v1202 = vld [vmem:[%s995 + $0xe0] sm:$0xff]
        %v1203 = vld [vmem:[%s995 + $0xe8] sm:$0xff]
        %v1204 = vld [vmem:[%s995 + $0xf0] sm:$0xff]
        %v1205 = vld [vmem:[%s995 + $0xf8] sm:$0xff]
        %v1206 = vld [vmem:[#allocation2] sm:$0xff]
        %v1207 = vld [vmem:[#allocation2 + $0x8] sm:$0xff]
        %v1208 = vld [vmem:[%s1004] sm:$0xff]
        %v1209 = vld [vmem:[%s1004 + $0x8] sm:$0xff]
        %v1210 = vld [vmem:[%s1004 + $0x10] sm:$0xff]
        %v1211 = vld [vmem:[%s1004 + $0x18] sm:$0xff]
        %v1212 = vld [vmem:[%s1004 + $0x20] sm:$0xff]
        %v1213 = vld [vmem:[%s1004 + $0x28] sm:$0xff]
        %v1214 = vld [vmem:[%s1004 + $0x30] sm:$0xff]
        %v1215 = vld [vmem:[%s1004 + $0x38] sm:$0xff]
        %v1216 = vld [vmem:[%s1004 + $0x40] sm:$0xff]
        %v1217 = vld [vmem:[%s1004 + $0x48] sm:$0xff]
        %v1218 = vld [vmem:[%s1004 + $0x50] sm:$0xff]
        %v1219 = vld [vmem:[%s1004 + $0x58] sm:$0xff]
        %v1220 = vld [vmem:[%s1004 + $0x60] sm:$0xff]
        %v1221 = vld [vmem:[%s1004 + $0x68] sm:$0xff]
        %v1222 = vld [vmem:[%s1004 + $0x70] sm:$0xff]
        %v1223 = vld [vmem:[%s1004 + $0x78] sm:$0xff]
        %v1224 = vld [vmem:[%s1004 + $0x80] sm:$0xff]
        %v1225 = vld [vmem:[%s1004 + $0x88] sm:$0xff]
        %v1226 = vld [vmem:[%s1004 + $0x90] sm:$0xff]
        %v1227 = vld [vmem:[%s1004 + $0x98] sm:$0xff]
        %v1228 = vld [vmem:[%s1004 + $0xa0] sm:$0xff]
        %v1229 = vld [vmem:[%s1004 + $0xa8] sm:$0xff]
        %v1230 = vld [vmem:[%s1004 + $0xb0] sm:$0xff]
        %v1231 = vld [vmem:[%s1004 + $0xb8] sm:$0xff]
        %v1232 = vld [vmem:[%s1004 + $0xc0] sm:$0xff]
        %v1233 = vld [vmem:[%s1004 + $0xc8] sm:$0xff]
        %v1234 = vld [vmem:[%s1004 + $0xd0] sm:$0xff]
        %v1235 = vld [vmem:[%s1004 + $0xd8] sm:$0xff]
        %v1236 = vld [vmem:[%s1004 + $0xe0] sm:$0xff]
        %v1237 = vld [vmem:[%s1004 + $0xe8] sm:$0xff]
        %v1238 = vld [vmem:[%s1004 + $0xf0] sm:$0xff]
        %v1239 = vld [vmem:[%s1004 + $0xf8] sm:$0xff]
        %v1240 = vld [vmem:[%s1004 + $0x100] sm:$0xff]
        %v1241 = vld [vmem:[%s1004 + $0x108] sm:$0xff]
        %v1242 = vld [vmem:[%s1004 + $0x110] sm:$0xff]
        %v1243 = vld [vmem:[%s1004 + $0x118] sm:$0xff]
        %v1244 = vld [vmem:[%s1004 + $0x120] sm:$0xff]
        %v1245 = vld [vmem:[%s1004 + $0x128] sm:$0xff]
        %v1246 = vld [vmem:[%s1004 + $0x130] sm:$0xff]
        %v1247 = vld [vmem:[%s1004 + $0x138] sm:$0xff]
        %v1248 = vld [vmem:[%s1004 + $0x140] sm:$0xff]
        %v1249 = vld [vmem:[%s1004 + $0x148] sm:$0xff]
        %v1250 = vld [vmem:[%s1004 + $0x150] sm:$0xff]
        %v1251 = vld [vmem:[%s1004 + $0x158] sm:$0xff]
        %v1252 = vld [vmem:[%s1004 + $0x160] sm:$0xff]
        %v1253 = vld [vmem:[%s1004 + $0x168] sm:$0xff]
        %v1254 = vld [vmem:[%s1004 + $0x170] sm:$0xff]
        %v1255 = vld [vmem:[%s1004 + $0x178] sm:$0xff]
        %v1256 = vld [vmem:[%s1004 + $0x180] sm:$0xff]
        %v1257 = vld [vmem:[%s1004 + $0x188] sm:$0xff]
        %v1258 = vld [vmem:[%s1004 + $0x190] sm:$0xff]
        %v1259 = vld [vmem:[%s1004 + $0x198] sm:$0xff]
        %v1260 = vld [vmem:[%s1004 + $0x1a0] sm:$0xff]
        %v1261 = vld [vmem:[%s1004 + $0x1a8] sm:$0xff]
        %v1262 = vld [vmem:[%s1004 + $0x1b0] sm:$0xff]
        %v1263 = vld [vmem:[%s1004 + $0x1b8] sm:$0xff]
        %v1264 = vld [vmem:[%s1004 + $0x1c0] sm:$0xff]
        %v1265 = vld [vmem:[%s1004 + $0x1c8] sm:$0xff]
        %v1266 = vld [vmem:[%s1004 + $0x1d0] sm:$0xff]
        %v1267 = vld [vmem:[%s1004 + $0x1d8] sm:$0xff]
        %v1268 = vld [vmem:[%s1004 + $0x1e0] sm:$0xff]
        %v1269 = vld [vmem:[%s1004 + $0x1e8] sm:$0xff]
        %v1270 = vld [vmem:[%s1004 + $0x1f0] sm:$0xff]
        %v1271 = vld [vmem:[%s1004 + $0x1f8] sm:$0xff]
        %v1272 = vld [vmem:[%s1004 + $0x200] sm:$0xff]
        %v1273 = vld [vmem:[%s1004 + $0x208] sm:$0xff]
        %v1274 = vld [vmem:[%s1004 + $0x210] sm:$0xff]
        %v1275 = vld [vmem:[%s1004 + $0x218] sm:$0xff]
        %v1276 = vld [vmem:[%s1004 + $0x220] sm:$0xff]
        %v1277 = vld [vmem:[%s1004 + $0x228] sm:$0xff]
        %v1278 = vld [vmem:[%s1004 + $0x230] sm:$0xff]
        %v1279 = vld [vmem:[%s1004 + $0x238] sm:$0xff]
        %v1280 = vld [vmem:[%s1004 + $0x240] sm:$0xff]
        %v1281 = vld [vmem:[%s1004 + $0x248] sm:$0xff]
        %v1282 = vld [vmem:[%s1004 + $0x250] sm:$0xff]
        %v1283 = vld [vmem:[%s1004 + $0x258] sm:$0xff]
        %v1284 = vld [vmem:[%s1004 + $0x260] sm:$0xff]
        %v1285 = vld [vmem:[%s1004 + $0x268] sm:$0xff]
        %v1286 = vld [vmem:[%s1004 + $0x270] sm:$0xff]
        %v1287 = vld [vmem:[%s1004 + $0x278] sm:$0xff]
        %v1288 = vld [vmem:[%s1004 + $0x280] sm:$0xff]
        %v1289 = vld [vmem:[%s1004 + $0x288] sm:$0xff]
        %v1290 = vld [vmem:[%s1004 + $0x290] sm:$0xff]
        %v1291 = vld [vmem:[%s1004 + $0x298] sm:$0xff]
        %v1292 = vld [vmem:[%s1004 + $0x2a0] sm:$0xff]
        %v1293 = vld [vmem:[%s1004 + $0x2a8] sm:$0xff]
        %v1294 = vld [vmem:[%s1004 + $0x2b0] sm:$0xff]
        %v1295 = vld [vmem:[%s1004 + $0x2b8] sm:$0xff]
        %v1296 = vld [vmem:[%s1004 + $0x2c0] sm:$0xff]
        %v1297 = vld [vmem:[%s1004 + $0x2c8] sm:$0xff]
        %v1298 = vld [vmem:[%s1004 + $0x2d0] sm:$0xff]
        %v1299 = vld [vmem:[%s1004 + $0x2d8] sm:$0xff]
        %v1300 = vld [vmem:[%s1004 + $0x2e0] sm:$0xff]
        %v1301 = vld [vmem:[%s1004 + $0x2e8] sm:$0xff]
        %v1302 = vld [vmem:[%s1004 + $0x2f0] sm:$0xff]
        %v1303 = vld [vmem:[%s1004 + $0x2f8] sm:$0xff]
        %v1304 = vld [vmem:[%s1004 + $0x300] sm:$0xff]
        %v1305 = vld [vmem:[%s1004 + $0x308] sm:$0xff]
        %v1306 = vld [vmem:[%s1004 + $0x310] sm:$0xff]
        %v1307 = vld [vmem:[%s1004 + $0x318] sm:$0xff]
        %v1308 = vld [vmem:[%s1004 + $0x320] sm:$0xff]
        %v1309 = vld [vmem:[%s1004 + $0x328] sm:$0xff]
        %v1310 = vld [vmem:[%s1004 + $0x330] sm:$0xff]
        %v1311 = vld [vmem:[%s1004 + $0x338] sm:$0xff]
        %v1312 = vld [vmem:[%s1004 + $0x340] sm:$0xff]
        %v1313 = vld [vmem:[%s1004 + $0x348] sm:$0xff]
        %v1314 = vld [vmem:[%s1004 + $0x350] sm:$0xff]
        %v1315 = vld [vmem:[%s1004 + $0x358] sm:$0xff]
        %v1316 = vld [vmem:[%s1004 + $0x360] sm:$0xff]
        %v1317 = vld [vmem:[%s1004 + $0x368] sm:$0xff]
        %v1318 = vld [vmem:[%s1004 + $0x370] sm:$0xff]
        %v1319 = vld [vmem:[%s1004 + $0x378] sm:$0xff]
        %v1320 = vld [vmem:[%s1004 + $0x380] sm:$0xff]
        %v1321 = vld [vmem:[%s1004 + $0x388] sm:$0xff]
        %v1322 = vld [vmem:[%s1004 + $0x390] sm:$0xff]
        %v1323 = vld [vmem:[%s1004 + $0x398] sm:$0xff]
        %v1324 = vld [vmem:[%s1004 + $0x3a0] sm:$0xff]
        %v1325 = vld [vmem:[%s1004 + $0x3a8] sm:$0xff]
        %v1326 = vld [vmem:[%s1004 + $0x3b0] sm:$0xff]
        %v1327 = vld [vmem:[%s1004 + $0x3b8] sm:$0xff]
        %v1328 = vld [vmem:[%s1004 + $0x3c0] sm:$0xff]
        %v1329 = vld [vmem:[%s1004 + $0x3c8] sm:$0xff]
        %v1330 = vld [vmem:[%s1004 + $0x3d0] sm:$0xff]
        %v1331 = vld [vmem:[%s1004 + $0x3d8] sm:$0xff]
        %v1332 = vld [vmem:[%s1004 + $0x3e0] sm:$0xff]
        %v1333 = vld [vmem:[%s1004 + $0x3e8] sm:$0xff]
        %v1334 = vld [vmem:[%s1004 + $0x3f0] sm:$0xff]
        %v1335 = vld [vmem:[%s1004 + $0x3f8] sm:$0xff]
        %v1336 = vld [vmem:[%s1004 + $0x400] sm:$0xff]
        %v1337 = vld [vmem:[%s1004 + $0x408] sm:$0xff]
        %v1338 = vld [vmem:[%s1004 + $0x410] sm:$0xff]
        %v1339 = vld [vmem:[%s1004 + $0x418] sm:$0xff]
        %v1340 = vld [vmem:[%s1004 + $0x420] sm:$0xff]
        %v1341 = vld [vmem:[%s1004 + $0x428] sm:$0xff]
        %v1342 = vld [vmem:[%s1004 + $0x430] sm:$0xff]
        %v1343 = vld [vmem:[%s1004 + $0x438] sm:$0xff]
        %v1344 = vld [vmem:[%s1004 + $0x440] sm:$0xff]
        %v1345 = vld [vmem:[%s1004 + $0x448] sm:$0xff]
        %v1346 = vld [vmem:[%s1004 + $0x450] sm:$0xff]
        %v1347 = vld [vmem:[%s1004 + $0x458] sm:$0xff]
        %v1348 = vld [vmem:[%s1004 + $0x460] sm:$0xff]
        %v1349 = vld [vmem:[%s1004 + $0x468] sm:$0xff]
        %v1350 = vld [vmem:[%s1004 + $0x470] sm:$0xff]
        %v1351 = vld [vmem:[%s1004 + $0x478] sm:$0xff]
        %v1352 = vld [vmem:[%s1004 + $0x480] sm:$0xff]
        %v1353 = vld [vmem:[%s1004 + $0x488] sm:$0xff]
        %v1354 = vld [vmem:[%s1004 + $0x490] sm:$0xff]
        %v1355 = vld [vmem:[%s1004 + $0x498] sm:$0xff]
        %v1356 = vld [vmem:[%s1004 + $0x4a0] sm:$0xff]
        %v1357 = vld [vmem:[%s1004 + $0x4a8] sm:$0xff]
        %v1358 = vld [vmem:[%s1004 + $0x4b0] sm:$0xff]
        %v1359 = vld [vmem:[%s1004 + $0x4b8] sm:$0xff]
        %v1360 = vld [vmem:[%s1004 + $0x4c0] sm:$0xff]
        %v1361 = vld [vmem:[%s1004 + $0x4c8] sm:$0xff]
        %v1362 = vld [vmem:[%s1004 + $0x4d0] sm:$0xff]
        %v1363 = vld [vmem:[%s1004 + $0x4d8] sm:$0xff]
        %v1364 = vld [vmem:[%s1004 + $0x4e0] sm:$0xff]
        %v1365 = vld [vmem:[%s1004 + $0x4e8] sm:$0xff]
        %v1366 = vld [vmem:[%s1004 + $0x4f0] sm:$0xff]
        %v1367 = vld [vmem:[%s1004 + $0x4f8] sm:$0xff]
        %v1368 = vld [vmem:[%s1004 + $0x500] sm:$0xff]
        %v1369 = vld [vmem:[%s1004 + $0x508] sm:$0xff]
        %v1370 = vld [vmem:[%s1004 + $0x510] sm:$0xff]
        %v1371 = vld [vmem:[%s1004 + $0x518] sm:$0xff]
        %v1372 = vld [vmem:[%s1004 + $0x520] sm:$0xff]
        %v1373 = vld [vmem:[%s1004 + $0x528] sm:$0xff]
        %v1374 = vld [vmem:[%s1004 + $0x530] sm:$0xff]
        %v1375 = vld [vmem:[%s1004 + $0x538] sm:$0xff]
        %v1376 = vld [vmem:[%s1004 + $0x540] sm:$0xff]
        %v1377 = vld [vmem:[%s1004 + $0x548] sm:$0xff]
        %v1378 = vld [vmem:[%s1004 + $0x550] sm:$0xff]
        %v1379 = vld [vmem:[%s1004 + $0x558] sm:$0xff]
        %v1380 = vld [vmem:[%s1004 + $0x560] sm:$0xff]
        %v1381 = vld [vmem:[%s1004 + $0x568] sm:$0xff]
        %v1382 = vld [vmem:[%s1004 + $0x570] sm:$0xff]
        %v1383 = vld [vmem:[%s1004 + $0x578] sm:$0xff]
        %v1384 = vld [vmem:[%s1004 + $0x580] sm:$0xff]
        %v1385 = vld [vmem:[%s1004 + $0x588] sm:$0xff]
        %v1386 = vld [vmem:[%s1004 + $0x590] sm:$0xff]
        %v1387 = vld [vmem:[%s1004 + $0x598] sm:$0xff]
        %v1388 = vld [vmem:[%s1004 + $0x5a0] sm:$0xff]
        %v1389 = vld [vmem:[%s1004 + $0x5a8] sm:$0xff]
        %v1390 = vld [vmem:[%s1004 + $0x5b0] sm:$0xff]
        %v1391 = vld [vmem:[%s1004 + $0x5b8] sm:$0xff]
        %v1392 = vld [vmem:[%s1004 + $0x5c0] sm:$0xff]
        %v1393 = vld [vmem:[%s1004 + $0x5c8] sm:$0xff]
        %v1394 = vld [vmem:[%s1004 + $0x5d0] sm:$0xff]
        %v1395 = vld [vmem:[%s1004 + $0x5d8] sm:$0xff]
        %v1396 = vld [vmem:[%s1004 + $0x5e0] sm:$0xff]
        %v1397 = vld [vmem:[%s1004 + $0x5e8] sm:$0xff]
        %v1398 = vld [vmem:[%s1004 + $0x5f0] sm:$0xff]
        %v1399 = vld [vmem:[%s1004 + $0x5f8] sm:$0xff]
        %v1400 = vld [vmem:[%s1004 + $0x600] sm:$0xff]
        %v1401 = vld [vmem:[%s1004 + $0x608] sm:$0xff]
        %v1402 = vld [vmem:[%s1004 + $0x610] sm:$0xff]
        %v1403 = vld [vmem:[%s1004 + $0x618] sm:$0xff]
        %v1404 = vld [vmem:[%s1004 + $0x620] sm:$0xff]
        %v1405 = vld [vmem:[%s1004 + $0x628] sm:$0xff]
        %v1406 = vld [vmem:[%s1004 + $0x630] sm:$0xff]
        %v1407 = vld [vmem:[%s1004 + $0x638] sm:$0xff]
        %v1408 = vld [vmem:[%s1004 + $0x640] sm:$0xff]
        %v1409 = vld [vmem:[%s1004 + $0x648] sm:$0xff]
        %v1410 = vld [vmem:[%s1004 + $0x650] sm:$0xff]
        %v1411 = vld [vmem:[%s1004 + $0x658] sm:$0xff]
        %v1412 = vld [vmem:[%s1004 + $0x660] sm:$0xff]
        %v1413 = vld [vmem:[%s1004 + $0x668] sm:$0xff]
        %v1414 = vld [vmem:[%s1004 + $0x670] sm:$0xff]
        %v1415 = vld [vmem:[%s1004 + $0x678] sm:$0xff]
        %v1416 = vld [vmem:[%s1004 + $0x680] sm:$0xff]
        %v1417 = vld [vmem:[%s1004 + $0x688] sm:$0xff]
        %v1418 = vld [vmem:[%s1004 + $0x690] sm:$0xff]
        %v1419 = vld [vmem:[%s1004 + $0x698] sm:$0xff]
        %v1420 = vld [vmem:[%s1004 + $0x6a0] sm:$0xff]
        %v1421 = vld [vmem:[%s1004 + $0x6a8] sm:$0xff]
        %v1422 = vld [vmem:[%s1004 + $0x6b0] sm:$0xff]
        %v1423 = vld [vmem:[%s1004 + $0x6b8] sm:$0xff]
        %v1424 = vld [vmem:[%s1004 + $0x6c0] sm:$0xff]
        %v1425 = vld [vmem:[%s1004 + $0x6c8] sm:$0xff]
        %v1426 = vld [vmem:[%s1004 + $0x6d0] sm:$0xff]
        %v1427 = vld [vmem:[%s1004 + $0x6d8] sm:$0xff]
        %v1428 = vld [vmem:[%s1004 + $0x6e0] sm:$0xff]
        %v1429 = vld [vmem:[%s1004 + $0x6e8] sm:$0xff]
        %v1430 = vld [vmem:[%s1004 + $0x6f0] sm:$0xff]
        %v1431 = vld [vmem:[%s1004 + $0x6f8] sm:$0xff]
        %v1432 = vld [vmem:[%s1004 + $0x700] sm:$0xff]
        %v1433 = vld [vmem:[%s1004 + $0x708] sm:$0xff]
        %v1434 = vld [vmem:[%s1004 + $0x710] sm:$0xff]
        %v1435 = vld [vmem:[%s1004 + $0x718] sm:$0xff]
        %v1436 = vld [vmem:[%s1004 + $0x720] sm:$0xff]
        %v1437 = vld [vmem:[%s1004 + $0x728] sm:$0xff]
        %v1438 = vld [vmem:[%s1004 + $0x730] sm:$0xff]
        %v1439 = vld [vmem:[%s1004 + $0x738] sm:$0xff]
        %v1440 = vld [vmem:[%s1004 + $0x740] sm:$0xff]
        %v1441 = vld [vmem:[%s1004 + $0x748] sm:$0xff]
        %v1442 = vld [vmem:[%s1004 + $0x750] sm:$0xff]
        %v1443 = vld [vmem:[%s1004 + $0x758] sm:$0xff]
        %v1444 = vld [vmem:[%s1004 + $0x760] sm:$0xff]
        %v1445 = vld [vmem:[%s1004 + $0x768] sm:$0xff]
        %v1446 = vld [vmem:[%s1004 + $0x770] sm:$0xff]
        %v1447 = vld [vmem:[%s1004 + $0x778] sm:$0xff]
        %v1448 = vld [vmem:[%s1004 + $0x780] sm:$0xff]
        %v1449 = vld [vmem:[%s1004 + $0x788] sm:$0xff]
        %v1450 = vld [vmem:[%s1004 + $0x790] sm:$0xff]
        %v1451 = vld [vmem:[%s1004 + $0x798] sm:$0xff]
        %v1452 = vld [vmem:[%s1004 + $0x7a0] sm:$0xff]
        %v1453 = vld [vmem:[%s1004 + $0x7a8] sm:$0xff]
        %v1454 = vld [vmem:[%s1004 + $0x7b0] sm:$0xff]
        %v1455 = vld [vmem:[%s1004 + $0x7b8] sm:$0xff]
        %v1456 = vld [vmem:[%s1004 + $0x7c0] sm:$0xff]
        %v1457 = vld [vmem:[%s1004 + $0x7c8] sm:$0xff]
        %v1458 = vld [vmem:[%s1004 + $0x7d0] sm:$0xff]
        %v1459 = vld [vmem:[%s1004 + $0x7d8] sm:$0xff]
        %v1460 = vld [vmem:[%s1004 + $0x7e0] sm:$0xff]
        %v1461 = vld [vmem:[%s1004 + $0x7e8] sm:$0xff]
        %v1462 = vld [vmem:[%s1004 + $0x7f0] sm:$0xff]
        %v1463 = vld [vmem:[%s1004 + $0x7f8] sm:$0xff]
        %1464 = vmatprep.subr.mxu0 0.0
        %1465 = vmatpush1.msra.mxu0 %v1208
        %1466 = vmatprep.subr.mxu0 0.0
        %1467 = vmatpush1.msra.mxu0 %v1209
        %1468 = vmatprep.subr.mxu0 0.0
        %1469 = vmatpush1.msra.mxu0 %v1210
        %1470 = vmatprep.subr.mxu0 0.0
        %1471 = vmatpush1.msra.mxu0 %v1211
        %1472 = vmatprep.subr.mxu0 0.0
        %1473 = vmatpush1.msra.mxu0 %v1212
        %1474 = vmatprep.subr.mxu0 0.0
        %1475 = vmatpush1.msra.mxu0 %v1213
        %1476 = vmatprep.subr.mxu0 0.0
        %1477 = vmatpush1.msra.mxu0 %v1214
        %1478 = vmatprep.subr.mxu0 0.0
        %1479 = vmatpush1.msra.mxu0 %v1215
        %1480 = vmatprep.subr.mxu0 0.0
        %1481 = vmatpush1.msra.mxu0 %v1216
        %1482 = vmatprep.subr.mxu0 0.0
        %1483 = vmatpush1.msra.mxu0 %v1217
        %1484 = vmatprep.subr.mxu0 0.0
        %1485 = vmatpush1.msra.mxu0 %v1218
        %1486 = vmatprep.subr.mxu0 0.0
        %1487 = vmatpush1.msra.mxu0 %v1219
        %1488 = vmatprep.subr.mxu0 0.0
        %1489 = vmatpush1.msra.mxu0 %v1220
        %1490 = vmatprep.subr.mxu0 0.0
        %1491 = vmatpush1.msra.mxu0 %v1221
        %1492 = vmatprep.subr.mxu0 0.0
        %1493 = vmatpush1.msra.mxu0 %v1222
        %1494 = vmatprep.subr.mxu0 0.0
        %1495 = vmatpush1.msra.mxu0 %v1223
        %1496 = vmatprep.subr.mxu0 0.0
        %1497 = vmatpush1.msra.mxu0 %v1224
        %1498 = vmatprep.subr.mxu0 0.0
        %1499 = vmatpush1.msra.mxu0 %v1225
        %1500 = vmatprep.subr.mxu0 0.0
        %1501 = vmatpush1.msra.mxu0 %v1226
        %1502 = vmatprep.subr.mxu0 0.0
        %1503 = vmatpush1.msra.mxu0 %v1227
        %1504 = vmatprep.subr.mxu0 0.0
        %1505 = vmatpush1.msra.mxu0 %v1228
        %1506 = vmatprep.subr.mxu0 0.0
        %1507 = vmatpush1.msra.mxu0 %v1229
        %1508 = vmatprep.subr.mxu0 0.0
        %1509 = vmatpush1.msra.mxu0 %v1230
        %1510 = vmatprep.subr.mxu0 0.0
        %1511 = vmatpush1.msra.mxu0 %v1231
        %1512 = vmatprep.subr.mxu0 0.0
        %1513 = vmatpush1.msra.mxu0 %v1232
        %1514 = vmatprep.subr.mxu0 0.0
        %1515 = vmatpush1.msra.mxu0 %v1233
        %1516 = vmatprep.subr.mxu0 0.0
        %1517 = vmatpush1.msra.mxu0 %v1234
        %1518 = vmatprep.subr.mxu0 0.0
        %1519 = vmatpush1.msra.mxu0 %v1235
        %1520 = vmatprep.subr.mxu0 0.0
        %1521 = vmatpush1.msra.mxu0 %v1236
        %1522 = vmatprep.subr.mxu0 0.0
        %1523 = vmatpush1.msra.mxu0 %v1237
        %1524 = vmatprep.subr.mxu0 0.0
        %1525 = vmatpush1.msra.mxu0 %v1238
        %1526 = vmatprep.subr.mxu0 0.0
        %1527 = vmatpush1.msra.mxu0 %v1239
        %1528 = vmatprep.mubr.f32.mxu0 %v1175
        %1529 = vmatmul.mubr.f32.gmra.mrb[0].mxu0 %v1174
        %v1530 = vpop.f32.mrb[0].mxu0
        %v1531 = vadd.f32 0.0, %v1530
        %v1532 = vpop.f32.mrb[0].mxu0
        %1533 = vmatprep.mubr.f32.mxu0 %v1191
        %1534 = vmatmul.mubr.f32.gmra.mrb[0].mxu0 %v1190
        %v1535 = vpop.f32.mrb[0].mxu0
        %v1536 = vadd.f32 0.0, %v1535
        %v1537 = vpop.f32.mrb[0].mxu0
        %1538 = vdwg.mxu0
        %1539 = vmatprep.subr.mxu0 0.0
        %1540 = vmatpush1.msra.mxu0 %v1240
        %1541 = vmatprep.subr.mxu0 0.0
        %1542 = vmatpush1.msra.mxu0 %v1241
        %1543 = vmatprep.subr.mxu0 0.0
        %1544 = vmatpush1.msra.mxu0 %v1242
        %1545 = vmatprep.subr.mxu0 0.0
        %1546 = vmatpush1.msra.mxu0 %v1243
        %1547 = vmatprep.subr.mxu0 0.0
        %1548 = vmatpush1.msra.mxu0 %v1244
        %1549 = vmatprep.subr.mxu0 0.0
        %1550 = vmatpush1.msra.mxu0 %v1245
        %1551 = vmatprep.subr.mxu0 0.0
        %1552 = vmatpush1.msra.mxu0 %v1246
        %1553 = vmatprep.subr.mxu0 0.0
        %1554 = vmatpush1.msra.mxu0 %v1247
        %1555 = vmatprep.subr.mxu0 0.0
        %1556 = vmatpush1.msra.mxu0 %v1248
        %1557 = vmatprep.subr.mxu0 0.0
        %1558 = vmatpush1.msra.mxu0 %v1249
        %1559 = vmatprep.subr.mxu0 0.0
        %1560 = vmatpush1.msra.mxu0 %v1250
        %1561 = vmatprep.subr.mxu0 0.0
        %1562 = vmatpush1.msra.mxu0 %v1251
        %1563 = vmatprep.subr.mxu0 0.0
        %1564 = vmatpush1.msra.mxu0 %v1252
        %1565 = vmatprep.subr.mxu0 0.0
        %1566 = vmatpush1.msra.mxu0 %v1253
        %1567 = vmatprep.subr.mxu0 0.0
        %1568 = vmatpush1.msra.mxu0 %v1254
        %1569 = vmatprep.subr.mxu0 0.0
        %1570 = vmatpush1.msra.mxu0 %v1255
        %1571 = vmatprep.subr.mxu0 0.0
        %1572 = vmatpush1.msra.mxu0 %v1256
        %1573 = vmatprep.subr.mxu0 0.0
        %1574 = vmatpush1.msra.mxu0 %v1257
        %1575 = vmatprep.subr.mxu0 0.0
        %1576 = vmatpush1.msra.mxu0 %v1258
        %1577 = vmatprep.subr.mxu0 0.0
        %1578 = vmatpush1.msra.mxu0 %v1259
        %1579 = vmatprep.subr.mxu0 0.0
        %1580 = vmatpush1.msra.mxu0 %v1260
        %1581 = vmatprep.subr.mxu0 0.0
        %1582 = vmatpush1.msra.mxu0 %v1261
        %1583 = vmatprep.subr.mxu0 0.0
        %1584 = vmatpush1.msra.mxu0 %v1262
        %1585 = vmatprep.subr.mxu0 0.0
        %1586 = vmatpush1.msra.mxu0 %v1263
        %1587 = vmatprep.subr.mxu0 0.0
        %1588 = vmatpush1.msra.mxu0 %v1264
        %1589 = vmatprep.subr.mxu0 0.0
        %1590 = vmatpush1.msra.mxu0 %v1265
        %1591 = vmatprep.subr.mxu0 0.0
        %1592 = vmatpush1.msra.mxu0 %v1266
        %1593 = vmatprep.subr.mxu0 0.0
        %1594 = vmatpush1.msra.mxu0 %v1267
        %1595 = vmatprep.subr.mxu0 0.0
        %1596 = vmatpush1.msra.mxu0 %v1268
        %1597 = vmatprep.subr.mxu0 0.0
        %1598 = vmatpush1.msra.mxu0 %v1269
        %1599 = vmatprep.subr.mxu0 0.0
        %1600 = vmatpush1.msra.mxu0 %v1270
        %1601 = vmatprep.subr.mxu0 0.0
        %1602 = vmatpush1.msra.mxu0 %v1271
        %1603 = vmatprep.mubr.f32.mxu0 %v1177
        %1604 = vmatmul.mubr.f32.gmra.mrb[0].mxu0 %v1176
        %v1605 = vpop.f32.mrb[0].mxu0
        %v1606 = vadd.f32 %v1531, %v1605
        %v1607 = vpop.f32.mrb[0].mxu0
        %1608 = vmatprep.mubr.f32.mxu0 %v1193
        %1609 = vmatmul.mubr.f32.gmra.mrb[0].mxu0 %v1192
        %v1610 = vpop.f32.mrb[0].mxu0
        %v1611 = vadd.f32 %v1536, %v1610
        %v1612 = vpop.f32.mrb[0].mxu0
        %1613 = vdwg.mxu0
        %1614 = vmatprep.subr.mxu0 0.0
        %1615 = vmatpush1.msra.mxu0 %v1272
        %1616 = vmatprep.subr.mxu0 0.0
        %1617 = vmatpush1.msra.mxu0 %v1273
        %1618 = vmatprep.subr.mxu0 0.0
        %1619 = vmatpush1.msra.mxu0 %v1274
        %1620 = vmatprep.subr.mxu0 0.0
        %1621 = vmatpush1.msra.mxu0 %v1275
        %1622 = vmatprep.subr.mxu0 0.0
        %1623 = vmatpush1.msra.mxu0 %v1276
        %1624 = vmatprep.subr.mxu0 0.0
        %1625 = vmatpush1.msra.mxu0 %v1277
        %1626 = vmatprep.subr.mxu0 0.0
        %1627 = vmatpush1.msra.mxu0 %v1278
        %1628 = vmatprep.subr.mxu0 0.0
        %1629 = vmatpush1.msra.mxu0 %v1279
        %1630 = vmatprep.subr.mxu0 0.0
        %1631 = vmatpush1.msra.mxu0 %v1280
        %1632 = vmatprep.subr.mxu0 0.0
        %1633 = vmatpush1.msra.mxu0 %v1281
        %1634 = vmatprep.subr.mxu0 0.0
        %1635 = vmatpush1.msra.mxu0 %v1282
        %1636 = vmatprep.subr.mxu0 0.0
        %1637 = vmatpush1.msra.mxu0 %v1283
        %1638 = vmatprep.subr.mxu0 0.0
        %1639 = vmatpush1.msra.mxu0 %v1284
        %1640 = vmatprep.subr.mxu0 0.0
        %1641 = vmatpush1.msra.mxu0 %v1285
        %1642 = vmatprep.subr.mxu0 0.0
        %1643 = vmatpush1.msra.mxu0 %v1286
        %1644 = vmatprep.subr.mxu0 0.0
        %1645 = vmatpush1.msra.mxu0 %v1287
        %1646 = vmatprep.subr.mxu0 0.0
        %1647 = vmatpush1.msra.mxu0 %v1288
        %1648 = vmatprep.subr.mxu0 0.0
        %1649 = vmatpush1.msra.mxu0 %v1289
        %1650 = vmatprep.subr.mxu0 0.0
        %1651 = vmatpush1.msra.mxu0 %v1290
        %1652 = vmatprep.subr.mxu0 0.0
        %1653 = vmatpush1.msra.mxu0 %v1291
        %1654 = vmatprep.subr.mxu0 0.0
        %1655 = vmatpush1.msra.mxu0 %v1292
        %1656 = vmatprep.subr.mxu0 0.0
        %1657 = vmatpush1.msra.mxu0 %v1293
        %1658 = vmatprep.subr.mxu0 0.0
        %1659 = vmatpush1.msra.mxu0 %v1294
        %1660 = vmatprep.subr.mxu0 0.0
        %1661 = vmatpush1.msra.mxu0 %v1295
        %1662 = vmatprep.subr.mxu0 0.0
        %1663 = vmatpush1.msra.mxu0 %v1296
        %1664 = vmatprep.subr.mxu0 0.0
        %1665 = vmatpush1.msra.mxu0 %v1297
        %1666 = vmatprep.subr.mxu0 0.0
        %1667 = vmatpush1.msra.mxu0 %v1298
        %1668 = vmatprep.subr.mxu0 0.0
        %1669 = vmatpush1.msra.mxu0 %v1299
        %1670 = vmatprep.subr.mxu0 0.0
        %1671 = vmatpush1.msra.mxu0 %v1300
        %1672 = vmatprep.subr.mxu0 0.0
        %1673 = vmatpush1.msra.mxu0 %v1301
        %1674 = vmatprep.subr.mxu0 0.0
        %1675 = vmatpush1.msra.mxu0 %v1302
        %1676 = vmatprep.subr.mxu0 0.0
        %1677 = vmatpush1.msra.mxu0 %v1303
        %1678 = vmatprep.mubr.f32.mxu0 %v1179
        %1679 = vmatmul.mubr.f32.gmra.mrb[0].mxu0 %v1178
        %v1680 = vpop.f32.mrb[0].mxu0
        %v1681 = vadd.f32 %v1606, %v1680
        %v1682 = vpop.f32.mrb[0].mxu0
        %1683 = vmatprep.mubr.f32.mxu0 %v1195
        %1684 = vmatmul.mubr.f32.gmra.mrb[0].mxu0 %v1194
        %v1685 = vpop.f32.mrb[0].mxu0
        %v1686 = vadd.f32 %v1611, %v1685
        %v1687 = vpop.f32.mrb[0].mxu0
        %1688 = vdwg.mxu0
        %1689 = vmatprep.subr.mxu0 0.0
        %1690 = vmatpush1.msra.mxu0 %v1304
        %1691 = vmatprep.subr.mxu0 0.0
        %1692 = vmatpush1.msra.mxu0 %v1305
        %1693 = vmatprep.subr.mxu0 0.0
        %1694 = vmatpush1.msra.mxu0 %v1306
        %1695 = vmatprep.subr.mxu0 0.0
        %1696 = vmatpush1.msra.mxu0 %v1307
        %1697 = vmatprep.subr.mxu0 0.0
        %1698 = vmatpush1.msra.mxu0 %v1308
        %1699 = vmatprep.subr.mxu0 0.0
        %1700 = vmatpush1.msra.mxu0 %v1309
        %1701 = vmatprep.subr.mxu0 0.0
        %1702 = vmatpush1.msra.mxu0 %v1310
        %1703 = vmatprep.subr.mxu0 0.0
        %1704 = vmatpush1.msra.mxu0 %v1311
        %1705 = vmatprep.subr.mxu0 0.0
        %1706 = vmatpush1.msra.mxu0 %v1312
        %1707 = vmatprep.subr.mxu0 0.0
        %1708 = vmatpush1.msra.mxu0 %v1313
        %1709 = vmatprep.subr.mxu0 0.0
        %1710 = vmatpush1.msra.mxu0 %v1314
        %1711 = vmatprep.subr.mxu0 0.0
        %1712 = vmatpush1.msra.mxu0 %v1315
        %1713 = vmatprep.subr.mxu0 0.0
        %1714 = vmatpush1.msra.mxu0 %v1316
        %1715 = vmatprep.subr.mxu0 0.0
        %1716 = vmatpush1.msra.mxu0 %v1317
        %1717 = vmatprep.subr.mxu0 0.0
        %1718 = vmatpush1.msra.mxu0 %v1318
        %1719 = vmatprep.subr.mxu0 0.0
        %1720 = vmatpush1.msra.mxu0 %v1319
        %1721 = vmatprep.subr.mxu0 0.0
        %1722 = vmatpush1.msra.mxu0 %v1320
        %1723 = vmatprep.subr.mxu0 0.0
        %1724 = vmatpush1.msra.mxu0 %v1321
        %1725 = vmatprep.subr.mxu0 0.0
        %1726 = vmatpush1.msra.mxu0 %v1322
        %1727 = vmatprep.subr.mxu0 0.0
        %1728 = vmatpush1.msra.mxu0 %v1323
        %1729 = vmatprep.subr.mxu0 0.0
        %1730 = vmatpush1.msra.mxu0 %v1324
        %1731 = vmatprep.subr.mxu0 0.0
        %1732 = vmatpush1.msra.mxu0 %v1325
        %1733 = vmatprep.subr.mxu0 0.0
        %1734 = vmatpush1.msra.mxu0 %v1326
        %1735 = vmatprep.subr.mxu0 0.0
        %1736 = vmatpush1.msra.mxu0 %v1327
        %1737 = vmatprep.subr.mxu0 0.0
        %1738 = vmatpush1.msra.mxu0 %v1328
        %1739 = vmatprep.subr.mxu0 0.0
        %1740 = vmatpush1.msra.mxu0 %v1329
        %1741 = vmatprep.subr.mxu0 0.0
        %1742 = vmatpush1.msra.mxu0 %v1330
        %1743 = vmatprep.subr.mxu0 0.0
        %1744 = vmatpush1.msra.mxu0 %v1331
        %1745 = vmatprep.subr.mxu0 0.0
        %1746 = vmatpush1.msra.mxu0 %v1332
        %1747 = vmatprep.subr.mxu0 0.0
        %1748 = vmatpush1.msra.mxu0 %v1333
        %1749 = vmatprep.subr.mxu0 0.0
        %1750 = vmatpush1.msra.mxu0 %v1334
        %1751 = vmatprep.subr.mxu0 0.0
        %1752 = vmatpush1.msra.mxu0 %v1335
        %1753 = vmatprep.mubr.f32.mxu0 %v1181
        %1754 = vmatmul.mubr.f32.gmra.mrb[0].mxu0 %v1180
        %v1755 = vpop.f32.mrb[0].mxu0
        %v1756 = vadd.f32 %v1681, %v1755
        %v1757 = vpop.f32.mrb[0].mxu0
        %1758 = vmatprep.mubr.f32.mxu0 %v1197
        %1759 = vmatmul.mubr.f32.gmra.mrb[0].mxu0 %v1196
        %v1760 = vpop.f32.mrb[0].mxu0
        %v1761 = vadd.f32 %v1686, %v1760
        %v1762 = vpop.f32.mrb[0].mxu0
        %1763 = vdwg.mxu0
        %1764 = vmatprep.subr.mxu0 0.0
        %1765 = vmatpush1.msra.mxu0 %v1336
        %1766 = vmatprep.subr.mxu0 0.0
        %1767 = vmatpush1.msra.mxu0 %v1337
        %1768 = vmatprep.subr.mxu0 0.0
        %1769 = vmatpush1.msra.mxu0 %v1338
        %1770 = vmatprep.subr.mxu0 0.0
        %1771 = vmatpush1.msra.mxu0 %v1339
        %1772 = vmatprep.subr.mxu0 0.0
        %1773 = vmatpush1.msra.mxu0 %v1340
        %1774 = vmatprep.subr.mxu0 0.0
        %1775 = vmatpush1.msra.mxu0 %v1341
        %1776 = vmatprep.subr.mxu0 0.0
        %1777 = vmatpush1.msra.mxu0 %v1342
        %1778 = vmatprep.subr.mxu0 0.0
        %1779 = vmatpush1.msra.mxu0 %v1343
        %1780 = vmatprep.subr.mxu0 0.0
        %1781 = vmatpush1.msra.mxu0 %v1344
        %1782 = vmatprep.subr.mxu0 0.0
        %1783 = vmatpush1.msra.mxu0 %v1345
        %1784 = vmatprep.subr.mxu0 0.0
        %1785 = vmatpush1.msra.mxu0 %v1346
        %1786 = vmatprep.subr.mxu0 0.0
        %1787 = vmatpush1.msra.mxu0 %v1347
        %1788 = vmatprep.subr.mxu0 0.0
        %1789 = vmatpush1.msra.mxu0 %v1348
        %1790 = vmatprep.subr.mxu0 0.0
        %1791 = vmatpush1.msra.mxu0 %v1349
        %1792 = vmatprep.subr.mxu0 0.0
        %1793 = vmatpush1.msra.mxu0 %v1350
        %1794 = vmatprep.subr.mxu0 0.0
        %1795 = vmatpush1.msra.mxu0 %v1351
        %1796 = vmatprep.subr.mxu0 0.0
        %1797 = vmatpush1.msra.mxu0 %v1352
        %1798 = vmatprep.subr.mxu0 0.0
        %1799 = vmatpush1.msra.mxu0 %v1353
        %1800 = vmatprep.subr.mxu0 0.0
        %1801 = vmatpush1.msra.mxu0 %v1354
        %1802 = vmatprep.subr.mxu0 0.0
        %1803 = vmatpush1.msra.mxu0 %v1355
        %1804 = vmatprep.subr.mxu0 0.0
        %1805 = vmatpush1.msra.mxu0 %v1356
        %1806 = vmatprep.subr.mxu0 0.0
        %1807 = vmatpush1.msra.mxu0 %v1357
        %1808 = vmatprep.subr.mxu0 0.0
        %1809 = vmatpush1.msra.mxu0 %v1358
        %1810 = vmatprep.subr.mxu0 0.0
        %1811 = vmatpush1.msra.mxu0 %v1359
        %1812 = vmatprep.subr.mxu0 0.0
        %1813 = vmatpush1.msra.mxu0 %v1360
        %1814 = vmatprep.subr.mxu0 0.0
        %1815 = vmatpush1.msra.mxu0 %v1361
        %1816 = vmatprep.subr.mxu0 0.0
        %1817 = vmatpush1.msra.mxu0 %v1362
        %1818 = vmatprep.subr.mxu0 0.0
        %1819 = vmatpush1.msra.mxu0 %v1363
        %1820 = vmatprep.subr.mxu0 0.0
        %1821 = vmatpush1.msra.mxu0 %v1364
        %1822 = vmatprep.subr.mxu0 0.0
        %1823 = vmatpush1.msra.mxu0 %v1365
        %1824 = vmatprep.subr.mxu0 0.0
        %1825 = vmatpush1.msra.mxu0 %v1366
        %1826 = vmatprep.subr.mxu0 0.0
        %1827 = vmatpush1.msra.mxu0 %v1367
        %1828 = vmatprep.mubr.f32.mxu0 %v1183
        %1829 = vmatmul.mubr.f32.gmra.mrb[0].mxu0 %v1182
        %v1830 = vpop.f32.mrb[0].mxu0
        %v1831 = vadd.f32 %v1756, %v1830
        %v1832 = vpop.f32.mrb[0].mxu0
        %1833 = vmatprep.mubr.f32.mxu0 %v1199
        %1834 = vmatmul.mubr.f32.gmra.mrb[0].mxu0 %v1198
        %v1835 = vpop.f32.mrb[0].mxu0
        %v1836 = vadd.f32 %v1761, %v1835
        %v1837 = vpop.f32.mrb[0].mxu0
        %1838 = vdwg.mxu0
        %1839 = vmatprep.subr.mxu0 0.0
        %1840 = vmatpush1.msra.mxu0 %v1368
        %1841 = vmatprep.subr.mxu0 0.0
        %1842 = vmatpush1.msra.mxu0 %v1369
        %1843 = vmatprep.subr.mxu0 0.0
        %1844 = vmatpush1.msra.mxu0 %v1370
        %1845 = vmatprep.subr.mxu0 0.0
        %1846 = vmatpush1.msra.mxu0 %v1371
        %1847 = vmatprep.subr.mxu0 0.0
        %1848 = vmatpush1.msra.mxu0 %v1372
        %1849 = vmatprep.subr.mxu0 0.0
        %1850 = vmatpush1.msra.mxu0 %v1373
        %1851 = vmatprep.subr.mxu0 0.0
        %1852 = vmatpush1.msra.mxu0 %v1374
        %1853 = vmatprep.subr.mxu0 0.0
        %1854 = vmatpush1.msra.mxu0 %v1375
        %1855 = vmatprep.subr.mxu0 0.0
        %1856 = vmatpush1.msra.mxu0 %v1376
        %1857 = vmatprep.subr.mxu0 0.0
        %1858 = vmatpush1.msra.mxu0 %v1377
        %1859 = vmatprep.subr.mxu0 0.0
        %1860 = vmatpush1.msra.mxu0 %v1378
        %1861 = vmatprep.subr.mxu0 0.0
        %1862 = vmatpush1.msra.mxu0 %v1379
        %1863 = vmatprep.subr.mxu0 0.0
        %1864 = vmatpush1.msra.mxu0 %v1380
        %1865 = vmatprep.subr.mxu0 0.0
        %1866 = vmatpush1.msra.mxu0 %v1381
        %1867 = vmatprep.subr.mxu0 0.0
        %1868 = vmatpush1.msra.mxu0 %v1382
        %1869 = vmatprep.subr.mxu0 0.0
        %1870 = vmatpush1.msra.mxu0 %v1383
        %1871 = vmatprep.subr.mxu0 0.0
        %1872 = vmatpush1.msra.mxu0 %v1384
        %1873 = vmatprep.subr.mxu0 0.0
        %1874 = vmatpush1.msra.mxu0 %v1385
        %1875 = vmatprep.subr.mxu0 0.0
        %1876 = vmatpush1.msra.mxu0 %v1386
        %1877 = vmatprep.subr.mxu0 0.0
        %1878 = vmatpush1.msra.mxu0 %v1387
        %1879 = vmatprep.subr.mxu0 0.0
        %1880 = vmatpush1.msra.mxu0 %v1388
        %1881 = vmatprep.subr.mxu0 0.0
        %1882 = vmatpush1.msra.mxu0 %v1389
        %1883 = vmatprep.subr.mxu0 0.0
        %1884 = vmatpush1.msra.mxu0 %v1390
        %1885 = vmatprep.subr.mxu0 0.0
        %1886 = vmatpush1.msra.mxu0 %v1391
        %1887 = vmatprep.subr.mxu0 0.0
        %1888 = vmatpush1.msra.mxu0 %v1392
        %1889 = vmatprep.subr.mxu0 0.0
        %1890 = vmatpush1.msra.mxu0 %v1393
        %1891 = vmatprep.subr.mxu0 0.0
        %1892 = vmatpush1.msra.mxu0 %v1394
        %1893 = vmatprep.subr.mxu0 0.0
        %1894 = vmatpush1.msra.mxu0 %v1395
        %1895 = vmatprep.subr.mxu0 0.0
        %1896 = vmatpush1.msra.mxu0 %v1396
        %1897 = vmatprep.subr.mxu0 0.0
        %1898 = vmatpush1.msra.mxu0 %v1397
        %1899 = vmatprep.subr.mxu0 0.0
        %1900 = vmatpush1.msra.mxu0 %v1398
        %1901 = vmatprep.subr.mxu0 0.0
        %1902 = vmatpush1.msra.mxu0 %v1399
        %1903 = vmatprep.mubr.f32.mxu0 %v1185
        %1904 = vmatmul.mubr.f32.gmra.mrb[0].mxu0 %v1184
        %v1905 = vpop.f32.mrb[0].mxu0
        %v1906 = vadd.f32 %v1831, %v1905
        %v1907 = vpop.f32.mrb[0].mxu0
        %1908 = vmatprep.mubr.f32.mxu0 %v1201
        %1909 = vmatmul.mubr.f32.gmra.mrb[0].mxu0 %v1200
        %v1910 = vpop.f32.mrb[0].mxu0
        %v1911 = vadd.f32 %v1836, %v1910
        %v1912 = vpop.f32.mrb[0].mxu0
        %1913 = vdwg.mxu0
        %1914 = vmatprep.subr.mxu0 0.0
        %1915 = vmatpush1.msra.mxu0 %v1400
        %1916 = vmatprep.subr.mxu0 0.0
        %1917 = vmatpush1.msra.mxu0 %v1401
        %1918 = vmatprep.subr.mxu0 0.0
        %1919 = vmatpush1.msra.mxu0 %v1402
        %1920 = vmatprep.subr.mxu0 0.0
        %1921 = vmatpush1.msra.mxu0 %v1403
        %1922 = vmatprep.subr.mxu0 0.0
        %1923 = vmatpush1.msra.mxu0 %v1404
        %1924 = vmatprep.subr.mxu0 0.0
        %1925 = vmatpush1.msra.mxu0 %v1405
        %1926 = vmatprep.subr.mxu0 0.0
        %1927 = vmatpush1.msra.mxu0 %v1406
        %1928 = vmatprep.subr.mxu0 0.0
        %1929 = vmatpush1.msra.mxu0 %v1407
        %1930 = vmatprep.subr.mxu0 0.0
        %1931 = vmatpush1.msra.mxu0 %v1408
        %1932 = vmatprep.subr.mxu0 0.0
        %1933 = vmatpush1.msra.mxu0 %v1409
        %1934 = vmatprep.subr.mxu0 0.0
        %1935 = vmatpush1.msra.mxu0 %v1410
        %1936 = vmatprep.subr.mxu0 0.0
        %1937 = vmatpush1.msra.mxu0 %v1411
        %1938 = vmatprep.subr.mxu0 0.0
        %1939 = vmatpush1.msra.mxu0 %v1412
        %1940 = vmatprep.subr.mxu0 0.0
        %1941 = vmatpush1.msra.mxu0 %v1413
        %1942 = vmatprep.subr.mxu0 0.0
        %1943 = vmatpush1.msra.mxu0 %v1414
        %1944 = vmatprep.subr.mxu0 0.0
        %1945 = vmatpush1.msra.mxu0 %v1415
        %1946 = vmatprep.subr.mxu0 0.0
        %1947 = vmatpush1.msra.mxu0 %v1416
        %1948 = vmatprep.subr.mxu0 0.0
        %1949 = vmatpush1.msra.mxu0 %v1417
        %1950 = vmatprep.subr.mxu0 0.0
        %1951 = vmatpush1.msra.mxu0 %v1418
        %1952 = vmatprep.subr.mxu0 0.0
        %1953 = vmatpush1.msra.mxu0 %v1419
        %1954 = vmatprep.subr.mxu0 0.0
        %1955 = vmatpush1.msra.mxu0 %v1420
        %1956 = vmatprep.subr.mxu0 0.0
        %1957 = vmatpush1.msra.mxu0 %v1421
        %1958 = vmatprep.subr.mxu0 0.0
        %1959 = vmatpush1.msra.mxu0 %v1422
        %1960 = vmatprep.subr.mxu0 0.0
        %1961 = vmatpush1.msra.mxu0 %v1423
        %1962 = vmatprep.subr.mxu0 0.0
        %1963 = vmatpush1.msra.mxu0 %v1424
        %1964 = vmatprep.subr.mxu0 0.0
        %1965 = vmatpush1.msra.mxu0 %v1425
        %1966 = vmatprep.subr.mxu0 0.0
        %1967 = vmatpush1.msra.mxu0 %v1426
        %1968 = vmatprep.subr.mxu0 0.0
        %1969 = vmatpush1.msra.mxu0 %v1427
        %1970 = vmatprep.subr.mxu0 0.0
        %1971 = vmatpush1.msra.mxu0 %v1428
        %1972 = vmatprep.subr.mxu0 0.0
        %1973 = vmatpush1.msra.mxu0 %v1429
        %1974 = vmatprep.subr.mxu0 0.0
        %1975 = vmatpush1.msra.mxu0 %v1430
        %1976 = vmatprep.subr.mxu0 0.0
        %1977 = vmatpush1.msra.mxu0 %v1431
        %1978 = vmatprep.mubr.f32.mxu0 %v1187
        %1979 = vmatmul.mubr.f32.gmra.mrb[0].mxu0 %v1186
        %v1980 = vpop.f32.mrb[0].mxu0
        %v1981 = vadd.f32 %v1906, %v1980
        %v1982 = vpop.f32.mrb[0].mxu0
        %1983 = vmatprep.mubr.f32.mxu0 %v1203
        %1984 = vmatmul.mubr.f32.gmra.mrb[0].mxu0 %v1202
        %v1985 = vpop.f32.mrb[0].mxu0
        %v1986 = vadd.f32 %v1911, %v1985
        %v1987 = vpop.f32.mrb[0].mxu0
        %1988 = vdwg.mxu0
        %1989 = vmatprep.subr.mxu0 0.0
        %1990 = vmatpush1.msra.mxu0 %v1432
        %1991 = vmatprep.subr.mxu0 0.0
        %1992 = vmatpush1.msra.mxu0 %v1433
        %1993 = vmatprep.subr.mxu0 0.0
        %1994 = vmatpush1.msra.mxu0 %v1434
        %1995 = vmatprep.subr.mxu0 0.0
        %1996 = vmatpush1.msra.mxu0 %v1435
        %1997 = vmatprep.subr.mxu0 0.0
        %1998 = vmatpush1.msra.mxu0 %v1436
        %1999 = vmatprep.subr.mxu0 0.0
        %2000 = vmatpush1.msra.mxu0 %v1437
        %2001 = vmatprep.subr.mxu0 0.0
        %2002 = vmatpush1.msra.mxu0 %v1438
        %2003 = vmatprep.subr.mxu0 0.0
        %2004 = vmatpush1.msra.mxu0 %v1439
        %2005 = vmatprep.subr.mxu0 0.0
        %2006 = vmatpush1.msra.mxu0 %v1440
        %2007 = vmatprep.subr.mxu0 0.0
        %2008 = vmatpush1.msra.mxu0 %v1441
        %2009 = vmatprep.subr.mxu0 0.0
        %2010 = vmatpush1.msra.mxu0 %v1442
        %2011 = vmatprep.subr.mxu0 0.0
        %2012 = vmatpush1.msra.mxu0 %v1443
        %2013 = vmatprep.subr.mxu0 0.0
        %2014 = vmatpush1.msra.mxu0 %v1444
        %2015 = vmatprep.subr.mxu0 0.0
        %2016 = vmatpush1.msra.mxu0 %v1445
        %2017 = vmatprep.subr.mxu0 0.0
        %2018 = vmatpush1.msra.mxu0 %v1446
        %2019 = vmatprep.subr.mxu0 0.0
        %2020 = vmatpush1.msra.mxu0 %v1447
        %2021 = vmatprep.subr.mxu0 0.0
        %2022 = vmatpush1.msra.mxu0 %v1448
        %2023 = vmatprep.subr.mxu0 0.0
        %2024 = vmatpush1.msra.mxu0 %v1449
        %2025 = vmatprep.subr.mxu0 0.0
        %2026 = vmatpush1.msra.mxu0 %v1450
        %2027 = vmatprep.subr.mxu0 0.0
        %2028 = vmatpush1.msra.mxu0 %v1451
        %2029 = vmatprep.subr.mxu0 0.0
        %2030 = vmatpush1.msra.mxu0 %v1452
        %2031 = vmatprep.subr.mxu0 0.0
        %2032 = vmatpush1.msra.mxu0 %v1453
        %2033 = vmatprep.subr.mxu0 0.0
        %2034 = vmatpush1.msra.mxu0 %v1454
        %2035 = vmatprep.subr.mxu0 0.0
        %2036 = vmatpush1.msra.mxu0 %v1455
        %2037 = vmatprep.subr.mxu0 0.0
        %2038 = vmatpush1.msra.mxu0 %v1456
        %2039 = vmatprep.subr.mxu0 0.0
        %2040 = vmatpush1.msra.mxu0 %v1457
        %2041 = vmatprep.subr.mxu0 0.0
        %2042 = vmatpush1.msra.mxu0 %v1458
        %2043 = vmatprep.subr.mxu0 0.0
        %2044 = vmatpush1.msra.mxu0 %v1459
        %2045 = vmatprep.subr.mxu0 0.0
        %2046 = vmatpush1.msra.mxu0 %v1460
        %2047 = vmatprep.subr.mxu0 0.0
        %2048 = vmatpush1.msra.mxu0 %v1461
        %2049 = vmatprep.subr.mxu0 0.0
        %2050 = vmatpush1.msra.mxu0 %v1462
        %2051 = vmatprep.subr.mxu0 0.0
        %2052 = vmatpush1.msra.mxu0 %v1463
        %2053 = vmatprep.mubr.f32.mxu0 %v1189
        %2054 = vmatmul.mubr.f32.gmra.mrb[0].mxu0 %v1188
        %v2055 = vpop.f32.mrb[0].mxu0
        %v2056 = vadd.f32 %v1981, %v2055
        %v2057 = vpop.f32.mrb[0].mxu0
        %2058 = vmatprep.mubr.f32.mxu0 %v1205
        %2059 = vmatmul.mubr.f32.gmra.mrb[0].mxu0 %v1204
        %v2060 = vpop.f32.mrb[0].mxu0
        %v2061 = vadd.f32 %v1986, %v2060
        %v2062 = vpop.f32.mrb[0].mxu0
        %2063 = vdwg.mxu0
        %v2064 = vadd.f32 %v1206, %v2056
        %v2065 = vadd.f32 %v1207, %v2061
        %2066 = vst [vmem:[#allocation2] sm:$0xff] %v2064
        %2067 = vst [vmem:[#allocation2 + $0x8] sm:$0xff] %v2065
        %v2068 = vld [vmem:[#allocation3] sm:$0xff]
        %v2069 = vld [vmem:[#allocation3 + $0x8] sm:$0xff]
        %v2070 = vmul.f32 %v1174, %v1174
        %v2071 = vmul.f32 %v1175, %v1175
        %v2072 = vmul.f32 %v1176, %v1176
        %v2073 = vmul.f32 %v1177, %v1177
        %v2074 = vmul.f32 %v1178, %v1178
        %v2075 = vmul.f32 %v1179, %v1179
        %v2076 = vmul.f32 %v1180, %v1180
        %v2077 = vmul.f32 %v1181, %v1181
        %v2078 = vmul.f32 %v1182, %v1182
        %v2079 = vmul.f32 %v1183, %v1183
        %v2080 = vmul.f32 %v1184, %v1184
        %v2081 = vmul.f32 %v1185, %v1185
        %v2082 = vmul.f32 %v1186, %v1186
        %v2083 = vmul.f32 %v1187, %v1187
        %v2084 = vmul.f32 %v1188, %v1188
        %v2085 = vmul.f32 %v1189, %v1189
        %v2086 = vmul.f32 %v1190, %v1190
        %v2087 = vmul.f32 %v1191, %v1191
        %v2088 = vmul.f32 %v1192, %v1192
        %v2089 = vmul.f32 %v1193, %v1193
        %v2090 = vmul.f32 %v1194, %v1194
        %v2091 = vmul.f32 %v1195, %v1195
        %v2092 = vmul.f32 %v1196, %v1196
        %v2093 = vmul.f32 %v1197, %v1197
        %v2094 = vmul.f32 %v1198, %v1198
        %v2095 = vmul.f32 %v1199, %v1199
        %v2096 = vmul.f32 %v1200, %v1200
        %v2097 = vmul.f32 %v1201, %v1201
        %v2098 = vmul.f32 %v1202, %v1202
        %v2099 = vmul.f32 %v1203, %v1203
        %v2100 = vmul.f32 %v1204, %v1204
        %v2101 = vmul.f32 %v1205, %v1205
        %v2102 = vadd.f32 %v2070, %v2071
        %v2103 = vadd.f32 %v2102, %v2072
        %v2104 = vadd.f32 %v2103, %v2073
        %v2105 = vadd.f32 %v2104, %v2074
        %v2106 = vadd.f32 %v2105, %v2075
        %v2107 = vadd.f32 %v2106, %v2076
        %v2108 = vadd.f32 %v2107, %v2077
        %v2109 = vadd.f32 %v2108, %v2078
        %v2110 = vadd.f32 %v2109, %v2079
        %v2111 = vadd.f32 %v2110, %v2080
        %v2112 = vadd.f32 %v2111, %v2081
        %v2113 = vadd.f32 %v2112, %v2082
        %v2114 = vadd.f32 %v2113, %v2083
        %v2115 = vadd.f32 %v2114, %v2084
        %v2116 = vadd.f32 %v2115, %v2085
        %2117 = vadd.xlane.f32.xlu0 %v2116
        %v2118 = vpop.xlane.xlu0 %2117
        %v2119 = vadd.f32 %v2086, %v2087
        %v2120 = vadd.f32 %v2119, %v2088
        %v2121 = vadd.f32 %v2120, %v2089
        %v2122 = vadd.f32 %v2121, %v2090
        %v2123 = vadd.f32 %v2122, %v2091
        %v2124 = vadd.f32 %v2123, %v2092
        %v2125 = vadd.f32 %v2124, %v2093
        %v2126 = vadd.f32 %v2125, %v2094
        %v2127 = vadd.f32 %v2126, %v2095
        %v2128 = vadd.f32 %v2127, %v2096
        %v2129 = vadd.f32 %v2128, %v2097
        %v2130 = vadd.f32 %v2129, %v2098
        %v2131 = vadd.f32 %v2130, %v2099
        %v2132 = vadd.f32 %v2131, %v2100
        %v2133 = vadd.f32 %v2132, %v2101
        %2134 = vadd.xlane.f32.xlu0 %v2133
        %v2135 = vpop.xlane.xlu0 %2134
        %v2136 = vadd.f32 %v2068, %v2118
        %v2137 = vadd.f32 %v2069, %v2135
        %vm2138 = vcmask 7168
        %2139 = vst.msk [vmem:[#allocation3] sm:$0xff] %vm2138, %v2136
        %2140 = vst.msk [vmem:[#allocation3 + $0x8] sm:$0xff] %vm2138, %v2137
        %p2141 = scmp.eq.s32.totalorder %s57, 4
        // Predicated region
        $region229: #{tpu_custom_call.1} parent=127 // pred_check
          %p2142 = pneg %p2141
        $region230: #{tpu_custom_call.1} parent=127 // pred_check_branch
          %2144 = sbr.rel (%p2142) target = $region232
        $region231: #{tpu_custom_call.1} parent=127 // pred_region
          %v2145 = vld [vmem:[#allocation2] sm:$0xff]
          %v2146 = vld [vmem:[#allocation2 + $0x8] sm:$0xff]
          %v2147 = vld [vmem:[#allocation3] sm:$0xff]
          %v2148 = vld [vmem:[#allocation3 + $0x8] sm:$0xff]
          %v2149 = vmax.f32 %v2147, 1e-24
          %v2150 = vmax.f32 %v2148, 1e-24
          %v2151 = vrsqrt.pop %v2149
          %v2152 = vrsqrt.pop %v2150
          %2154 = vset.pattern.permute.xlu0 0
          %2155 = vperm.xlu0 %2154, %v2151
          %v2156 = vpop.permute.xlu0 %2155
          %2159 = vset.pattern.permute.xlu0 0
          %2160 = vperm.xlu0 %2159, %v2152
          %v2161 = vpop.permute.xlu0 %2160
          %v2163 = vmul.f32 %v2145, %v2156
          %v2164 = vmul.f32 %v2146, %v2161
          %v2165 = vld [vmem:[#allocation9] sm:$0x1]
          %v2167 = vlaneseq
          %v2168 = vshrl.u32 %v2167, 7
          %v2169 = vsub.s32 0, %v2168
          %v2170 = vrot.slane %v2165, %v2169
          %v2172 = vadd.f32 %v2163, %v2170
          %v2173 = vadd.f32 %v2164, %v2170
          %v2174 = vmax.f32 %v2172, 0.0
          %v2175 = vmax.f32 %v2173, 0.0
          %v2176 = vld [vmem:[#allocation10] sm:$0xff]
          %v2177 = vld [vmem:[#allocation10 + $0x8] sm:$0xff]
          %v2178 = vld [vmem:[#allocation12] sm:$0xff]
          %v2179 = vld [vmem:[#allocation12 + $0x8] sm:$0xff]
          %v2180 = vld [vmem:[#allocation13] sm:$0xff]
          %v2181 = vld [vmem:[#allocation13 + $0x8] sm:$0xff]
          %v2182 = vld [vmem:[#allocation13 + $0x10] sm:$0xff]
          %v2183 = vld [vmem:[#allocation13 + $0x18] sm:$0xff]
          %v2184 = vld [vmem:[#allocation13 + $0x20] sm:$0xff]
          %v2185 = vld [vmem:[#allocation13 + $0x28] sm:$0xff]
          %v2186 = vld [vmem:[#allocation13 + $0x30] sm:$0xff]
          %v2187 = vld [vmem:[#allocation13 + $0x38] sm:$0xff]
          %v2188 = vld [vmem:[#allocation13 + $0x40] sm:$0xff]
          %v2189 = vld [vmem:[#allocation13 + $0x48] sm:$0xff]
          %v2190 = vld [vmem:[#allocation13 + $0x50] sm:$0xff]
          %v2191 = vld [vmem:[#allocation13 + $0x58] sm:$0xff]
          %v2192 = vld [vmem:[#allocation13 + $0x60] sm:$0xff]
          %v2193 = vld [vmem:[#allocation13 + $0x68] sm:$0xff]
          %v2194 = vld [vmem:[#allocation13 + $0x70] sm:$0xff]
          %v2195 = vld [vmem:[#allocation13 + $0x78] sm:$0xff]
          %v2196 = vld [vmem:[#allocation15] sm:$0xff]
          %v2197 = vld [vmem:[#allocation15 + $0x8] sm:$0xff]
          %v2198 = vld [vmem:[#allocation15 + $0x10] sm:$0xff]
          %v2199 = vld [vmem:[#allocation15 + $0x18] sm:$0xff]
          %v2200 = vld [vmem:[#allocation15 + $0x20] sm:$0xff]
          %v2201 = vld [vmem:[#allocation15 + $0x28] sm:$0xff]
          %v2202 = vld [vmem:[#allocation15 + $0x30] sm:$0xff]
          %v2203 = vld [vmem:[#allocation15 + $0x38] sm:$0xff]
          %v2204 = vld [vmem:[#allocation15 + $0x40] sm:$0xff]
          %v2205 = vld [vmem:[#allocation15 + $0x48] sm:$0xff]
          %v2206 = vld [vmem:[#allocation15 + $0x50] sm:$0xff]
          %v2207 = vld [vmem:[#allocation15 + $0x58] sm:$0xff]
          %v2208 = vld [vmem:[#allocation15 + $0x60] sm:$0xff]
          %v2209 = vld [vmem:[#allocation15 + $0x68] sm:$0xff]
          %v2210 = vld [vmem:[#allocation15 + $0x70] sm:$0xff]
          %v2211 = vld [vmem:[#allocation15 + $0x78] sm:$0xff]
          %2212 = vmatprep.subr.mxu0 0.0
          %2213 = vmatpush1.msra.mxu0 %v2196
          %2214 = vmatprep.subr.mxu0 0.0
          %2215 = vmatpush1.msra.mxu0 %v2197
          %2216 = vmatprep.subr.mxu0 0.0
          %2217 = vmatpush1.msra.mxu0 %v2198
          %2218 = vmatprep.subr.mxu0 0.0
          %2219 = vmatpush1.msra.mxu0 %v2199
          %2220 = vmatprep.subr.mxu0 0.0
          %2221 = vmatpush1.msra.mxu0 %v2200
          %2222 = vmatprep.subr.mxu0 0.0
          %2223 = vmatpush1.msra.mxu0 %v2201
          %2224 = vmatprep.subr.mxu0 0.0
          %2225 = vmatpush1.msra.mxu0 %v2202
          %2226 = vmatprep.subr.mxu0 0.0
          %2227 = vmatpush1.msra.mxu0 %v2203
          %2228 = vmatprep.subr.mxu0 0.0
          %2229 = vmatpush1.msra.mxu0 %v2204
          %2230 = vmatprep.subr.mxu0 0.0
          %2231 = vmatpush1.msra.mxu0 %v2205
          %2232 = vmatprep.subr.mxu0 0.0
          %2233 = vmatpush1.msra.mxu0 %v2206
          %2234 = vmatprep.subr.mxu0 0.0
          %2235 = vmatpush1.msra.mxu0 %v2207
          %2236 = vmatprep.subr.mxu0 0.0
          %2237 = vmatpush1.msra.mxu0 %v2208
          %2238 = vmatprep.subr.mxu0 0.0
          %2239 = vmatpush1.msra.mxu0 %v2209
          %2240 = vmatprep.subr.mxu0 0.0
          %2241 = vmatpush1.msra.mxu0 %v2210
          %2242 = vmatprep.subr.mxu0 0.0
          %2243 = vmatpush1.msra.mxu0 %v2211
          %2244 = vmatprep.subr.mxu0 0.0
          %2245 = vmatpush1.msra.mxu0 0.0
          %2246 = vmatprep.subr.mxu0 0.0
          %2247 = vmatpush1.msra.mxu0 0.0
          %2248 = vmatprep.subr.mxu0 0.0
          %2249 = vmatpush1.msra.mxu0 0.0
          %2250 = vmatprep.subr.mxu0 0.0
          %2251 = vmatpush1.msra.mxu0 0.0
          %2252 = vmatprep.subr.mxu0 0.0
          %2253 = vmatpush1.msra.mxu0 0.0
          %2254 = vmatprep.subr.mxu0 0.0
          %2255 = vmatpush1.msra.mxu0 0.0
          %2256 = vmatprep.subr.mxu0 0.0
          %2257 = vmatpush1.msra.mxu0 0.0
          %2258 = vmatprep.subr.mxu0 0.0
          %2259 = vmatpush1.msra.mxu0 0.0
          %2260 = vmatprep.subr.mxu0 0.0
          %2261 = vmatpush1.msra.mxu0 0.0
          %2262 = vmatprep.subr.mxu0 0.0
          %2263 = vmatpush1.msra.mxu0 0.0
          %2264 = vmatprep.subr.mxu0 0.0
          %2265 = vmatpush1.msra.mxu0 0.0
          %2266 = vmatprep.subr.mxu0 0.0
          %2267 = vmatpush1.msra.mxu0 0.0
          %2268 = vmatprep.subr.mxu0 0.0
          %2269 = vmatpush1.msra.mxu0 0.0
          %2270 = vmatprep.subr.mxu0 0.0
          %2271 = vmatpush1.msra.mxu0 0.0
          %2272 = vmatprep.subr.mxu0 0.0
          %2273 = vmatpush1.msra.mxu0 0.0
          %2274 = vmatprep.subr.mxu0 0.0
          %2275 = vmatpush1.msra.mxu0 0.0
          %2276 = vmatprep.mubr.f32.mxu0 0.0
          %2277 = vmatmul.mubr.f32.gmra.mrb[0].mxu0 %v2178
          %v2278 = vpop.f32.mrb[0].mxu0
          %v2279 = vadd.f32 0.0, %v2278
          %v2280 = vpop.f32.mrb[0].mxu0
          %2281 = vmatprep.mubr.f32.mxu0 0.0
          %2282 = vmatmul.mubr.f32.gmra.mrb[0].mxu0 %v2179
          %v2283 = vpop.f32.mrb[0].mxu0
          %v2284 = vadd.f32 0.0, %v2283
          %v2285 = vpop.f32.mrb[0].mxu0
          %2286 = vdwg.mxu0
          %2287 = vmatprep.subr.mxu0 0.0
          %2288 = vmatpush1.msra.mxu0 %v2180
          %2289 = vmatprep.subr.mxu0 0.0
          %2290 = vmatpush1.msra.mxu0 %v2181
          %2291 = vmatprep.subr.mxu0 0.0
          %2292 = vmatpush1.msra.mxu0 %v2182
          %2293 = vmatprep.subr.mxu0 0.0
          %2294 = vmatpush1.msra.mxu0 %v2183
          %2295 = vmatprep.subr.mxu0 0.0
          %2296 = vmatpush1.msra.mxu0 %v2184
          %2297 = vmatprep.subr.mxu0 0.0
          %2298 = vmatpush1.msra.mxu0 %v2185
          %2299 = vmatprep.subr.mxu0 0.0
          %2300 = vmatpush1.msra.mxu0 %v2186
          %2301 = vmatprep.subr.mxu0 0.0
          %2302 = vmatpush1.msra.mxu0 %v2187
          %2303 = vmatprep.subr.mxu0 0.0
          %2304 = vmatpush1.msra.mxu0 %v2188
          %2305 = vmatprep.subr.mxu0 0.0
          %2306 = vmatpush1.msra.mxu0 %v2189
          %2307 = vmatprep.subr.mxu0 0.0
          %2308 = vmatpush1.msra.mxu0 %v2190
          %2309 = vmatprep.subr.mxu0 0.0
          %2310 = vmatpush1.msra.mxu0 %v2191
          %2311 = vmatprep.subr.mxu0 0.0
          %2312 = vmatpush1.msra.mxu0 %v2192
          %2313 = vmatprep.subr.mxu0 0.0
          %2314 = vmatpush1.msra.mxu0 %v2193
          %2315 = vmatprep.subr.mxu0 0.0
          %2316 = vmatpush1.msra.mxu0 %v2194
          %2317 = vmatprep.subr.mxu0 0.0
          %2318 = vmatpush1.msra.mxu0 %v2195
          %2319 = vmatprep.subr.mxu0 0.0
          %2320 = vmatpush1.msra.mxu0 0.0
          %2321 = vmatprep.subr.mxu0 0.0
          %2322 = vmatpush1.msra.mxu0 0.0
          %2323 = vmatprep.subr.mxu0 0.0
          %2324 = vmatpush1.msra.mxu0 0.0
          %2325 = vmatprep.subr.mxu0 0.0
          %2326 = vmatpush1.msra.mxu0 0.0
          %2327 = vmatprep.subr.mxu0 0.0
          %2328 = vmatpush1.msra.mxu0 0.0
          %2329 = vmatprep.subr.mxu0 0.0
          %2330 = vmatpush1.msra.mxu0 0.0
          %2331 = vmatprep.subr.mxu0 0.0
          %2332 = vmatpush1.msra.mxu0 0.0
          %2333 = vmatprep.subr.mxu0 0.0
          %2334 = vmatpush1.msra.mxu0 0.0
          %2335 = vmatprep.subr.mxu0 0.0
          %2336 = vmatpush1.msra.mxu0 0.0
          %2337 = vmatprep.subr.mxu0 0.0
          %2338 = vmatpush1.msra.mxu0 0.0
          %2339 = vmatprep.subr.mxu0 0.0
          %2340 = vmatpush1.msra.mxu0 0.0
          %2341 = vmatprep.subr.mxu0 0.0
          %2342 = vmatpush1.msra.mxu0 0.0
          %2343 = vmatprep.subr.mxu0 0.0
          %2344 = vmatpush1.msra.mxu0 0.0
          %2345 = vmatprep.subr.mxu0 0.0
          %2346 = vmatpush1.msra.mxu0 0.0
          %2347 = vmatprep.subr.mxu0 0.0
          %2348 = vmatpush1.msra.mxu0 0.0
          %2349 = vmatprep.subr.mxu0 0.0
          %2350 = vmatpush1.msra.mxu0 0.0
          %2351 = vmatprep.mubr.f32.mxu0 0.0
          %2352 = vmatmul.mubr.f32.gmra.mrb[0].mxu0 %v2176
          %v2353 = vpop.f32.mrb[0].mxu0
          %v2354 = vadd.f32 %v2279, %v2353
          %v2355 = vpop.f32.mrb[0].mxu0
          %2356 = vmatprep.mubr.f32.mxu0 0.0
          %2357 = vmatmul.mubr.f32.gmra.mrb[0].mxu0 %v2177
          %v2358 = vpop.f32.mrb[0].mxu0
          %v2359 = vadd.f32 %v2284, %v2358
          %v2360 = vpop.f32.mrb[0].mxu0
          %2361 = vdwg.mxu0
          %v2362 = vld [vmem:[#allocation16] sm:$0x1]
          %v2364 = vlaneseq
          %v2365 = vshrl.u32 %v2364, 7
          %v2366 = vsub.s32 0, %v2365
          %v2367 = vrot.slane %v2362, %v2366
          %v2369 = vadd.f32 %v2354, %v2367
          %v2370 = vadd.f32 %v2359, %v2367
          %v2371 = vtanh.pop %v2369
          %v2372 = vtanh.pop %v2370
          %v2373 = vld [vmem:[%s8] sm:$0xff]
          %v2374 = vld [vmem:[%s8 + $0x8] sm:$0xff]
          %v2375 = vld [vmem:[%s8 + $0x10] sm:$0xff]
          %v2376 = vld [vmem:[%s8 + $0x18] sm:$0xff]
          %v2377 = vld [vmem:[%s8 + $0x20] sm:$0xff]
          %v2378 = vld [vmem:[%s8 + $0x28] sm:$0xff]
          %v2379 = vld [vmem:[%s8 + $0x30] sm:$0xff]
          %v2380 = vld [vmem:[%s8 + $0x38] sm:$0xff]
          %v2381 = vld [vmem:[%s8 + $0x40] sm:$0xff]
          %v2382 = vld [vmem:[%s8 + $0x48] sm:$0xff]
          %v2383 = vld [vmem:[%s8 + $0x50] sm:$0xff]
          %v2384 = vld [vmem:[%s8 + $0x58] sm:$0xff]
          %v2385 = vld [vmem:[%s8 + $0x60] sm:$0xff]
          %v2386 = vld [vmem:[%s8 + $0x68] sm:$0xff]
          %v2387 = vld [vmem:[%s8 + $0x70] sm:$0xff]
          %v2388 = vld [vmem:[%s8 + $0x78] sm:$0xff]
          %v2389 = vld [vmem:[#allocation4] sm:$0x1]
          %v2391 = vlaneseq
          %v2392 = vshrl.u32 %v2391, 7
          %v2393 = vsub.s32 0, %v2392
          %v2394 = vrot.slane %v2389, %v2393
          %2396 = vmatprep.subr.mxu0 0.0
          %2397 = vmatpush1.msra.mxu0 %v2373
          %2398 = vmatprep.subr.mxu0 0.0
          %2399 = vmatpush1.msra.mxu0 %v2374
          %2400 = vmatprep.subr.mxu0 0.0
          %2401 = vmatpush1.msra.mxu0 %v2375
          %2402 = vmatprep.subr.mxu0 0.0
          %2403 = vmatpush1.msra.mxu0 %v2376
          %2404 = vmatprep.subr.mxu0 0.0
          %2405 = vmatpush1.msra.mxu0 %v2377
          %2406 = vmatprep.subr.mxu0 0.0
          %2407 = vmatpush1.msra.mxu0 %v2378
          %2408 = vmatprep.subr.mxu0 0.0
          %2409 = vmatpush1.msra.mxu0 %v2379
          %2410 = vmatprep.subr.mxu0 0.0
          %2411 = vmatpush1.msra.mxu0 %v2380
          %2412 = vmatprep.subr.mxu0 0.0
          %2413 = vmatpush1.msra.mxu0 %v2381
          %2414 = vmatprep.subr.mxu0 0.0
          %2415 = vmatpush1.msra.mxu0 %v2382
          %2416 = vmatprep.subr.mxu0 0.0
          %2417 = vmatpush1.msra.mxu0 %v2383
          %2418 = vmatprep.subr.mxu0 0.0
          %2419 = vmatpush1.msra.mxu0 %v2384
          %2420 = vmatprep.subr.mxu0 0.0
          %2421 = vmatpush1.msra.mxu0 %v2385
          %2422 = vmatprep.subr.mxu0 0.0
          %2423 = vmatpush1.msra.mxu0 %v2386
          %2424 = vmatprep.subr.mxu0 0.0
          %2425 = vmatpush1.msra.mxu0 %v2387
          %2426 = vmatprep.subr.mxu0 0.0
          %2427 = vmatpush1.msra.mxu0 %v2388
          %2428 = vmatprep.subr.mxu0 0.0
          %2429 = vmatpush1.msra.mxu0 0.0
          %2430 = vmatprep.subr.mxu0 0.0
          %2431 = vmatpush1.msra.mxu0 0.0
          %2432 = vmatprep.subr.mxu0 0.0
          %2433 = vmatpush1.msra.mxu0 0.0
          %2434 = vmatprep.subr.mxu0 0.0
          %2435 = vmatpush1.msra.mxu0 0.0
          %2436 = vmatprep.subr.mxu0 0.0
          %2437 = vmatpush1.msra.mxu0 0.0
          %2438 = vmatprep.subr.mxu0 0.0
          %2439 = vmatpush1.msra.mxu0 0.0
          %2440 = vmatprep.subr.mxu0 0.0
          %2441 = vmatpush1.msra.mxu0 0.0
          %2442 = vmatprep.subr.mxu0 0.0
          %2443 = vmatpush1.msra.mxu0 0.0
          %2444 = vmatprep.subr.mxu0 0.0
          %2445 = vmatpush1.msra.mxu0 0.0
          %2446 = vmatprep.subr.mxu0 0.0
          %2447 = vmatpush1.msra.mxu0 0.0
          %2448 = vmatprep.subr.mxu0 0.0
          %2449 = vmatpush1.msra.mxu0 0.0
          %2450 = vmatprep.subr.mxu0 0.0
          %2451 = vmatpush1.msra.mxu0 0.0
          %2452 = vmatprep.subr.mxu0 0.0
          %2453 = vmatpush1.msra.mxu0 0.0
          %2454 = vmatprep.subr.mxu0 0.0
          %2455 = vmatpush1.msra.mxu0 0.0
          %2456 = vmatprep.subr.mxu0 0.0
          %2457 = vmatpush1.msra.mxu0 0.0
          %2458 = vmatprep.subr.mxu0 0.0
          %2459 = vmatpush1.msra.mxu0 0.0
          %2460 = vmatprep.mubr.f32.mxu0 0.0
          %2461 = vmatmul.mubr.f32.gmra.mrb[0].mxu0 %v2371
          %v2462 = vpop.f32.mrb[0].mxu0
          %v2463 = vadd.f32 %v2394, %v2462
          %v2464 = vpop.f32.mrb[0].mxu0
          %2465 = vmatprep.mubr.f32.mxu0 0.0
          %2466 = vmatmul.mubr.f32.gmra.mrb[0].mxu0 %v2372
          %v2467 = vpop.f32.mrb[0].mxu0
          %v2468 = vadd.f32 %v2394, %v2467
          %v2469 = vpop.f32.mrb[0].mxu0
          %2470 = vdwg.mxu0
          %v2471 = vxor.u32 %v2463, 2147483648
          %v2472 = vxor.u32 %v2468, 2147483648
          %v2473 = vmul.f32 %v2471, 1.442695
          %v2474 = vpow.pop %v2473
          %v2475 = vmul.f32 %v2472, 1.442695
          %v2476 = vpow.pop %v2475
          %v2477 = vadd.f32 %v2474, 1.0
          %v2478 = vadd.f32 %v2476, 1.0
          %v2479 = vrcp.pop %v2477
          %v2480 = vmul.f32 1.0, %v2479
          %v2481 = vrcp.pop %v2478
          %v2482 = vmul.f32 1.0, %v2481
          %2484 = vset.pattern.permute.xlu0 0
          %2485 = vperm.xlu0 %2484, %v2480
          %v2486 = vpop.permute.xlu0 %2485
          %2489 = vset.pattern.permute.xlu0 0
          %2490 = vperm.xlu0 %2489, %v2482
          %v2491 = vpop.permute.xlu0 %2490
          %v2493 = vmul.f32 %v2486, %v2176
          %v2494 = vmul.f32 %v2491, %v2177
          %v2495 = vsub.f32 1.0, %v2480
          %v2496 = vsub.f32 1.0, %v2482
          %2498 = vset.pattern.permute.xlu0 0
          %2499 = vperm.xlu0 %2498, %v2495
          %v2500 = vpop.permute.xlu0 %2499
          %2503 = vset.pattern.permute.xlu0 0
          %2504 = vperm.xlu0 %2503, %v2496
          %v2505 = vpop.permute.xlu0 %2504
          %v2507 = vmul.f32 %v2500, %v2178
          %v2508 = vmul.f32 %v2505, %v2179
          %v2509 = vadd.f32 %v2493, %v2507
          %v2510 = vadd.f32 %v2494, %v2508
          %v2511 = vld [vmem:[#allocation18] sm:$0xff]
          %v2512 = vld [vmem:[#allocation18 + $0x8] sm:$0xff]
          %v2513 = vld [vmem:[#allocation18 + $0x10] sm:$0xff]
          %v2514 = vld [vmem:[#allocation18 + $0x18] sm:$0xff]
          %v2515 = vld [vmem:[#allocation18 + $0x20] sm:$0xff]
          %v2516 = vld [vmem:[#allocation18 + $0x28] sm:$0xff]
          %v2517 = vmul.f32 %v2511, %v2511
          %v2518 = vmul.f32 %v2512, %v2512
          %v2519 = vmul.f32 %v2513, %v2513
          %v2520 = vmul.f32 %v2514, %v2514
          %v2521 = vmul.f32 %v2515, %v2515
          %v2522 = vmul.f32 %v2516, %v2516
          %v2523 = vadd.f32 %v2517, %v2518
          %v2524 = vadd.f32 %v2523, %v2519
          %v2525 = vadd.f32 %v2524, %v2520
          %v2526 = vadd.f32 %v2525, %v2521
          %v2527 = vadd.f32 %v2526, %v2522
          %2528 = vadd.xlane.f32.xlu0 %v2527
          %v2529 = vpop.xlane.xlu0 %2528
          %v2530 = vmax.f32 %v2529, 1e-24
          %v2531 = vrsqrt.pop %v2530
          %v2532 = vmul.f32 %v2511, %v2531
          %v2533 = vmul.f32 %v2512, %v2531
          %v2534 = vmul.f32 %v2513, %v2531
          %v2535 = vmul.f32 %v2514, %v2531
          %v2536 = vmul.f32 %v2515, %v2531
          %v2537 = vmul.f32 %v2516, %v2531
          %v2538 = vld [vmem:[#allocation19] sm:$0xff]
          %v2539 = vld [vmem:[#allocation19 + $0x8] sm:$0xff]
          %v2540 = vld [vmem:[#allocation19 + $0x10] sm:$0xff]
          %v2541 = vld [vmem:[#allocation19 + $0x18] sm:$0xff]
          %v2542 = vld [vmem:[#allocation19 + $0x20] sm:$0xff]
          %v2543 = vld [vmem:[#allocation19 + $0x28] sm:$0xff]
          %v2544 = vld [vmem:[#allocation19 + $0x30] sm:$0xff]
          %v2545 = vld [vmem:[#allocation19 + $0x38] sm:$0xff]
          %v2546 = vld [vmem:[#allocation19 + $0x40] sm:$0xff]
          %v2547 = vld [vmem:[#allocation19 + $0x48] sm:$0xff]
          %v2548 = vld [vmem:[#allocation19 + $0x50] sm:$0xff]
          %v2549 = vld [vmem:[#allocation19 + $0x58] sm:$0xff]
          %v2550 = vld [vmem:[#allocation19 + $0x60] sm:$0xff]
          %v2551 = vld [vmem:[#allocation19 + $0x68] sm:$0xff]
          %v2552 = vld [vmem:[#allocation19 + $0x70] sm:$0xff]
          %v2553 = vld [vmem:[#allocation19 + $0x78] sm:$0xff]
          %v2554 = vld [vmem:[#allocation19 + $0x80] sm:$0xff]
          %v2555 = vld [vmem:[#allocation19 + $0x88] sm:$0xff]
          %v2556 = vld [vmem:[#allocation19 + $0x90] sm:$0xff]
          %v2557 = vld [vmem:[#allocation19 + $0x98] sm:$0xff]
          %v2558 = vld [vmem:[#allocation19 + $0xa0] sm:$0xff]
          %v2559 = vld [vmem:[#allocation19 + $0xa8] sm:$0xff]
          %v2560 = vld [vmem:[#allocation19 + $0xb0] sm:$0xff]
          %v2561 = vld [vmem:[#allocation19 + $0xb8] sm:$0xff]
          %v2562 = vld [vmem:[#allocation19 + $0xc0] sm:$0xff]
          %v2563 = vld [vmem:[#allocation19 + $0xc8] sm:$0xff]
          %v2564 = vld [vmem:[#allocation19 + $0xd0] sm:$0xff]
          %v2565 = vld [vmem:[#allocation19 + $0xd8] sm:$0xff]
          %v2566 = vld [vmem:[#allocation19 + $0xe0] sm:$0xff]
          %v2567 = vld [vmem:[#allocation19 + $0xe8] sm:$0xff]
          %v2568 = vld [vmem:[#allocation19 + $0xf0] sm:$0xff]
          %v2569 = vld [vmem:[#allocation19 + $0xf8] sm:$0xff]
          %v2570 = vld [vmem:[#allocation19 + $0x100] sm:$0xff]
          %v2571 = vld [vmem:[#allocation19 + $0x108] sm:$0xff]
          %v2572 = vld [vmem:[#allocation19 + $0x110] sm:$0xff]
          %v2573 = vld [vmem:[#allocation19 + $0x118] sm:$0xff]
          %v2574 = vld [vmem:[#allocation19 + $0x120] sm:$0xff]
          %v2575 = vld [vmem:[#allocation19 + $0x128] sm:$0xff]
          %v2576 = vld [vmem:[#allocation19 + $0x130] sm:$0xff]
          %v2577 = vld [vmem:[#allocation19 + $0x138] sm:$0xff]
          %v2578 = vld [vmem:[#allocation19 + $0x140] sm:$0xff]
          %v2579 = vld [vmem:[#allocation19 + $0x148] sm:$0xff]
          %v2580 = vld [vmem:[#allocation19 + $0x150] sm:$0xff]
          %v2581 = vld [vmem:[#allocation19 + $0x158] sm:$0xff]
          %v2582 = vld [vmem:[#allocation19 + $0x160] sm:$0xff]
          %v2583 = vld [vmem:[#allocation19 + $0x168] sm:$0xff]
          %v2584 = vld [vmem:[#allocation19 + $0x170] sm:$0xff]
          %v2585 = vld [vmem:[#allocation19 + $0x178] sm:$0xff]
          %v2586 = vld [vmem:[#allocation19 + $0x180] sm:$0xff]
          %v2587 = vld [vmem:[#allocation19 + $0x188] sm:$0xff]
          %v2588 = vld [vmem:[#allocation19 + $0x190] sm:$0xff]
          %v2589 = vld [vmem:[#allocation19 + $0x198] sm:$0xff]
          %v2590 = vld [vmem:[#allocation19 + $0x1a0] sm:$0xff]
          %v2591 = vld [vmem:[#allocation19 + $0x1a8] sm:$0xff]
          %v2592 = vld [vmem:[#allocation19 + $0x1b0] sm:$0xff]
          %v2593 = vld [vmem:[#allocation19 + $0x1b8] sm:$0xff]
          %v2594 = vld [vmem:[#allocation19 + $0x1c0] sm:$0xff]
          %v2595 = vld [vmem:[#allocation19 + $0x1c8] sm:$0xff]
          %v2596 = vld [vmem:[#allocation19 + $0x1d0] sm:$0xff]
          %v2597 = vld [vmem:[#allocation19 + $0x1d8] sm:$0xff]
          %v2598 = vld [vmem:[#allocation19 + $0x1e0] sm:$0xff]
          %v2599 = vld [vmem:[#allocation19 + $0x1e8] sm:$0xff]
          %v2600 = vld [vmem:[#allocation19 + $0x1f0] sm:$0xff]
          %v2601 = vld [vmem:[#allocation19 + $0x1f8] sm:$0xff]
          %v2602 = vld [vmem:[#allocation19 + $0x200] sm:$0xff]
          %v2603 = vld [vmem:[#allocation19 + $0x208] sm:$0xff]
          %v2604 = vld [vmem:[#allocation19 + $0x210] sm:$0xff]
          %v2605 = vld [vmem:[#allocation19 + $0x218] sm:$0xff]
          %v2606 = vld [vmem:[#allocation19 + $0x220] sm:$0xff]
          %v2607 = vld [vmem:[#allocation19 + $0x228] sm:$0xff]
          %v2608 = vld [vmem:[#allocation19 + $0x230] sm:$0xff]
          %v2609 = vld [vmem:[#allocation19 + $0x238] sm:$0xff]
          %v2610 = vld [vmem:[#allocation19 + $0x240] sm:$0xff]
          %v2611 = vld [vmem:[#allocation19 + $0x248] sm:$0xff]
          %v2612 = vld [vmem:[#allocation19 + $0x250] sm:$0xff]
          %v2613 = vld [vmem:[#allocation19 + $0x258] sm:$0xff]
          %v2614 = vld [vmem:[#allocation19 + $0x260] sm:$0xff]
          %v2615 = vld [vmem:[#allocation19 + $0x268] sm:$0xff]
          %v2616 = vld [vmem:[#allocation19 + $0x270] sm:$0xff]
          %v2617 = vld [vmem:[#allocation19 + $0x278] sm:$0xff]
          %v2618 = vld [vmem:[#allocation19 + $0x280] sm:$0xff]
          %v2619 = vld [vmem:[#allocation19 + $0x288] sm:$0xff]
          %v2620 = vld [vmem:[#allocation19 + $0x290] sm:$0xff]
          %v2621 = vld [vmem:[#allocation19 + $0x298] sm:$0xff]
          %v2622 = vld [vmem:[#allocation19 + $0x2a0] sm:$0xff]
          %v2623 = vld [vmem:[#allocation19 + $0x2a8] sm:$0xff]
          %v2624 = vld [vmem:[#allocation19 + $0x2b0] sm:$0xff]
          %v2625 = vld [vmem:[#allocation19 + $0x2b8] sm:$0xff]
          %v2626 = vld [vmem:[#allocation19 + $0x2c0] sm:$0xff]
          %v2627 = vld [vmem:[#allocation19 + $0x2c8] sm:$0xff]
          %v2628 = vld [vmem:[#allocation19 + $0x2d0] sm:$0xff]
          %v2629 = vld [vmem:[#allocation19 + $0x2d8] sm:$0xff]
          %v2630 = vld [vmem:[#allocation19 + $0x2e0] sm:$0xff]
          %v2631 = vld [vmem:[#allocation19 + $0x2e8] sm:$0xff]
          %v2632 = vld [vmem:[#allocation19 + $0x2f0] sm:$0xff]
          %v2633 = vld [vmem:[#allocation19 + $0x2f8] sm:$0xff]
          %v2634 = vld [vmem:[#allocation19 + $0x300] sm:$0xff]
          %v2635 = vld [vmem:[#allocation19 + $0x308] sm:$0xff]
          %v2636 = vld [vmem:[#allocation19 + $0x310] sm:$0xff]
          %v2637 = vld [vmem:[#allocation19 + $0x318] sm:$0xff]
          %v2638 = vld [vmem:[#allocation19 + $0x320] sm:$0xff]
          %v2639 = vld [vmem:[#allocation19 + $0x328] sm:$0xff]
          %v2640 = vld [vmem:[#allocation19 + $0x330] sm:$0xff]
          %v2641 = vld [vmem:[#allocation19 + $0x338] sm:$0xff]
          %v2642 = vld [vmem:[#allocation19 + $0x340] sm:$0xff]
          %v2643 = vld [vmem:[#allocation19 + $0x348] sm:$0xff]
          %v2644 = vld [vmem:[#allocation19 + $0x350] sm:$0xff]
          %v2645 = vld [vmem:[#allocation19 + $0x358] sm:$0xff]
          %v2646 = vld [vmem:[#allocation19 + $0x360] sm:$0xff]
          %v2647 = vld [vmem:[#allocation19 + $0x368] sm:$0xff]
          %v2648 = vld [vmem:[#allocation19 + $0x370] sm:$0xff]
          %v2649 = vld [vmem:[#allocation19 + $0x378] sm:$0xff]
          %v2650 = vld [vmem:[#allocation19 + $0x380] sm:$0xff]
          %v2651 = vld [vmem:[#allocation19 + $0x388] sm:$0xff]
          %v2652 = vld [vmem:[#allocation19 + $0x390] sm:$0xff]
          %v2653 = vld [vmem:[#allocation19 + $0x398] sm:$0xff]
          %v2654 = vld [vmem:[#allocation19 + $0x3a0] sm:$0xff]
          %v2655 = vld [vmem:[#allocation19 + $0x3a8] sm:$0xff]
          %v2656 = vld [vmem:[#allocation19 + $0x3b0] sm:$0xff]
          %v2657 = vld [vmem:[#allocation19 + $0x3b8] sm:$0xff]
          %v2658 = vld [vmem:[#allocation19 + $0x3c0] sm:$0xff]
          %v2659 = vld [vmem:[#allocation19 + $0x3c8] sm:$0xff]
          %v2660 = vld [vmem:[#allocation19 + $0x3d0] sm:$0xff]
          %v2661 = vld [vmem:[#allocation19 + $0x3d8] sm:$0xff]
          %v2662 = vld [vmem:[#allocation19 + $0x3e0] sm:$0xff]
          %v2663 = vld [vmem:[#allocation19 + $0x3e8] sm:$0xff]
          %v2664 = vld [vmem:[#allocation19 + $0x3f0] sm:$0xff]
          %v2665 = vld [vmem:[#allocation19 + $0x3f8] sm:$0xff]
          %v2666 = vld [vmem:[#allocation19 + $0x400] sm:$0xff]
          %v2667 = vld [vmem:[#allocation19 + $0x408] sm:$0xff]
          %v2668 = vld [vmem:[#allocation19 + $0x410] sm:$0xff]
          %v2669 = vld [vmem:[#allocation19 + $0x418] sm:$0xff]
          %v2670 = vld [vmem:[#allocation19 + $0x420] sm:$0xff]
          %v2671 = vld [vmem:[#allocation19 + $0x428] sm:$0xff]
          %v2672 = vld [vmem:[#allocation19 + $0x430] sm:$0xff]
          %v2673 = vld [vmem:[#allocation19 + $0x438] sm:$0xff]
          %v2674 = vld [vmem:[#allocation19 + $0x440] sm:$0xff]
          %v2675 = vld [vmem:[#allocation19 + $0x448] sm:$0xff]
          %v2676 = vld [vmem:[#allocation19 + $0x450] sm:$0xff]
          %v2677 = vld [vmem:[#allocation19 + $0x458] sm:$0xff]
          %v2678 = vld [vmem:[#allocation19 + $0x460] sm:$0xff]
          %v2679 = vld [vmem:[#allocation19 + $0x468] sm:$0xff]
          %v2680 = vld [vmem:[#allocation19 + $0x470] sm:$0xff]
          %v2681 = vld [vmem:[#allocation19 + $0x478] sm:$0xff]
          %v2682 = vld [vmem:[#allocation19 + $0x480] sm:$0xff]
          %v2683 = vld [vmem:[#allocation19 + $0x488] sm:$0xff]
          %v2684 = vld [vmem:[#allocation19 + $0x490] sm:$0xff]
          %v2685 = vld [vmem:[#allocation19 + $0x498] sm:$0xff]
          %v2686 = vld [vmem:[#allocation19 + $0x4a0] sm:$0xff]
          %v2687 = vld [vmem:[#allocation19 + $0x4a8] sm:$0xff]
          %v2688 = vld [vmem:[#allocation19 + $0x4b0] sm:$0xff]
          %v2689 = vld [vmem:[#allocation19 + $0x4b8] sm:$0xff]
          %v2690 = vld [vmem:[#allocation19 + $0x4c0] sm:$0xff]
          %v2691 = vld [vmem:[#allocation19 + $0x4c8] sm:$0xff]
          %v2692 = vld [vmem:[#allocation19 + $0x4d0] sm:$0xff]
          %v2693 = vld [vmem:[#allocation19 + $0x4d8] sm:$0xff]
          %v2694 = vld [vmem:[#allocation19 + $0x4e0] sm:$0xff]
          %v2695 = vld [vmem:[#allocation19 + $0x4e8] sm:$0xff]
          %v2696 = vld [vmem:[#allocation19 + $0x4f0] sm:$0xff]
          %v2697 = vld [vmem:[#allocation19 + $0x4f8] sm:$0xff]
          %v2698 = vld [vmem:[#allocation19 + $0x500] sm:$0xff]
          %v2699 = vld [vmem:[#allocation19 + $0x508] sm:$0xff]
          %v2700 = vld [vmem:[#allocation19 + $0x510] sm:$0xff]
          %v2701 = vld [vmem:[#allocation19 + $0x518] sm:$0xff]
          %v2702 = vld [vmem:[#allocation19 + $0x520] sm:$0xff]
          %v2703 = vld [vmem:[#allocation19 + $0x528] sm:$0xff]
          %v2704 = vld [vmem:[#allocation19 + $0x530] sm:$0xff]
          %v2705 = vld [vmem:[#allocation19 + $0x538] sm:$0xff]
          %v2706 = vld [vmem:[#allocation19 + $0x540] sm:$0xff]
          %v2707 = vld [vmem:[#allocation19 + $0x548] sm:$0xff]
          %v2708 = vld [vmem:[#allocation19 + $0x550] sm:$0xff]
          %v2709 = vld [vmem:[#allocation19 + $0x558] sm:$0xff]
          %v2710 = vld [vmem:[#allocation19 + $0x560] sm:$0xff]
          %v2711 = vld [vmem:[#allocation19 + $0x568] sm:$0xff]
          %v2712 = vld [vmem:[#allocation19 + $0x570] sm:$0xff]
          %v2713 = vld [vmem:[#allocation19 + $0x578] sm:$0xff]
          %v2714 = vld [vmem:[#allocation19 + $0x580] sm:$0xff]
          %v2715 = vld [vmem:[#allocation19 + $0x588] sm:$0xff]
          %v2716 = vld [vmem:[#allocation19 + $0x590] sm:$0xff]
          %v2717 = vld [vmem:[#allocation19 + $0x598] sm:$0xff]
          %v2718 = vld [vmem:[#allocation19 + $0x5a0] sm:$0xff]
          %v2719 = vld [vmem:[#allocation19 + $0x5a8] sm:$0xff]
          %v2720 = vld [vmem:[#allocation19 + $0x5b0] sm:$0xff]
          %v2721 = vld [vmem:[#allocation19 + $0x5b8] sm:$0xff]
          %v2722 = vld [vmem:[#allocation19 + $0x5c0] sm:$0xff]
          %v2723 = vld [vmem:[#allocation19 + $0x5c8] sm:$0xff]
          %v2724 = vld [vmem:[#allocation19 + $0x5d0] sm:$0xff]
          %v2725 = vld [vmem:[#allocation19 + $0x5d8] sm:$0xff]
          %v2726 = vld [vmem:[#allocation19 + $0x5e0] sm:$0xff]
          %v2727 = vld [vmem:[#allocation19 + $0x5e8] sm:$0xff]
          %v2728 = vld [vmem:[#allocation19 + $0x5f0] sm:$0xff]
          %v2729 = vld [vmem:[#allocation19 + $0x5f8] sm:$0xff]
          %v2730 = vld [vmem:[#allocation19 + $0x600] sm:$0xff]
          %v2731 = vld [vmem:[#allocation19 + $0x608] sm:$0xff]
          %v2732 = vld [vmem:[#allocation19 + $0x610] sm:$0xff]
          %v2733 = vld [vmem:[#allocation19 + $0x618] sm:$0xff]
          %v2734 = vld [vmem:[#allocation19 + $0x620] sm:$0xff]
          %v2735 = vld [vmem:[#allocation19 + $0x628] sm:$0xff]
          %v2736 = vld [vmem:[#allocation19 + $0x630] sm:$0xff]
          %v2737 = vld [vmem:[#allocation19 + $0x638] sm:$0xff]
          %v2738 = vld [vmem:[#allocation19 + $0x640] sm:$0xff]
          %v2739 = vld [vmem:[#allocation19 + $0x648] sm:$0xff]
          %v2740 = vld [vmem:[#allocation19 + $0x650] sm:$0xff]
          %v2741 = vld [vmem:[#allocation19 + $0x658] sm:$0xff]
          %v2742 = vld [vmem:[#allocation19 + $0x660] sm:$0xff]
          %v2743 = vld [vmem:[#allocation19 + $0x668] sm:$0xff]
          %v2744 = vld [vmem:[#allocation19 + $0x670] sm:$0xff]
          %v2745 = vld [vmem:[#allocation19 + $0x678] sm:$0xff]
          %v2746 = vld [vmem:[#allocation19 + $0x680] sm:$0xff]
          %v2747 = vld [vmem:[#allocation19 + $0x688] sm:$0xff]
          %v2748 = vld [vmem:[#allocation19 + $0x690] sm:$0xff]
          %v2749 = vld [vmem:[#allocation19 + $0x698] sm:$0xff]
          %v2750 = vld [vmem:[#allocation19 + $0x6a0] sm:$0xff]
          %v2751 = vld [vmem:[#allocation19 + $0x6a8] sm:$0xff]
          %v2752 = vld [vmem:[#allocation19 + $0x6b0] sm:$0xff]
          %v2753 = vld [vmem:[#allocation19 + $0x6b8] sm:$0xff]
          %v2754 = vld [vmem:[#allocation19 + $0x6c0] sm:$0xff]
          %v2755 = vld [vmem:[#allocation19 + $0x6c8] sm:$0xff]
          %v2756 = vld [vmem:[#allocation19 + $0x6d0] sm:$0xff]
          %v2757 = vld [vmem:[#allocation19 + $0x6d8] sm:$0xff]
          %v2758 = vld [vmem:[#allocation19 + $0x6e0] sm:$0xff]
          %v2759 = vld [vmem:[#allocation19 + $0x6e8] sm:$0xff]
          %v2760 = vld [vmem:[#allocation19 + $0x6f0] sm:$0xff]
          %v2761 = vld [vmem:[#allocation19 + $0x6f8] sm:$0xff]
          %v2762 = vld [vmem:[#allocation19 + $0x700] sm:$0xff]
          %v2763 = vld [vmem:[#allocation19 + $0x708] sm:$0xff]
          %v2764 = vld [vmem:[#allocation19 + $0x710] sm:$0xff]
          %v2765 = vld [vmem:[#allocation19 + $0x718] sm:$0xff]
          %v2766 = vld [vmem:[#allocation19 + $0x720] sm:$0xff]
          %v2767 = vld [vmem:[#allocation19 + $0x728] sm:$0xff]
          %v2768 = vld [vmem:[#allocation19 + $0x730] sm:$0xff]
          %v2769 = vld [vmem:[#allocation19 + $0x738] sm:$0xff]
          %v2770 = vld [vmem:[#allocation19 + $0x740] sm:$0xff]
          %v2771 = vld [vmem:[#allocation19 + $0x748] sm:$0xff]
          %v2772 = vld [vmem:[#allocation19 + $0x750] sm:$0xff]
          %v2773 = vld [vmem:[#allocation19 + $0x758] sm:$0xff]
          %v2774 = vld [vmem:[#allocation19 + $0x760] sm:$0xff]
          %v2775 = vld [vmem:[#allocation19 + $0x768] sm:$0xff]
          %v2776 = vld [vmem:[#allocation19 + $0x770] sm:$0xff]
          %v2777 = vld [vmem:[#allocation19 + $0x778] sm:$0xff]
          %v2778 = vld [vmem:[#allocation19 + $0x780] sm:$0xff]
          %v2779 = vld [vmem:[#allocation19 + $0x788] sm:$0xff]
          %v2780 = vld [vmem:[#allocation19 + $0x790] sm:$0xff]
          %v2781 = vld [vmem:[#allocation19 + $0x798] sm:$0xff]
          %v2782 = vld [vmem:[#allocation19 + $0x7a0] sm:$0xff]
          %v2783 = vld [vmem:[#allocation19 + $0x7a8] sm:$0xff]
          %v2784 = vld [vmem:[#allocation19 + $0x7b0] sm:$0xff]
          %v2785 = vld [vmem:[#allocation19 + $0x7b8] sm:$0xff]
          %v2786 = vld [vmem:[#allocation19 + $0x7c0] sm:$0xff]
          %v2787 = vld [vmem:[#allocation19 + $0x7c8] sm:$0xff]
          %v2788 = vld [vmem:[#allocation19 + $0x7d0] sm:$0xff]
          %v2789 = vld [vmem:[#allocation19 + $0x7d8] sm:$0xff]
          %v2790 = vld [vmem:[#allocation19 + $0x7e0] sm:$0xff]
          %v2791 = vld [vmem:[#allocation19 + $0x7e8] sm:$0xff]
          %v2792 = vld [vmem:[#allocation19 + $0x7f0] sm:$0xff]
          %v2793 = vld [vmem:[#allocation19 + $0x7f8] sm:$0xff]
          %v2794 = vld [vmem:[#allocation19 + $0x800] sm:$0xff]
          %v2795 = vld [vmem:[#allocation19 + $0x808] sm:$0xff]
          %v2796 = vld [vmem:[#allocation19 + $0x810] sm:$0xff]
          %v2797 = vld [vmem:[#allocation19 + $0x818] sm:$0xff]
          %v2798 = vld [vmem:[#allocation19 + $0x820] sm:$0xff]
          %v2799 = vld [vmem:[#allocation19 + $0x828] sm:$0xff]
          %v2800 = vld [vmem:[#allocation19 + $0x830] sm:$0xff]
          %v2801 = vld [vmem:[#allocation19 + $0x838] sm:$0xff]
          %v2802 = vld [vmem:[#allocation19 + $0x840] sm:$0xff]
          %v2803 = vld [vmem:[#allocation19 + $0x848] sm:$0xff]
          %v2804 = vld [vmem:[#allocation19 + $0x850] sm:$0xff]
          %v2805 = vld [vmem:[#allocation19 + $0x858] sm:$0xff]
          %v2806 = vld [vmem:[#allocation19 + $0x860] sm:$0xff]
          %v2807 = vld [vmem:[#allocation19 + $0x868] sm:$0xff]
          %v2808 = vld [vmem:[#allocation19 + $0x870] sm:$0xff]
          %v2809 = vld [vmem:[#allocation19 + $0x878] sm:$0xff]
          %v2810 = vld [vmem:[#allocation19 + $0x880] sm:$0xff]
          %v2811 = vld [vmem:[#allocation19 + $0x888] sm:$0xff]
          %v2812 = vld [vmem:[#allocation19 + $0x890] sm:$0xff]
          %v2813 = vld [vmem:[#allocation19 + $0x898] sm:$0xff]
          %v2814 = vld [vmem:[#allocation19 + $0x8a0] sm:$0xff]
          %v2815 = vld [vmem:[#allocation19 + $0x8a8] sm:$0xff]
          %v2816 = vld [vmem:[#allocation19 + $0x8b0] sm:$0xff]
          %v2817 = vld [vmem:[#allocation19 + $0x8b8] sm:$0xff]
          %v2818 = vld [vmem:[#allocation19 + $0x8c0] sm:$0xff]
          %v2819 = vld [vmem:[#allocation19 + $0x8c8] sm:$0xff]
          %v2820 = vld [vmem:[#allocation19 + $0x8d0] sm:$0xff]
          %v2821 = vld [vmem:[#allocation19 + $0x8d8] sm:$0xff]
          %v2822 = vld [vmem:[#allocation19 + $0x8e0] sm:$0xff]
          %v2823 = vld [vmem:[#allocation19 + $0x8e8] sm:$0xff]
          %v2824 = vld [vmem:[#allocation19 + $0x8f0] sm:$0xff]
          %v2825 = vld [vmem:[#allocation19 + $0x8f8] sm:$0xff]
          %v2826 = vld [vmem:[#allocation19 + $0x900] sm:$0xff]
          %v2827 = vld [vmem:[#allocation19 + $0x908] sm:$0xff]
          %v2828 = vld [vmem:[#allocation19 + $0x910] sm:$0xff]
          %v2829 = vld [vmem:[#allocation19 + $0x918] sm:$0xff]
          %v2830 = vld [vmem:[#allocation19 + $0x920] sm:$0xff]
          %v2831 = vld [vmem:[#allocation19 + $0x928] sm:$0xff]
          %v2832 = vld [vmem:[#allocation19 + $0x930] sm:$0xff]
          %v2833 = vld [vmem:[#allocation19 + $0x938] sm:$0xff]
          %v2834 = vld [vmem:[#allocation19 + $0x940] sm:$0xff]
          %v2835 = vld [vmem:[#allocation19 + $0x948] sm:$0xff]
          %v2836 = vld [vmem:[#allocation19 + $0x950] sm:$0xff]
          %v2837 = vld [vmem:[#allocation19 + $0x958] sm:$0xff]
          %v2838 = vld [vmem:[#allocation19 + $0x960] sm:$0xff]
          %v2839 = vld [vmem:[#allocation19 + $0x968] sm:$0xff]
          %v2840 = vld [vmem:[#allocation19 + $0x970] sm:$0xff]
          %v2841 = vld [vmem:[#allocation19 + $0x978] sm:$0xff]
          %v2842 = vld [vmem:[#allocation19 + $0x980] sm:$0xff]
          %v2843 = vld [vmem:[#allocation19 + $0x988] sm:$0xff]
          %v2844 = vld [vmem:[#allocation19 + $0x990] sm:$0xff]
          %v2845 = vld [vmem:[#allocation19 + $0x998] sm:$0xff]
          %v2846 = vld [vmem:[#allocation19 + $0x9a0] sm:$0xff]
          %v2847 = vld [vmem:[#allocation19 + $0x9a8] sm:$0xff]
          %v2848 = vld [vmem:[#allocation19 + $0x9b0] sm:$0xff]
          %v2849 = vld [vmem:[#allocation19 + $0x9b8] sm:$0xff]
          %v2850 = vld [vmem:[#allocation19 + $0x9c0] sm:$0xff]
          %v2851 = vld [vmem:[#allocation19 + $0x9c8] sm:$0xff]
          %v2852 = vld [vmem:[#allocation19 + $0x9d0] sm:$0xff]
          %v2853 = vld [vmem:[#allocation19 + $0x9d8] sm:$0xff]
          %v2854 = vld [vmem:[#allocation19 + $0x9e0] sm:$0xff]
          %v2855 = vld [vmem:[#allocation19 + $0x9e8] sm:$0xff]
          %v2856 = vld [vmem:[#allocation19 + $0x9f0] sm:$0xff]
          %v2857 = vld [vmem:[#allocation19 + $0x9f8] sm:$0xff]
          %v2858 = vld [vmem:[#allocation19 + $0xa00] sm:$0xff]
          %v2859 = vld [vmem:[#allocation19 + $0xa08] sm:$0xff]
          %v2860 = vld [vmem:[#allocation19 + $0xa10] sm:$0xff]
          %v2861 = vld [vmem:[#allocation19 + $0xa18] sm:$0xff]
          %v2862 = vld [vmem:[#allocation19 + $0xa20] sm:$0xff]
          %v2863 = vld [vmem:[#allocation19 + $0xa28] sm:$0xff]
          %v2864 = vld [vmem:[#allocation19 + $0xa30] sm:$0xff]
          %v2865 = vld [vmem:[#allocation19 + $0xa38] sm:$0xff]
          %v2866 = vld [vmem:[#allocation19 + $0xa40] sm:$0xff]
          %v2867 = vld [vmem:[#allocation19 + $0xa48] sm:$0xff]
          %v2868 = vld [vmem:[#allocation19 + $0xa50] sm:$0xff]
          %v2869 = vld [vmem:[#allocation19 + $0xa58] sm:$0xff]
          %v2870 = vld [vmem:[#allocation19 + $0xa60] sm:$0xff]
          %v2871 = vld [vmem:[#allocation19 + $0xa68] sm:$0xff]
          %v2872 = vld [vmem:[#allocation19 + $0xa70] sm:$0xff]
          %v2873 = vld [vmem:[#allocation19 + $0xa78] sm:$0xff]
          %v2874 = vld [vmem:[#allocation19 + $0xa80] sm:$0xff]
          %v2875 = vld [vmem:[#allocation19 + $0xa88] sm:$0xff]
          %v2876 = vld [vmem:[#allocation19 + $0xa90] sm:$0xff]
          %v2877 = vld [vmem:[#allocation19 + $0xa98] sm:$0xff]
          %v2878 = vld [vmem:[#allocation19 + $0xaa0] sm:$0xff]
          %v2879 = vld [vmem:[#allocation19 + $0xaa8] sm:$0xff]
          %v2880 = vld [vmem:[#allocation19 + $0xab0] sm:$0xff]
          %v2881 = vld [vmem:[#allocation19 + $0xab8] sm:$0xff]
          %v2882 = vld [vmem:[#allocation19 + $0xac0] sm:$0xff]
          %v2883 = vld [vmem:[#allocation19 + $0xac8] sm:$0xff]
          %v2884 = vld [vmem:[#allocation19 + $0xad0] sm:$0xff]
          %v2885 = vld [vmem:[#allocation19 + $0xad8] sm:$0xff]
          %v2886 = vld [vmem:[#allocation19 + $0xae0] sm:$0xff]
          %v2887 = vld [vmem:[#allocation19 + $0xae8] sm:$0xff]
          %v2888 = vld [vmem:[#allocation19 + $0xaf0] sm:$0xff]
          %v2889 = vld [vmem:[#allocation19 + $0xaf8] sm:$0xff]
          %v2890 = vld [vmem:[#allocation19 + $0xb00] sm:$0xff]
          %v2891 = vld [vmem:[#allocation19 + $0xb08] sm:$0xff]
          %v2892 = vld [vmem:[#allocation19 + $0xb10] sm:$0xff]
          %v2893 = vld [vmem:[#allocation19 + $0xb18] sm:$0xff]
          %v2894 = vld [vmem:[#allocation19 + $0xb20] sm:$0xff]
          %v2895 = vld [vmem:[#allocation19 + $0xb28] sm:$0xff]
          %v2896 = vld [vmem:[#allocation19 + $0xb30] sm:$0xff]
          %v2897 = vld [vmem:[#allocation19 + $0xb38] sm:$0xff]
          %v2898 = vld [vmem:[#allocation19 + $0xb40] sm:$0xff]
          %v2899 = vld [vmem:[#allocation19 + $0xb48] sm:$0xff]
          %v2900 = vld [vmem:[#allocation19 + $0xb50] sm:$0xff]
          %v2901 = vld [vmem:[#allocation19 + $0xb58] sm:$0xff]
          %v2902 = vld [vmem:[#allocation19 + $0xb60] sm:$0xff]
          %v2903 = vld [vmem:[#allocation19 + $0xb68] sm:$0xff]
          %v2904 = vld [vmem:[#allocation19 + $0xb70] sm:$0xff]
          %v2905 = vld [vmem:[#allocation19 + $0xb78] sm:$0xff]
          %v2906 = vld [vmem:[#allocation19 + $0xb80] sm:$0xff]
          %v2907 = vld [vmem:[#allocation19 + $0xb88] sm:$0xff]
          %v2908 = vld [vmem:[#allocation19 + $0xb90] sm:$0xff]
          %v2909 = vld [vmem:[#allocation19 + $0xb98] sm:$0xff]
          %v2910 = vld [vmem:[#allocation19 + $0xba0] sm:$0xff]
          %v2911 = vld [vmem:[#allocation19 + $0xba8] sm:$0xff]
          %v2912 = vld [vmem:[#allocation19 + $0xbb0] sm:$0xff]
          %v2913 = vld [vmem:[#allocation19 + $0xbb8] sm:$0xff]
          %v2914 = vld [vmem:[#allocation19 + $0xbc0] sm:$0xff]
          %v2915 = vld [vmem:[#allocation19 + $0xbc8] sm:$0xff]
          %v2916 = vld [vmem:[#allocation19 + $0xbd0] sm:$0xff]
          %v2917 = vld [vmem:[#allocation19 + $0xbd8] sm:$0xff]
          %v2918 = vld [vmem:[#allocation19 + $0xbe0] sm:$0xff]
          %v2919 = vld [vmem:[#allocation19 + $0xbe8] sm:$0xff]
          %v2920 = vld [vmem:[#allocation19 + $0xbf0] sm:$0xff]
          %v2921 = vld [vmem:[#allocation19 + $0xbf8] sm:$0xff]
          %v2922 = vld [vmem:[#allocation19 + $0xc00] sm:$0xff]
          %v2923 = vld [vmem:[#allocation19 + $0xc08] sm:$0xff]
          %v2924 = vld [vmem:[#allocation19 + $0xc10] sm:$0xff]
          %v2925 = vld [vmem:[#allocation19 + $0xc18] sm:$0xff]
          %v2926 = vld [vmem:[#allocation19 + $0xc20] sm:$0xff]
          %v2927 = vld [vmem:[#allocation19 + $0xc28] sm:$0xff]
          %v2928 = vld [vmem:[#allocation19 + $0xc30] sm:$0xff]
          %v2929 = vld [vmem:[#allocation19 + $0xc38] sm:$0xff]
          %v2930 = vld [vmem:[#allocation19 + $0xc40] sm:$0xff]
          %v2931 = vld [vmem:[#allocation19 + $0xc48] sm:$0xff]
          %v2932 = vld [vmem:[#allocation19 + $0xc50] sm:$0xff]
          %v2933 = vld [vmem:[#allocation19 + $0xc58] sm:$0xff]
          %v2934 = vld [vmem:[#allocation19 + $0xc60] sm:$0xff]
          %v2935 = vld [vmem:[#allocation19 + $0xc68] sm:$0xff]
          %v2936 = vld [vmem:[#allocation19 + $0xc70] sm:$0xff]
          %v2937 = vld [vmem:[#allocation19 + $0xc78] sm:$0xff]
          %v2938 = vld [vmem:[#allocation19 + $0xc80] sm:$0xff]
          %v2939 = vld [vmem:[#allocation19 + $0xc88] sm:$0xff]
          %v2940 = vld [vmem:[#allocation19 + $0xc90] sm:$0xff]
          %v2941 = vld [vmem:[#allocation19 + $0xc98] sm:$0xff]
          %v2942 = vld [vmem:[#allocation19 + $0xca0] sm:$0xff]
          %v2943 = vld [vmem:[#allocation19 + $0xca8] sm:$0xff]
          %v2944 = vld [vmem:[#allocation19 + $0xcb0] sm:$0xff]
          %v2945 = vld [vmem:[#allocation19 + $0xcb8] sm:$0xff]
          %v2946 = vld [vmem:[#allocation19 + $0xcc0] sm:$0xff]
          %v2947 = vld [vmem:[#allocation19 + $0xcc8] sm:$0xff]
          %v2948 = vld [vmem:[#allocation19 + $0xcd0] sm:$0xff]
          %v2949 = vld [vmem:[#allocation19 + $0xcd8] sm:$0xff]
          %v2950 = vld [vmem:[#allocation19 + $0xce0] sm:$0xff]
          %v2951 = vld [vmem:[#allocation19 + $0xce8] sm:$0xff]
          %v2952 = vld [vmem:[#allocation19 + $0xcf0] sm:$0xff]
          %v2953 = vld [vmem:[#allocation19 + $0xcf8] sm:$0xff]
          %v2954 = vld [vmem:[#allocation19 + $0xd00] sm:$0xff]
          %v2955 = vld [vmem:[#allocation19 + $0xd08] sm:$0xff]
          %v2956 = vld [vmem:[#allocation19 + $0xd10] sm:$0xff]
          %v2957 = vld [vmem:[#allocation19 + $0xd18] sm:$0xff]
          %v2958 = vld [vmem:[#allocation19 + $0xd20] sm:$0xff]
          %v2959 = vld [vmem:[#allocation19 + $0xd28] sm:$0xff]
          %v2960 = vld [vmem:[#allocation19 + $0xd30] sm:$0xff]
          %v2961 = vld [vmem:[#allocation19 + $0xd38] sm:$0xff]
          %v2962 = vld [vmem:[#allocation19 + $0xd40] sm:$0xff]
          %v2963 = vld [vmem:[#allocation19 + $0xd48] sm:$0xff]
          %v2964 = vld [vmem:[#allocation19 + $0xd50] sm:$0xff]
          %v2965 = vld [vmem:[#allocation19 + $0xd58] sm:$0xff]
          %v2966 = vld [vmem:[#allocation19 + $0xd60] sm:$0xff]
          %v2967 = vld [vmem:[#allocation19 + $0xd68] sm:$0xff]
          %v2968 = vld [vmem:[#allocation19 + $0xd70] sm:$0xff]
          %v2969 = vld [vmem:[#allocation19 + $0xd78] sm:$0xff]
          %v2970 = vld [vmem:[#allocation19 + $0xd80] sm:$0xff]
          %v2971 = vld [vmem:[#allocation19 + $0xd88] sm:$0xff]
          %v2972 = vld [vmem:[#allocation19 + $0xd90] sm:$0xff]
          %v2973 = vld [vmem:[#allocation19 + $0xd98] sm:$0xff]
          %v2974 = vld [vmem:[#allocation19 + $0xda0] sm:$0xff]
          %v2975 = vld [vmem:[#allocation19 + $0xda8] sm:$0xff]
          %v2976 = vld [vmem:[#allocation19 + $0xdb0] sm:$0xff]
          %v2977 = vld [vmem:[#allocation19 + $0xdb8] sm:$0xff]
          %v2978 = vld [vmem:[#allocation19 + $0xdc0] sm:$0xff]
          %v2979 = vld [vmem:[#allocation19 + $0xdc8] sm:$0xff]
          %v2980 = vld [vmem:[#allocation19 + $0xdd0] sm:$0xff]
          %v2981 = vld [vmem:[#allocation19 + $0xdd8] sm:$0xff]
          %v2982 = vld [vmem:[#allocation19 + $0xde0] sm:$0xff]
          %v2983 = vld [vmem:[#allocation19 + $0xde8] sm:$0xff]
          %v2984 = vld [vmem:[#allocation19 + $0xdf0] sm:$0xff]
          %v2985 = vld [vmem:[#allocation19 + $0xdf8] sm:$0xff]
          %v2986 = vld [vmem:[#allocation19 + $0xe00] sm:$0xff]
          %v2987 = vld [vmem:[#allocation19 + $0xe08] sm:$0xff]
          %v2988 = vld [vmem:[#allocation19 + $0xe10] sm:$0xff]
          %v2989 = vld [vmem:[#allocation19 + $0xe18] sm:$0xff]
          %v2990 = vld [vmem:[#allocation19 + $0xe20] sm:$0xff]
          %v2991 = vld [vmem:[#allocation19 + $0xe28] sm:$0xff]
          %v2992 = vld [vmem:[#allocation19 + $0xe30] sm:$0xff]
          %v2993 = vld [vmem:[#allocation19 + $0xe38] sm:$0xff]
          %v2994 = vld [vmem:[#allocation19 + $0xe40] sm:$0xff]
          %v2995 = vld [vmem:[#allocation19 + $0xe48] sm:$0xff]
          %v2996 = vld [vmem:[#allocation19 + $0xe50] sm:$0xff]
          %v2997 = vld [vmem:[#allocation19 + $0xe58] sm:$0xff]
          %v2998 = vld [vmem:[#allocation19 + $0xe60] sm:$0xff]
          %v2999 = vld [vmem:[#allocation19 + $0xe68] sm:$0xff]
          %v3000 = vld [vmem:[#allocation19 + $0xe70] sm:$0xff]
          %v3001 = vld [vmem:[#allocation19 + $0xe78] sm:$0xff]
          %v3002 = vld [vmem:[#allocation19 + $0xe80] sm:$0xff]
          %v3003 = vld [vmem:[#allocation19 + $0xe88] sm:$0xff]
          %v3004 = vld [vmem:[#allocation19 + $0xe90] sm:$0xff]
          %v3005 = vld [vmem:[#allocation19 + $0xe98] sm:$0xff]
          %v3006 = vld [vmem:[#allocation19 + $0xea0] sm:$0xff]
          %v3007 = vld [vmem:[#allocation19 + $0xea8] sm:$0xff]
          %v3008 = vld [vmem:[#allocation19 + $0xeb0] sm:$0xff]
          %v3009 = vld [vmem:[#allocation19 + $0xeb8] sm:$0xff]
          %v3010 = vld [vmem:[#allocation19 + $0xec0] sm:$0xff]
          %v3011 = vld [vmem:[#allocation19 + $0xec8] sm:$0xff]
          %v3012 = vld [vmem:[#allocation19 + $0xed0] sm:$0xff]
          %v3013 = vld [vmem:[#allocation19 + $0xed8] sm:$0xff]
          %v3014 = vld [vmem:[#allocation19 + $0xee0] sm:$0xff]
          %v3015 = vld [vmem:[#allocation19 + $0xee8] sm:$0xff]
          %v3016 = vld [vmem:[#allocation19 + $0xef0] sm:$0xff]
          %v3017 = vld [vmem:[#allocation19 + $0xef8] sm:$0xff]
          %v3018 = vld [vmem:[#allocation19 + $0xf00] sm:$0xff]
          %v3019 = vld [vmem:[#allocation19 + $0xf08] sm:$0xff]
          %v3020 = vld [vmem:[#allocation19 + $0xf10] sm:$0xff]
          %v3021 = vld [vmem:[#allocation19 + $0xf18] sm:$0xff]
          %v3022 = vld [vmem:[#allocation19 + $0xf20] sm:$0xff]
          %v3023 = vld [vmem:[#allocation19 + $0xf28] sm:$0xff]
          %v3024 = vld [vmem:[#allocation19 + $0xf30] sm:$0xff]
          %v3025 = vld [vmem:[#allocation19 + $0xf38] sm:$0xff]
          %v3026 = vld [vmem:[#allocation19 + $0xf40] sm:$0xff]
          %v3027 = vld [vmem:[#allocation19 + $0xf48] sm:$0xff]
          %v3028 = vld [vmem:[#allocation19 + $0xf50] sm:$0xff]
          %v3029 = vld [vmem:[#allocation19 + $0xf58] sm:$0xff]
          %v3030 = vld [vmem:[#allocation19 + $0xf60] sm:$0xff]
          %v3031 = vld [vmem:[#allocation19 + $0xf68] sm:$0xff]
          %v3032 = vld [vmem:[#allocation19 + $0xf70] sm:$0xff]
          %v3033 = vld [vmem:[#allocation19 + $0xf78] sm:$0xff]
          %v3034 = vld [vmem:[#allocation19 + $0xf80] sm:$0xff]
          %v3035 = vld [vmem:[#allocation19 + $0xf88] sm:$0xff]
          %v3036 = vld [vmem:[#allocation19 + $0xf90] sm:$0xff]
          %v3037 = vld [vmem:[#allocation19 + $0xf98] sm:$0xff]
          %v3038 = vld [vmem:[#allocation19 + $0xfa0] sm:$0xff]
          %v3039 = vld [vmem:[#allocation19 + $0xfa8] sm:$0xff]
          %v3040 = vld [vmem:[#allocation19 + $0xfb0] sm:$0xff]
          %v3041 = vld [vmem:[#allocation19 + $0xfb8] sm:$0xff]
          %v3042 = vld [vmem:[#allocation19 + $0xfc0] sm:$0xff]
          %v3043 = vld [vmem:[#allocation19 + $0xfc8] sm:$0xff]
          %v3044 = vld [vmem:[#allocation19 + $0xfd0] sm:$0xff]
          %v3045 = vld [vmem:[#allocation19 + $0xfd8] sm:$0xff]
          %v3046 = vld [vmem:[#allocation19 + $0xfe0] sm:$0xff]
          %v3047 = vld [vmem:[#allocation19 + $0xfe8] sm:$0xff]
          %v3048 = vld [vmem:[#allocation19 + $0xff0] sm:$0xff]
          %v3049 = vld [vmem:[#allocation19 + $0xff8] sm:$0xff]
          %v3050 = vld [vmem:[#allocation19 + $0x1000] sm:$0xff]
          %v3051 = vld [vmem:[#allocation19 + $0x1008] sm:$0xff]
          %v3052 = vld [vmem:[#allocation19 + $0x1010] sm:$0xff]
          %v3053 = vld [vmem:[#allocation19 + $0x1018] sm:$0xff]
          %v3054 = vld [vmem:[#allocation19 + $0x1020] sm:$0xff]
          %v3055 = vld [vmem:[#allocation19 + $0x1028] sm:$0xff]
          %v3056 = vld [vmem:[#allocation19 + $0x1030] sm:$0xff]
          %v3057 = vld [vmem:[#allocation19 + $0x1038] sm:$0xff]
          %v3058 = vld [vmem:[#allocation19 + $0x1040] sm:$0xff]
          %v3059 = vld [vmem:[#allocation19 + $0x1048] sm:$0xff]
          %v3060 = vld [vmem:[#allocation19 + $0x1050] sm:$0xff]
          %v3061 = vld [vmem:[#allocation19 + $0x1058] sm:$0xff]
          %v3062 = vld [vmem:[#allocation19 + $0x1060] sm:$0xff]
          %v3063 = vld [vmem:[#allocation19 + $0x1068] sm:$0xff]
          %v3064 = vld [vmem:[#allocation19 + $0x1070] sm:$0xff]
          %v3065 = vld [vmem:[#allocation19 + $0x1078] sm:$0xff]
          %v3066 = vld [vmem:[#allocation19 + $0x1080] sm:$0xff]
          %v3067 = vld [vmem:[#allocation19 + $0x1088] sm:$0xff]
          %v3068 = vld [vmem:[#allocation19 + $0x1090] sm:$0xff]
          %v3069 = vld [vmem:[#allocation19 + $0x1098] sm:$0xff]
          %v3070 = vld [vmem:[#allocation19 + $0x10a0] sm:$0xff]
          %v3071 = vld [vmem:[#allocation19 + $0x10a8] sm:$0xff]
          %v3072 = vld [vmem:[#allocation19 + $0x10b0] sm:$0xff]
          %v3073 = vld [vmem:[#allocation19 + $0x10b8] sm:$0xff]
          %v3074 = vld [vmem:[#allocation19 + $0x10c0] sm:$0xff]
          %v3075 = vld [vmem:[#allocation19 + $0x10c8] sm:$0xff]
          %v3076 = vld [vmem:[#allocation19 + $0x10d0] sm:$0xff]
          %v3077 = vld [vmem:[#allocation19 + $0x10d8] sm:$0xff]
          %v3078 = vld [vmem:[#allocation19 + $0x10e0] sm:$0xff]
          %v3079 = vld [vmem:[#allocation19 + $0x10e8] sm:$0xff]
          %v3080 = vld [vmem:[#allocation19 + $0x10f0] sm:$0xff]
          %v3081 = vld [vmem:[#allocation19 + $0x10f8] sm:$0xff]
          %v3082 = vld [vmem:[#allocation19 + $0x1100] sm:$0xff]
          %v3083 = vld [vmem:[#allocation19 + $0x1108] sm:$0xff]
          %v3084 = vld [vmem:[#allocation19 + $0x1110] sm:$0xff]
          %v3085 = vld [vmem:[#allocation19 + $0x1118] sm:$0xff]
          %v3086 = vld [vmem:[#allocation19 + $0x1120] sm:$0xff]
          %v3087 = vld [vmem:[#allocation19 + $0x1128] sm:$0xff]
          %v3088 = vld [vmem:[#allocation19 + $0x1130] sm:$0xff]
          %v3089 = vld [vmem:[#allocation19 + $0x1138] sm:$0xff]
          %v3090 = vld [vmem:[#allocation19 + $0x1140] sm:$0xff]
          %v3091 = vld [vmem:[#allocation19 + $0x1148] sm:$0xff]
          %v3092 = vld [vmem:[#allocation19 + $0x1150] sm:$0xff]
          %v3093 = vld [vmem:[#allocation19 + $0x1158] sm:$0xff]
          %v3094 = vld [vmem:[#allocation19 + $0x1160] sm:$0xff]
          %v3095 = vld [vmem:[#allocation19 + $0x1168] sm:$0xff]
          %v3096 = vld [vmem:[#allocation19 + $0x1170] sm:$0xff]
          %v3097 = vld [vmem:[#allocation19 + $0x1178] sm:$0xff]
          %v3098 = vld [vmem:[#allocation19 + $0x1180] sm:$0xff]
          %v3099 = vld [vmem:[#allocation19 + $0x1188] sm:$0xff]
          %v3100 = vld [vmem:[#allocation19 + $0x1190] sm:$0xff]
          %v3101 = vld [vmem:[#allocation19 + $0x1198] sm:$0xff]
          %v3102 = vld [vmem:[#allocation19 + $0x11a0] sm:$0xff]
          %v3103 = vld [vmem:[#allocation19 + $0x11a8] sm:$0xff]
          %v3104 = vld [vmem:[#allocation19 + $0x11b0] sm:$0xff]
          %v3105 = vld [vmem:[#allocation19 + $0x11b8] sm:$0xff]
          %v3106 = vld [vmem:[#allocation19 + $0x11c0] sm:$0xff]
          %v3107 = vld [vmem:[#allocation19 + $0x11c8] sm:$0xff]
          %v3108 = vld [vmem:[#allocation19 + $0x11d0] sm:$0xff]
          %v3109 = vld [vmem:[#allocation19 + $0x11d8] sm:$0xff]
          %v3110 = vld [vmem:[#allocation19 + $0x11e0] sm:$0xff]
          %v3111 = vld [vmem:[#allocation19 + $0x11e8] sm:$0xff]
          %v3112 = vld [vmem:[#allocation19 + $0x11f0] sm:$0xff]
          %v3113 = vld [vmem:[#allocation19 + $0x11f8] sm:$0xff]
          %v3114 = vld [vmem:[#allocation19 + $0x1200] sm:$0xff]
          %v3115 = vld [vmem:[#allocation19 + $0x1208] sm:$0xff]
          %v3116 = vld [vmem:[#allocation19 + $0x1210] sm:$0xff]
          %v3117 = vld [vmem:[#allocation19 + $0x1218] sm:$0xff]
          %v3118 = vld [vmem:[#allocation19 + $0x1220] sm:$0xff]
          %v3119 = vld [vmem:[#allocation19 + $0x1228] sm:$0xff]
          %v3120 = vld [vmem:[#allocation19 + $0x1230] sm:$0xff]
          %v3121 = vld [vmem:[#allocation19 + $0x1238] sm:$0xff]
          %v3122 = vld [vmem:[#allocation19 + $0x1240] sm:$0xff]
          %v3123 = vld [vmem:[#allocation19 + $0x1248] sm:$0xff]
          %v3124 = vld [vmem:[#allocation19 + $0x1250] sm:$0xff]
          %v3125 = vld [vmem:[#allocation19 + $0x1258] sm:$0xff]
          %v3126 = vld [vmem:[#allocation19 + $0x1260] sm:$0xff]
          %v3127 = vld [vmem:[#allocation19 + $0x1268] sm:$0xff]
          %v3128 = vld [vmem:[#allocation19 + $0x1270] sm:$0xff]
          %v3129 = vld [vmem:[#allocation19 + $0x1278] sm:$0xff]
          %v3130 = vld [vmem:[#allocation19 + $0x1280] sm:$0xff]
          %v3131 = vld [vmem:[#allocation19 + $0x1288] sm:$0xff]
          %v3132 = vld [vmem:[#allocation19 + $0x1290] sm:$0xff]
          %v3133 = vld [vmem:[#allocation19 + $0x1298] sm:$0xff]
          %v3134 = vld [vmem:[#allocation19 + $0x12a0] sm:$0xff]
          %v3135 = vld [vmem:[#allocation19 + $0x12a8] sm:$0xff]
          %v3136 = vld [vmem:[#allocation19 + $0x12b0] sm:$0xff]
          %v3137 = vld [vmem:[#allocation19 + $0x12b8] sm:$0xff]
          %v3138 = vld [vmem:[#allocation19 + $0x12c0] sm:$0xff]
          %v3139 = vld [vmem:[#allocation19 + $0x12c8] sm:$0xff]
          %v3140 = vld [vmem:[#allocation19 + $0x12d0] sm:$0xff]
          %v3141 = vld [vmem:[#allocation19 + $0x12d8] sm:$0xff]
          %v3142 = vld [vmem:[#allocation19 + $0x12e0] sm:$0xff]
          %v3143 = vld [vmem:[#allocation19 + $0x12e8] sm:$0xff]
          %v3144 = vld [vmem:[#allocation19 + $0x12f0] sm:$0xff]
          %v3145 = vld [vmem:[#allocation19 + $0x12f8] sm:$0xff]
          %v3146 = vld [vmem:[#allocation19 + $0x1300] sm:$0xff]
          %v3147 = vld [vmem:[#allocation19 + $0x1308] sm:$0xff]
          %v3148 = vld [vmem:[#allocation19 + $0x1310] sm:$0xff]
          %v3149 = vld [vmem:[#allocation19 + $0x1318] sm:$0xff]
          %v3150 = vld [vmem:[#allocation19 + $0x1320] sm:$0xff]
          %v3151 = vld [vmem:[#allocation19 + $0x1328] sm:$0xff]
          %v3152 = vld [vmem:[#allocation19 + $0x1330] sm:$0xff]
          %v3153 = vld [vmem:[#allocation19 + $0x1338] sm:$0xff]
          %v3154 = vld [vmem:[#allocation19 + $0x1340] sm:$0xff]
          %v3155 = vld [vmem:[#allocation19 + $0x1348] sm:$0xff]
          %v3156 = vld [vmem:[#allocation19 + $0x1350] sm:$0xff]
          %v3157 = vld [vmem:[#allocation19 + $0x1358] sm:$0xff]
          %v3158 = vld [vmem:[#allocation19 + $0x1360] sm:$0xff]
          %v3159 = vld [vmem:[#allocation19 + $0x1368] sm:$0xff]
          %v3160 = vld [vmem:[#allocation19 + $0x1370] sm:$0xff]
          %v3161 = vld [vmem:[#allocation19 + $0x1378] sm:$0xff]
          %v3162 = vld [vmem:[#allocation19 + $0x1380] sm:$0xff]
          %v3163 = vld [vmem:[#allocation19 + $0x1388] sm:$0xff]
          %v3164 = vld [vmem:[#allocation19 + $0x1390] sm:$0xff]
          %v3165 = vld [vmem:[#allocation19 + $0x1398] sm:$0xff]
          %v3166 = vld [vmem:[#allocation19 + $0x13a0] sm:$0xff]
          %v3167 = vld [vmem:[#allocation19 + $0x13a8] sm:$0xff]
          %v3168 = vld [vmem:[#allocation19 + $0x13b0] sm:$0xff]
          %v3169 = vld [vmem:[#allocation19 + $0x13b8] sm:$0xff]
          %v3170 = vld [vmem:[#allocation19 + $0x13c0] sm:$0xff]
          %v3171 = vld [vmem:[#allocation19 + $0x13c8] sm:$0xff]
          %v3172 = vld [vmem:[#allocation19 + $0x13d0] sm:$0xff]
          %v3173 = vld [vmem:[#allocation19 + $0x13d8] sm:$0xff]
          %v3174 = vld [vmem:[#allocation19 + $0x13e0] sm:$0xff]
          %v3175 = vld [vmem:[#allocation19 + $0x13e8] sm:$0xff]
          %v3176 = vld [vmem:[#allocation19 + $0x13f0] sm:$0xff]
          %v3177 = vld [vmem:[#allocation19 + $0x13f8] sm:$0xff]
          %v3178 = vld [vmem:[#allocation19 + $0x1400] sm:$0xff]
          %v3179 = vld [vmem:[#allocation19 + $0x1408] sm:$0xff]
          %v3180 = vld [vmem:[#allocation19 + $0x1410] sm:$0xff]
          %v3181 = vld [vmem:[#allocation19 + $0x1418] sm:$0xff]
          %v3182 = vld [vmem:[#allocation19 + $0x1420] sm:$0xff]
          %v3183 = vld [vmem:[#allocation19 + $0x1428] sm:$0xff]
          %v3184 = vld [vmem:[#allocation19 + $0x1430] sm:$0xff]
          %v3185 = vld [vmem:[#allocation19 + $0x1438] sm:$0xff]
          %v3186 = vld [vmem:[#allocation19 + $0x1440] sm:$0xff]
          %v3187 = vld [vmem:[#allocation19 + $0x1448] sm:$0xff]
          %v3188 = vld [vmem:[#allocation19 + $0x1450] sm:$0xff]
          %v3189 = vld [vmem:[#allocation19 + $0x1458] sm:$0xff]
          %v3190 = vld [vmem:[#allocation19 + $0x1460] sm:$0xff]
          %v3191 = vld [vmem:[#allocation19 + $0x1468] sm:$0xff]
          %v3192 = vld [vmem:[#allocation19 + $0x1470] sm:$0xff]
          %v3193 = vld [vmem:[#allocation19 + $0x1478] sm:$0xff]
          %v3194 = vld [vmem:[#allocation19 + $0x1480] sm:$0xff]
          %v3195 = vld [vmem:[#allocation19 + $0x1488] sm:$0xff]
          %v3196 = vld [vmem:[#allocation19 + $0x1490] sm:$0xff]
          %v3197 = vld [vmem:[#allocation19 + $0x1498] sm:$0xff]
          %v3198 = vld [vmem:[#allocation19 + $0x14a0] sm:$0xff]
          %v3199 = vld [vmem:[#allocation19 + $0x14a8] sm:$0xff]
          %v3200 = vld [vmem:[#allocation19 + $0x14b0] sm:$0xff]
          %v3201 = vld [vmem:[#allocation19 + $0x14b8] sm:$0xff]
          %v3202 = vld [vmem:[#allocation19 + $0x14c0] sm:$0xff]
          %v3203 = vld [vmem:[#allocation19 + $0x14c8] sm:$0xff]
          %v3204 = vld [vmem:[#allocation19 + $0x14d0] sm:$0xff]
          %v3205 = vld [vmem:[#allocation19 + $0x14d8] sm:$0xff]
          %v3206 = vld [vmem:[#allocation19 + $0x14e0] sm:$0xff]
          %v3207 = vld [vmem:[#allocation19 + $0x14e8] sm:$0xff]
          %v3208 = vld [vmem:[#allocation19 + $0x14f0] sm:$0xff]
          %v3209 = vld [vmem:[#allocation19 + $0x14f8] sm:$0xff]
          %v3210 = vld [vmem:[#allocation19 + $0x1500] sm:$0xff]
          %v3211 = vld [vmem:[#allocation19 + $0x1508] sm:$0xff]
          %v3212 = vld [vmem:[#allocation19 + $0x1510] sm:$0xff]
          %v3213 = vld [vmem:[#allocation19 + $0x1518] sm:$0xff]
          %v3214 = vld [vmem:[#allocation19 + $0x1520] sm:$0xff]
          %v3215 = vld [vmem:[#allocation19 + $0x1528] sm:$0xff]
          %v3216 = vld [vmem:[#allocation19 + $0x1530] sm:$0xff]
          %v3217 = vld [vmem:[#allocation19 + $0x1538] sm:$0xff]
          %v3218 = vld [vmem:[#allocation19 + $0x1540] sm:$0xff]
          %v3219 = vld [vmem:[#allocation19 + $0x1548] sm:$0xff]
          %v3220 = vld [vmem:[#allocation19 + $0x1550] sm:$0xff]
          %v3221 = vld [vmem:[#allocation19 + $0x1558] sm:$0xff]
          %v3222 = vld [vmem:[#allocation19 + $0x1560] sm:$0xff]
          %v3223 = vld [vmem:[#allocation19 + $0x1568] sm:$0xff]
          %v3224 = vld [vmem:[#allocation19 + $0x1570] sm:$0xff]
          %v3225 = vld [vmem:[#allocation19 + $0x1578] sm:$0xff]
          %v3226 = vld [vmem:[#allocation19 + $0x1580] sm:$0xff]
          %v3227 = vld [vmem:[#allocation19 + $0x1588] sm:$0xff]
          %v3228 = vld [vmem:[#allocation19 + $0x1590] sm:$0xff]
          %v3229 = vld [vmem:[#allocation19 + $0x1598] sm:$0xff]
          %v3230 = vld [vmem:[#allocation19 + $0x15a0] sm:$0xff]
          %v3231 = vld [vmem:[#allocation19 + $0x15a8] sm:$0xff]
          %v3232 = vld [vmem:[#allocation19 + $0x15b0] sm:$0xff]
          %v3233 = vld [vmem:[#allocation19 + $0x15b8] sm:$0xff]
          %v3234 = vld [vmem:[#allocation19 + $0x15c0] sm:$0xff]
          %v3235 = vld [vmem:[#allocation19 + $0x15c8] sm:$0xff]
          %v3236 = vld [vmem:[#allocation19 + $0x15d0] sm:$0xff]
          %v3237 = vld [vmem:[#allocation19 + $0x15d8] sm:$0xff]
          %v3238 = vld [vmem:[#allocation19 + $0x15e0] sm:$0xff]
          %v3239 = vld [vmem:[#allocation19 + $0x15e8] sm:$0xff]
          %v3240 = vld [vmem:[#allocation19 + $0x15f0] sm:$0xff]
          %v3241 = vld [vmem:[#allocation19 + $0x15f8] sm:$0xff]
          %v3242 = vld [vmem:[#allocation19 + $0x1600] sm:$0xff]
          %v3243 = vld [vmem:[#allocation19 + $0x1608] sm:$0xff]
          %v3244 = vld [vmem:[#allocation19 + $0x1610] sm:$0xff]
          %v3245 = vld [vmem:[#allocation19 + $0x1618] sm:$0xff]
          %v3246 = vld [vmem:[#allocation19 + $0x1620] sm:$0xff]
          %v3247 = vld [vmem:[#allocation19 + $0x1628] sm:$0xff]
          %v3248 = vld [vmem:[#allocation19 + $0x1630] sm:$0xff]
          %v3249 = vld [vmem:[#allocation19 + $0x1638] sm:$0xff]
          %v3250 = vld [vmem:[#allocation19 + $0x1640] sm:$0xff]
          %v3251 = vld [vmem:[#allocation19 + $0x1648] sm:$0xff]
          %v3252 = vld [vmem:[#allocation19 + $0x1650] sm:$0xff]
          %v3253 = vld [vmem:[#allocation19 + $0x1658] sm:$0xff]
          %v3254 = vld [vmem:[#allocation19 + $0x1660] sm:$0xff]
          %v3255 = vld [vmem:[#allocation19 + $0x1668] sm:$0xff]
          %v3256 = vld [vmem:[#allocation19 + $0x1670] sm:$0xff]
          %v3257 = vld [vmem:[#allocation19 + $0x1678] sm:$0xff]
          %v3258 = vld [vmem:[#allocation19 + $0x1680] sm:$0xff]
          %v3259 = vld [vmem:[#allocation19 + $0x1688] sm:$0xff]
          %v3260 = vld [vmem:[#allocation19 + $0x1690] sm:$0xff]
          %v3261 = vld [vmem:[#allocation19 + $0x1698] sm:$0xff]
          %v3262 = vld [vmem:[#allocation19 + $0x16a0] sm:$0xff]
          %v3263 = vld [vmem:[#allocation19 + $0x16a8] sm:$0xff]
          %v3264 = vld [vmem:[#allocation19 + $0x16b0] sm:$0xff]
          %v3265 = vld [vmem:[#allocation19 + $0x16b8] sm:$0xff]
          %v3266 = vld [vmem:[#allocation19 + $0x16c0] sm:$0xff]
          %v3267 = vld [vmem:[#allocation19 + $0x16c8] sm:$0xff]
          %v3268 = vld [vmem:[#allocation19 + $0x16d0] sm:$0xff]
          %v3269 = vld [vmem:[#allocation19 + $0x16d8] sm:$0xff]
          %v3270 = vld [vmem:[#allocation19 + $0x16e0] sm:$0xff]
          %v3271 = vld [vmem:[#allocation19 + $0x16e8] sm:$0xff]
          %v3272 = vld [vmem:[#allocation19 + $0x16f0] sm:$0xff]
          %v3273 = vld [vmem:[#allocation19 + $0x16f8] sm:$0xff]
          %v3274 = vld [vmem:[#allocation19 + $0x1700] sm:$0xff]
          %v3275 = vld [vmem:[#allocation19 + $0x1708] sm:$0xff]
          %v3276 = vld [vmem:[#allocation19 + $0x1710] sm:$0xff]
          %v3277 = vld [vmem:[#allocation19 + $0x1718] sm:$0xff]
          %v3278 = vld [vmem:[#allocation19 + $0x1720] sm:$0xff]
          %v3279 = vld [vmem:[#allocation19 + $0x1728] sm:$0xff]
          %v3280 = vld [vmem:[#allocation19 + $0x1730] sm:$0xff]
          %v3281 = vld [vmem:[#allocation19 + $0x1738] sm:$0xff]
          %v3282 = vld [vmem:[#allocation19 + $0x1740] sm:$0xff]
          %v3283 = vld [vmem:[#allocation19 + $0x1748] sm:$0xff]
          %v3284 = vld [vmem:[#allocation19 + $0x1750] sm:$0xff]
          %v3285 = vld [vmem:[#allocation19 + $0x1758] sm:$0xff]
          %v3286 = vld [vmem:[#allocation19 + $0x1760] sm:$0xff]
          %v3287 = vld [vmem:[#allocation19 + $0x1768] sm:$0xff]
          %v3288 = vld [vmem:[#allocation19 + $0x1770] sm:$0xff]
          %v3289 = vld [vmem:[#allocation19 + $0x1778] sm:$0xff]
          %v3290 = vld [vmem:[#allocation19 + $0x1780] sm:$0xff]
          %v3291 = vld [vmem:[#allocation19 + $0x1788] sm:$0xff]
          %v3292 = vld [vmem:[#allocation19 + $0x1790] sm:$0xff]
          %v3293 = vld [vmem:[#allocation19 + $0x1798] sm:$0xff]
          %v3294 = vld [vmem:[#allocation19 + $0x17a0] sm:$0xff]
          %v3295 = vld [vmem:[#allocation19 + $0x17a8] sm:$0xff]
          %v3296 = vld [vmem:[#allocation19 + $0x17b0] sm:$0xff]
          %v3297 = vld [vmem:[#allocation19 + $0x17b8] sm:$0xff]
          %v3298 = vld [vmem:[#allocation19 + $0x17c0] sm:$0xff]
          %v3299 = vld [vmem:[#allocation19 + $0x17c8] sm:$0xff]
          %v3300 = vld [vmem:[#allocation19 + $0x17d0] sm:$0xff]
          %v3301 = vld [vmem:[#allocation19 + $0x17d8] sm:$0xff]
          %v3302 = vld [vmem:[#allocation19 + $0x17e0] sm:$0xff]
          %v3303 = vld [vmem:[#allocation19 + $0x17e8] sm:$0xff]
          %v3304 = vld [vmem:[#allocation19 + $0x17f0] sm:$0xff]
          %v3305 = vld [vmem:[#allocation19 + $0x17f8] sm:$0xff]
          %v3306 = vld [vmem:[#allocation21] sm:$0xff]
          %v3308 = vlaneseq
          %v3309 = vshrl.u32 %v3308, 7
          %v3310 = vsub.s32 0, %v3309
          %v3311 = vrot.slane %v3306, %v3310
          %v3312 = vlaneseq
          %v3313 = vshrl.u32 %v3312, 7
          %v3314 = vsub.s32 1, %v3313
          %v3315 = vrot.slane %v3306, %v3314
          %v3316 = vlaneseq
          %v3317 = vshrl.u32 %v3316, 7
          %v3318 = vsub.s32 2, %v3317
          %v3319 = vrot.slane %v3306, %v3318
          %v3320 = vlaneseq
          %v3321 = vshrl.u32 %v3320, 7
          %v3322 = vsub.s32 3, %v3321
          %v3323 = vrot.slane %v3306, %v3322
          %v3324 = vlaneseq
          %v3325 = vshrl.u32 %v3324, 7
          %v3326 = vsub.s32 4, %v3325
          %v3327 = vrot.slane %v3306, %v3326
          %v3328 = vlaneseq
          %v3329 = vshrl.u32 %v3328, 7
          %v3330 = vsub.s32 5, %v3329
          %v3331 = vrot.slane %v3306, %v3330
          %v3332 = vlaneseq
          %v3333 = vshrl.u32 %v3332, 7
          %v3334 = vsub.s32 6, %v3333
          %v3335 = vrot.slane %v3306, %v3334
          %v3336 = vlaneseq
          %v3337 = vshrl.u32 %v3336, 7
          %v3338 = vsub.s32 7, %v3337
          %v3339 = vrot.slane %v3306, %v3338
          %3348 = vmatprep.subr.mxu0 %v2539
          %3349 = vmatpush1.msra.mxu0 %v2538
          %3350 = vmatprep.subr.mxu0 %v2547
          %3351 = vmatpush1.msra.mxu0 %v2546
          %3352 = vmatprep.subr.mxu0 %v2555
          %3353 = vmatpush1.msra.mxu0 %v2554
          %3354 = vmatprep.subr.mxu0 %v2563
          %3355 = vmatpush1.msra.mxu0 %v2562
          %3356 = vmatprep.subr.mxu0 %v2571
          %3357 = vmatpush1.msra.mxu0 %v2570
          %3358 = vmatprep.subr.mxu0 %v2579
          %3359 = vmatpush1.msra.mxu0 %v2578
          %3360 = vmatprep.subr.mxu0 %v2587
          %3361 = vmatpush1.msra.mxu0 %v2586
          %3362 = vmatprep.subr.mxu0 %v2595
          %3363 = vmatpush1.msra.mxu0 %v2594
          %3364 = vmatprep.subr.mxu0 %v2603
          %3365 = vmatpush1.msra.mxu0 %v2602
          %3366 = vmatprep.subr.mxu0 %v2611
          %3367 = vmatpush1.msra.mxu0 %v2610
          %3368 = vmatprep.subr.mxu0 %v2619
          %3369 = vmatpush1.msra.mxu0 %v2618
          %3370 = vmatprep.subr.mxu0 %v2627
          %3371 = vmatpush1.msra.mxu0 %v2626
          %3372 = vmatprep.subr.mxu0 %v2635
          %3373 = vmatpush1.msra.mxu0 %v2634
          %3374 = vmatprep.subr.mxu0 %v2643
          %3375 = vmatpush1.msra.mxu0 %v2642
          %3376 = vmatprep.subr.mxu0 %v2651
          %3377 = vmatpush1.msra.mxu0 %v2650
          %3378 = vmatprep.subr.mxu0 %v2659
          %3379 = vmatpush1.msra.mxu0 %v2658
          %3380 = vmatprep.subr.mxu0 %v2667
          %3381 = vmatpush1.msra.mxu0 %v2666
          %3382 = vmatprep.subr.mxu0 %v2675
          %3383 = vmatpush1.msra.mxu0 %v2674
          %3384 = vmatprep.subr.mxu0 %v2683
          %3385 = vmatpush1.msra.mxu0 %v2682
          %3386 = vmatprep.subr.mxu0 %v2691
          %3387 = vmatpush1.msra.mxu0 %v2690
          %3388 = vmatprep.subr.mxu0 %v2699
          %3389 = vmatpush1.msra.mxu0 %v2698
          %3390 = vmatprep.subr.mxu0 %v2707
          %3391 = vmatpush1.msra.mxu0 %v2706
          %3392 = vmatprep.subr.mxu0 %v2715
          %3393 = vmatpush1.msra.mxu0 %v2714
          %3394 = vmatprep.subr.mxu0 %v2723
          %3395 = vmatpush1.msra.mxu0 %v2722
          %3396 = vmatprep.subr.mxu0 %v2731
          %3397 = vmatpush1.msra.mxu0 %v2730
          %3398 = vmatprep.subr.mxu0 %v2739
          %3399 = vmatpush1.msra.mxu0 %v2738
          %3400 = vmatprep.subr.mxu0 %v2747
          %3401 = vmatpush1.msra.mxu0 %v2746
          %3402 = vmatprep.subr.mxu0 %v2755
          %3403 = vmatpush1.msra.mxu0 %v2754
          %3404 = vmatprep.subr.mxu0 %v2763
          %3405 = vmatpush1.msra.mxu0 %v2762
          %3406 = vmatprep.subr.mxu0 %v2771
          %3407 = vmatpush1.msra.mxu0 %v2770
          %3408 = vmatprep.subr.mxu0 %v2779
          %3409 = vmatpush1.msra.mxu0 %v2778
          %3410 = vmatprep.subr.mxu0 %v2787
          %3411 = vmatpush1.msra.mxu0 %v2786
          %3412 = vmatprep.mubr.f32.mxu0 %v2533
          %3413 = vmatmul.mubr.f32.gmra.mrb[0].mxu0 %v2532
          %v3414 = vpop.f32.mrb[0].mxu0
          %v3415 = vadd.f32 %v3311, %v3414
          %v3416 = vpop.f32.mrb[0].mxu0
          %v3417 = vadd.f32 %v3315, %v3416
          %3418 = vdwg.mxu0
          %3419 = vmatprep.subr.mxu0 %v2795
          %3420 = vmatpush1.msra.mxu0 %v2794
          %3421 = vmatprep.subr.mxu0 %v2803
          %3422 = vmatpush1.msra.mxu0 %v2802
          %3423 = vmatprep.subr.mxu0 %v2811
          %3424 = vmatpush1.msra.mxu0 %v2810
          %3425 = vmatprep.subr.mxu0 %v2819
          %3426 = vmatpush1.msra.mxu0 %v2818
          %3427 = vmatprep.subr.mxu0 %v2827
          %3428 = vmatpush1.msra.mxu0 %v2826
          %3429 = vmatprep.subr.mxu0 %v2835
          %3430 = vmatpush1.msra.mxu0 %v2834
          %3431 = vmatprep.subr.mxu0 %v2843
          %3432 = vmatpush1.msra.mxu0 %v2842
          %3433 = vmatprep.subr.mxu0 %v2851
          %3434 = vmatpush1.msra.mxu0 %v2850
          %3435 = vmatprep.subr.mxu0 %v2859
          %3436 = vmatpush1.msra.mxu0 %v2858
          %3437 = vmatprep.subr.mxu0 %v2867
          %3438 = vmatpush1.msra.mxu0 %v2866
          %3439 = vmatprep.subr.mxu0 %v2875
          %3440 = vmatpush1.msra.mxu0 %v2874
          %3441 = vmatprep.subr.mxu0 %v2883
          %3442 = vmatpush1.msra.mxu0 %v2882
          %3443 = vmatprep.subr.mxu0 %v2891
          %3444 = vmatpush1.msra.mxu0 %v2890
          %3445 = vmatprep.subr.mxu0 %v2899
          %3446 = vmatpush1.msra.mxu0 %v2898
          %3447 = vmatprep.subr.mxu0 %v2907
          %3448 = vmatpush1.msra.mxu0 %v2906
          %3449 = vmatprep.subr.mxu0 %v2915
          %3450 = vmatpush1.msra.mxu0 %v2914
          %3451 = vmatprep.subr.mxu0 %v2923
          %3452 = vmatpush1.msra.mxu0 %v2922
          %3453 = vmatprep.subr.mxu0 %v2931
          %3454 = vmatpush1.msra.mxu0 %v2930
          %3455 = vmatprep.subr.mxu0 %v2939
          %3456 = vmatpush1.msra.mxu0 %v2938
          %3457 = vmatprep.subr.mxu0 %v2947
          %3458 = vmatpush1.msra.mxu0 %v2946
          %3459 = vmatprep.subr.mxu0 %v2955
          %3460 = vmatpush1.msra.mxu0 %v2954
          %3461 = vmatprep.subr.mxu0 %v2963
          %3462 = vmatpush1.msra.mxu0 %v2962
          %3463 = vmatprep.subr.mxu0 %v2971
          %3464 = vmatpush1.msra.mxu0 %v2970
          %3465 = vmatprep.subr.mxu0 %v2979
          %3466 = vmatpush1.msra.mxu0 %v2978
          %3467 = vmatprep.subr.mxu0 %v2987
          %3468 = vmatpush1.msra.mxu0 %v2986
          %3469 = vmatprep.subr.mxu0 %v2995
          %3470 = vmatpush1.msra.mxu0 %v2994
          %3471 = vmatprep.subr.mxu0 %v3003
          %3472 = vmatpush1.msra.mxu0 %v3002
          %3473 = vmatprep.subr.mxu0 %v3011
          %3474 = vmatpush1.msra.mxu0 %v3010
          %3475 = vmatprep.subr.mxu0 %v3019
          %3476 = vmatpush1.msra.mxu0 %v3018
          %3477 = vmatprep.subr.mxu0 %v3027
          %3478 = vmatpush1.msra.mxu0 %v3026
          %3479 = vmatprep.subr.mxu0 %v3035
          %3480 = vmatpush1.msra.mxu0 %v3034
          %3481 = vmatprep.subr.mxu0 %v3043
          %3482 = vmatpush1.msra.mxu0 %v3042
          %3483 = vmatprep.mubr.f32.mxu0 %v2535
          %3484 = vmatmul.mubr.f32.gmra.mrb[0].mxu0 %v2534
          %v3485 = vpop.f32.mrb[0].mxu0
          %v3486 = vadd.f32 %v3415, %v3485
          %v3487 = vpop.f32.mrb[0].mxu0
          %v3488 = vadd.f32 %v3417, %v3487
          %3489 = vdwg.mxu0
          %3490 = vmatprep.subr.mxu0 %v3051
          %3491 = vmatpush1.msra.mxu0 %v3050
          %3492 = vmatprep.subr.mxu0 %v3059
          %3493 = vmatpush1.msra.mxu0 %v3058
          %3494 = vmatprep.subr.mxu0 %v3067
          %3495 = vmatpush1.msra.mxu0 %v3066
          %3496 = vmatprep.subr.mxu0 %v3075
          %3497 = vmatpush1.msra.mxu0 %v3074
          %3498 = vmatprep.subr.mxu0 %v3083
          %3499 = vmatpush1.msra.mxu0 %v3082
          %3500 = vmatprep.subr.mxu0 %v3091
          %3501 = vmatpush1.msra.mxu0 %v3090
          %3502 = vmatprep.subr.mxu0 %v3099
          %3503 = vmatpush1.msra.mxu0 %v3098
          %3504 = vmatprep.subr.mxu0 %v3107
          %3505 = vmatpush1.msra.mxu0 %v3106
          %3506 = vmatprep.subr.mxu0 %v3115
          %3507 = vmatpush1.msra.mxu0 %v3114
          %3508 = vmatprep.subr.mxu0 %v3123
          %3509 = vmatpush1.msra.mxu0 %v3122
          %3510 = vmatprep.subr.mxu0 %v3131
          %3511 = vmatpush1.msra.mxu0 %v3130
          %3512 = vmatprep.subr.mxu0 %v3139
          %3513 = vmatpush1.msra.mxu0 %v3138
          %3514 = vmatprep.subr.mxu0 %v3147
          %3515 = vmatpush1.msra.mxu0 %v3146
          %3516 = vmatprep.subr.mxu0 %v3155
          %3517 = vmatpush1.msra.mxu0 %v3154
          %3518 = vmatprep.subr.mxu0 %v3163
          %3519 = vmatpush1.msra.mxu0 %v3162
          %3520 = vmatprep.subr.mxu0 %v3171
          %3521 = vmatpush1.msra.mxu0 %v3170
          %3522 = vmatprep.subr.mxu0 %v3179
          %3523 = vmatpush1.msra.mxu0 %v3178
          %3524 = vmatprep.subr.mxu0 %v3187
          %3525 = vmatpush1.msra.mxu0 %v3186
          %3526 = vmatprep.subr.mxu0 %v3195
          %3527 = vmatpush1.msra.mxu0 %v3194
          %3528 = vmatprep.subr.mxu0 %v3203
          %3529 = vmatpush1.msra.mxu0 %v3202
          %3530 = vmatprep.subr.mxu0 %v3211
          %3531 = vmatpush1.msra.mxu0 %v3210
          %3532 = vmatprep.subr.mxu0 %v3219
          %3533 = vmatpush1.msra.mxu0 %v3218
          %3534 = vmatprep.subr.mxu0 %v3227
          %3535 = vmatpush1.msra.mxu0 %v3226
          %3536 = vmatprep.subr.mxu0 %v3235
          %3537 = vmatpush1.msra.mxu0 %v3234
          %3538 = vmatprep.subr.mxu0 %v3243
          %3539 = vmatpush1.msra.mxu0 %v3242
          %3540 = vmatprep.subr.mxu0 %v3251
          %3541 = vmatpush1.msra.mxu0 %v3250
          %3542 = vmatprep.subr.mxu0 %v3259
          %3543 = vmatpush1.msra.mxu0 %v3258
          %3544 = vmatprep.subr.mxu0 %v3267
          %3545 = vmatpush1.msra.mxu0 %v3266
          %3546 = vmatprep.subr.mxu0 %v3275
          %3547 = vmatpush1.msra.mxu0 %v3274
          %3548 = vmatprep.subr.mxu0 %v3283
          %3549 = vmatpush1.msra.mxu0 %v3282
          %3550 = vmatprep.subr.mxu0 %v3291
          %3551 = vmatpush1.msra.mxu0 %v3290
          %3552 = vmatprep.subr.mxu0 %v3299
          %3553 = vmatpush1.msra.mxu0 %v3298
          %3554 = vmatprep.mubr.f32.mxu0 %v2537
          %3555 = vmatmul.mubr.f32.gmra.mrb[0].mxu0 %v2536
          %v3556 = vpop.f32.mrb[0].mxu0
          %v3557 = vadd.f32 %v3486, %v3556
          %v3558 = vpop.f32.mrb[0].mxu0
          %v3559 = vadd.f32 %v3488, %v3558
          %3560 = vdwg.mxu0
          %3561 = vmatprep.subr.mxu0 %v2541
          %3562 = vmatpush1.msra.mxu0 %v2540
          %3563 = vmatprep.subr.mxu0 %v2549
          %3564 = vmatpush1.msra.mxu0 %v2548
          %3565 = vmatprep.subr.mxu0 %v2557
          %3566 = vmatpush1.msra.mxu0 %v2556
          %3567 = vmatprep.subr.mxu0 %v2565
          %3568 = vmatpush1.msra.mxu0 %v2564
          %3569 = vmatprep.subr.mxu0 %v2573
          %3570 = vmatpush1.msra.mxu0 %v2572
          %3571 = vmatprep.subr.mxu0 %v2581
          %3572 = vmatpush1.msra.mxu0 %v2580
          %3573 = vmatprep.subr.mxu0 %v2589
          %3574 = vmatpush1.msra.mxu0 %v2588
          %3575 = vmatprep.subr.mxu0 %v2597
          %3576 = vmatpush1.msra.mxu0 %v2596
          %3577 = vmatprep.subr.mxu0 %v2605
          %3578 = vmatpush1.msra.mxu0 %v2604
          %3579 = vmatprep.subr.mxu0 %v2613
          %3580 = vmatpush1.msra.mxu0 %v2612
          %3581 = vmatprep.subr.mxu0 %v2621
          %3582 = vmatpush1.msra.mxu0 %v2620
          %3583 = vmatprep.subr.mxu0 %v2629
          %3584 = vmatpush1.msra.mxu0 %v2628
          %3585 = vmatprep.subr.mxu0 %v2637
          %3586 = vmatpush1.msra.mxu0 %v2636
          %3587 = vmatprep.subr.mxu0 %v2645
          %3588 = vmatpush1.msra.mxu0 %v2644
          %3589 = vmatprep.subr.mxu0 %v2653
          %3590 = vmatpush1.msra.mxu0 %v2652
          %3591 = vmatprep.subr.mxu0 %v2661
          %3592 = vmatpush1.msra.mxu0 %v2660
          %3593 = vmatprep.subr.mxu0 %v2669
          %3594 = vmatpush1.msra.mxu0 %v2668
          %3595 = vmatprep.subr.mxu0 %v2677
          %3596 = vmatpush1.msra.mxu0 %v2676
          %3597 = vmatprep.subr.mxu0 %v2685
          %3598 = vmatpush1.msra.mxu0 %v2684
          %3599 = vmatprep.subr.mxu0 %v2693
          %3600 = vmatpush1.msra.mxu0 %v2692
          %3601 = vmatprep.subr.mxu0 %v2701
          %3602 = vmatpush1.msra.mxu0 %v2700
          %3603 = vmatprep.subr.mxu0 %v2709
          %3604 = vmatpush1.msra.mxu0 %v2708
          %3605 = vmatprep.subr.mxu0 %v2717
          %3606 = vmatpush1.msra.mxu0 %v2716
          %3607 = vmatprep.subr.mxu0 %v2725
          %3608 = vmatpush1.msra.mxu0 %v2724
          %3609 = vmatprep.subr.mxu0 %v2733
          %3610 = vmatpush1.msra.mxu0 %v2732
          %3611 = vmatprep.subr.mxu0 %v2741
          %3612 = vmatpush1.msra.mxu0 %v2740
          %3613 = vmatprep.subr.mxu0 %v2749
          %3614 = vmatpush1.msra.mxu0 %v2748
          %3615 = vmatprep.subr.mxu0 %v2757
          %3616 = vmatpush1.msra.mxu0 %v2756
          %3617 = vmatprep.subr.mxu0 %v2765
          %3618 = vmatpush1.msra.mxu0 %v2764
          %3619 = vmatprep.subr.mxu0 %v2773
          %3620 = vmatpush1.msra.mxu0 %v2772
          %3621 = vmatprep.subr.mxu0 %v2781
          %3622 = vmatpush1.msra.mxu0 %v2780
          %3623 = vmatprep.subr.mxu0 %v2789
          %3624 = vmatpush1.msra.mxu0 %v2788
          %3625 = vmatprep.mubr.f32.mxu0 %v2533
          %3626 = vmatmul.mubr.f32.gmra.mrb[0].mxu0 %v2532
          %v3627 = vpop.f32.mrb[0].mxu0
          %v3628 = vadd.f32 %v3319, %v3627
          %v3629 = vpop.f32.mrb[0].mxu0
          %v3630 = vadd.f32 %v3323, %v3629
          %3631 = vdwg.mxu0
          %3632 = vmatprep.subr.mxu0 %v2797
          %3633 = vmatpush1.msra.mxu0 %v2796
          %3634 = vmatprep.subr.mxu0 %v2805
          %3635 = vmatpush1.msra.mxu0 %v2804
          %3636 = vmatprep.subr.mxu0 %v2813
          %3637 = vmatpush1.msra.mxu0 %v2812
          %3638 = vmatprep.subr.mxu0 %v2821
          %3639 = vmatpush1.msra.mxu0 %v2820
          %3640 = vmatprep.subr.mxu0 %v2829
          %3641 = vmatpush1.msra.mxu0 %v2828
          %3642 = vmatprep.subr.mxu0 %v2837
          %3643 = vmatpush1.msra.mxu0 %v2836
          %3644 = vmatprep.subr.mxu0 %v2845
          %3645 = vmatpush1.msra.mxu0 %v2844
          %3646 = vmatprep.subr.mxu0 %v2853
          %3647 = vmatpush1.msra.mxu0 %v2852
          %3648 = vmatprep.subr.mxu0 %v2861
          %3649 = vmatpush1.msra.mxu0 %v2860
          %3650 = vmatprep.subr.mxu0 %v2869
          %3651 = vmatpush1.msra.mxu0 %v2868
          %3652 = vmatprep.subr.mxu0 %v2877
          %3653 = vmatpush1.msra.mxu0 %v2876
          %3654 = vmatprep.subr.mxu0 %v2885
          %3655 = vmatpush1.msra.mxu0 %v2884
          %3656 = vmatprep.subr.mxu0 %v2893
          %3657 = vmatpush1.msra.mxu0 %v2892
          %3658 = vmatprep.subr.mxu0 %v2901
          %3659 = vmatpush1.msra.mxu0 %v2900
          %3660 = vmatprep.subr.mxu0 %v2909
          %3661 = vmatpush1.msra.mxu0 %v2908
          %3662 = vmatprep.subr.mxu0 %v2917
          %3663 = vmatpush1.msra.mxu0 %v2916
          %3664 = vmatprep.subr.mxu0 %v2925
          %3665 = vmatpush1.msra.mxu0 %v2924
          %3666 = vmatprep.subr.mxu0 %v2933
          %3667 = vmatpush1.msra.mxu0 %v2932
          %3668 = vmatprep.subr.mxu0 %v2941
          %3669 = vmatpush1.msra.mxu0 %v2940
          %3670 = vmatprep.subr.mxu0 %v2949
          %3671 = vmatpush1.msra.mxu0 %v2948
          %3672 = vmatprep.subr.mxu0 %v2957
          %3673 = vmatpush1.msra.mxu0 %v2956
          %3674 = vmatprep.subr.mxu0 %v2965
          %3675 = vmatpush1.msra.mxu0 %v2964
          %3676 = vmatprep.subr.mxu0 %v2973
          %3677 = vmatpush1.msra.mxu0 %v2972
          %3678 = vmatprep.subr.mxu0 %v2981
          %3679 = vmatpush1.msra.mxu0 %v2980
          %3680 = vmatprep.subr.mxu0 %v2989
          %3681 = vmatpush1.msra.mxu0 %v2988
          %3682 = vmatprep.subr.mxu0 %v2997
          %3683 = vmatpush1.msra.mxu0 %v2996
          %3684 = vmatprep.subr.mxu0 %v3005
          %3685 = vmatpush1.msra.mxu0 %v3004
          %3686 = vmatprep.subr.mxu0 %v3013
          %3687 = vmatpush1.msra.mxu0 %v3012
          %3688 = vmatprep.subr.mxu0 %v3021
          %3689 = vmatpush1.msra.mxu0 %v3020
          %3690 = vmatprep.subr.mxu0 %v3029
          %3691 = vmatpush1.msra.mxu0 %v3028
          %3692 = vmatprep.subr.mxu0 %v3037
          %3693 = vmatpush1.msra.mxu0 %v3036
          %3694 = vmatprep.subr.mxu0 %v3045
          %3695 = vmatpush1.msra.mxu0 %v3044
          %3696 = vmatprep.mubr.f32.mxu0 %v2535
          %3697 = vmatmul.mubr.f32.gmra.mrb[0].mxu0 %v2534
          %v3698 = vpop.f32.mrb[0].mxu0
          %v3699 = vadd.f32 %v3628, %v3698
          %v3700 = vpop.f32.mrb[0].mxu0
          %v3701 = vadd.f32 %v3630, %v3700
          %3702 = vdwg.mxu0
          %3703 = vmatprep.subr.mxu0 %v3053
          %3704 = vmatpush1.msra.mxu0 %v3052
          %3705 = vmatprep.subr.mxu0 %v3061
          %3706 = vmatpush1.msra.mxu0 %v3060
          %3707 = vmatprep.subr.mxu0 %v3069
          %3708 = vmatpush1.msra.mxu0 %v3068
          %3709 = vmatprep.subr.mxu0 %v3077
          %3710 = vmatpush1.msra.mxu0 %v3076
          %3711 = vmatprep.subr.mxu0 %v3085
          %3712 = vmatpush1.msra.mxu0 %v3084
          %3713 = vmatprep.subr.mxu0 %v3093
          %3714 = vmatpush1.msra.mxu0 %v3092
          %3715 = vmatprep.subr.mxu0 %v3101
          %3716 = vmatpush1.msra.mxu0 %v3100
          %3717 = vmatprep.subr.mxu0 %v3109
          %3718 = vmatpush1.msra.mxu0 %v3108
          %3719 = vmatprep.subr.mxu0 %v3117
          %3720 = vmatpush1.msra.mxu0 %v3116
          %3721 = vmatprep.subr.mxu0 %v3125
          %3722 = vmatpush1.msra.mxu0 %v3124
          %3723 = vmatprep.subr.mxu0 %v3133
          %3724 = vmatpush1.msra.mxu0 %v3132
          %3725 = vmatprep.subr.mxu0 %v3141
          %3726 = vmatpush1.msra.mxu0 %v3140
          %3727 = vmatprep.subr.mxu0 %v3149
          %3728 = vmatpush1.msra.mxu0 %v3148
          %3729 = vmatprep.subr.mxu0 %v3157
          %3730 = vmatpush1.msra.mxu0 %v3156
          %3731 = vmatprep.subr.mxu0 %v3165
          %3732 = vmatpush1.msra.mxu0 %v3164
          %3733 = vmatprep.subr.mxu0 %v3173
          %3734 = vmatpush1.msra.mxu0 %v3172
          %3735 = vmatprep.subr.mxu0 %v3181
          %3736 = vmatpush1.msra.mxu0 %v3180
          %3737 = vmatprep.subr.mxu0 %v3189
          %3738 = vmatpush1.msra.mxu0 %v3188
          %3739 = vmatprep.subr.mxu0 %v3197
          %3740 = vmatpush1.msra.mxu0 %v3196
          %3741 = vmatprep.subr.mxu0 %v3205
          %3742 = vmatpush1.msra.mxu0 %v3204
          %3743 = vmatprep.subr.mxu0 %v3213
          %3744 = vmatpush1.msra.mxu0 %v3212
          %3745 = vmatprep.subr.mxu0 %v3221
          %3746 = vmatpush1.msra.mxu0 %v3220
          %3747 = vmatprep.subr.mxu0 %v3229
          %3748 = vmatpush1.msra.mxu0 %v3228
          %3749 = vmatprep.subr.mxu0 %v3237
          %3750 = vmatpush1.msra.mxu0 %v3236
          %3751 = vmatprep.subr.mxu0 %v3245
          %3752 = vmatpush1.msra.mxu0 %v3244
          %3753 = vmatprep.subr.mxu0 %v3253
          %3754 = vmatpush1.msra.mxu0 %v3252
          %3755 = vmatprep.subr.mxu0 %v3261
          %3756 = vmatpush1.msra.mxu0 %v3260
          %3757 = vmatprep.subr.mxu0 %v3269
          %3758 = vmatpush1.msra.mxu0 %v3268
          %3759 = vmatprep.subr.mxu0 %v3277
          %3760 = vmatpush1.msra.mxu0 %v3276
          %3761 = vmatprep.subr.mxu0 %v3285
          %3762 = vmatpush1.msra.mxu0 %v3284
          %3763 = vmatprep.subr.mxu0 %v3293
          %3764 = vmatpush1.msra.mxu0 %v3292
          %3765 = vmatprep.subr.mxu0 %v3301
          %3766 = vmatpush1.msra.mxu0 %v3300
          %3767 = vmatprep.mubr.f32.mxu0 %v2537
          %3768 = vmatmul.mubr.f32.gmra.mrb[0].mxu0 %v2536
          %v3769 = vpop.f32.mrb[0].mxu0
          %v3770 = vadd.f32 %v3699, %v3769
          %v3771 = vpop.f32.mrb[0].mxu0
          %v3772 = vadd.f32 %v3701, %v3771
          %3773 = vdwg.mxu0
          %3774 = vmatprep.subr.mxu0 %v2543
          %3775 = vmatpush1.msra.mxu0 %v2542
          %3776 = vmatprep.subr.mxu0 %v2551
          %3777 = vmatpush1.msra.mxu0 %v2550
          %3778 = vmatprep.subr.mxu0 %v2559
          %3779 = vmatpush1.msra.mxu0 %v2558
          %3780 = vmatprep.subr.mxu0 %v2567
          %3781 = vmatpush1.msra.mxu0 %v2566
          %3782 = vmatprep.subr.mxu0 %v2575
          %3783 = vmatpush1.msra.mxu0 %v2574
          %3784 = vmatprep.subr.mxu0 %v2583
          %3785 = vmatpush1.msra.mxu0 %v2582
          %3786 = vmatprep.subr.mxu0 %v2591
          %3787 = vmatpush1.msra.mxu0 %v2590
          %3788 = vmatprep.subr.mxu0 %v2599
          %3789 = vmatpush1.msra.mxu0 %v2598
          %3790 = vmatprep.subr.mxu0 %v2607
          %3791 = vmatpush1.msra.mxu0 %v2606
          %3792 = vmatprep.subr.mxu0 %v2615
          %3793 = vmatpush1.msra.mxu0 %v2614
          %3794 = vmatprep.subr.mxu0 %v2623
          %3795 = vmatpush1.msra.mxu0 %v2622
          %3796 = vmatprep.subr.mxu0 %v2631
          %3797 = vmatpush1.msra.mxu0 %v2630
          %3798 = vmatprep.subr.mxu0 %v2639
          %3799 = vmatpush1.msra.mxu0 %v2638
          %3800 = vmatprep.subr.mxu0 %v2647
          %3801 = vmatpush1.msra.mxu0 %v2646
          %3802 = vmatprep.subr.mxu0 %v2655
          %3803 = vmatpush1.msra.mxu0 %v2654
          %3804 = vmatprep.subr.mxu0 %v2663
          %3805 = vmatpush1.msra.mxu0 %v2662
          %3806 = vmatprep.subr.mxu0 %v2671
          %3807 = vmatpush1.msra.mxu0 %v2670
          %3808 = vmatprep.subr.mxu0 %v2679
          %3809 = vmatpush1.msra.mxu0 %v2678
          %3810 = vmatprep.subr.mxu0 %v2687
          %3811 = vmatpush1.msra.mxu0 %v2686
          %3812 = vmatprep.subr.mxu0 %v2695
          %3813 = vmatpush1.msra.mxu0 %v2694
          %3814 = vmatprep.subr.mxu0 %v2703
          %3815 = vmatpush1.msra.mxu0 %v2702
          %3816 = vmatprep.subr.mxu0 %v2711
          %3817 = vmatpush1.msra.mxu0 %v2710
          %3818 = vmatprep.subr.mxu0 %v2719
          %3819 = vmatpush1.msra.mxu0 %v2718
          %3820 = vmatprep.subr.mxu0 %v2727
          %3821 = vmatpush1.msra.mxu0 %v2726
          %3822 = vmatprep.subr.mxu0 %v2735
          %3823 = vmatpush1.msra.mxu0 %v2734
          %3824 = vmatprep.subr.mxu0 %v2743
          %3825 = vmatpush1.msra.mxu0 %v2742
          %3826 = vmatprep.subr.mxu0 %v2751
          %3827 = vmatpush1.msra.mxu0 %v2750
          %3828 = vmatprep.subr.mxu0 %v2759
          %3829 = vmatpush1.msra.mxu0 %v2758
          %3830 = vmatprep.subr.mxu0 %v2767
          %3831 = vmatpush1.msra.mxu0 %v2766
          %3832 = vmatprep.subr.mxu0 %v2775
          %3833 = vmatpush1.msra.mxu0 %v2774
          %3834 = vmatprep.subr.mxu0 %v2783
          %3835 = vmatpush1.msra.mxu0 %v2782
          %3836 = vmatprep.subr.mxu0 %v2791
          %3837 = vmatpush1.msra.mxu0 %v2790
          %3838 = vmatprep.mubr.f32.mxu0 %v2533
          %3839 = vmatmul.mubr.f32.gmra.mrb[0].mxu0 %v2532
          %v3840 = vpop.f32.mrb[0].mxu0
          %v3841 = vadd.f32 %v3327, %v3840
          %v3842 = vpop.f32.mrb[0].mxu0
          %v3843 = vadd.f32 %v3331, %v3842
          %3844 = vdwg.mxu0
          %3845 = vmatprep.subr.mxu0 %v2799
          %3846 = vmatpush1.msra.mxu0 %v2798
          %3847 = vmatprep.subr.mxu0 %v2807
          %3848 = vmatpush1.msra.mxu0 %v2806
          %3849 = vmatprep.subr.mxu0 %v2815
          %3850 = vmatpush1.msra.mxu0 %v2814
          %3851 = vmatprep.subr.mxu0 %v2823
          %3852 = vmatpush1.msra.mxu0 %v2822
          %3853 = vmatprep.subr.mxu0 %v2831
          %3854 = vmatpush1.msra.mxu0 %v2830
          %3855 = vmatprep.subr.mxu0 %v2839
          %3856 = vmatpush1.msra.mxu0 %v2838
          %3857 = vmatprep.subr.mxu0 %v2847
          %3858 = vmatpush1.msra.mxu0 %v2846
          %3859 = vmatprep.subr.mxu0 %v2855
          %3860 = vmatpush1.msra.mxu0 %v2854
          %3861 = vmatprep.subr.mxu0 %v2863
          %3862 = vmatpush1.msra.mxu0 %v2862
          %3863 = vmatprep.subr.mxu0 %v2871
          %3864 = vmatpush1.msra.mxu0 %v2870
          %3865 = vmatprep.subr.mxu0 %v2879
          %3866 = vmatpush1.msra.mxu0 %v2878
          %3867 = vmatprep.subr.mxu0 %v2887
          %3868 = vmatpush1.msra.mxu0 %v2886
          %3869 = vmatprep.subr.mxu0 %v2895
          %3870 = vmatpush1.msra.mxu0 %v2894
          %3871 = vmatprep.subr.mxu0 %v2903
          %3872 = vmatpush1.msra.mxu0 %v2902
          %3873 = vmatprep.subr.mxu0 %v2911
          %3874 = vmatpush1.msra.mxu0 %v2910
          %3875 = vmatprep.subr.mxu0 %v2919
          %3876 = vmatpush1.msra.mxu0 %v2918
          %3877 = vmatprep.subr.mxu0 %v2927
          %3878 = vmatpush1.msra.mxu0 %v2926
          %3879 = vmatprep.subr.mxu0 %v2935
          %3880 = vmatpush1.msra.mxu0 %v2934
          %3881 = vmatprep.subr.mxu0 %v2943
          %3882 = vmatpush1.msra.mxu0 %v2942
          %3883 = vmatprep.subr.mxu0 %v2951
          %3884 = vmatpush1.msra.mxu0 %v2950
          %3885 = vmatprep.subr.mxu0 %v2959
          %3886 = vmatpush1.msra.mxu0 %v2958
          %3887 = vmatprep.subr.mxu0 %v2967
          %3888 = vmatpush1.msra.mxu0 %v2966
          %3889 = vmatprep.subr.mxu0 %v2975
          %3890 = vmatpush1.msra.mxu0 %v2974
          %3891 = vmatprep.subr.mxu0 %v2983
          %3892 = vmatpush1.msra.mxu0 %v2982
          %3893 = vmatprep.subr.mxu0 %v2991
          %3894 = vmatpush1.msra.mxu0 %v2990
          %3895 = vmatprep.subr.mxu0 %v2999
          %3896 = vmatpush1.msra.mxu0 %v2998
          %3897 = vmatprep.subr.mxu0 %v3007
          %3898 = vmatpush1.msra.mxu0 %v3006
          %3899 = vmatprep.subr.mxu0 %v3015
          %3900 = vmatpush1.msra.mxu0 %v3014
          %3901 = vmatprep.subr.mxu0 %v3023
          %3902 = vmatpush1.msra.mxu0 %v3022
          %3903 = vmatprep.subr.mxu0 %v3031
          %3904 = vmatpush1.msra.mxu0 %v3030
          %3905 = vmatprep.subr.mxu0 %v3039
          %3906 = vmatpush1.msra.mxu0 %v3038
          %3907 = vmatprep.subr.mxu0 %v3047
          %3908 = vmatpush1.msra.mxu0 %v3046
          %3909 = vmatprep.mubr.f32.mxu0 %v2535
          %3910 = vmatmul.mubr.f32.gmra.mrb[0].mxu0 %v2534
          %v3911 = vpop.f32.mrb[0].mxu0
          %v3912 = vadd.f32 %v3841, %v3911
          %v3913 = vpop.f32.mrb[0].mxu0
          %v3914 = vadd.f32 %v3843, %v3913
          %3915 = vdwg.mxu0
          %3916 = vmatprep.subr.mxu0 %v3055
          %3917 = vmatpush1.msra.mxu0 %v3054
          %3918 = vmatprep.subr.mxu0 %v3063
          %3919 = vmatpush1.msra.mxu0 %v3062
          %3920 = vmatprep.subr.mxu0 %v3071
          %3921 = vmatpush1.msra.mxu0 %v3070
          %3922 = vmatprep.subr.mxu0 %v3079
          %3923 = vmatpush1.msra.mxu0 %v3078
          %3924 = vmatprep.subr.mxu0 %v3087
          %3925 = vmatpush1.msra.mxu0 %v3086
          %3926 = vmatprep.subr.mxu0 %v3095
          %3927 = vmatpush1.msra.mxu0 %v3094
          %3928 = vmatprep.subr.mxu0 %v3103
          %3929 = vmatpush1.msra.mxu0 %v3102
          %3930 = vmatprep.subr.mxu0 %v3111
          %3931 = vmatpush1.msra.mxu0 %v3110
          %3932 = vmatprep.subr.mxu0 %v3119
          %3933 = vmatpush1.msra.mxu0 %v3118
          %3934 = vmatprep.subr.mxu0 %v3127
          %3935 = vmatpush1.msra.mxu0 %v3126
          %3936 = vmatprep.subr.mxu0 %v3135
          %3937 = vmatpush1.msra.mxu0 %v3134
          %3938 = vmatprep.subr.mxu0 %v3143
          %3939 = vmatpush1.msra.mxu0 %v3142
          %3940 = vmatprep.subr.mxu0 %v3151
          %3941 = vmatpush1.msra.mxu0 %v3150
          %3942 = vmatprep.subr.mxu0 %v3159
          %3943 = vmatpush1.msra.mxu0 %v3158
          %3944 = vmatprep.subr.mxu0 %v3167
          %3945 = vmatpush1.msra.mxu0 %v3166
          %3946 = vmatprep.subr.mxu0 %v3175
          %3947 = vmatpush1.msra.mxu0 %v3174
          %3948 = vmatprep.subr.mxu0 %v3183
          %3949 = vmatpush1.msra.mxu0 %v3182
          %3950 = vmatprep.subr.mxu0 %v3191
          %3951 = vmatpush1.msra.mxu0 %v3190
          %3952 = vmatprep.subr.mxu0 %v3199
          %3953 = vmatpush1.msra.mxu0 %v3198
          %3954 = vmatprep.subr.mxu0 %v3207
          %3955 = vmatpush1.msra.mxu0 %v3206
          %3956 = vmatprep.subr.mxu0 %v3215
          %3957 = vmatpush1.msra.mxu0 %v3214
          %3958 = vmatprep.subr.mxu0 %v3223
          %3959 = vmatpush1.msra.mxu0 %v3222
          %3960 = vmatprep.subr.mxu0 %v3231
          %3961 = vmatpush1.msra.mxu0 %v3230
          %3962 = vmatprep.subr.mxu0 %v3239
          %3963 = vmatpush1.msra.mxu0 %v3238
          %3964 = vmatprep.subr.mxu0 %v3247
          %3965 = vmatpush1.msra.mxu0 %v3246
          %3966 = vmatprep.subr.mxu0 %v3255
          %3967 = vmatpush1.msra.mxu0 %v3254
          %3968 = vmatprep.subr.mxu0 %v3263
          %3969 = vmatpush1.msra.mxu0 %v3262
          %3970 = vmatprep.subr.mxu0 %v3271
          %3971 = vmatpush1.msra.mxu0 %v3270
          %3972 = vmatprep.subr.mxu0 %v3279
          %3973 = vmatpush1.msra.mxu0 %v3278
          %3974 = vmatprep.subr.mxu0 %v3287
          %3975 = vmatpush1.msra.mxu0 %v3286
          %3976 = vmatprep.subr.mxu0 %v3295
          %3977 = vmatpush1.msra.mxu0 %v3294
          %3978 = vmatprep.subr.mxu0 %v3303
          %3979 = vmatpush1.msra.mxu0 %v3302
          %3980 = vmatprep.mubr.f32.mxu0 %v2537
          %3981 = vmatmul.mubr.f32.gmra.mrb[0].mxu0 %v2536
          %v3982 = vpop.f32.mrb[0].mxu0
          %v3983 = vadd.f32 %v3912, %v3982
          %v3984 = vpop.f32.mrb[0].mxu0
          %v3985 = vadd.f32 %v3914, %v3984
          %3986 = vdwg.mxu0
          %3987 = vmatprep.subr.mxu0 %v2545
          %3988 = vmatpush1.msra.mxu0 %v2544
          %3989 = vmatprep.subr.mxu0 %v2553
          %3990 = vmatpush1.msra.mxu0 %v2552
          %3991 = vmatprep.subr.mxu0 %v2561
          %3992 = vmatpush1.msra.mxu0 %v2560
          %3993 = vmatprep.subr.mxu0 %v2569
          %3994 = vmatpush1.msra.mxu0 %v2568
          %3995 = vmatprep.subr.mxu0 %v2577
          %3996 = vmatpush1.msra.mxu0 %v2576
          %3997 = vmatprep.subr.mxu0 %v2585
          %3998 = vmatpush1.msra.mxu0 %v2584
          %3999 = vmatprep.subr.mxu0 %v2593
          %4000 = vmatpush1.msra.mxu0 %v2592
          %4001 = vmatprep.subr.mxu0 %v2601
          %4002 = vmatpush1.msra.mxu0 %v2600
          %4003 = vmatprep.subr.mxu0 %v2609
          %4004 = vmatpush1.msra.mxu0 %v2608
          %4005 = vmatprep.subr.mxu0 %v2617
          %4006 = vmatpush1.msra.mxu0 %v2616
          %4007 = vmatprep.subr.mxu0 %v2625
          %4008 = vmatpush1.msra.mxu0 %v2624
          %4009 = vmatprep.subr.mxu0 %v2633
          %4010 = vmatpush1.msra.mxu0 %v2632
          %4011 = vmatprep.subr.mxu0 %v2641
          %4012 = vmatpush1.msra.mxu0 %v2640
          %4013 = vmatprep.subr.mxu0 %v2649
          %4014 = vmatpush1.msra.mxu0 %v2648
          %4015 = vmatprep.subr.mxu0 %v2657
          %4016 = vmatpush1.msra.mxu0 %v2656
          %4017 = vmatprep.subr.mxu0 %v2665
          %4018 = vmatpush1.msra.mxu0 %v2664
          %4019 = vmatprep.subr.mxu0 %v2673
          %4020 = vmatpush1.msra.mxu0 %v2672
          %4021 = vmatprep.subr.mxu0 %v2681
          %4022 = vmatpush1.msra.mxu0 %v2680
          %4023 = vmatprep.subr.mxu0 %v2689
          %4024 = vmatpush1.msra.mxu0 %v2688
          %4025 = vmatprep.subr.mxu0 %v2697
          %4026 = vmatpush1.msra.mxu0 %v2696
          %4027 = vmatprep.subr.mxu0 %v2705
          %4028 = vmatpush1.msra.mxu0 %v2704
          %4029 = vmatprep.subr.mxu0 %v2713
          %4030 = vmatpush1.msra.mxu0 %v2712
          %4031 = vmatprep.subr.mxu0 %v2721
          %4032 = vmatpush1.msra.mxu0 %v2720
          %4033 = vmatprep.subr.mxu0 %v2729
          %4034 = vmatpush1.msra.mxu0 %v2728
          %4035 = vmatprep.subr.mxu0 %v2737
          %4036 = vmatpush1.msra.mxu0 %v2736
          %4037 = vmatprep.subr.mxu0 %v2745
          %4038 = vmatpush1.msra.mxu0 %v2744
          %4039 = vmatprep.subr.mxu0 %v2753
          %4040 = vmatpush1.msra.mxu0 %v2752
          %4041 = vmatprep.subr.mxu0 %v2761
          %4042 = vmatpush1.msra.mxu0 %v2760
          %4043 = vmatprep.subr.mxu0 %v2769
          %4044 = vmatpush1.msra.mxu0 %v2768
          %4045 = vmatprep.subr.mxu0 %v2777
          %4046 = vmatpush1.msra.mxu0 %v2776
          %4047 = vmatprep.subr.mxu0 %v2785
          %4048 = vmatpush1.msra.mxu0 %v2784
          %4049 = vmatprep.subr.mxu0 %v2793
          %4050 = vmatpush1.msra.mxu0 %v2792
          %4051 = vmatprep.mubr.f32.mxu0 %v2533
          %4052 = vmatmul.mubr.f32.gmra.mrb[0].mxu0 %v2532
          %v4053 = vpop.f32.mrb[0].mxu0
          %v4054 = vadd.f32 %v3335, %v4053
          %v4055 = vpop.f32.mrb[0].mxu0
          %v4056 = vadd.f32 %v3339, %v4055
          %4057 = vdwg.mxu0
          %4058 = vmatprep.subr.mxu0 %v2801
          %4059 = vmatpush1.msra.mxu0 %v2800
          %4060 = vmatprep.subr.mxu0 %v2809
          %4061 = vmatpush1.msra.mxu0 %v2808
          %4062 = vmatprep.subr.mxu0 %v2817
          %4063 = vmatpush1.msra.mxu0 %v2816
          %4064 = vmatprep.subr.mxu0 %v2825
          %4065 = vmatpush1.msra.mxu0 %v2824
          %4066 = vmatprep.subr.mxu0 %v2833
          %4067 = vmatpush1.msra.mxu0 %v2832
          %4068 = vmatprep.subr.mxu0 %v2841
          %4069 = vmatpush1.msra.mxu0 %v2840
          %4070 = vmatprep.subr.mxu0 %v2849
          %4071 = vmatpush1.msra.mxu0 %v2848
          %4072 = vmatprep.subr.mxu0 %v2857
          %4073 = vmatpush1.msra.mxu0 %v2856
          %4074 = vmatprep.subr.mxu0 %v2865
          %4075 = vmatpush1.msra.mxu0 %v2864
          %4076 = vmatprep.subr.mxu0 %v2873
          %4077 = vmatpush1.msra.mxu0 %v2872
          %4078 = vmatprep.subr.mxu0 %v2881
          %4079 = vmatpush1.msra.mxu0 %v2880
          %4080 = vmatprep.subr.mxu0 %v2889
          %4081 = vmatpush1.msra.mxu0 %v2888
          %4082 = vmatprep.subr.mxu0 %v2897
          %4083 = vmatpush1.msra.mxu0 %v2896
          %4084 = vmatprep.subr.mxu0 %v2905
          %4085 = vmatpush1.msra.mxu0 %v2904
          %4086 = vmatprep.subr.mxu0 %v2913
          %4087 = vmatpush1.msra.mxu0 %v2912
          %4088 = vmatprep.subr.mxu0 %v2921
          %4089 = vmatpush1.msra.mxu0 %v2920
          %4090 = vmatprep.subr.mxu0 %v2929
          %4091 = vmatpush1.msra.mxu0 %v2928
          %4092 = vmatprep.subr.mxu0 %v2937
          %4093 = vmatpush1.msra.mxu0 %v2936
          %4094 = vmatprep.subr.mxu0 %v2945
          %4095 = vmatpush1.msra.mxu0 %v2944
          %4096 = vmatprep.subr.mxu0 %v2953
          %4097 = vmatpush1.msra.mxu0 %v2952
          %4098 = vmatprep.subr.mxu0 %v2961
          %4099 = vmatpush1.msra.mxu0 %v2960
          %4100 = vmatprep.subr.mxu0 %v2969
          %4101 = vmatpush1.msra.mxu0 %v2968
          %4102 = vmatprep.subr.mxu0 %v2977
          %4103 = vmatpush1.msra.mxu0 %v2976
          %4104 = vmatprep.subr.mxu0 %v2985
          %4105 = vmatpush1.msra.mxu0 %v2984
          %4106 = vmatprep.subr.mxu0 %v2993
          %4107 = vmatpush1.msra.mxu0 %v2992
          %4108 = vmatprep.subr.mxu0 %v3001
          %4109 = vmatpush1.msra.mxu0 %v3000
          %4110 = vmatprep.subr.mxu0 %v3009
          %4111 = vmatpush1.msra.mxu0 %v3008
          %4112 = vmatprep.subr.mxu0 %v3017
          %4113 = vmatpush1.msra.mxu0 %v3016
          %4114 = vmatprep.subr.mxu0 %v3025
          %4115 = vmatpush1.msra.mxu0 %v3024
          %4116 = vmatprep.subr.mxu0 %v3033
          %4117 = vmatpush1.msra.mxu0 %v3032
          %4118 = vmatprep.subr.mxu0 %v3041
          %4119 = vmatpush1.msra.mxu0 %v3040
          %4120 = vmatprep.subr.mxu0 %v3049
          %4121 = vmatpush1.msra.mxu0 %v3048
          %4122 = vmatprep.mubr.f32.mxu0 %v2535
          %4123 = vmatmul.mubr.f32.gmra.mrb[0].mxu0 %v2534
          %v4124 = vpop.f32.mrb[0].mxu0
          %v4125 = vadd.f32 %v4054, %v4124
          %v4126 = vpop.f32.mrb[0].mxu0
          %v4127 = vadd.f32 %v4056, %v4126
          %4128 = vdwg.mxu0
          %4129 = vmatprep.subr.mxu0 %v3057
          %4130 = vmatpush1.msra.mxu0 %v3056
          %4131 = vmatprep.subr.mxu0 %v3065
          %4132 = vmatpush1.msra.mxu0 %v3064
          %4133 = vmatprep.subr.mxu0 %v3073
          %4134 = vmatpush1.msra.mxu0 %v3072
          %4135 = vmatprep.subr.mxu0 %v3081
          %4136 = vmatpush1.msra.mxu0 %v3080
          %4137 = vmatprep.subr.mxu0 %v3089
          %4138 = vmatpush1.msra.mxu0 %v3088
          %4139 = vmatprep.subr.mxu0 %v3097
          %4140 = vmatpush1.msra.mxu0 %v3096
          %4141 = vmatprep.subr.mxu0 %v3105
          %4142 = vmatpush1.msra.mxu0 %v3104
          %4143 = vmatprep.subr.mxu0 %v3113
          %4144 = vmatpush1.msra.mxu0 %v3112
          %4145 = vmatprep.subr.mxu0 %v3121
          %4146 = vmatpush1.msra.mxu0 %v3120
          %4147 = vmatprep.subr.mxu0 %v3129
          %4148 = vmatpush1.msra.mxu0 %v3128
          %4149 = vmatprep.subr.mxu0 %v3137
          %4150 = vmatpush1.msra.mxu0 %v3136
          %4151 = vmatprep.subr.mxu0 %v3145
          %4152 = vmatpush1.msra.mxu0 %v3144
          %4153 = vmatprep.subr.mxu0 %v3153
          %4154 = vmatpush1.msra.mxu0 %v3152
          %4155 = vmatprep.subr.mxu0 %v3161
          %4156 = vmatpush1.msra.mxu0 %v3160
          %4157 = vmatprep.subr.mxu0 %v3169
          %4158 = vmatpush1.msra.mxu0 %v3168
          %4159 = vmatprep.subr.mxu0 %v3177
          %4160 = vmatpush1.msra.mxu0 %v3176
          %4161 = vmatprep.subr.mxu0 %v3185
          %4162 = vmatpush1.msra.mxu0 %v3184
          %4163 = vmatprep.subr.mxu0 %v3193
          %4164 = vmatpush1.msra.mxu0 %v3192
          %4165 = vmatprep.subr.mxu0 %v3201
          %4166 = vmatpush1.msra.mxu0 %v3200
          %4167 = vmatprep.subr.mxu0 %v3209
          %4168 = vmatpush1.msra.mxu0 %v3208
          %4169 = vmatprep.subr.mxu0 %v3217
          %4170 = vmatpush1.msra.mxu0 %v3216
          %4171 = vmatprep.subr.mxu0 %v3225
          %4172 = vmatpush1.msra.mxu0 %v3224
          %4173 = vmatprep.subr.mxu0 %v3233
          %4174 = vmatpush1.msra.mxu0 %v3232
          %4175 = vmatprep.subr.mxu0 %v3241
          %4176 = vmatpush1.msra.mxu0 %v3240
          %4177 = vmatprep.subr.mxu0 %v3249
          %4178 = vmatpush1.msra.mxu0 %v3248
          %4179 = vmatprep.subr.mxu0 %v3257
          %4180 = vmatpush1.msra.mxu0 %v3256
          %4181 = vmatprep.subr.mxu0 %v3265
          %4182 = vmatpush1.msra.mxu0 %v3264
          %4183 = vmatprep.subr.mxu0 %v3273
          %4184 = vmatpush1.msra.mxu0 %v3272
          %4185 = vmatprep.subr.mxu0 %v3281
          %4186 = vmatpush1.msra.mxu0 %v3280
          %4187 = vmatprep.subr.mxu0 %v3289
          %4188 = vmatpush1.msra.mxu0 %v3288
          %4189 = vmatprep.subr.mxu0 %v3297
          %4190 = vmatpush1.msra.mxu0 %v3296
          %4191 = vmatprep.subr.mxu0 %v3305
          %4192 = vmatpush1.msra.mxu0 %v3304
          %4193 = vmatprep.mubr.f32.mxu0 %v2537
          %4194 = vmatmul.mubr.f32.gmra.mrb[0].mxu0 %v2536
          %v4195 = vpop.f32.mrb[0].mxu0
          %v4196 = vadd.f32 %v4125, %v4195
          %v4197 = vpop.f32.mrb[0].mxu0
          %v4198 = vadd.f32 %v4127, %v4197
          %4199 = vdwg.mxu0
          %v4200 = vmax.f32 %v3557, 0.0
          %v4201 = vmax.f32 %v3559, 0.0
          %v4202 = vmax.f32 %v3770, 0.0
          %v4203 = vmax.f32 %v3772, 0.0
          %v4204 = vmax.f32 %v3983, 0.0
          %v4205 = vmax.f32 %v3985, 0.0
          %v4206 = vmax.f32 %v4196, 0.0
          %v4207 = vmax.f32 %v4198, 0.0
          %v4208 = vld [vmem:[#allocation22] sm:$0xff]
          %v4209 = vld [vmem:[#allocation22 + $0x8] sm:$0xff]
          %v4210 = vld [vmem:[#allocation22 + $0x10] sm:$0xff]
          %v4211 = vld [vmem:[#allocation22 + $0x18] sm:$0xff]
          %v4212 = vld [vmem:[#allocation22 + $0x20] sm:$0xff]
          %v4213 = vld [vmem:[#allocation22 + $0x28] sm:$0xff]
          %v4214 = vld [vmem:[#allocation22 + $0x30] sm:$0xff]
          %v4215 = vld [vmem:[#allocation22 + $0x38] sm:$0xff]
          %v4216 = vld [vmem:[#allocation22 + $0x40] sm:$0xff]
          %v4217 = vld [vmem:[#allocation22 + $0x48] sm:$0xff]
          %v4218 = vld [vmem:[#allocation22 + $0x50] sm:$0xff]
          %v4219 = vld [vmem:[#allocation22 + $0x58] sm:$0xff]
          %v4220 = vld [vmem:[#allocation22 + $0x60] sm:$0xff]
          %v4221 = vld [vmem:[#allocation22 + $0x68] sm:$0xff]
          %v4222 = vld [vmem:[#allocation22 + $0x70] sm:$0xff]
          %v4223 = vld [vmem:[#allocation22 + $0x78] sm:$0xff]
          %v4224 = vld [vmem:[#allocation22 + $0x80] sm:$0xff]
          %v4225 = vld [vmem:[#allocation22 + $0x88] sm:$0xff]
          %v4226 = vld [vmem:[#allocation22 + $0x90] sm:$0xff]
          %v4227 = vld [vmem:[#allocation22 + $0x98] sm:$0xff]
          %v4228 = vld [vmem:[#allocation22 + $0xa0] sm:$0xff]
          %v4229 = vld [vmem:[#allocation22 + $0xa8] sm:$0xff]
          %v4230 = vld [vmem:[#allocation22 + $0xb0] sm:$0xff]
          %v4231 = vld [vmem:[#allocation22 + $0xb8] sm:$0xff]
          %v4232 = vld [vmem:[#allocation22 + $0xc0] sm:$0xff]
          %v4233 = vld [vmem:[#allocation22 + $0xc8] sm:$0xff]
          %v4234 = vld [vmem:[#allocation22 + $0xd0] sm:$0xff]
          %v4235 = vld [vmem:[#allocation22 + $0xd8] sm:$0xff]
          %v4236 = vld [vmem:[#allocation22 + $0xe0] sm:$0xff]
          %v4237 = vld [vmem:[#allocation22 + $0xe8] sm:$0xff]
          %v4238 = vld [vmem:[#allocation22 + $0xf0] sm:$0xff]
          %v4239 = vld [vmem:[#allocation22 + $0xf8] sm:$0xff]
          %v4240 = vld [vmem:[#allocation22 + $0x100] sm:$0xff]
          %v4241 = vld [vmem:[#allocation22 + $0x108] sm:$0xff]
          %v4242 = vld [vmem:[#allocation22 + $0x110] sm:$0xff]
          %v4243 = vld [vmem:[#allocation22 + $0x118] sm:$0xff]
          %v4244 = vld [vmem:[#allocation22 + $0x120] sm:$0xff]
          %v4245 = vld [vmem:[#allocation22 + $0x128] sm:$0xff]
          %v4246 = vld [vmem:[#allocation22 + $0x130] sm:$0xff]
          %v4247 = vld [vmem:[#allocation22 + $0x138] sm:$0xff]
          %v4248 = vld [vmem:[#allocation22 + $0x140] sm:$0xff]
          %v4249 = vld [vmem:[#allocation22 + $0x148] sm:$0xff]
          %v4250 = vld [vmem:[#allocation22 + $0x150] sm:$0xff]
          %v4251 = vld [vmem:[#allocation22 + $0x158] sm:$0xff]
          %v4252 = vld [vmem:[#allocation22 + $0x160] sm:$0xff]
          %v4253 = vld [vmem:[#allocation22 + $0x168] sm:$0xff]
          %v4254 = vld [vmem:[#allocation22 + $0x170] sm:$0xff]
          %v4255 = vld [vmem:[#allocation22 + $0x178] sm:$0xff]
          %v4256 = vld [vmem:[#allocation22 + $0x180] sm:$0xff]
          %v4257 = vld [vmem:[#allocation22 + $0x188] sm:$0xff]
          %v4258 = vld [vmem:[#allocation22 + $0x190] sm:$0xff]
          %v4259 = vld [vmem:[#allocation22 + $0x198] sm:$0xff]
          %v4260 = vld [vmem:[#allocation22 + $0x1a0] sm:$0xff]
          %v4261 = vld [vmem:[#allocation22 + $0x1a8] sm:$0xff]
          %v4262 = vld [vmem:[#allocation22 + $0x1b0] sm:$0xff]
          %v4263 = vld [vmem:[#allocation22 + $0x1b8] sm:$0xff]
          %v4264 = vld [vmem:[#allocation22 + $0x1c0] sm:$0xff]
          %v4265 = vld [vmem:[#allocation22 + $0x1c8] sm:$0xff]
          %v4266 = vld [vmem:[#allocation22 + $0x1d0] sm:$0xff]
          %v4267 = vld [vmem:[#allocation22 + $0x1d8] sm:$0xff]
          %v4268 = vld [vmem:[#allocation22 + $0x1e0] sm:$0xff]
          %v4269 = vld [vmem:[#allocation22 + $0x1e8] sm:$0xff]
          %v4270 = vld [vmem:[#allocation22 + $0x1f0] sm:$0xff]
          %v4271 = vld [vmem:[#allocation22 + $0x1f8] sm:$0xff]
          %v4272 = vld [vmem:[#allocation22 + $0x200] sm:$0xff]
          %v4273 = vld [vmem:[#allocation22 + $0x208] sm:$0xff]
          %v4274 = vld [vmem:[#allocation22 + $0x210] sm:$0xff]
          %v4275 = vld [vmem:[#allocation22 + $0x218] sm:$0xff]
          %v4276 = vld [vmem:[#allocation22 + $0x220] sm:$0xff]
          %v4277 = vld [vmem:[#allocation22 + $0x228] sm:$0xff]
          %v4278 = vld [vmem:[#allocation22 + $0x230] sm:$0xff]
          %v4279 = vld [vmem:[#allocation22 + $0x238] sm:$0xff]
          %v4280 = vld [vmem:[#allocation22 + $0x240] sm:$0xff]
          %v4281 = vld [vmem:[#allocation22 + $0x248] sm:$0xff]
          %v4282 = vld [vmem:[#allocation22 + $0x250] sm:$0xff]
          %v4283 = vld [vmem:[#allocation22 + $0x258] sm:$0xff]
          %v4284 = vld [vmem:[#allocation22 + $0x260] sm:$0xff]
          %v4285 = vld [vmem:[#allocation22 + $0x268] sm:$0xff]
          %v4286 = vld [vmem:[#allocation22 + $0x270] sm:$0xff]
          %v4287 = vld [vmem:[#allocation22 + $0x278] sm:$0xff]
          %v4288 = vld [vmem:[#allocation22 + $0x280] sm:$0xff]
          %v4289 = vld [vmem:[#allocation22 + $0x288] sm:$0xff]
          %v4290 = vld [vmem:[#allocation22 + $0x290] sm:$0xff]
          %v4291 = vld [vmem:[#allocation22 + $0x298] sm:$0xff]
          %v4292 = vld [vmem:[#allocation22 + $0x2a0] sm:$0xff]
          %v4293 = vld [vmem:[#allocation22 + $0x2a8] sm:$0xff]
          %v4294 = vld [vmem:[#allocation22 + $0x2b0] sm:$0xff]
          %v4295 = vld [vmem:[#allocation22 + $0x2b8] sm:$0xff]
          %v4296 = vld [vmem:[#allocation22 + $0x2c0] sm:$0xff]
          %v4297 = vld [vmem:[#allocation22 + $0x2c8] sm:$0xff]
          %v4298 = vld [vmem:[#allocation22 + $0x2d0] sm:$0xff]
          %v4299 = vld [vmem:[#allocation22 + $0x2d8] sm:$0xff]
          %v4300 = vld [vmem:[#allocation22 + $0x2e0] sm:$0xff]
          %v4301 = vld [vmem:[#allocation22 + $0x2e8] sm:$0xff]
          %v4302 = vld [vmem:[#allocation22 + $0x2f0] sm:$0xff]
          %v4303 = vld [vmem:[#allocation22 + $0x2f8] sm:$0xff]
          %v4304 = vld [vmem:[#allocation22 + $0x300] sm:$0xff]
          %v4305 = vld [vmem:[#allocation22 + $0x308] sm:$0xff]
          %v4306 = vld [vmem:[#allocation22 + $0x310] sm:$0xff]
          %v4307 = vld [vmem:[#allocation22 + $0x318] sm:$0xff]
          %v4308 = vld [vmem:[#allocation22 + $0x320] sm:$0xff]
          %v4309 = vld [vmem:[#allocation22 + $0x328] sm:$0xff]
          %v4310 = vld [vmem:[#allocation22 + $0x330] sm:$0xff]
          %v4311 = vld [vmem:[#allocation22 + $0x338] sm:$0xff]
          %v4312 = vld [vmem:[#allocation22 + $0x340] sm:$0xff]
          %v4313 = vld [vmem:[#allocation22 + $0x348] sm:$0xff]
          %v4314 = vld [vmem:[#allocation22 + $0x350] sm:$0xff]
          %v4315 = vld [vmem:[#allocation22 + $0x358] sm:$0xff]
          %v4316 = vld [vmem:[#allocation22 + $0x360] sm:$0xff]
          %v4317 = vld [vmem:[#allocation22 + $0x368] sm:$0xff]
          %v4318 = vld [vmem:[#allocation22 + $0x370] sm:$0xff]
          %v4319 = vld [vmem:[#allocation22 + $0x378] sm:$0xff]
          %v4320 = vld [vmem:[#allocation22 + $0x380] sm:$0xff]
          %v4321 = vld [vmem:[#allocation22 + $0x388] sm:$0xff]
          %v4322 = vld [vmem:[#allocation22 + $0x390] sm:$0xff]
          %v4323 = vld [vmem:[#allocation22 + $0x398] sm:$0xff]
          %v4324 = vld [vmem:[#allocation22 + $0x3a0] sm:$0xff]
          %v4325 = vld [vmem:[#allocation22 + $0x3a8] sm:$0xff]
          %v4326 = vld [vmem:[#allocation22 + $0x3b0] sm:$0xff]
          %v4327 = vld [vmem:[#allocation22 + $0x3b8] sm:$0xff]
          %v4328 = vld [vmem:[#allocation22 + $0x3c0] sm:$0xff]
          %v4329 = vld [vmem:[#allocation22 + $0x3c8] sm:$0xff]
          %v4330 = vld [vmem:[#allocation22 + $0x3d0] sm:$0xff]
          %v4331 = vld [vmem:[#allocation22 + $0x3d8] sm:$0xff]
          %v4332 = vld [vmem:[#allocation22 + $0x3e0] sm:$0xff]
          %v4333 = vld [vmem:[#allocation22 + $0x3e8] sm:$0xff]
          %v4334 = vld [vmem:[#allocation22 + $0x3f0] sm:$0xff]
          %v4335 = vld [vmem:[#allocation22 + $0x3f8] sm:$0xff]
          %v4336 = vld [vmem:[#allocation22 + $0x400] sm:$0xff]
          %v4337 = vld [vmem:[#allocation22 + $0x408] sm:$0xff]
          %v4338 = vld [vmem:[#allocation22 + $0x410] sm:$0xff]
          %v4339 = vld [vmem:[#allocation22 + $0x418] sm:$0xff]
          %v4340 = vld [vmem:[#allocation22 + $0x420] sm:$0xff]
          %v4341 = vld [vmem:[#allocation22 + $0x428] sm:$0xff]
          %v4342 = vld [vmem:[#allocation22 + $0x430] sm:$0xff]
          %v4343 = vld [vmem:[#allocation22 + $0x438] sm:$0xff]
          %v4344 = vld [vmem:[#allocation22 + $0x440] sm:$0xff]
          %v4345 = vld [vmem:[#allocation22 + $0x448] sm:$0xff]
          %v4346 = vld [vmem:[#allocation22 + $0x450] sm:$0xff]
          %v4347 = vld [vmem:[#allocation22 + $0x458] sm:$0xff]
          %v4348 = vld [vmem:[#allocation22 + $0x460] sm:$0xff]
          %v4349 = vld [vmem:[#allocation22 + $0x468] sm:$0xff]
          %v4350 = vld [vmem:[#allocation22 + $0x470] sm:$0xff]
          %v4351 = vld [vmem:[#allocation22 + $0x478] sm:$0xff]
          %v4352 = vld [vmem:[#allocation22 + $0x480] sm:$0xff]
          %v4353 = vld [vmem:[#allocation22 + $0x488] sm:$0xff]
          %v4354 = vld [vmem:[#allocation22 + $0x490] sm:$0xff]
          %v4355 = vld [vmem:[#allocation22 + $0x498] sm:$0xff]
          %v4356 = vld [vmem:[#allocation22 + $0x4a0] sm:$0xff]
          %v4357 = vld [vmem:[#allocation22 + $0x4a8] sm:$0xff]
          %v4358 = vld [vmem:[#allocation22 + $0x4b0] sm:$0xff]
          %v4359 = vld [vmem:[#allocation22 + $0x4b8] sm:$0xff]
          %v4360 = vld [vmem:[#allocation22 + $0x4c0] sm:$0xff]
          %v4361 = vld [vmem:[#allocation22 + $0x4c8] sm:$0xff]
          %v4362 = vld [vmem:[#allocation22 + $0x4d0] sm:$0xff]
          %v4363 = vld [vmem:[#allocation22 + $0x4d8] sm:$0xff]
          %v4364 = vld [vmem:[#allocation22 + $0x4e0] sm:$0xff]
          %v4365 = vld [vmem:[#allocation22 + $0x4e8] sm:$0xff]
          %v4366 = vld [vmem:[#allocation22 + $0x4f0] sm:$0xff]
          %v4367 = vld [vmem:[#allocation22 + $0x4f8] sm:$0xff]
          %v4368 = vld [vmem:[#allocation22 + $0x500] sm:$0xff]
          %v4369 = vld [vmem:[#allocation22 + $0x508] sm:$0xff]
          %v4370 = vld [vmem:[#allocation22 + $0x510] sm:$0xff]
          %v4371 = vld [vmem:[#allocation22 + $0x518] sm:$0xff]
          %v4372 = vld [vmem:[#allocation22 + $0x520] sm:$0xff]
          %v4373 = vld [vmem:[#allocation22 + $0x528] sm:$0xff]
          %v4374 = vld [vmem:[#allocation22 + $0x530] sm:$0xff]
          %v4375 = vld [vmem:[#allocation22 + $0x538] sm:$0xff]
          %v4376 = vld [vmem:[#allocation22 + $0x540] sm:$0xff]
          %v4377 = vld [vmem:[#allocation22 + $0x548] sm:$0xff]
          %v4378 = vld [vmem:[#allocation22 + $0x550] sm:$0xff]
          %v4379 = vld [vmem:[#allocation22 + $0x558] sm:$0xff]
          %v4380 = vld [vmem:[#allocation22 + $0x560] sm:$0xff]
          %v4381 = vld [vmem:[#allocation22 + $0x568] sm:$0xff]
          %v4382 = vld [vmem:[#allocation22 + $0x570] sm:$0xff]
          %v4383 = vld [vmem:[#allocation22 + $0x578] sm:$0xff]
          %v4384 = vld [vmem:[#allocation22 + $0x580] sm:$0xff]
          %v4385 = vld [vmem:[#allocation22 + $0x588] sm:$0xff]
          %v4386 = vld [vmem:[#allocation22 + $0x590] sm:$0xff]
          %v4387 = vld [vmem:[#allocation22 + $0x598] sm:$0xff]
          %v4388 = vld [vmem:[#allocation22 + $0x5a0] sm:$0xff]
          %v4389 = vld [vmem:[#allocation22 + $0x5a8] sm:$0xff]
          %v4390 = vld [vmem:[#allocation22 + $0x5b0] sm:$0xff]
          %v4391 = vld [vmem:[#allocation22 + $0x5b8] sm:$0xff]
          %v4392 = vld [vmem:[#allocation22 + $0x5c0] sm:$0xff]
          %v4393 = vld [vmem:[#allocation22 + $0x5c8] sm:$0xff]
          %v4394 = vld [vmem:[#allocation22 + $0x5d0] sm:$0xff]
          %v4395 = vld [vmem:[#allocation22 + $0x5d8] sm:$0xff]
          %v4396 = vld [vmem:[#allocation22 + $0x5e0] sm:$0xff]
          %v4397 = vld [vmem:[#allocation22 + $0x5e8] sm:$0xff]
          %v4398 = vld [vmem:[#allocation22 + $0x5f0] sm:$0xff]
          %v4399 = vld [vmem:[#allocation22 + $0x5f8] sm:$0xff]
          %v4400 = vld [vmem:[#allocation22 + $0x600] sm:$0xff]
          %v4401 = vld [vmem:[#allocation22 + $0x608] sm:$0xff]
          %v4402 = vld [vmem:[#allocation22 + $0x610] sm:$0xff]
          %v4403 = vld [vmem:[#allocation22 + $0x618] sm:$0xff]
          %v4404 = vld [vmem:[#allocation22 + $0x620] sm:$0xff]
          %v4405 = vld [vmem:[#allocation22 + $0x628] sm:$0xff]
          %v4406 = vld [vmem:[#allocation22 + $0x630] sm:$0xff]
          %v4407 = vld [vmem:[#allocation22 + $0x638] sm:$0xff]
          %v4408 = vld [vmem:[#allocation22 + $0x640] sm:$0xff]
          %v4409 = vld [vmem:[#allocation22 + $0x648] sm:$0xff]
          %v4410 = vld [vmem:[#allocation22 + $0x650] sm:$0xff]
          %v4411 = vld [vmem:[#allocation22 + $0x658] sm:$0xff]
          %v4412 = vld [vmem:[#allocation22 + $0x660] sm:$0xff]
          %v4413 = vld [vmem:[#allocation22 + $0x668] sm:$0xff]
          %v4414 = vld [vmem:[#allocation22 + $0x670] sm:$0xff]
          %v4415 = vld [vmem:[#allocation22 + $0x678] sm:$0xff]
          %v4416 = vld [vmem:[#allocation22 + $0x680] sm:$0xff]
          %v4417 = vld [vmem:[#allocation22 + $0x688] sm:$0xff]
          %v4418 = vld [vmem:[#allocation22 + $0x690] sm:$0xff]
          %v4419 = vld [vmem:[#allocation22 + $0x698] sm:$0xff]
          %v4420 = vld [vmem:[#allocation22 + $0x6a0] sm:$0xff]
          %v4421 = vld [vmem:[#allocation22 + $0x6a8] sm:$0xff]
          %v4422 = vld [vmem:[#allocation22 + $0x6b0] sm:$0xff]
          %v4423 = vld [vmem:[#allocation22 + $0x6b8] sm:$0xff]
          %v4424 = vld [vmem:[#allocation22 + $0x6c0] sm:$0xff]
          %v4425 = vld [vmem:[#allocation22 + $0x6c8] sm:$0xff]
          %v4426 = vld [vmem:[#allocation22 + $0x6d0] sm:$0xff]
          %v4427 = vld [vmem:[#allocation22 + $0x6d8] sm:$0xff]
          %v4428 = vld [vmem:[#allocation22 + $0x6e0] sm:$0xff]
          %v4429 = vld [vmem:[#allocation22 + $0x6e8] sm:$0xff]
          %v4430 = vld [vmem:[#allocation22 + $0x6f0] sm:$0xff]
          %v4431 = vld [vmem:[#allocation22 + $0x6f8] sm:$0xff]
          %v4432 = vld [vmem:[#allocation22 + $0x700] sm:$0xff]
          %v4433 = vld [vmem:[#allocation22 + $0x708] sm:$0xff]
          %v4434 = vld [vmem:[#allocation22 + $0x710] sm:$0xff]
          %v4435 = vld [vmem:[#allocation22 + $0x718] sm:$0xff]
          %v4436 = vld [vmem:[#allocation22 + $0x720] sm:$0xff]
          %v4437 = vld [vmem:[#allocation22 + $0x728] sm:$0xff]
          %v4438 = vld [vmem:[#allocation22 + $0x730] sm:$0xff]
          %v4439 = vld [vmem:[#allocation22 + $0x738] sm:$0xff]
          %v4440 = vld [vmem:[#allocation22 + $0x740] sm:$0xff]
          %v4441 = vld [vmem:[#allocation22 + $0x748] sm:$0xff]
          %v4442 = vld [vmem:[#allocation22 + $0x750] sm:$0xff]
          %v4443 = vld [vmem:[#allocation22 + $0x758] sm:$0xff]
          %v4444 = vld [vmem:[#allocation22 + $0x760] sm:$0xff]
          %v4445 = vld [vmem:[#allocation22 + $0x768] sm:$0xff]
          %v4446 = vld [vmem:[#allocation22 + $0x770] sm:$0xff]
          %v4447 = vld [vmem:[#allocation22 + $0x778] sm:$0xff]
          %v4448 = vld [vmem:[#allocation22 + $0x780] sm:$0xff]
          %v4449 = vld [vmem:[#allocation22 + $0x788] sm:$0xff]
          %v4450 = vld [vmem:[#allocation22 + $0x790] sm:$0xff]
          %v4451 = vld [vmem:[#allocation22 + $0x798] sm:$0xff]
          %v4452 = vld [vmem:[#allocation22 + $0x7a0] sm:$0xff]
          %v4453 = vld [vmem:[#allocation22 + $0x7a8] sm:$0xff]
          %v4454 = vld [vmem:[#allocation22 + $0x7b0] sm:$0xff]
          %v4455 = vld [vmem:[#allocation22 + $0x7b8] sm:$0xff]
          %v4456 = vld [vmem:[#allocation22 + $0x7c0] sm:$0xff]
          %v4457 = vld [vmem:[#allocation22 + $0x7c8] sm:$0xff]
          %v4458 = vld [vmem:[#allocation22 + $0x7d0] sm:$0xff]
          %v4459 = vld [vmem:[#allocation22 + $0x7d8] sm:$0xff]
          %v4460 = vld [vmem:[#allocation22 + $0x7e0] sm:$0xff]
          %v4461 = vld [vmem:[#allocation22 + $0x7e8] sm:$0xff]
          %v4462 = vld [vmem:[#allocation22 + $0x7f0] sm:$0xff]
          %v4463 = vld [vmem:[#allocation22 + $0x7f8] sm:$0xff]
          %v4464 = vld [vmem:[#allocation22 + $0x800] sm:$0xff]
          %v4465 = vld [vmem:[#allocation22 + $0x808] sm:$0xff]
          %v4466 = vld [vmem:[#allocation22 + $0x810] sm:$0xff]
          %v4467 = vld [vmem:[#allocation22 + $0x818] sm:$0xff]
          %v4468 = vld [vmem:[#allocation22 + $0x820] sm:$0xff]
          %v4469 = vld [vmem:[#allocation22 + $0x828] sm:$0xff]
          %v4470 = vld [vmem:[#allocation22 + $0x830] sm:$0xff]
          %v4471 = vld [vmem:[#allocation22 + $0x838] sm:$0xff]
          %v4472 = vld [vmem:[#allocation22 + $0x840] sm:$0xff]
          %v4473 = vld [vmem:[#allocation22 + $0x848] sm:$0xff]
          %v4474 = vld [vmem:[#allocation22 + $0x850] sm:$0xff]
          %v4475 = vld [vmem:[#allocation22 + $0x858] sm:$0xff]
          %v4476 = vld [vmem:[#allocation22 + $0x860] sm:$0xff]
          %v4477 = vld [vmem:[#allocation22 + $0x868] sm:$0xff]
          %v4478 = vld [vmem:[#allocation22 + $0x870] sm:$0xff]
          %v4479 = vld [vmem:[#allocation22 + $0x878] sm:$0xff]
          %v4480 = vld [vmem:[#allocation22 + $0x880] sm:$0xff]
          %v4481 = vld [vmem:[#allocation22 + $0x888] sm:$0xff]
          %v4482 = vld [vmem:[#allocation22 + $0x890] sm:$0xff]
          %v4483 = vld [vmem:[#allocation22 + $0x898] sm:$0xff]
          %v4484 = vld [vmem:[#allocation22 + $0x8a0] sm:$0xff]
          %v4485 = vld [vmem:[#allocation22 + $0x8a8] sm:$0xff]
          %v4486 = vld [vmem:[#allocation22 + $0x8b0] sm:$0xff]
          %v4487 = vld [vmem:[#allocation22 + $0x8b8] sm:$0xff]
          %v4488 = vld [vmem:[#allocation22 + $0x8c0] sm:$0xff]
          %v4489 = vld [vmem:[#allocation22 + $0x8c8] sm:$0xff]
          %v4490 = vld [vmem:[#allocation22 + $0x8d0] sm:$0xff]
          %v4491 = vld [vmem:[#allocation22 + $0x8d8] sm:$0xff]
          %v4492 = vld [vmem:[#allocation22 + $0x8e0] sm:$0xff]
          %v4493 = vld [vmem:[#allocation22 + $0x8e8] sm:$0xff]
          %v4494 = vld [vmem:[#allocation22 + $0x8f0] sm:$0xff]
          %v4495 = vld [vmem:[#allocation22 + $0x8f8] sm:$0xff]
          %v4496 = vld [vmem:[#allocation22 + $0x900] sm:$0xff]
          %v4497 = vld [vmem:[#allocation22 + $0x908] sm:$0xff]
          %v4498 = vld [vmem:[#allocation22 + $0x910] sm:$0xff]
          %v4499 = vld [vmem:[#allocation22 + $0x918] sm:$0xff]
          %v4500 = vld [vmem:[#allocation22 + $0x920] sm:$0xff]
          %v4501 = vld [vmem:[#allocation22 + $0x928] sm:$0xff]
          %v4502 = vld [vmem:[#allocation22 + $0x930] sm:$0xff]
          %v4503 = vld [vmem:[#allocation22 + $0x938] sm:$0xff]
          %v4504 = vld [vmem:[#allocation22 + $0x940] sm:$0xff]
          %v4505 = vld [vmem:[#allocation22 + $0x948] sm:$0xff]
          %v4506 = vld [vmem:[#allocation22 + $0x950] sm:$0xff]
          %v4507 = vld [vmem:[#allocation22 + $0x958] sm:$0xff]
          %v4508 = vld [vmem:[#allocation22 + $0x960] sm:$0xff]
          %v4509 = vld [vmem:[#allocation22 + $0x968] sm:$0xff]
          %v4510 = vld [vmem:[#allocation22 + $0x970] sm:$0xff]
          %v4511 = vld [vmem:[#allocation22 + $0x978] sm:$0xff]
          %v4512 = vld [vmem:[#allocation22 + $0x980] sm:$0xff]
          %v4513 = vld [vmem:[#allocation22 + $0x988] sm:$0xff]
          %v4514 = vld [vmem:[#allocation22 + $0x990] sm:$0xff]
          %v4515 = vld [vmem:[#allocation22 + $0x998] sm:$0xff]
          %v4516 = vld [vmem:[#allocation22 + $0x9a0] sm:$0xff]
          %v4517 = vld [vmem:[#allocation22 + $0x9a8] sm:$0xff]
          %v4518 = vld [vmem:[#allocation22 + $0x9b0] sm:$0xff]
          %v4519 = vld [vmem:[#allocation22 + $0x9b8] sm:$0xff]
          %v4520 = vld [vmem:[#allocation22 + $0x9c0] sm:$0xff]
          %v4521 = vld [vmem:[#allocation22 + $0x9c8] sm:$0xff]
          %v4522 = vld [vmem:[#allocation22 + $0x9d0] sm:$0xff]
          %v4523 = vld [vmem:[#allocation22 + $0x9d8] sm:$0xff]
          %v4524 = vld [vmem:[#allocation22 + $0x9e0] sm:$0xff]
          %v4525 = vld [vmem:[#allocation22 + $0x9e8] sm:$0xff]
          %v4526 = vld [vmem:[#allocation22 + $0x9f0] sm:$0xff]
          %v4527 = vld [vmem:[#allocation22 + $0x9f8] sm:$0xff]
          %v4528 = vld [vmem:[#allocation22 + $0xa00] sm:$0xff]
          %v4529 = vld [vmem:[#allocation22 + $0xa08] sm:$0xff]
          %v4530 = vld [vmem:[#allocation22 + $0xa10] sm:$0xff]
          %v4531 = vld [vmem:[#allocation22 + $0xa18] sm:$0xff]
          %v4532 = vld [vmem:[#allocation22 + $0xa20] sm:$0xff]
          %v4533 = vld [vmem:[#allocation22 + $0xa28] sm:$0xff]
          %v4534 = vld [vmem:[#allocation22 + $0xa30] sm:$0xff]
          %v4535 = vld [vmem:[#allocation22 + $0xa38] sm:$0xff]
          %v4536 = vld [vmem:[#allocation22 + $0xa40] sm:$0xff]
          %v4537 = vld [vmem:[#allocation22 + $0xa48] sm:$0xff]
          %v4538 = vld [vmem:[#allocation22 + $0xa50] sm:$0xff]
          %v4539 = vld [vmem:[#allocation22 + $0xa58] sm:$0xff]
          %v4540 = vld [vmem:[#allocation22 + $0xa60] sm:$0xff]
          %v4541 = vld [vmem:[#allocation22 + $0xa68] sm:$0xff]
          %v4542 = vld [vmem:[#allocation22 + $0xa70] sm:$0xff]
          %v4543 = vld [vmem:[#allocation22 + $0xa78] sm:$0xff]
          %v4544 = vld [vmem:[#allocation22 + $0xa80] sm:$0xff]
          %v4545 = vld [vmem:[#allocation22 + $0xa88] sm:$0xff]
          %v4546 = vld [vmem:[#allocation22 + $0xa90] sm:$0xff]
          %v4547 = vld [vmem:[#allocation22 + $0xa98] sm:$0xff]
          %v4548 = vld [vmem:[#allocation22 + $0xaa0] sm:$0xff]
          %v4549 = vld [vmem:[#allocation22 + $0xaa8] sm:$0xff]
          %v4550 = vld [vmem:[#allocation22 + $0xab0] sm:$0xff]
          %v4551 = vld [vmem:[#allocation22 + $0xab8] sm:$0xff]
          %v4552 = vld [vmem:[#allocation22 + $0xac0] sm:$0xff]
          %v4553 = vld [vmem:[#allocation22 + $0xac8] sm:$0xff]
          %v4554 = vld [vmem:[#allocation22 + $0xad0] sm:$0xff]
          %v4555 = vld [vmem:[#allocation22 + $0xad8] sm:$0xff]
          %v4556 = vld [vmem:[#allocation22 + $0xae0] sm:$0xff]
          %v4557 = vld [vmem:[#allocation22 + $0xae8] sm:$0xff]
          %v4558 = vld [vmem:[#allocation22 + $0xaf0] sm:$0xff]
          %v4559 = vld [vmem:[#allocation22 + $0xaf8] sm:$0xff]
          %v4560 = vld [vmem:[#allocation22 + $0xb00] sm:$0xff]
          %v4561 = vld [vmem:[#allocation22 + $0xb08] sm:$0xff]
          %v4562 = vld [vmem:[#allocation22 + $0xb10] sm:$0xff]
          %v4563 = vld [vmem:[#allocation22 + $0xb18] sm:$0xff]
          %v4564 = vld [vmem:[#allocation22 + $0xb20] sm:$0xff]
          %v4565 = vld [vmem:[#allocation22 + $0xb28] sm:$0xff]
          %v4566 = vld [vmem:[#allocation22 + $0xb30] sm:$0xff]
          %v4567 = vld [vmem:[#allocation22 + $0xb38] sm:$0xff]
          %v4568 = vld [vmem:[#allocation22 + $0xb40] sm:$0xff]
          %v4569 = vld [vmem:[#allocation22 + $0xb48] sm:$0xff]
          %v4570 = vld [vmem:[#allocation22 + $0xb50] sm:$0xff]
          %v4571 = vld [vmem:[#allocation22 + $0xb58] sm:$0xff]
          %v4572 = vld [vmem:[#allocation22 + $0xb60] sm:$0xff]
          %v4573 = vld [vmem:[#allocation22 + $0xb68] sm:$0xff]
          %v4574 = vld [vmem:[#allocation22 + $0xb70] sm:$0xff]
          %v4575 = vld [vmem:[#allocation22 + $0xb78] sm:$0xff]
          %v4576 = vld [vmem:[#allocation22 + $0xb80] sm:$0xff]
          %v4577 = vld [vmem:[#allocation22 + $0xb88] sm:$0xff]
          %v4578 = vld [vmem:[#allocation22 + $0xb90] sm:$0xff]
          %v4579 = vld [vmem:[#allocation22 + $0xb98] sm:$0xff]
          %v4580 = vld [vmem:[#allocation22 + $0xba0] sm:$0xff]
          %v4581 = vld [vmem:[#allocation22 + $0xba8] sm:$0xff]
          %v4582 = vld [vmem:[#allocation22 + $0xbb0] sm:$0xff]
          %v4583 = vld [vmem:[#allocation22 + $0xbb8] sm:$0xff]
          %v4584 = vld [vmem:[#allocation22 + $0xbc0] sm:$0xff]
          %v4585 = vld [vmem:[#allocation22 + $0xbc8] sm:$0xff]
          %v4586 = vld [vmem:[#allocation22 + $0xbd0] sm:$0xff]
          %v4587 = vld [vmem:[#allocation22 + $0xbd8] sm:$0xff]
          %v4588 = vld [vmem:[#allocation22 + $0xbe0] sm:$0xff]
          %v4589 = vld [vmem:[#allocation22 + $0xbe8] sm:$0xff]
          %v4590 = vld [vmem:[#allocation22 + $0xbf0] sm:$0xff]
          %v4591 = vld [vmem:[#allocation22 + $0xbf8] sm:$0xff]
          %v4592 = vld [vmem:[#allocation22 + $0xc00] sm:$0xff]
          %v4593 = vld [vmem:[#allocation22 + $0xc08] sm:$0xff]
          %v4594 = vld [vmem:[#allocation22 + $0xc10] sm:$0xff]
          %v4595 = vld [vmem:[#allocation22 + $0xc18] sm:$0xff]
          %v4596 = vld [vmem:[#allocation22 + $0xc20] sm:$0xff]
          %v4597 = vld [vmem:[#allocation22 + $0xc28] sm:$0xff]
          %v4598 = vld [vmem:[#allocation22 + $0xc30] sm:$0xff]
          %v4599 = vld [vmem:[#allocation22 + $0xc38] sm:$0xff]
          %v4600 = vld [vmem:[#allocation22 + $0xc40] sm:$0xff]
          %v4601 = vld [vmem:[#allocation22 + $0xc48] sm:$0xff]
          %v4602 = vld [vmem:[#allocation22 + $0xc50] sm:$0xff]
          %v4603 = vld [vmem:[#allocation22 + $0xc58] sm:$0xff]
          %v4604 = vld [vmem:[#allocation22 + $0xc60] sm:$0xff]
          %v4605 = vld [vmem:[#allocation22 + $0xc68] sm:$0xff]
          %v4606 = vld [vmem:[#allocation22 + $0xc70] sm:$0xff]
          %v4607 = vld [vmem:[#allocation22 + $0xc78] sm:$0xff]
          %v4608 = vld [vmem:[#allocation22 + $0xc80] sm:$0xff]
          %v4609 = vld [vmem:[#allocation22 + $0xc88] sm:$0xff]
          %v4610 = vld [vmem:[#allocation22 + $0xc90] sm:$0xff]
          %v4611 = vld [vmem:[#allocation22 + $0xc98] sm:$0xff]
          %v4612 = vld [vmem:[#allocation22 + $0xca0] sm:$0xff]
          %v4613 = vld [vmem:[#allocation22 + $0xca8] sm:$0xff]
          %v4614 = vld [vmem:[#allocation22 + $0xcb0] sm:$0xff]
          %v4615 = vld [vmem:[#allocation22 + $0xcb8] sm:$0xff]
          %v4616 = vld [vmem:[#allocation22 + $0xcc0] sm:$0xff]
          %v4617 = vld [vmem:[#allocation22 + $0xcc8] sm:$0xff]
          %v4618 = vld [vmem:[#allocation22 + $0xcd0] sm:$0xff]
          %v4619 = vld [vmem:[#allocation22 + $0xcd8] sm:$0xff]
          %v4620 = vld [vmem:[#allocation22 + $0xce0] sm:$0xff]
          %v4621 = vld [vmem:[#allocation22 + $0xce8] sm:$0xff]
          %v4622 = vld [vmem:[#allocation22 + $0xcf0] sm:$0xff]
          %v4623 = vld [vmem:[#allocation22 + $0xcf8] sm:$0xff]
          %v4624 = vld [vmem:[#allocation22 + $0xd00] sm:$0xff]
          %v4625 = vld [vmem:[#allocation22 + $0xd08] sm:$0xff]
          %v4626 = vld [vmem:[#allocation22 + $0xd10] sm:$0xff]
          %v4627 = vld [vmem:[#allocation22 + $0xd18] sm:$0xff]
          %v4628 = vld [vmem:[#allocation22 + $0xd20] sm:$0xff]
          %v4629 = vld [vmem:[#allocation22 + $0xd28] sm:$0xff]
          %v4630 = vld [vmem:[#allocation22 + $0xd30] sm:$0xff]
          %v4631 = vld [vmem:[#allocation22 + $0xd38] sm:$0xff]
          %v4632 = vld [vmem:[#allocation22 + $0xd40] sm:$0xff]
          %v4633 = vld [vmem:[#allocation22 + $0xd48] sm:$0xff]
          %v4634 = vld [vmem:[#allocation22 + $0xd50] sm:$0xff]
          %v4635 = vld [vmem:[#allocation22 + $0xd58] sm:$0xff]
          %v4636 = vld [vmem:[#allocation22 + $0xd60] sm:$0xff]
          %v4637 = vld [vmem:[#allocation22 + $0xd68] sm:$0xff]
          %v4638 = vld [vmem:[#allocation22 + $0xd70] sm:$0xff]
          %v4639 = vld [vmem:[#allocation22 + $0xd78] sm:$0xff]
          %v4640 = vld [vmem:[#allocation22 + $0xd80] sm:$0xff]
          %v4641 = vld [vmem:[#allocation22 + $0xd88] sm:$0xff]
          %v4642 = vld [vmem:[#allocation22 + $0xd90] sm:$0xff]
          %v4643 = vld [vmem:[#allocation22 + $0xd98] sm:$0xff]
          %v4644 = vld [vmem:[#allocation22 + $0xda0] sm:$0xff]
          %v4645 = vld [vmem:[#allocation22 + $0xda8] sm:$0xff]
          %v4646 = vld [vmem:[#allocation22 + $0xdb0] sm:$0xff]
          %v4647 = vld [vmem:[#allocation22 + $0xdb8] sm:$0xff]
          %v4648 = vld [vmem:[#allocation22 + $0xdc0] sm:$0xff]
          %v4649 = vld [vmem:[#allocation22 + $0xdc8] sm:$0xff]
          %v4650 = vld [vmem:[#allocation22 + $0xdd0] sm:$0xff]
          %v4651 = vld [vmem:[#allocation22 + $0xdd8] sm:$0xff]
          %v4652 = vld [vmem:[#allocation22 + $0xde0] sm:$0xff]
          %v4653 = vld [vmem:[#allocation22 + $0xde8] sm:$0xff]
          %v4654 = vld [vmem:[#allocation22 + $0xdf0] sm:$0xff]
          %v4655 = vld [vmem:[#allocation22 + $0xdf8] sm:$0xff]
          %v4656 = vld [vmem:[#allocation22 + $0xe00] sm:$0xff]
          %v4657 = vld [vmem:[#allocation22 + $0xe08] sm:$0xff]
          %v4658 = vld [vmem:[#allocation22 + $0xe10] sm:$0xff]
          %v4659 = vld [vmem:[#allocation22 + $0xe18] sm:$0xff]
          %v4660 = vld [vmem:[#allocation22 + $0xe20] sm:$0xff]
          %v4661 = vld [vmem:[#allocation22 + $0xe28] sm:$0xff]
          %v4662 = vld [vmem:[#allocation22 + $0xe30] sm:$0xff]
          %v4663 = vld [vmem:[#allocation22 + $0xe38] sm:$0xff]
          %v4664 = vld [vmem:[#allocation22 + $0xe40] sm:$0xff]
          %v4665 = vld [vmem:[#allocation22 + $0xe48] sm:$0xff]
          %v4666 = vld [vmem:[#allocation22 + $0xe50] sm:$0xff]
          %v4667 = vld [vmem:[#allocation22 + $0xe58] sm:$0xff]
          %v4668 = vld [vmem:[#allocation22 + $0xe60] sm:$0xff]
          %v4669 = vld [vmem:[#allocation22 + $0xe68] sm:$0xff]
          %v4670 = vld [vmem:[#allocation22 + $0xe70] sm:$0xff]
          %v4671 = vld [vmem:[#allocation22 + $0xe78] sm:$0xff]
          %v4672 = vld [vmem:[#allocation22 + $0xe80] sm:$0xff]
          %v4673 = vld [vmem:[#allocation22 + $0xe88] sm:$0xff]
          %v4674 = vld [vmem:[#allocation22 + $0xe90] sm:$0xff]
          %v4675 = vld [vmem:[#allocation22 + $0xe98] sm:$0xff]
          %v4676 = vld [vmem:[#allocation22 + $0xea0] sm:$0xff]
          %v4677 = vld [vmem:[#allocation22 + $0xea8] sm:$0xff]
          %v4678 = vld [vmem:[#allocation22 + $0xeb0] sm:$0xff]
          %v4679 = vld [vmem:[#allocation22 + $0xeb8] sm:$0xff]
          %v4680 = vld [vmem:[#allocation22 + $0xec0] sm:$0xff]
          %v4681 = vld [vmem:[#allocation22 + $0xec8] sm:$0xff]
          %v4682 = vld [vmem:[#allocation22 + $0xed0] sm:$0xff]
          %v4683 = vld [vmem:[#allocation22 + $0xed8] sm:$0xff]
          %v4684 = vld [vmem:[#allocation22 + $0xee0] sm:$0xff]
          %v4685 = vld [vmem:[#allocation22 + $0xee8] sm:$0xff]
          %v4686 = vld [vmem:[#allocation22 + $0xef0] sm:$0xff]
          %v4687 = vld [vmem:[#allocation22 + $0xef8] sm:$0xff]
          %v4688 = vld [vmem:[#allocation22 + $0xf00] sm:$0xff]
          %v4689 = vld [vmem:[#allocation22 + $0xf08] sm:$0xff]
          %v4690 = vld [vmem:[#allocation22 + $0xf10] sm:$0xff]
          %v4691 = vld [vmem:[#allocation22 + $0xf18] sm:$0xff]
          %v4692 = vld [vmem:[#allocation22 + $0xf20] sm:$0xff]
          %v4693 = vld [vmem:[#allocation22 + $0xf28] sm:$0xff]
          %v4694 = vld [vmem:[#allocation22 + $0xf30] sm:$0xff]
          %v4695 = vld [vmem:[#allocation22 + $0xf38] sm:$0xff]
          %v4696 = vld [vmem:[#allocation22 + $0xf40] sm:$0xff]
          %v4697 = vld [vmem:[#allocation22 + $0xf48] sm:$0xff]
          %v4698 = vld [vmem:[#allocation22 + $0xf50] sm:$0xff]
          %v4699 = vld [vmem:[#allocation22 + $0xf58] sm:$0xff]
          %v4700 = vld [vmem:[#allocation22 + $0xf60] sm:$0xff]
          %v4701 = vld [vmem:[#allocation22 + $0xf68] sm:$0xff]
          %v4702 = vld [vmem:[#allocation22 + $0xf70] sm:$0xff]
          %v4703 = vld [vmem:[#allocation22 + $0xf78] sm:$0xff]
          %v4704 = vld [vmem:[#allocation22 + $0xf80] sm:$0xff]
          %v4705 = vld [vmem:[#allocation22 + $0xf88] sm:$0xff]
          %v4706 = vld [vmem:[#allocation22 + $0xf90] sm:$0xff]
          %v4707 = vld [vmem:[#allocation22 + $0xf98] sm:$0xff]
          %v4708 = vld [vmem:[#allocation22 + $0xfa0] sm:$0xff]
          %v4709 = vld [vmem:[#allocation22 + $0xfa8] sm:$0xff]
          %v4710 = vld [vmem:[#allocation22 + $0xfb0] sm:$0xff]
          %v4711 = vld [vmem:[#allocation22 + $0xfb8] sm:$0xff]
          %v4712 = vld [vmem:[#allocation22 + $0xfc0] sm:$0xff]
          %v4713 = vld [vmem:[#allocation22 + $0xfc8] sm:$0xff]
          %v4714 = vld [vmem:[#allocation22 + $0xfd0] sm:$0xff]
          %v4715 = vld [vmem:[#allocation22 + $0xfd8] sm:$0xff]
          %v4716 = vld [vmem:[#allocation22 + $0xfe0] sm:$0xff]
          %v4717 = vld [vmem:[#allocation22 + $0xfe8] sm:$0xff]
          %v4718 = vld [vmem:[#allocation22 + $0xff0] sm:$0xff]
          %v4719 = vld [vmem:[#allocation22 + $0xff8] sm:$0xff]
          %v4720 = vld [vmem:[#allocation24] sm:$0xf]
          %v4722 = vlaneseq
          %v4723 = vshrl.u32 %v4722, 7
          %v4724 = vsub.s32 0, %v4723
          %v4725 = vrot.slane %v4720, %v4724
          %v4726 = vlaneseq
          %v4727 = vshrl.u32 %v4726, 7
          %v4728 = vsub.s32 1, %v4727
          %v4729 = vrot.slane %v4720, %v4728
          %v4730 = vlaneseq
          %v4731 = vshrl.u32 %v4730, 7
          %v4732 = vsub.s32 2, %v4731
          %v4733 = vrot.slane %v4720, %v4732
          %v4734 = vlaneseq
          %v4735 = vshrl.u32 %v4734, 7
          %v4736 = vsub.s32 3, %v4735
          %v4737 = vrot.slane %v4720, %v4736
          %4742 = vmatprep.subr.mxu0 %v4209
          %4743 = vmatpush1.msra.mxu0 %v4208
          %4744 = vmatprep.subr.mxu0 %v4213
          %4745 = vmatpush1.msra.mxu0 %v4212
          %4746 = vmatprep.subr.mxu0 %v4217
          %4747 = vmatpush1.msra.mxu0 %v4216
          %4748 = vmatprep.subr.mxu0 %v4221
          %4749 = vmatpush1.msra.mxu0 %v4220
          %4750 = vmatprep.subr.mxu0 %v4225
          %4751 = vmatpush1.msra.mxu0 %v4224
          %4752 = vmatprep.subr.mxu0 %v4229
          %4753 = vmatpush1.msra.mxu0 %v4228
          %4754 = vmatprep.subr.mxu0 %v4233
          %4755 = vmatpush1.msra.mxu0 %v4232
          %4756 = vmatprep.subr.mxu0 %v4237
          %4757 = vmatpush1.msra.mxu0 %v4236
          %4758 = vmatprep.subr.mxu0 %v4241
          %4759 = vmatpush1.msra.mxu0 %v4240
          %4760 = vmatprep.subr.mxu0 %v4245
          %4761 = vmatpush1.msra.mxu0 %v4244
          %4762 = vmatprep.subr.mxu0 %v4249
          %4763 = vmatpush1.msra.mxu0 %v4248
          %4764 = vmatprep.subr.mxu0 %v4253
          %4765 = vmatpush1.msra.mxu0 %v4252
          %4766 = vmatprep.subr.mxu0 %v4257
          %4767 = vmatpush1.msra.mxu0 %v4256
          %4768 = vmatprep.subr.mxu0 %v4261
          %4769 = vmatpush1.msra.mxu0 %v4260
          %4770 = vmatprep.subr.mxu0 %v4265
          %4771 = vmatpush1.msra.mxu0 %v4264
          %4772 = vmatprep.subr.mxu0 %v4269
          %4773 = vmatpush1.msra.mxu0 %v4268
          %4774 = vmatprep.subr.mxu0 %v4273
          %4775 = vmatpush1.msra.mxu0 %v4272
          %4776 = vmatprep.subr.mxu0 %v4277
          %4777 = vmatpush1.msra.mxu0 %v4276
          %4778 = vmatprep.subr.mxu0 %v4281
          %4779 = vmatpush1.msra.mxu0 %v4280
          %4780 = vmatprep.subr.mxu0 %v4285
          %4781 = vmatpush1.msra.mxu0 %v4284
          %4782 = vmatprep.subr.mxu0 %v4289
          %4783 = vmatpush1.msra.mxu0 %v4288
          %4784 = vmatprep.subr.mxu0 %v4293
          %4785 = vmatpush1.msra.mxu0 %v4292
          %4786 = vmatprep.subr.mxu0 %v4297
          %4787 = vmatpush1.msra.mxu0 %v4296
          %4788 = vmatprep.subr.mxu0 %v4301
          %4789 = vmatpush1.msra.mxu0 %v4300
          %4790 = vmatprep.subr.mxu0 %v4305
          %4791 = vmatpush1.msra.mxu0 %v4304
          %4792 = vmatprep.subr.mxu0 %v4309
          %4793 = vmatpush1.msra.mxu0 %v4308
          %4794 = vmatprep.subr.mxu0 %v4313
          %4795 = vmatpush1.msra.mxu0 %v4312
          %4796 = vmatprep.subr.mxu0 %v4317
          %4797 = vmatpush1.msra.mxu0 %v4316
          %4798 = vmatprep.subr.mxu0 %v4321
          %4799 = vmatpush1.msra.mxu0 %v4320
          %4800 = vmatprep.subr.mxu0 %v4325
          %4801 = vmatpush1.msra.mxu0 %v4324
          %4802 = vmatprep.subr.mxu0 %v4329
          %4803 = vmatpush1.msra.mxu0 %v4328
          %4804 = vmatprep.subr.mxu0 %v4333
          %4805 = vmatpush1.msra.mxu0 %v4332
          %4806 = vmatprep.mubr.f32.mxu0 %v4201
          %4807 = vmatmul.mubr.f32.gmra.mrb[0].mxu0 %v4200
          %v4808 = vpop.f32.mrb[0].mxu0
          %v4809 = vadd.f32 %v4725, %v4808
          %v4810 = vpop.f32.mrb[0].mxu0
          %v4811 = vadd.f32 %v4729, %v4810
          %4812 = vdwg.mxu0
          %4813 = vmatprep.subr.mxu0 %v4337
          %4814 = vmatpush1.msra.mxu0 %v4336
          %4815 = vmatprep.subr.mxu0 %v4341
          %4816 = vmatpush1.msra.mxu0 %v4340
          %4817 = vmatprep.subr.mxu0 %v4345
          %4818 = vmatpush1.msra.mxu0 %v4344
          %4819 = vmatprep.subr.mxu0 %v4349
          %4820 = vmatpush1.msra.mxu0 %v4348
          %4821 = vmatprep.subr.mxu0 %v4353
          %4822 = vmatpush1.msra.mxu0 %v4352
          %4823 = vmatprep.subr.mxu0 %v4357
          %4824 = vmatpush1.msra.mxu0 %v4356
          %4825 = vmatprep.subr.mxu0 %v4361
          %4826 = vmatpush1.msra.mxu0 %v4360
          %4827 = vmatprep.subr.mxu0 %v4365
          %4828 = vmatpush1.msra.mxu0 %v4364
          %4829 = vmatprep.subr.mxu0 %v4369
          %4830 = vmatpush1.msra.mxu0 %v4368
          %4831 = vmatprep.subr.mxu0 %v4373
          %4832 = vmatpush1.msra.mxu0 %v4372
          %4833 = vmatprep.subr.mxu0 %v4377
          %4834 = vmatpush1.msra.mxu0 %v4376
          %4835 = vmatprep.subr.mxu0 %v4381
          %4836 = vmatpush1.msra.mxu0 %v4380
          %4837 = vmatprep.subr.mxu0 %v4385
          %4838 = vmatpush1.msra.mxu0 %v4384
          %4839 = vmatprep.subr.mxu0 %v4389
          %4840 = vmatpush1.msra.mxu0 %v4388
          %4841 = vmatprep.subr.mxu0 %v4393
          %4842 = vmatpush1.msra.mxu0 %v4392
          %4843 = vmatprep.subr.mxu0 %v4397
          %4844 = vmatpush1.msra.mxu0 %v4396
          %4845 = vmatprep.subr.mxu0 %v4401
          %4846 = vmatpush1.msra.mxu0 %v4400
          %4847 = vmatprep.subr.mxu0 %v4405
          %4848 = vmatpush1.msra.mxu0 %v4404
          %4849 = vmatprep.subr.mxu0 %v4409
          %4850 = vmatpush1.msra.mxu0 %v4408
          %4851 = vmatprep.subr.mxu0 %v4413
          %4852 = vmatpush1.msra.mxu0 %v4412
          %4853 = vmatprep.subr.mxu0 %v4417
          %4854 = vmatpush1.msra.mxu0 %v4416
          %4855 = vmatprep.subr.mxu0 %v4421
          %4856 = vmatpush1.msra.mxu0 %v4420
          %4857 = vmatprep.subr.mxu0 %v4425
          %4858 = vmatpush1.msra.mxu0 %v4424
          %4859 = vmatprep.subr.mxu0 %v4429
          %4860 = vmatpush1.msra.mxu0 %v4428
          %4861 = vmatprep.subr.mxu0 %v4433
          %4862 = vmatpush1.msra.mxu0 %v4432
          %4863 = vmatprep.subr.mxu0 %v4437
          %4864 = vmatpush1.msra.mxu0 %v4436
          %4865 = vmatprep.subr.mxu0 %v4441
          %4866 = vmatpush1.msra.mxu0 %v4440
          %4867 = vmatprep.subr.mxu0 %v4445
          %4868 = vmatpush1.msra.mxu0 %v4444
          %4869 = vmatprep.subr.mxu0 %v4449
          %4870 = vmatpush1.msra.mxu0 %v4448
          %4871 = vmatprep.subr.mxu0 %v4453
          %4872 = vmatpush1.msra.mxu0 %v4452
          %4873 = vmatprep.subr.mxu0 %v4457
          %4874 = vmatpush1.msra.mxu0 %v4456
          %4875 = vmatprep.subr.mxu0 %v4461
          %4876 = vmatpush1.msra.mxu0 %v4460
          %4877 = vmatprep.mubr.f32.mxu0 %v4203
          %4878 = vmatmul.mubr.f32.gmra.mrb[0].mxu0 %v4202
          %v4879 = vpop.f32.mrb[0].mxu0
          %v4880 = vadd.f32 %v4809, %v4879
          %v4881 = vpop.f32.mrb[0].mxu0
          %v4882 = vadd.f32 %v4811, %v4881
          %4883 = vdwg.mxu0
          %4884 = vmatprep.subr.mxu0 %v4465
          %4885 = vmatpush1.msra.mxu0 %v4464
          %4886 = vmatprep.subr.mxu0 %v4469
          %4887 = vmatpush1.msra.mxu0 %v4468
          %4888 = vmatprep.subr.mxu0 %v4473
          %4889 = vmatpush1.msra.mxu0 %v4472
          %4890 = vmatprep.subr.mxu0 %v4477
          %4891 = vmatpush1.msra.mxu0 %v4476
          %4892 = vmatprep.subr.mxu0 %v4481
          %4893 = vmatpush1.msra.mxu0 %v4480
          %4894 = vmatprep.subr.mxu0 %v4485
          %4895 = vmatpush1.msra.mxu0 %v4484
          %4896 = vmatprep.subr.mxu0 %v4489
          %4897 = vmatpush1.msra.mxu0 %v4488
          %4898 = vmatprep.subr.mxu0 %v4493
          %4899 = vmatpush1.msra.mxu0 %v4492
          %4900 = vmatprep.subr.mxu0 %v4497
          %4901 = vmatpush1.msra.mxu0 %v4496
          %4902 = vmatprep.subr.mxu0 %v4501
          %4903 = vmatpush1.msra.mxu0 %v4500
          %4904 = vmatprep.subr.mxu0 %v4505
          %4905 = vmatpush1.msra.mxu0 %v4504
          %4906 = vmatprep.subr.mxu0 %v4509
          %4907 = vmatpush1.msra.mxu0 %v4508
          %4908 = vmatprep.subr.mxu0 %v4513
          %4909 = vmatpush1.msra.mxu0 %v4512
          %4910 = vmatprep.subr.mxu0 %v4517
          %4911 = vmatpush1.msra.mxu0 %v4516
          %4912 = vmatprep.subr.mxu0 %v4521
          %4913 = vmatpush1.msra.mxu0 %v4520
          %4914 = vmatprep.subr.mxu0 %v4525
          %4915 = vmatpush1.msra.mxu0 %v4524
          %4916 = vmatprep.subr.mxu0 %v4529
          %4917 = vmatpush1.msra.mxu0 %v4528
          %4918 = vmatprep.subr.mxu0 %v4533
          %4919 = vmatpush1.msra.mxu0 %v4532
          %4920 = vmatprep.subr.mxu0 %v4537
          %4921 = vmatpush1.msra.mxu0 %v4536
          %4922 = vmatprep.subr.mxu0 %v4541
          %4923 = vmatpush1.msra.mxu0 %v4540
          %4924 = vmatprep.subr.mxu0 %v4545
          %4925 = vmatpush1.msra.mxu0 %v4544
          %4926 = vmatprep.subr.mxu0 %v4549
          %4927 = vmatpush1.msra.mxu0 %v4548
          %4928 = vmatprep.subr.mxu0 %v4553
          %4929 = vmatpush1.msra.mxu0 %v4552
          %4930 = vmatprep.subr.mxu0 %v4557
          %4931 = vmatpush1.msra.mxu0 %v4556
          %4932 = vmatprep.subr.mxu0 %v4561
          %4933 = vmatpush1.msra.mxu0 %v4560
          %4934 = vmatprep.subr.mxu0 %v4565
          %4935 = vmatpush1.msra.mxu0 %v4564
          %4936 = vmatprep.subr.mxu0 %v4569
          %4937 = vmatpush1.msra.mxu0 %v4568
          %4938 = vmatprep.subr.mxu0 %v4573
          %4939 = vmatpush1.msra.mxu0 %v4572
          %4940 = vmatprep.subr.mxu0 %v4577
          %4941 = vmatpush1.msra.mxu0 %v4576
          %4942 = vmatprep.subr.mxu0 %v4581
          %4943 = vmatpush1.msra.mxu0 %v4580
          %4944 = vmatprep.subr.mxu0 %v4585
          %4945 = vmatpush1.msra.mxu0 %v4584
          %4946 = vmatprep.subr.mxu0 %v4589
          %4947 = vmatpush1.msra.mxu0 %v4588
          %4948 = vmatprep.mubr.f32.mxu0 %v4205
          %4949 = vmatmul.mubr.f32.gmra.mrb[0].mxu0 %v4204
          %v4950 = vpop.f32.mrb[0].mxu0
          %v4951 = vadd.f32 %v4880, %v4950
          %v4952 = vpop.f32.mrb[0].mxu0
          %v4953 = vadd.f32 %v4882, %v4952
          %4954 = vdwg.mxu0
          %4955 = vmatprep.subr.mxu0 %v4593
          %4956 = vmatpush1.msra.mxu0 %v4592
          %4957 = vmatprep.subr.mxu0 %v4597
          %4958 = vmatpush1.msra.mxu0 %v4596
          %4959 = vmatprep.subr.mxu0 %v4601
          %4960 = vmatpush1.msra.mxu0 %v4600
          %4961 = vmatprep.subr.mxu0 %v4605
          %4962 = vmatpush1.msra.mxu0 %v4604
          %4963 = vmatprep.subr.mxu0 %v4609
          %4964 = vmatpush1.msra.mxu0 %v4608
          %4965 = vmatprep.subr.mxu0 %v4613
          %4966 = vmatpush1.msra.mxu0 %v4612
          %4967 = vmatprep.subr.mxu0 %v4617
          %4968 = vmatpush1.msra.mxu0 %v4616
          %4969 = vmatprep.subr.mxu0 %v4621
          %4970 = vmatpush1.msra.mxu0 %v4620
          %4971 = vmatprep.subr.mxu0 %v4625
          %4972 = vmatpush1.msra.mxu0 %v4624
          %4973 = vmatprep.subr.mxu0 %v4629
          %4974 = vmatpush1.msra.mxu0 %v4628
          %4975 = vmatprep.subr.mxu0 %v4633
          %4976 = vmatpush1.msra.mxu0 %v4632
          %4977 = vmatprep.subr.mxu0 %v4637
          %4978 = vmatpush1.msra.mxu0 %v4636
          %4979 = vmatprep.subr.mxu0 %v4641
          %4980 = vmatpush1.msra.mxu0 %v4640
          %4981 = vmatprep.subr.mxu0 %v4645
          %4982 = vmatpush1.msra.mxu0 %v4644
          %4983 = vmatprep.subr.mxu0 %v4649
          %4984 = vmatpush1.msra.mxu0 %v4648
          %4985 = vmatprep.subr.mxu0 %v4653
          %4986 = vmatpush1.msra.mxu0 %v4652
          %4987 = vmatprep.subr.mxu0 %v4657
          %4988 = vmatpush1.msra.mxu0 %v4656
          %4989 = vmatprep.subr.mxu0 %v4661
          %4990 = vmatpush1.msra.mxu0 %v4660
          %4991 = vmatprep.subr.mxu0 %v4665
          %4992 = vmatpush1.msra.mxu0 %v4664
          %4993 = vmatprep.subr.mxu0 %v4669
          %4994 = vmatpush1.msra.mxu0 %v4668
          %4995 = vmatprep.subr.mxu0 %v4673
          %4996 = vmatpush1.msra.mxu0 %v4672
          %4997 = vmatprep.subr.mxu0 %v4677
          %4998 = vmatpush1.msra.mxu0 %v4676
          %4999 = vmatprep.subr.mxu0 %v4681
          %5000 = vmatpush1.msra.mxu0 %v4680
          %5001 = vmatprep.subr.mxu0 %v4685
          %5002 = vmatpush1.msra.mxu0 %v4684
          %5003 = vmatprep.subr.mxu0 %v4689
          %5004 = vmatpush1.msra.mxu0 %v4688
          %5005 = vmatprep.subr.mxu0 %v4693
          %5006 = vmatpush1.msra.mxu0 %v4692
          %5007 = vmatprep.subr.mxu0 %v4697
          %5008 = vmatpush1.msra.mxu0 %v4696
          %5009 = vmatprep.subr.mxu0 %v4701
          %5010 = vmatpush1.msra.mxu0 %v4700
          %5011 = vmatprep.subr.mxu0 %v4705
          %5012 = vmatpush1.msra.mxu0 %v4704
          %5013 = vmatprep.subr.mxu0 %v4709
          %5014 = vmatpush1.msra.mxu0 %v4708
          %5015 = vmatprep.subr.mxu0 %v4713
          %5016 = vmatpush1.msra.mxu0 %v4712
          %5017 = vmatprep.subr.mxu0 %v4717
          %5018 = vmatpush1.msra.mxu0 %v4716
          %5019 = vmatprep.mubr.f32.mxu0 %v4207
          %5020 = vmatmul.mubr.f32.gmra.mrb[0].mxu0 %v4206
          %v5021 = vpop.f32.mrb[0].mxu0
          %v5022 = vadd.f32 %v4951, %v5021
          %v5023 = vpop.f32.mrb[0].mxu0
          %v5024 = vadd.f32 %v4953, %v5023
          %5025 = vdwg.mxu0
          %5026 = vmatprep.subr.mxu0 %v4211
          %5027 = vmatpush1.msra.mxu0 %v4210
          %5028 = vmatprep.subr.mxu0 %v4215
          %5029 = vmatpush1.msra.mxu0 %v4214
          %5030 = vmatprep.subr.mxu0 %v4219
          %5031 = vmatpush1.msra.mxu0 %v4218
          %5032 = vmatprep.subr.mxu0 %v4223
          %5033 = vmatpush1.msra.mxu0 %v4222
          %5034 = vmatprep.subr.mxu0 %v4227
          %5035 = vmatpush1.msra.mxu0 %v4226
          %5036 = vmatprep.subr.mxu0 %v4231
          %5037 = vmatpush1.msra.mxu0 %v4230
          %5038 = vmatprep.subr.mxu0 %v4235
          %5039 = vmatpush1.msra.mxu0 %v4234
          %5040 = vmatprep.subr.mxu0 %v4239
          %5041 = vmatpush1.msra.mxu0 %v4238
          %5042 = vmatprep.subr.mxu0 %v4243
          %5043 = vmatpush1.msra.mxu0 %v4242
          %5044 = vmatprep.subr.mxu0 %v4247
          %5045 = vmatpush1.msra.mxu0 %v4246
          %5046 = vmatprep.subr.mxu0 %v4251
          %5047 = vmatpush1.msra.mxu0 %v4250
          %5048 = vmatprep.subr.mxu0 %v4255
          %5049 = vmatpush1.msra.mxu0 %v4254
          %5050 = vmatprep.subr.mxu0 %v4259
          %5051 = vmatpush1.msra.mxu0 %v4258
          %5052 = vmatprep.subr.mxu0 %v4263
          %5053 = vmatpush1.msra.mxu0 %v4262
          %5054 = vmatprep.subr.mxu0 %v4267
          %5055 = vmatpush1.msra.mxu0 %v4266
          %5056 = vmatprep.subr.mxu0 %v4271
          %5057 = vmatpush1.msra.mxu0 %v4270
          %5058 = vmatprep.subr.mxu0 %v4275
          %5059 = vmatpush1.msra.mxu0 %v4274
          %5060 = vmatprep.subr.mxu0 %v4279
          %5061 = vmatpush1.msra.mxu0 %v4278
          %5062 = vmatprep.subr.mxu0 %v4283
          %5063 = vmatpush1.msra.mxu0 %v4282
          %5064 = vmatprep.subr.mxu0 %v4287
          %5065 = vmatpush1.msra.mxu0 %v4286
          %5066 = vmatprep.subr.mxu0 %v4291
          %5067 = vmatpush1.msra.mxu0 %v4290
          %5068 = vmatprep.subr.mxu0 %v4295
          %5069 = vmatpush1.msra.mxu0 %v4294
          %5070 = vmatprep.subr.mxu0 %v4299
          %5071 = vmatpush1.msra.mxu0 %v4298
          %5072 = vmatprep.subr.mxu0 %v4303
          %5073 = vmatpush1.msra.mxu0 %v4302
          %5074 = vmatprep.subr.mxu0 %v4307
          %5075 = vmatpush1.msra.mxu0 %v4306
          %5076 = vmatprep.subr.mxu0 %v4311
          %5077 = vmatpush1.msra.mxu0 %v4310
          %5078 = vmatprep.subr.mxu0 %v4315
          %5079 = vmatpush1.msra.mxu0 %v4314
          %5080 = vmatprep.subr.mxu0 %v4319
          %5081 = vmatpush1.msra.mxu0 %v4318
          %5082 = vmatprep.subr.mxu0 %v4323
          %5083 = vmatpush1.msra.mxu0 %v4322
          %5084 = vmatprep.subr.mxu0 %v4327
          %5085 = vmatpush1.msra.mxu0 %v4326
          %5086 = vmatprep.subr.mxu0 %v4331
          %5087 = vmatpush1.msra.mxu0 %v4330
          %5088 = vmatprep.subr.mxu0 %v4335
          %5089 = vmatpush1.msra.mxu0 %v4334
          %5090 = vmatprep.mubr.f32.mxu0 %v4201
          %5091 = vmatmul.mubr.f32.gmra.mrb[0].mxu0 %v4200
          %v5092 = vpop.f32.mrb[0].mxu0
          %v5093 = vadd.f32 %v4733, %v5092
          %v5094 = vpop.f32.mrb[0].mxu0
          %v5095 = vadd.f32 %v4737, %v5094
          %5096 = vdwg.mxu0
          %5097 = vmatprep.subr.mxu0 %v4339
          %5098 = vmatpush1.msra.mxu0 %v4338
          %5099 = vmatprep.subr.mxu0 %v4343
          %5100 = vmatpush1.msra.mxu0 %v4342
          %5101 = vmatprep.subr.mxu0 %v4347
          %5102 = vmatpush1.msra.mxu0 %v4346
          %5103 = vmatprep.subr.mxu0 %v4351
          %5104 = vmatpush1.msra.mxu0 %v4350
          %5105 = vmatprep.subr.mxu0 %v4355
          %5106 = vmatpush1.msra.mxu0 %v4354
          %5107 = vmatprep.subr.mxu0 %v4359
          %5108 = vmatpush1.msra.mxu0 %v4358
          %5109 = vmatprep.subr.mxu0 %v4363
          %5110 = vmatpush1.msra.mxu0 %v4362
          %5111 = vmatprep.subr.mxu0 %v4367
          %5112 = vmatpush1.msra.mxu0 %v4366
          %5113 = vmatprep.subr.mxu0 %v4371
          %5114 = vmatpush1.msra.mxu0 %v4370
          %5115 = vmatprep.subr.mxu0 %v4375
          %5116 = vmatpush1.msra.mxu0 %v4374
          %5117 = vmatprep.subr.mxu0 %v4379
          %5118 = vmatpush1.msra.mxu0 %v4378
          %5119 = vmatprep.subr.mxu0 %v4383
          %5120 = vmatpush1.msra.mxu0 %v4382
          %5121 = vmatprep.subr.mxu0 %v4387
          %5122 = vmatpush1.msra.mxu0 %v4386
          %5123 = vmatprep.subr.mxu0 %v4391
          %5124 = vmatpush1.msra.mxu0 %v4390
          %5125 = vmatprep.subr.mxu0 %v4395
          %5126 = vmatpush1.msra.mxu0 %v4394
          %5127 = vmatprep.subr.mxu0 %v4399
          %5128 = vmatpush1.msra.mxu0 %v4398
          %5129 = vmatprep.subr.mxu0 %v4403
          %5130 = vmatpush1.msra.mxu0 %v4402
          %5131 = vmatprep.subr.mxu0 %v4407
          %5132 = vmatpush1.msra.mxu0 %v4406
          %5133 = vmatprep.subr.mxu0 %v4411
          %5134 = vmatpush1.msra.mxu0 %v4410
          %5135 = vmatprep.subr.mxu0 %v4415
          %5136 = vmatpush1.msra.mxu0 %v4414
          %5137 = vmatprep.subr.mxu0 %v4419
          %5138 = vmatpush1.msra.mxu0 %v4418
          %5139 = vmatprep.subr.mxu0 %v4423
          %5140 = vmatpush1.msra.mxu0 %v4422
          %5141 = vmatprep.subr.mxu0 %v4427
          %5142 = vmatpush1.msra.mxu0 %v4426
          %5143 = vmatprep.subr.mxu0 %v4431
          %5144 = vmatpush1.msra.mxu0 %v4430
          %5145 = vmatprep.subr.mxu0 %v4435
          %5146 = vmatpush1.msra.mxu0 %v4434
          %5147 = vmatprep.subr.mxu0 %v4439
          %5148 = vmatpush1.msra.mxu0 %v4438
          %5149 = vmatprep.subr.mxu0 %v4443
          %5150 = vmatpush1.msra.mxu0 %v4442
          %5151 = vmatprep.subr.mxu0 %v4447
          %5152 = vmatpush1.msra.mxu0 %v4446
          %5153 = vmatprep.subr.mxu0 %v4451
          %5154 = vmatpush1.msra.mxu0 %v4450
          %5155 = vmatprep.subr.mxu0 %v4455
          %5156 = vmatpush1.msra.mxu0 %v4454
          %5157 = vmatprep.subr.mxu0 %v4459
          %5158 = vmatpush1.msra.mxu0 %v4458
          %5159 = vmatprep.subr.mxu0 %v4463
          %5160 = vmatpush1.msra.mxu0 %v4462
          %5161 = vmatprep.mubr.f32.mxu0 %v4203
          %5162 = vmatmul.mubr.f32.gmra.mrb[0].mxu0 %v4202
          %v5163 = vpop.f32.mrb[0].mxu0
          %v5164 = vadd.f32 %v5093, %v5163
          %v5165 = vpop.f32.mrb[0].mxu0
          %v5166 = vadd.f32 %v5095, %v5165
          %5167 = vdwg.mxu0
          %5168 = vmatprep.subr.mxu0 %v4467
          %5169 = vmatpush1.msra.mxu0 %v4466
          %5170 = vmatprep.subr.mxu0 %v4471
          %5171 = vmatpush1.msra.mxu0 %v4470
          %5172 = vmatprep.subr.mxu0 %v4475
          %5173 = vmatpush1.msra.mxu0 %v4474
          %5174 = vmatprep.subr.mxu0 %v4479
          %5175 = vmatpush1.msra.mxu0 %v4478
          %5176 = vmatprep.subr.mxu0 %v4483
          %5177 = vmatpush1.msra.mxu0 %v4482
          %5178 = vmatprep.subr.mxu0 %v4487
          %5179 = vmatpush1.msra.mxu0 %v4486
          %5180 = vmatprep.subr.mxu0 %v4491
          %5181 = vmatpush1.msra.mxu0 %v4490
          %5182 = vmatprep.subr.mxu0 %v4495
          %5183 = vmatpush1.msra.mxu0 %v4494
          %5184 = vmatprep.subr.mxu0 %v4499
          %5185 = vmatpush1.msra.mxu0 %v4498
          %5186 = vmatprep.subr.mxu0 %v4503
          %5187 = vmatpush1.msra.mxu0 %v4502
          %5188 = vmatprep.subr.mxu0 %v4507
          %5189 = vmatpush1.msra.mxu0 %v4506
          %5190 = vmatprep.subr.mxu0 %v4511
          %5191 = vmatpush1.msra.mxu0 %v4510
          %5192 = vmatprep.subr.mxu0 %v4515
          %5193 = vmatpush1.msra.mxu0 %v4514
          %5194 = vmatprep.subr.mxu0 %v4519
          %5195 = vmatpush1.msra.mxu0 %v4518
          %5196 = vmatprep.subr.mxu0 %v4523
          %5197 = vmatpush1.msra.mxu0 %v4522
          %5198 = vmatprep.subr.mxu0 %v4527
          %5199 = vmatpush1.msra.mxu0 %v4526
          %5200 = vmatprep.subr.mxu0 %v4531
          %5201 = vmatpush1.msra.mxu0 %v4530
          %5202 = vmatprep.subr.mxu0 %v4535
          %5203 = vmatpush1.msra.mxu0 %v4534
          %5204 = vmatprep.subr.mxu0 %v4539
          %5205 = vmatpush1.msra.mxu0 %v4538
          %5206 = vmatprep.subr.mxu0 %v4543
          %5207 = vmatpush1.msra.mxu0 %v4542
          %5208 = vmatprep.subr.mxu0 %v4547
          %5209 = vmatpush1.msra.mxu0 %v4546
          %5210 = vmatprep.subr.mxu0 %v4551
          %5211 = vmatpush1.msra.mxu0 %v4550
          %5212 = vmatprep.subr.mxu0 %v4555
          %5213 = vmatpush1.msra.mxu0 %v4554
          %5214 = vmatprep.subr.mxu0 %v4559
          %5215 = vmatpush1.msra.mxu0 %v4558
          %5216 = vmatprep.subr.mxu0 %v4563
          %5217 = vmatpush1.msra.mxu0 %v4562
          %5218 = vmatprep.subr.mxu0 %v4567
          %5219 = vmatpush1.msra.mxu0 %v4566
          %5220 = vmatprep.subr.mxu0 %v4571
          %5221 = vmatpush1.msra.mxu0 %v4570
          %5222 = vmatprep.subr.mxu0 %v4575
          %5223 = vmatpush1.msra.mxu0 %v4574
          %5224 = vmatprep.subr.mxu0 %v4579
          %5225 = vmatpush1.msra.mxu0 %v4578
          %5226 = vmatprep.subr.mxu0 %v4583
          %5227 = vmatpush1.msra.mxu0 %v4582
          %5228 = vmatprep.subr.mxu0 %v4587
          %5229 = vmatpush1.msra.mxu0 %v4586
          %5230 = vmatprep.subr.mxu0 %v4591
          %5231 = vmatpush1.msra.mxu0 %v4590
          %5232 = vmatprep.mubr.f32.mxu0 %v4205
          %5233 = vmatmul.mubr.f32.gmra.mrb[0].mxu0 %v4204
          %v5234 = vpop.f32.mrb[0].mxu0
          %v5235 = vadd.f32 %v5164, %v5234
          %v5236 = vpop.f32.mrb[0].mxu0
          %v5237 = vadd.f32 %v5166, %v5236
          %5238 = vdwg.mxu0
          %5239 = vmatprep.subr.mxu0 %v4595
          %5240 = vmatpush1.msra.mxu0 %v4594
          %5241 = vmatprep.subr.mxu0 %v4599
          %5242 = vmatpush1.msra.mxu0 %v4598
          %5243 = vmatprep.subr.mxu0 %v4603
          %5244 = vmatpush1.msra.mxu0 %v4602
          %5245 = vmatprep.subr.mxu0 %v4607
          %5246 = vmatpush1.msra.mxu0 %v4606
          %5247 = vmatprep.subr.mxu0 %v4611
          %5248 = vmatpush1.msra.mxu0 %v4610
          %5249 = vmatprep.subr.mxu0 %v4615
          %5250 = vmatpush1.msra.mxu0 %v4614
          %5251 = vmatprep.subr.mxu0 %v4619
          %5252 = vmatpush1.msra.mxu0 %v4618
          %5253 = vmatprep.subr.mxu0 %v4623
          %5254 = vmatpush1.msra.mxu0 %v4622
          %5255 = vmatprep.subr.mxu0 %v4627
          %5256 = vmatpush1.msra.mxu0 %v4626
          %5257 = vmatprep.subr.mxu0 %v4631
          %5258 = vmatpush1.msra.mxu0 %v4630
          %5259 = vmatprep.subr.mxu0 %v4635
          %5260 = vmatpush1.msra.mxu0 %v4634
          %5261 = vmatprep.subr.mxu0 %v4639
          %5262 = vmatpush1.msra.mxu0 %v4638
          %5263 = vmatprep.subr.mxu0 %v4643
          %5264 = vmatpush1.msra.mxu0 %v4642
          %5265 = vmatprep.subr.mxu0 %v4647
          %5266 = vmatpush1.msra.mxu0 %v4646
          %5267 = vmatprep.subr.mxu0 %v4651
          %5268 = vmatpush1.msra.mxu0 %v4650
          %5269 = vmatprep.subr.mxu0 %v4655
          %5270 = vmatpush1.msra.mxu0 %v4654
          %5271 = vmatprep.subr.mxu0 %v4659
          %5272 = vmatpush1.msra.mxu0 %v4658
          %5273 = vmatprep.subr.mxu0 %v4663
          %5274 = vmatpush1.msra.mxu0 %v4662
          %5275 = vmatprep.subr.mxu0 %v4667
          %5276 = vmatpush1.msra.mxu0 %v4666
          %5277 = vmatprep.subr.mxu0 %v4671
          %5278 = vmatpush1.msra.mxu0 %v4670
          %5279 = vmatprep.subr.mxu0 %v4675
          %5280 = vmatpush1.msra.mxu0 %v4674
          %5281 = vmatprep.subr.mxu0 %v4679
          %5282 = vmatpush1.msra.mxu0 %v4678
          %5283 = vmatprep.subr.mxu0 %v4683
          %5284 = vmatpush1.msra.mxu0 %v4682
          %5285 = vmatprep.subr.mxu0 %v4687
          %5286 = vmatpush1.msra.mxu0 %v4686
          %5287 = vmatprep.subr.mxu0 %v4691
          %5288 = vmatpush1.msra.mxu0 %v4690
          %5289 = vmatprep.subr.mxu0 %v4695
          %5290 = vmatpush1.msra.mxu0 %v4694
          %5291 = vmatprep.subr.mxu0 %v4699
          %5292 = vmatpush1.msra.mxu0 %v4698
          %5293 = vmatprep.subr.mxu0 %v4703
          %5294 = vmatpush1.msra.mxu0 %v4702
          %5295 = vmatprep.subr.mxu0 %v4707
          %5296 = vmatpush1.msra.mxu0 %v4706
          %5297 = vmatprep.subr.mxu0 %v4711
          %5298 = vmatpush1.msra.mxu0 %v4710
          %5299 = vmatprep.subr.mxu0 %v4715
          %5300 = vmatpush1.msra.mxu0 %v4714
          %5301 = vmatprep.subr.mxu0 %v4719
          %5302 = vmatpush1.msra.mxu0 %v4718
          %5303 = vmatprep.mubr.f32.mxu0 %v4207
          %5304 = vmatmul.mubr.f32.gmra.mrb[0].mxu0 %v4206
          %v5305 = vpop.f32.mrb[0].mxu0
          %v5306 = vadd.f32 %v5235, %v5305
          %v5307 = vpop.f32.mrb[0].mxu0
          %v5308 = vadd.f32 %v5237, %v5307
          %5309 = vdwg.mxu0
          %v5310 = vmax.f32 %v5022, 0.0
          %v5311 = vmax.f32 %v5024, 0.0
          %v5312 = vmax.f32 %v5306, 0.0
          %v5313 = vmax.f32 %v5308, 0.0
          %v5314 = vmul.f32 %v2509, %v2509
          %5315 = vadd.xlane.f32.xlu0 %v5314
          %v5316 = vpop.xlane.xlu0 %5315
          %v5317 = vmul.f32 %v2510, %v2510
          %5318 = vadd.xlane.f32.xlu0 %v5317
          %v5319 = vpop.xlane.xlu0 %5318
          %v5320 = vadd.f32 %v5316, %v5319
          %v5321 = vmul.f32 %v5310, %v5310
          %v5322 = vmul.f32 %v5311, %v5311
          %v5323 = vmul.f32 %v5312, %v5312
          %v5324 = vmul.f32 %v5313, %v5313
          %v5325 = vadd.f32 %v5321, %v5322
          %v5326 = vadd.f32 %v5325, %v5323
          %v5327 = vadd.f32 %v5326, %v5324
          %5328 = vadd.xlane.f32.xlu0 %v5327
          %v5329 = vpop.xlane.xlu0 %5328
          %v5330 = vadd.f32 %v5320, %v5329
          %v5331 = vmul.f32 %v2174, %v2174
          %5332 = vadd.xlane.f32.xlu0 %v5331
          %v5333 = vpop.xlane.xlu0 %5332
          %v5334 = vadd.f32 %v5330, %v5333
          %v5335 = vmul.f32 %v2175, %v2175
          %5336 = vadd.xlane.f32.xlu0 %v5335
          %v5337 = vpop.xlane.xlu0 %5336
          %v5338 = vadd.f32 %v5334, %v5337
          %v5339 = vld [vmem:[#allocation25] sm:$0xff]
          %v5340 = vld [vmem:[#allocation25 + $0x8] sm:$0xff]
          %v5341 = vld [vmem:[#allocation25 + $0x10] sm:$0xff]
          %v5342 = vld [vmem:[#allocation25 + $0x18] sm:$0xff]
          %v5343 = vld [vmem:[#allocation25 + $0x20] sm:$0xff]
          %v5344 = vld [vmem:[#allocation25 + $0x28] sm:$0xff]
          %v5345 = vld [vmem:[#allocation25 + $0x30] sm:$0xff]
          %v5346 = vld [vmem:[#allocation25 + $0x38] sm:$0xff]
          %v5347 = vld [vmem:[#allocation25 + $0x40] sm:$0xff]
          %v5348 = vld [vmem:[#allocation25 + $0x48] sm:$0xff]
          %v5349 = vld [vmem:[#allocation25 + $0x50] sm:$0xff]
          %v5350 = vld [vmem:[#allocation25 + $0x58] sm:$0xff]
          %v5351 = vld [vmem:[#allocation25 + $0x60] sm:$0xff]
          %v5352 = vld [vmem:[#allocation25 + $0x68] sm:$0xff]
          %v5353 = vld [vmem:[#allocation25 + $0x70] sm:$0xff]
          %v5354 = vld [vmem:[#allocation25 + $0x78] sm:$0xff]
          %v5355 = vld [vmem:[#allocation25 + $0x80] sm:$0xff]
          %v5356 = vld [vmem:[#allocation25 + $0x88] sm:$0xff]
          %v5357 = vld [vmem:[#allocation25 + $0x90] sm:$0xff]
          %v5358 = vld [vmem:[#allocation25 + $0x98] sm:$0xff]
          %v5359 = vld [vmem:[#allocation25 + $0xa0] sm:$0xff]
          %v5360 = vld [vmem:[#allocation25 + $0xa8] sm:$0xff]
          %v5361 = vld [vmem:[#allocation25 + $0xb0] sm:$0xff]
          %v5362 = vld [vmem:[#allocation25 + $0xb8] sm:$0xff]
          %v5363 = vld [vmem:[#allocation25 + $0xc0] sm:$0xff]
          %v5364 = vld [vmem:[#allocation25 + $0xc8] sm:$0xff]
          %v5365 = vld [vmem:[#allocation25 + $0xd0] sm:$0xff]
          %v5366 = vld [vmem:[#allocation25 + $0xd8] sm:$0xff]
          %v5367 = vld [vmem:[#allocation25 + $0xe0] sm:$0xff]
          %v5368 = vld [vmem:[#allocation25 + $0xe8] sm:$0xff]
          %v5369 = vld [vmem:[#allocation25 + $0xf0] sm:$0xff]
          %v5370 = vld [vmem:[#allocation25 + $0xf8] sm:$0xff]
          %v5371 = vld [vmem:[#allocation27] sm:$0xff]
          %v5372 = vld [vmem:[#allocation27 + $0x8] sm:$0xff]
          %v5373 = vld [vmem:[#allocation27 + $0x10] sm:$0xff]
          %v5374 = vld [vmem:[#allocation27 + $0x18] sm:$0xff]
          %v5375 = vld [vmem:[#allocation27 + $0x20] sm:$0xff]
          %v5376 = vld [vmem:[#allocation27 + $0x28] sm:$0xff]
          %v5377 = vld [vmem:[#allocation27 + $0x30] sm:$0xff]
          %v5378 = vld [vmem:[#allocation27 + $0x38] sm:$0xff]
          %v5379 = vld [vmem:[#allocation27 + $0x40] sm:$0xff]
          %v5380 = vld [vmem:[#allocation27 + $0x48] sm:$0xff]
          %v5381 = vld [vmem:[#allocation27 + $0x50] sm:$0xff]
          %v5382 = vld [vmem:[#allocation27 + $0x58] sm:$0xff]
          %v5383 = vld [vmem:[#allocation27 + $0x60] sm:$0xff]
          %v5384 = vld [vmem:[#allocation27 + $0x68] sm:$0xff]
          %v5385 = vld [vmem:[#allocation27 + $0x70] sm:$0xff]
          %v5386 = vld [vmem:[#allocation27 + $0x78] sm:$0xff]
          %v5387 = vld [vmem:[#allocation27 + $0x80] sm:$0xff]
          %v5388 = vld [vmem:[#allocation27 + $0x88] sm:$0xff]
          %v5389 = vld [vmem:[#allocation27 + $0x90] sm:$0xff]
          %v5390 = vld [vmem:[#allocation27 + $0x98] sm:$0xff]
          %v5391 = vld [vmem:[#allocation27 + $0xa0] sm:$0xff]
          %v5392 = vld [vmem:[#allocation27 + $0xa8] sm:$0xff]
          %v5393 = vld [vmem:[#allocation27 + $0xb0] sm:$0xff]
          %v5394 = vld [vmem:[#allocation27 + $0xb8] sm:$0xff]
          %v5395 = vld [vmem:[#allocation27 + $0xc0] sm:$0xff]
          %v5396 = vld [vmem:[#allocation27 + $0xc8] sm:$0xff]
          %v5397 = vld [vmem:[#allocation27 + $0xd0] sm:$0xff]
          %v5398 = vld [vmem:[#allocation27 + $0xd8] sm:$0xff]
          %v5399 = vld [vmem:[#allocation27 + $0xe0] sm:$0xff]
          %v5400 = vld [vmem:[#allocation27 + $0xe8] sm:$0xff]
          %v5401 = vld [vmem:[#allocation27 + $0xf0] sm:$0xff]
          %v5402 = vld [vmem:[#allocation27 + $0xf8] sm:$0xff]
          %5403 = vmatprep.subr.mxu0 %v5372
          %5404 = vmatpush1.msra.mxu0 %v5371
          %5405 = vmatprep.subr.mxu0 %v5374
          %5406 = vmatpush1.msra.mxu0 %v5373
          %5407 = vmatprep.subr.mxu0 %v5376
          %5408 = vmatpush1.msra.mxu0 %v5375
          %5409 = vmatprep.subr.mxu0 %v5378
          %5410 = vmatpush1.msra.mxu0 %v5377
          %5411 = vmatprep.subr.mxu0 %v5380
          %5412 = vmatpush1.msra.mxu0 %v5379
          %5413 = vmatprep.subr.mxu0 %v5382
          %5414 = vmatpush1.msra.mxu0 %v5381
          %5415 = vmatprep.subr.mxu0 %v5384
          %5416 = vmatpush1.msra.mxu0 %v5383
          %5417 = vmatprep.subr.mxu0 %v5386
          %5418 = vmatpush1.msra.mxu0 %v5385
          %5419 = vmatprep.subr.mxu0 %v5388
          %5420 = vmatpush1.msra.mxu0 %v5387
          %5421 = vmatprep.subr.mxu0 %v5390
          %5422 = vmatpush1.msra.mxu0 %v5389
          %5423 = vmatprep.subr.mxu0 %v5392
          %5424 = vmatpush1.msra.mxu0 %v5391
          %5425 = vmatprep.subr.mxu0 %v5394
          %5426 = vmatpush1.msra.mxu0 %v5393
          %5427 = vmatprep.subr.mxu0 %v5396
          %5428 = vmatpush1.msra.mxu0 %v5395
          %5429 = vmatprep.subr.mxu0 %v5398
          %5430 = vmatpush1.msra.mxu0 %v5397
          %5431 = vmatprep.subr.mxu0 %v5400
          %5432 = vmatpush1.msra.mxu0 %v5399
          %5433 = vmatprep.subr.mxu0 %v5402
          %5434 = vmatpush1.msra.mxu0 %v5401
          %5435 = vmatprep.subr.mxu0 0.0
          %5436 = vmatpush1.msra.mxu0 0.0
          %5437 = vmatprep.subr.mxu0 0.0
          %5438 = vmatpush1.msra.mxu0 0.0
          %5439 = vmatprep.subr.mxu0 0.0
          %5440 = vmatpush1.msra.mxu0 0.0
          %5441 = vmatprep.subr.mxu0 0.0
          %5442 = vmatpush1.msra.mxu0 0.0
          %5443 = vmatprep.subr.mxu0 0.0
          %5444 = vmatpush1.msra.mxu0 0.0
          %5445 = vmatprep.subr.mxu0 0.0
          %5446 = vmatpush1.msra.mxu0 0.0
          %5447 = vmatprep.subr.mxu0 0.0
          %5448 = vmatpush1.msra.mxu0 0.0
          %5449 = vmatprep.subr.mxu0 0.0
          %5450 = vmatpush1.msra.mxu0 0.0
          %5451 = vmatprep.subr.mxu0 0.0
          %5452 = vmatpush1.msra.mxu0 0.0
          %5453 = vmatprep.subr.mxu0 0.0
          %5454 = vmatpush1.msra.mxu0 0.0
          %5455 = vmatprep.subr.mxu0 0.0
          %5456 = vmatpush1.msra.mxu0 0.0
          %5457 = vmatprep.subr.mxu0 0.0
          %5458 = vmatpush1.msra.mxu0 0.0
          %5459 = vmatprep.subr.mxu0 0.0
          %5460 = vmatpush1.msra.mxu0 0.0
          %5461 = vmatprep.subr.mxu0 0.0
          %5462 = vmatpush1.msra.mxu0 0.0
          %5463 = vmatprep.subr.mxu0 0.0
          %5464 = vmatpush1.msra.mxu0 0.0
          %5465 = vmatprep.subr.mxu0 0.0
          %5466 = vmatpush1.msra.mxu0 0.0
          %5467 = vmatprep.mubr.f32.mxu0 0.0
          %5468 = vmatmul.mubr.f32.gmra.mrb[0].mxu0 %v2510
          %v5469 = vpop.f32.mrb[0].mxu0
          %v5470 = vadd.f32 0.0, %v5469
          %v5471 = vpop.f32.mrb[0].mxu0
          %v5472 = vadd.f32 0.0, %v5471
          %5473 = vdwg.mxu0
          %5474 = vmatprep.subr.mxu0 %v5340
          %5475 = vmatpush1.msra.mxu0 %v5339
          %5476 = vmatprep.subr.mxu0 %v5342
          %5477 = vmatpush1.msra.mxu0 %v5341
          %5478 = vmatprep.subr.mxu0 %v5344
          %5479 = vmatpush1.msra.mxu0 %v5343
          %5480 = vmatprep.subr.mxu0 %v5346
          %5481 = vmatpush1.msra.mxu0 %v5345
          %5482 = vmatprep.subr.mxu0 %v5348
          %5483 = vmatpush1.msra.mxu0 %v5347
          %5484 = vmatprep.subr.mxu0 %v5350
          %5485 = vmatpush1.msra.mxu0 %v5349
          %5486 = vmatprep.subr.mxu0 %v5352
          %5487 = vmatpush1.msra.mxu0 %v5351
          %5488 = vmatprep.subr.mxu0 %v5354
          %5489 = vmatpush1.msra.mxu0 %v5353
          %5490 = vmatprep.subr.mxu0 %v5356
          %5491 = vmatpush1.msra.mxu0 %v5355
          %5492 = vmatprep.subr.mxu0 %v5358
          %5493 = vmatpush1.msra.mxu0 %v5357
          %5494 = vmatprep.subr.mxu0 %v5360
          %5495 = vmatpush1.msra.mxu0 %v5359
          %5496 = vmatprep.subr.mxu0 %v5362
          %5497 = vmatpush1.msra.mxu0 %v5361
          %5498 = vmatprep.subr.mxu0 %v5364
          %5499 = vmatpush1.msra.mxu0 %v5363
          %5500 = vmatprep.subr.mxu0 %v5366
          %5501 = vmatpush1.msra.mxu0 %v5365
          %5502 = vmatprep.subr.mxu0 %v5368
          %5503 = vmatpush1.msra.mxu0 %v5367
          %5504 = vmatprep.subr.mxu0 %v5370
          %5505 = vmatpush1.msra.mxu0 %v5369
          %5506 = vmatprep.subr.mxu0 0.0
          %5507 = vmatpush1.msra.mxu0 0.0
          %5508 = vmatprep.subr.mxu0 0.0
          %5509 = vmatpush1.msra.mxu0 0.0
          %5510 = vmatprep.subr.mxu0 0.0
          %5511 = vmatpush1.msra.mxu0 0.0
          %5512 = vmatprep.subr.mxu0 0.0
          %5513 = vmatpush1.msra.mxu0 0.0
          %5514 = vmatprep.subr.mxu0 0.0
          %5515 = vmatpush1.msra.mxu0 0.0
          %5516 = vmatprep.subr.mxu0 0.0
          %5517 = vmatpush1.msra.mxu0 0.0
          %5518 = vmatprep.subr.mxu0 0.0
          %5519 = vmatpush1.msra.mxu0 0.0
          %5520 = vmatprep.subr.mxu0 0.0
          %5521 = vmatpush1.msra.mxu0 0.0
          %5522 = vmatprep.subr.mxu0 0.0
          %5523 = vmatpush1.msra.mxu0 0.0
          %5524 = vmatprep.subr.mxu0 0.0
          %5525 = vmatpush1.msra.mxu0 0.0
          %5526 = vmatprep.subr.mxu0 0.0
          %5527 = vmatpush1.msra.mxu0 0.0
          %5528 = vmatprep.subr.mxu0 0.0
          %5529 = vmatpush1.msra.mxu0 0.0
          %5530 = vmatprep.subr.mxu0 0.0
          %5531 = vmatpush1.msra.mxu0 0.0
          %5532 = vmatprep.subr.mxu0 0.0
          %5533 = vmatpush1.msra.mxu0 0.0
          %5534 = vmatprep.subr.mxu0 0.0
          %5535 = vmatpush1.msra.mxu0 0.0
          %5536 = vmatprep.subr.mxu0 0.0
          %5537 = vmatpush1.msra.mxu0 0.0
          %5538 = vmatprep.mubr.f32.mxu0 0.0
          %5539 = vmatmul.mubr.f32.gmra.mrb[0].mxu0 %v2509
          %v5540 = vpop.f32.mrb[0].mxu0
          %v5541 = vadd.f32 %v5470, %v5540
          %v5542 = vpop.f32.mrb[0].mxu0
          %v5543 = vadd.f32 %v5472, %v5542
          %5544 = vdwg.mxu0
          %v5545 = vld [vmem:[#allocation28] sm:$0xff]
          %v5546 = vld [vmem:[#allocation28 + $0x8] sm:$0xff]
          %v5547 = vld [vmem:[#allocation28 + $0x10] sm:$0xff]
          %v5548 = vld [vmem:[#allocation28 + $0x18] sm:$0xff]
          %v5549 = vld [vmem:[#allocation28 + $0x20] sm:$0xff]
          %v5550 = vld [vmem:[#allocation28 + $0x28] sm:$0xff]
          %v5551 = vld [vmem:[#allocation28 + $0x30] sm:$0xff]
          %v5552 = vld [vmem:[#allocation28 + $0x38] sm:$0xff]
          %v5553 = vld [vmem:[#allocation28 + $0x40] sm:$0xff]
          %v5554 = vld [vmem:[#allocation28 + $0x48] sm:$0xff]
          %v5555 = vld [vmem:[#allocation28 + $0x50] sm:$0xff]
          %v5556 = vld [vmem:[#allocation28 + $0x58] sm:$0xff]
          %v5557 = vld [vmem:[#allocation28 + $0x60] sm:$0xff]
          %v5558 = vld [vmem:[#allocation28 + $0x68] sm:$0xff]
          %v5559 = vld [vmem:[#allocation28 + $0x70] sm:$0xff]
          %v5560 = vld [vmem:[#allocation28 + $0x78] sm:$0xff]
          %v5561 = vld [vmem:[#allocation28 + $0x80] sm:$0xff]
          %v5562 = vld [vmem:[#allocation28 + $0x88] sm:$0xff]
          %v5563 = vld [vmem:[#allocation28 + $0x90] sm:$0xff]
          %v5564 = vld [vmem:[#allocation28 + $0x98] sm:$0xff]
          %v5565 = vld [vmem:[#allocation28 + $0xa0] sm:$0xff]
          %v5566 = vld [vmem:[#allocation28 + $0xa8] sm:$0xff]
          %v5567 = vld [vmem:[#allocation28 + $0xb0] sm:$0xff]
          %v5568 = vld [vmem:[#allocation28 + $0xb8] sm:$0xff]
          %v5569 = vld [vmem:[#allocation28 + $0xc0] sm:$0xff]
          %v5570 = vld [vmem:[#allocation28 + $0xc8] sm:$0xff]
          %v5571 = vld [vmem:[#allocation28 + $0xd0] sm:$0xff]
          %v5572 = vld [vmem:[#allocation28 + $0xd8] sm:$0xff]
          %v5573 = vld [vmem:[#allocation28 + $0xe0] sm:$0xff]
          %v5574 = vld [vmem:[#allocation28 + $0xe8] sm:$0xff]
          %v5575 = vld [vmem:[#allocation28 + $0xf0] sm:$0xff]
          %v5576 = vld [vmem:[#allocation28 + $0xf8] sm:$0xff]
          %v5577 = vld [vmem:[#allocation28 + $0x100] sm:$0xff]
          %v5578 = vld [vmem:[#allocation28 + $0x108] sm:$0xff]
          %v5579 = vld [vmem:[#allocation28 + $0x110] sm:$0xff]
          %v5580 = vld [vmem:[#allocation28 + $0x118] sm:$0xff]
          %v5581 = vld [vmem:[#allocation28 + $0x120] sm:$0xff]
          %v5582 = vld [vmem:[#allocation28 + $0x128] sm:$0xff]
          %v5583 = vld [vmem:[#allocation28 + $0x130] sm:$0xff]
          %v5584 = vld [vmem:[#allocation28 + $0x138] sm:$0xff]
          %v5585 = vld [vmem:[#allocation28 + $0x140] sm:$0xff]
          %v5586 = vld [vmem:[#allocation28 + $0x148] sm:$0xff]
          %v5587 = vld [vmem:[#allocation28 + $0x150] sm:$0xff]
          %v5588 = vld [vmem:[#allocation28 + $0x158] sm:$0xff]
          %v5589 = vld [vmem:[#allocation28 + $0x160] sm:$0xff]
          %v5590 = vld [vmem:[#allocation28 + $0x168] sm:$0xff]
          %v5591 = vld [vmem:[#allocation28 + $0x170] sm:$0xff]
          %v5592 = vld [vmem:[#allocation28 + $0x178] sm:$0xff]
          %v5593 = vld [vmem:[#allocation28 + $0x180] sm:$0xff]
          %v5594 = vld [vmem:[#allocation28 + $0x188] sm:$0xff]
          %v5595 = vld [vmem:[#allocation28 + $0x190] sm:$0xff]
          %v5596 = vld [vmem:[#allocation28 + $0x198] sm:$0xff]
          %v5597 = vld [vmem:[#allocation28 + $0x1a0] sm:$0xff]
          %v5598 = vld [vmem:[#allocation28 + $0x1a8] sm:$0xff]
          %v5599 = vld [vmem:[#allocation28 + $0x1b0] sm:$0xff]
          %v5600 = vld [vmem:[#allocation28 + $0x1b8] sm:$0xff]
          %v5601 = vld [vmem:[#allocation28 + $0x1c0] sm:$0xff]
          %v5602 = vld [vmem:[#allocation28 + $0x1c8] sm:$0xff]
          %v5603 = vld [vmem:[#allocation28 + $0x1d0] sm:$0xff]
          %v5604 = vld [vmem:[#allocation28 + $0x1d8] sm:$0xff]
          %v5605 = vld [vmem:[#allocation28 + $0x1e0] sm:$0xff]
          %v5606 = vld [vmem:[#allocation28 + $0x1e8] sm:$0xff]
          %v5607 = vld [vmem:[#allocation28 + $0x1f0] sm:$0xff]
          %v5608 = vld [vmem:[#allocation28 + $0x1f8] sm:$0xff]
          %v5609 = vld [vmem:[#allocation28 + $0x200] sm:$0xff]
          %v5610 = vld [vmem:[#allocation28 + $0x208] sm:$0xff]
          %v5611 = vld [vmem:[#allocation28 + $0x210] sm:$0xff]
          %v5612 = vld [vmem:[#allocation28 + $0x218] sm:$0xff]
          %v5613 = vld [vmem:[#allocation28 + $0x220] sm:$0xff]
          %v5614 = vld [vmem:[#allocation28 + $0x228] sm:$0xff]
          %v5615 = vld [vmem:[#allocation28 + $0x230] sm:$0xff]
          %v5616 = vld [vmem:[#allocation28 + $0x238] sm:$0xff]
          %v5617 = vld [vmem:[#allocation28 + $0x240] sm:$0xff]
          %v5618 = vld [vmem:[#allocation28 + $0x248] sm:$0xff]
          %v5619 = vld [vmem:[#allocation28 + $0x250] sm:$0xff]
          %v5620 = vld [vmem:[#allocation28 + $0x258] sm:$0xff]
          %v5621 = vld [vmem:[#allocation28 + $0x260] sm:$0xff]
          %v5622 = vld [vmem:[#allocation28 + $0x268] sm:$0xff]
          %v5623 = vld [vmem:[#allocation28 + $0x270] sm:$0xff]
          %v5624 = vld [vmem:[#allocation28 + $0x278] sm:$0xff]
          %v5625 = vld [vmem:[#allocation28 + $0x280] sm:$0xff]
          %v5626 = vld [vmem:[#allocation28 + $0x288] sm:$0xff]
          %v5627 = vld [vmem:[#allocation28 + $0x290] sm:$0xff]
          %v5628 = vld [vmem:[#allocation28 + $0x298] sm:$0xff]
          %v5629 = vld [vmem:[#allocation28 + $0x2a0] sm:$0xff]
          %v5630 = vld [vmem:[#allocation28 + $0x2a8] sm:$0xff]
          %v5631 = vld [vmem:[#allocation28 + $0x2b0] sm:$0xff]
          %v5632 = vld [vmem:[#allocation28 + $0x2b8] sm:$0xff]
          %v5633 = vld [vmem:[#allocation28 + $0x2c0] sm:$0xff]
          %v5634 = vld [vmem:[#allocation28 + $0x2c8] sm:$0xff]
          %v5635 = vld [vmem:[#allocation28 + $0x2d0] sm:$0xff]
          %v5636 = vld [vmem:[#allocation28 + $0x2d8] sm:$0xff]
          %v5637 = vld [vmem:[#allocation28 + $0x2e0] sm:$0xff]
          %v5638 = vld [vmem:[#allocation28 + $0x2e8] sm:$0xff]
          %v5639 = vld [vmem:[#allocation28 + $0x2f0] sm:$0xff]
          %v5640 = vld [vmem:[#allocation28 + $0x2f8] sm:$0xff]
          %v5641 = vld [vmem:[#allocation28 + $0x300] sm:$0xff]
          %v5642 = vld [vmem:[#allocation28 + $0x308] sm:$0xff]
          %v5643 = vld [vmem:[#allocation28 + $0x310] sm:$0xff]
          %v5644 = vld [vmem:[#allocation28 + $0x318] sm:$0xff]
          %v5645 = vld [vmem:[#allocation28 + $0x320] sm:$0xff]
          %v5646 = vld [vmem:[#allocation28 + $0x328] sm:$0xff]
          %v5647 = vld [vmem:[#allocation28 + $0x330] sm:$0xff]
          %v5648 = vld [vmem:[#allocation28 + $0x338] sm:$0xff]
          %v5649 = vld [vmem:[#allocation28 + $0x340] sm:$0xff]
          %v5650 = vld [vmem:[#allocation28 + $0x348] sm:$0xff]
          %v5651 = vld [vmem:[#allocation28 + $0x350] sm:$0xff]
          %v5652 = vld [vmem:[#allocation28 + $0x358] sm:$0xff]
          %v5653 = vld [vmem:[#allocation28 + $0x360] sm:$0xff]
          %v5654 = vld [vmem:[#allocation28 + $0x368] sm:$0xff]
          %v5655 = vld [vmem:[#allocation28 + $0x370] sm:$0xff]
          %v5656 = vld [vmem:[#allocation28 + $0x378] sm:$0xff]
          %v5657 = vld [vmem:[#allocation28 + $0x380] sm:$0xff]
          %v5658 = vld [vmem:[#allocation28 + $0x388] sm:$0xff]
          %v5659 = vld [vmem:[#allocation28 + $0x390] sm:$0xff]
          %v5660 = vld [vmem:[#allocation28 + $0x398] sm:$0xff]
          %v5661 = vld [vmem:[#allocation28 + $0x3a0] sm:$0xff]
          %v5662 = vld [vmem:[#allocation28 + $0x3a8] sm:$0xff]
          %v5663 = vld [vmem:[#allocation28 + $0x3b0] sm:$0xff]
          %v5664 = vld [vmem:[#allocation28 + $0x3b8] sm:$0xff]
          %v5665 = vld [vmem:[#allocation28 + $0x3c0] sm:$0xff]
          %v5666 = vld [vmem:[#allocation28 + $0x3c8] sm:$0xff]
          %v5667 = vld [vmem:[#allocation28 + $0x3d0] sm:$0xff]
          %v5668 = vld [vmem:[#allocation28 + $0x3d8] sm:$0xff]
          %v5669 = vld [vmem:[#allocation28 + $0x3e0] sm:$0xff]
          %v5670 = vld [vmem:[#allocation28 + $0x3e8] sm:$0xff]
          %v5671 = vld [vmem:[#allocation28 + $0x3f0] sm:$0xff]
          %v5672 = vld [vmem:[#allocation28 + $0x3f8] sm:$0xff]
          %5673 = vmatprep.subr.mxu0 %v5546
          %5674 = vmatpush1.msra.mxu0 %v5545
          %5675 = vmatprep.subr.mxu0 %v5548
          %5676 = vmatpush1.msra.mxu0 %v5547
          %5677 = vmatprep.subr.mxu0 %v5550
          %5678 = vmatpush1.msra.mxu0 %v5549
          %5679 = vmatprep.subr.mxu0 %v5552
          %5680 = vmatpush1.msra.mxu0 %v5551
          %5681 = vmatprep.subr.mxu0 %v5554
          %5682 = vmatpush1.msra.mxu0 %v5553
          %5683 = vmatprep.subr.mxu0 %v5556
          %5684 = vmatpush1.msra.mxu0 %v5555
          %5685 = vmatprep.subr.mxu0 %v5558
          %5686 = vmatpush1.msra.mxu0 %v5557
          %5687 = vmatprep.subr.mxu0 %v5560
          %5688 = vmatpush1.msra.mxu0 %v5559
          %5689 = vmatprep.subr.mxu0 %v5562
          %5690 = vmatpush1.msra.mxu0 %v5561
          %5691 = vmatprep.subr.mxu0 %v5564
          %5692 = vmatpush1.msra.mxu0 %v5563
          %5693 = vmatprep.subr.mxu0 %v5566
          %5694 = vmatpush1.msra.mxu0 %v5565
          %5695 = vmatprep.subr.mxu0 %v5568
          %5696 = vmatpush1.msra.mxu0 %v5567
          %5697 = vmatprep.subr.mxu0 %v5570
          %5698 = vmatpush1.msra.mxu0 %v5569
          %5699 = vmatprep.subr.mxu0 %v5572
          %5700 = vmatpush1.msra.mxu0 %v5571
          %5701 = vmatprep.subr.mxu0 %v5574
          %5702 = vmatpush1.msra.mxu0 %v5573
          %5703 = vmatprep.subr.mxu0 %v5576
          %5704 = vmatpush1.msra.mxu0 %v5575
          %5705 = vmatprep.subr.mxu0 %v5578
          %5706 = vmatpush1.msra.mxu0 %v5577
          %5707 = vmatprep.subr.mxu0 %v5580
          %5708 = vmatpush1.msra.mxu0 %v5579
          %5709 = vmatprep.subr.mxu0 %v5582
          %5710 = vmatpush1.msra.mxu0 %v5581
          %5711 = vmatprep.subr.mxu0 %v5584
          %5712 = vmatpush1.msra.mxu0 %v5583
          %5713 = vmatprep.subr.mxu0 %v5586
          %5714 = vmatpush1.msra.mxu0 %v5585
          %5715 = vmatprep.subr.mxu0 %v5588
          %5716 = vmatpush1.msra.mxu0 %v5587
          %5717 = vmatprep.subr.mxu0 %v5590
          %5718 = vmatpush1.msra.mxu0 %v5589
          %5719 = vmatprep.subr.mxu0 %v5592
          %5720 = vmatpush1.msra.mxu0 %v5591
          %5721 = vmatprep.subr.mxu0 %v5594
          %5722 = vmatpush1.msra.mxu0 %v5593
          %5723 = vmatprep.subr.mxu0 %v5596
          %5724 = vmatpush1.msra.mxu0 %v5595
          %5725 = vmatprep.subr.mxu0 %v5598
          %5726 = vmatpush1.msra.mxu0 %v5597
          %5727 = vmatprep.subr.mxu0 %v5600
          %5728 = vmatpush1.msra.mxu0 %v5599
          %5729 = vmatprep.subr.mxu0 %v5602
          %5730 = vmatpush1.msra.mxu0 %v5601
          %5731 = vmatprep.subr.mxu0 %v5604
          %5732 = vmatpush1.msra.mxu0 %v5603
          %5733 = vmatprep.subr.mxu0 %v5606
          %5734 = vmatpush1.msra.mxu0 %v5605
          %5735 = vmatprep.subr.mxu0 %v5608
          %5736 = vmatpush1.msra.mxu0 %v5607
          %5737 = vmatprep.mubr.f32.mxu0 %v5311
          %5738 = vmatmul.mubr.f32.gmra.mrb[0].mxu0 %v5310
          %v5739 = vpop.f32.mrb[0].mxu0
          %v5740 = vadd.f32 0.0, %v5739
          %v5741 = vpop.f32.mrb[0].mxu0
          %v5742 = vadd.f32 0.0, %v5741
          %5743 = vdwg.mxu0
          %5744 = vmatprep.subr.mxu0 %v5610
          %5745 = vmatpush1.msra.mxu0 %v5609
          %5746 = vmatprep.subr.mxu0 %v5612
          %5747 = vmatpush1.msra.mxu0 %v5611
          %5748 = vmatprep.subr.mxu0 %v5614
          %5749 = vmatpush1.msra.mxu0 %v5613
          %5750 = vmatprep.subr.mxu0 %v5616
          %5751 = vmatpush1.msra.mxu0 %v5615
          %5752 = vmatprep.subr.mxu0 %v5618
          %5753 = vmatpush1.msra.mxu0 %v5617
          %5754 = vmatprep.subr.mxu0 %v5620
          %5755 = vmatpush1.msra.mxu0 %v5619
          %5756 = vmatprep.subr.mxu0 %v5622
          %5757 = vmatpush1.msra.mxu0 %v5621
          %5758 = vmatprep.subr.mxu0 %v5624
          %5759 = vmatpush1.msra.mxu0 %v5623
          %5760 = vmatprep.subr.mxu0 %v5626
          %5761 = vmatpush1.msra.mxu0 %v5625
          %5762 = vmatprep.subr.mxu0 %v5628
          %5763 = vmatpush1.msra.mxu0 %v5627
          %5764 = vmatprep.subr.mxu0 %v5630
          %5765 = vmatpush1.msra.mxu0 %v5629
          %5766 = vmatprep.subr.mxu0 %v5632
          %5767 = vmatpush1.msra.mxu0 %v5631
          %5768 = vmatprep.subr.mxu0 %v5634
          %5769 = vmatpush1.msra.mxu0 %v5633
          %5770 = vmatprep.subr.mxu0 %v5636
          %5771 = vmatpush1.msra.mxu0 %v5635
          %5772 = vmatprep.subr.mxu0 %v5638
          %5773 = vmatpush1.msra.mxu0 %v5637
          %5774 = vmatprep.subr.mxu0 %v5640
          %5775 = vmatpush1.msra.mxu0 %v5639
          %5776 = vmatprep.subr.mxu0 %v5642
          %5777 = vmatpush1.msra.mxu0 %v5641
          %5778 = vmatprep.subr.mxu0 %v5644
          %5779 = vmatpush1.msra.mxu0 %v5643
          %5780 = vmatprep.subr.mxu0 %v5646
          %5781 = vmatpush1.msra.mxu0 %v5645
          %5782 = vmatprep.subr.mxu0 %v5648
          %5783 = vmatpush1.msra.mxu0 %v5647
          %5784 = vmatprep.subr.mxu0 %v5650
          %5785 = vmatpush1.msra.mxu0 %v5649
          %5786 = vmatprep.subr.mxu0 %v5652
          %5787 = vmatpush1.msra.mxu0 %v5651
          %5788 = vmatprep.subr.mxu0 %v5654
          %5789 = vmatpush1.msra.mxu0 %v5653
          %5790 = vmatprep.subr.mxu0 %v5656
          %5791 = vmatpush1.msra.mxu0 %v5655
          %5792 = vmatprep.subr.mxu0 %v5658
          %5793 = vmatpush1.msra.mxu0 %v5657
          %5794 = vmatprep.subr.mxu0 %v5660
          %5795 = vmatpush1.msra.mxu0 %v5659
          %5796 = vmatprep.subr.mxu0 %v5662
          %5797 = vmatpush1.msra.mxu0 %v5661
          %5798 = vmatprep.subr.mxu0 %v5664
          %5799 = vmatpush1.msra.mxu0 %v5663
          %5800 = vmatprep.subr.mxu0 %v5666
          %5801 = vmatpush1.msra.mxu0 %v5665
          %5802 = vmatprep.subr.mxu0 %v5668
          %5803 = vmatpush1.msra.mxu0 %v5667
          %5804 = vmatprep.subr.mxu0 %v5670
          %5805 = vmatpush1.msra.mxu0 %v5669
          %5806 = vmatprep.subr.mxu0 %v5672
          %5807 = vmatpush1.msra.mxu0 %v5671
          %5808 = vmatprep.mubr.f32.mxu0 %v5313
          %5809 = vmatmul.mubr.f32.gmra.mrb[0].mxu0 %v5312
          %v5810 = vpop.f32.mrb[0].mxu0
          %v5811 = vadd.f32 %v5740, %v5810
          %v5812 = vpop.f32.mrb[0].mxu0
          %v5813 = vadd.f32 %v5742, %v5812
          %5814 = vdwg.mxu0
          %v5815 = vadd.f32 %v5541, %v5811
          %v5816 = vadd.f32 %v5543, %v5813
          %v5817 = vld [vmem:[#allocation30] sm:$0xff]
          %v5818 = vld [vmem:[#allocation30 + $0x8] sm:$0xff]
          %v5819 = vld [vmem:[#allocation30 + $0x10] sm:$0xff]
          %v5820 = vld [vmem:[#allocation30 + $0x18] sm:$0xff]
          %v5821 = vld [vmem:[#allocation30 + $0x20] sm:$0xff]
          %v5822 = vld [vmem:[#allocation30 + $0x28] sm:$0xff]
          %v5823 = vld [vmem:[#allocation30 + $0x30] sm:$0xff]
          %v5824 = vld [vmem:[#allocation30 + $0x38] sm:$0xff]
          %v5825 = vld [vmem:[#allocation30 + $0x40] sm:$0xff]
          %v5826 = vld [vmem:[#allocation30 + $0x48] sm:$0xff]
          %v5827 = vld [vmem:[#allocation30 + $0x50] sm:$0xff]
          %v5828 = vld [vmem:[#allocation30 + $0x58] sm:$0xff]
          %v5829 = vld [vmem:[#allocation30 + $0x60] sm:$0xff]
          %v5830 = vld [vmem:[#allocation30 + $0x68] sm:$0xff]
          %v5831 = vld [vmem:[#allocation30 + $0x70] sm:$0xff]
          %v5832 = vld [vmem:[#allocation30 + $0x78] sm:$0xff]
          %v5833 = vld [vmem:[#allocation30 + $0x80] sm:$0xff]
          %v5834 = vld [vmem:[#allocation30 + $0x88] sm:$0xff]
          %v5835 = vld [vmem:[#allocation30 + $0x90] sm:$0xff]
          %v5836 = vld [vmem:[#allocation30 + $0x98] sm:$0xff]
          %v5837 = vld [vmem:[#allocation30 + $0xa0] sm:$0xff]
          %v5838 = vld [vmem:[#allocation30 + $0xa8] sm:$0xff]
          %v5839 = vld [vmem:[#allocation30 + $0xb0] sm:$0xff]
          %v5840 = vld [vmem:[#allocation30 + $0xb8] sm:$0xff]
          %v5841 = vld [vmem:[#allocation30 + $0xc0] sm:$0xff]
          %v5842 = vld [vmem:[#allocation30 + $0xc8] sm:$0xff]
          %v5843 = vld [vmem:[#allocation30 + $0xd0] sm:$0xff]
          %v5844 = vld [vmem:[#allocation30 + $0xd8] sm:$0xff]
          %v5845 = vld [vmem:[#allocation30 + $0xe0] sm:$0xff]
          %v5846 = vld [vmem:[#allocation30 + $0xe8] sm:$0xff]
          %v5847 = vld [vmem:[#allocation30 + $0xf0] sm:$0xff]
          %v5848 = vld [vmem:[#allocation30 + $0xf8] sm:$0xff]
          %5849 = vmatprep.subr.mxu0 %v5818
          %5850 = vmatpush1.msra.mxu0 %v5817
          %5851 = vmatprep.subr.mxu0 %v5820
          %5852 = vmatpush1.msra.mxu0 %v5819
          %5853 = vmatprep.subr.mxu0 %v5822
          %5854 = vmatpush1.msra.mxu0 %v5821
          %5855 = vmatprep.subr.mxu0 %v5824
          %5856 = vmatpush1.msra.mxu0 %v5823
          %5857 = vmatprep.subr.mxu0 %v5826
          %5858 = vmatpush1.msra.mxu0 %v5825
          %5859 = vmatprep.subr.mxu0 %v5828
          %5860 = vmatpush1.msra.mxu0 %v5827
          %5861 = vmatprep.subr.mxu0 %v5830
          %5862 = vmatpush1.msra.mxu0 %v5829
          %5863 = vmatprep.subr.mxu0 %v5832
          %5864 = vmatpush1.msra.mxu0 %v5831
          %5865 = vmatprep.subr.mxu0 %v5834
          %5866 = vmatpush1.msra.mxu0 %v5833
          %5867 = vmatprep.subr.mxu0 %v5836
          %5868 = vmatpush1.msra.mxu0 %v5835
          %5869 = vmatprep.subr.mxu0 %v5838
          %5870 = vmatpush1.msra.mxu0 %v5837
          %5871 = vmatprep.subr.mxu0 %v5840
          %5872 = vmatpush1.msra.mxu0 %v5839
          %5873 = vmatprep.subr.mxu0 %v5842
          %5874 = vmatpush1.msra.mxu0 %v5841
          %5875 = vmatprep.subr.mxu0 %v5844
          %5876 = vmatpush1.msra.mxu0 %v5843
          %5877 = vmatprep.subr.mxu0 %v5846
          %5878 = vmatpush1.msra.mxu0 %v5845
          %5879 = vmatprep.subr.mxu0 %v5848
          %5880 = vmatpush1.msra.mxu0 %v5847
          %5881 = vmatprep.subr.mxu0 0.0
          %5882 = vmatpush1.msra.mxu0 0.0
          %5883 = vmatprep.subr.mxu0 0.0
          %5884 = vmatpush1.msra.mxu0 0.0
          %5885 = vmatprep.subr.mxu0 0.0
          %5886 = vmatpush1.msra.mxu0 0.0
          %5887 = vmatprep.subr.mxu0 0.0
          %5888 = vmatpush1.msra.mxu0 0.0
          %5889 = vmatprep.subr.mxu0 0.0
          %5890 = vmatpush1.msra.mxu0 0.0
          %5891 = vmatprep.subr.mxu0 0.0
          %5892 = vmatpush1.msra.mxu0 0.0
          %5893 = vmatprep.subr.mxu0 0.0
          %5894 = vmatpush1.msra.mxu0 0.0
          %5895 = vmatprep.subr.mxu0 0.0
          %5896 = vmatpush1.msra.mxu0 0.0
          %5897 = vmatprep.subr.mxu0 0.0
          %5898 = vmatpush1.msra.mxu0 0.0
          %5899 = vmatprep.subr.mxu0 0.0
          %5900 = vmatpush1.msra.mxu0 0.0
          %5901 = vmatprep.subr.mxu0 0.0
          %5902 = vmatpush1.msra.mxu0 0.0
          %5903 = vmatprep.subr.mxu0 0.0
          %5904 = vmatpush1.msra.mxu0 0.0
          %5905 = vmatprep.subr.mxu0 0.0
          %5906 = vmatpush1.msra.mxu0 0.0
          %5907 = vmatprep.subr.mxu0 0.0
          %5908 = vmatpush1.msra.mxu0 0.0
          %5909 = vmatprep.subr.mxu0 0.0
          %5910 = vmatpush1.msra.mxu0 0.0
          %5911 = vmatprep.subr.mxu0 0.0
          %5912 = vmatpush1.msra.mxu0 0.0
          %5913 = vmatprep.mubr.f32.mxu0 0.0
          %5914 = vmatmul.mubr.f32.gmra.mrb[0].mxu0 %v2174
          %v5915 = vpop.f32.mrb[0].mxu0
          %v5916 = vadd.f32 0.0, %v5915
          %v5917 = vpop.f32.mrb[0].mxu0
          %v5918 = vadd.f32 0.0, %v5917
          %5919 = vdwg.mxu0
          %v5920 = vadd.f32 %v5815, %v5916
          %v5921 = vadd.f32 %v5816, %v5918
          %v5922 = vld [vmem:[#allocation31] sm:$0xff]
          %v5923 = vld [vmem:[#allocation31 + $0x8] sm:$0xff]
          %v5924 = vld [vmem:[#allocation31 + $0x10] sm:$0xff]
          %v5925 = vld [vmem:[#allocation31 + $0x18] sm:$0xff]
          %v5926 = vld [vmem:[#allocation31 + $0x20] sm:$0xff]
          %v5927 = vld [vmem:[#allocation31 + $0x28] sm:$0xff]
          %v5928 = vld [vmem:[#allocation31 + $0x30] sm:$0xff]
          %v5929 = vld [vmem:[#allocation31 + $0x38] sm:$0xff]
          %v5930 = vld [vmem:[#allocation31 + $0x40] sm:$0xff]
          %v5931 = vld [vmem:[#allocation31 + $0x48] sm:$0xff]
          %v5932 = vld [vmem:[#allocation31 + $0x50] sm:$0xff]
          %v5933 = vld [vmem:[#allocation31 + $0x58] sm:$0xff]
          %v5934 = vld [vmem:[#allocation31 + $0x60] sm:$0xff]
          %v5935 = vld [vmem:[#allocation31 + $0x68] sm:$0xff]
          %v5936 = vld [vmem:[#allocation31 + $0x70] sm:$0xff]
          %v5937 = vld [vmem:[#allocation31 + $0x78] sm:$0xff]
          %v5938 = vld [vmem:[#allocation31 + $0x80] sm:$0xff]
          %v5939 = vld [vmem:[#allocation31 + $0x88] sm:$0xff]
          %v5940 = vld [vmem:[#allocation31 + $0x90] sm:$0xff]
          %v5941 = vld [vmem:[#allocation31 + $0x98] sm:$0xff]
          %v5942 = vld [vmem:[#allocation31 + $0xa0] sm:$0xff]
          %v5943 = vld [vmem:[#allocation31 + $0xa8] sm:$0xff]
          %v5944 = vld [vmem:[#allocation31 + $0xb0] sm:$0xff]
          %v5945 = vld [vmem:[#allocation31 + $0xb8] sm:$0xff]
          %v5946 = vld [vmem:[#allocation31 + $0xc0] sm:$0xff]
          %v5947 = vld [vmem:[#allocation31 + $0xc8] sm:$0xff]
          %v5948 = vld [vmem:[#allocation31 + $0xd0] sm:$0xff]
          %v5949 = vld [vmem:[#allocation31 + $0xd8] sm:$0xff]
          %v5950 = vld [vmem:[#allocation31 + $0xe0] sm:$0xff]
          %v5951 = vld [vmem:[#allocation31 + $0xe8] sm:$0xff]
          %v5952 = vld [vmem:[#allocation31 + $0xf0] sm:$0xff]
          %v5953 = vld [vmem:[#allocation31 + $0xf8] sm:$0xff]
          %5954 = vmatprep.subr.mxu0 %v5923
          %5955 = vmatpush1.msra.mxu0 %v5922
          %5956 = vmatprep.subr.mxu0 %v5925
          %5957 = vmatpush1.msra.mxu0 %v5924
          %5958 = vmatprep.subr.mxu0 %v5927
          %5959 = vmatpush1.msra.mxu0 %v5926
          %5960 = vmatprep.subr.mxu0 %v5929
          %5961 = vmatpush1.msra.mxu0 %v5928
          %5962 = vmatprep.subr.mxu0 %v5931
          %5963 = vmatpush1.msra.mxu0 %v5930
          %5964 = vmatprep.subr.mxu0 %v5933
          %5965 = vmatpush1.msra.mxu0 %v5932
          %5966 = vmatprep.subr.mxu0 %v5935
          %5967 = vmatpush1.msra.mxu0 %v5934
          %5968 = vmatprep.subr.mxu0 %v5937
          %5969 = vmatpush1.msra.mxu0 %v5936
          %5970 = vmatprep.subr.mxu0 %v5939
          %5971 = vmatpush1.msra.mxu0 %v5938
          %5972 = vmatprep.subr.mxu0 %v5941
          %5973 = vmatpush1.msra.mxu0 %v5940
          %5974 = vmatprep.subr.mxu0 %v5943
          %5975 = vmatpush1.msra.mxu0 %v5942
          %5976 = vmatprep.subr.mxu0 %v5945
          %5977 = vmatpush1.msra.mxu0 %v5944
          %5978 = vmatprep.subr.mxu0 %v5947
          %5979 = vmatpush1.msra.mxu0 %v5946
          %5980 = vmatprep.subr.mxu0 %v5949
          %5981 = vmatpush1.msra.mxu0 %v5948
          %5982 = vmatprep.subr.mxu0 %v5951
          %5983 = vmatpush1.msra.mxu0 %v5950
          %5984 = vmatprep.subr.mxu0 %v5953
          %5985 = vmatpush1.msra.mxu0 %v5952
          %5986 = vmatprep.subr.mxu0 0.0
          %5987 = vmatpush1.msra.mxu0 0.0
          %5988 = vmatprep.subr.mxu0 0.0
          %5989 = vmatpush1.msra.mxu0 0.0
          %5990 = vmatprep.subr.mxu0 0.0
          %5991 = vmatpush1.msra.mxu0 0.0
          %5992 = vmatprep.subr.mxu0 0.0
          %5993 = vmatpush1.msra.mxu0 0.0
          %5994 = vmatprep.subr.mxu0 0.0
          %5995 = vmatpush1.msra.mxu0 0.0
          %5996 = vmatprep.subr.mxu0 0.0
          %5997 = vmatpush1.msra.mxu0 0.0
          %5998 = vmatprep.subr.mxu0 0.0
          %5999 = vmatpush1.msra.mxu0 0.0
          %6000 = vmatprep.subr.mxu0 0.0
          %6001 = vmatpush1.msra.mxu0 0.0
          %6002 = vmatprep.subr.mxu0 0.0
          %6003 = vmatpush1.msra.mxu0 0.0
          %6004 = vmatprep.subr.mxu0 0.0
          %6005 = vmatpush1.msra.mxu0 0.0
          %6006 = vmatprep.subr.mxu0 0.0
          %6007 = vmatpush1.msra.mxu0 0.0
          %6008 = vmatprep.subr.mxu0 0.0
          %6009 = vmatpush1.msra.mxu0 0.0
          %6010 = vmatprep.subr.mxu0 0.0
          %6011 = vmatpush1.msra.mxu0 0.0
          %6012 = vmatprep.subr.mxu0 0.0
          %6013 = vmatpush1.msra.mxu0 0.0
          %6014 = vmatprep.subr.mxu0 0.0
          %6015 = vmatpush1.msra.mxu0 0.0
          %6016 = vmatprep.subr.mxu0 0.0
          %6017 = vmatpush1.msra.mxu0 0.0
          %6018 = vmatprep.mubr.f32.mxu0 0.0
          %6019 = vmatmul.mubr.f32.gmra.mrb[0].mxu0 %v2175
          %v6020 = vpop.f32.mrb[0].mxu0
          %v6021 = vadd.f32 0.0, %v6020
          %v6022 = vpop.f32.mrb[0].mxu0
          %v6023 = vadd.f32 0.0, %v6022
          %6024 = vdwg.mxu0
          %v6025 = vadd.f32 %v5920, %v6021
          %v6026 = vadd.f32 %v5921, %v6023
          %v6027 = vmax.f32 %v5338, 1e-24
          %v6028 = vrsqrt.pop %v6027
          %v6029 = vmul.f32 %v6025, %v6028
          %v6030 = vmul.f32 %v6026, %v6028
          %v6031 = vld [vmem:[#allocation33] sm:$0x3]
          %v6033 = vlaneseq
          %v6034 = vshrl.u32 %v6033, 7
          %v6035 = vsub.s32 0, %v6034
          %v6036 = vrot.slane %v6031, %v6035
          %v6037 = vlaneseq
          %v6038 = vshrl.u32 %v6037, 7
          %v6039 = vsub.s32 1, %v6038
          %v6040 = vrot.slane %v6031, %v6039
          %v6043 = vadd.f32 %v6029, %v6036
          %v6044 = vadd.f32 %v6030, %v6040
          %v6045 = vld [vmem:[#allocation37] sm:$0x3]
          %v6047 = vlaneseq
          %v6048 = vshrl.u32 %v6047, 7
          %v6049 = vsub.s32 0, %v6048
          %v6050 = vrot.slane %v6045, %v6049
          %v6051 = vlaneseq
          %v6052 = vshrl.u32 %v6051, 7
          %v6053 = vsub.s32 1, %v6052
          %v6054 = vrot.slane %v6045, %v6053
          %v6057 = vsub.f32 %v6043, %v6050
          %v6058 = vsub.f32 %v6044, %v6054
          %v6059 = vld [vmem:[#allocation39] sm:$0x3]
          %v6060 = vadd.f32 %v6059, 1e-05
          %v6061 = vrsqrt.pop %v6060
          %v6063 = vlaneseq
          %v6064 = vshrl.u32 %v6063, 7
          %v6065 = vsub.s32 0, %v6064
          %v6066 = vrot.slane %v6061, %v6065
          %v6067 = vlaneseq
          %v6068 = vshrl.u32 %v6067, 7
          %v6069 = vsub.s32 1, %v6068
          %v6070 = vrot.slane %v6061, %v6069
          %v6073 = vmul.f32 %v6057, %v6066
          %v6074 = vmul.f32 %v6058, %v6070
          %v6075 = vld [vmem:[#allocation34] sm:$0x3]
          %v6077 = vlaneseq
          %v6078 = vshrl.u32 %v6077, 7
          %v6079 = vsub.s32 0, %v6078
          %v6080 = vrot.slane %v6075, %v6079
          %v6081 = vlaneseq
          %v6082 = vshrl.u32 %v6081, 7
          %v6083 = vsub.s32 1, %v6082
          %v6084 = vrot.slane %v6075, %v6083
          %v6087 = vmul.f32 %v6073, %v6080
          %v6088 = vmul.f32 %v6074, %v6084
          %v6089 = vld [vmem:[#allocation36] sm:$0x3]
          %v6091 = vlaneseq
          %v6092 = vshrl.u32 %v6091, 7
          %v6093 = vsub.s32 0, %v6092
          %v6094 = vrot.slane %v6089, %v6093
          %v6095 = vlaneseq
          %v6096 = vshrl.u32 %v6095, 7
          %v6097 = vsub.s32 1, %v6096
          %v6098 = vrot.slane %v6089, %v6097
          %v6101 = vadd.f32 %v6087, %v6094
          %v6102 = vadd.f32 %v6088, %v6098
          %v6103 = vmax.f32 %v6101, 0.0
          %v6104 = vmax.f32 %v6102, 0.0
          %v6105 = vld [vmem:[%s25] sm:$0xff]
          %v6106 = vld [vmem:[%s25 + $0x8] sm:$0xff]
          %v6107 = vld [vmem:[%s25 + $0x10] sm:$0xff]
          %v6108 = vld [vmem:[%s25 + $0x18] sm:$0xff]
          %v6109 = vld [vmem:[%s25 + $0x20] sm:$0xff]
          %v6110 = vld [vmem:[%s25 + $0x28] sm:$0xff]
          %v6111 = vld [vmem:[%s25 + $0x30] sm:$0xff]
          %v6112 = vld [vmem:[%s25 + $0x38] sm:$0xff]
          %v6113 = vld [vmem:[%s25 + $0x40] sm:$0xff]
          %v6114 = vld [vmem:[%s25 + $0x48] sm:$0xff]
          %v6115 = vld [vmem:[%s25 + $0x50] sm:$0xff]
          %v6116 = vld [vmem:[%s25 + $0x58] sm:$0xff]
          %v6117 = vld [vmem:[%s25 + $0x60] sm:$0xff]
          %v6118 = vld [vmem:[%s25 + $0x68] sm:$0xff]
          %v6119 = vld [vmem:[%s25 + $0x70] sm:$0xff]
          %v6120 = vld [vmem:[%s25 + $0x78] sm:$0xff]
          %v6121 = vld [vmem:[%s25 + $0x80] sm:$0xff]
          %v6122 = vld [vmem:[%s25 + $0x88] sm:$0xff]
          %v6123 = vld [vmem:[%s25 + $0x90] sm:$0xff]
          %v6124 = vld [vmem:[%s25 + $0x98] sm:$0xff]
          %v6125 = vld [vmem:[%s25 + $0xa0] sm:$0xff]
          %v6126 = vld [vmem:[%s25 + $0xa8] sm:$0xff]
          %v6127 = vld [vmem:[%s25 + $0xb0] sm:$0xff]
          %v6128 = vld [vmem:[%s25 + $0xb8] sm:$0xff]
          %v6129 = vld [vmem:[%s25 + $0xc0] sm:$0xff]
          %v6130 = vld [vmem:[%s25 + $0xc8] sm:$0xff]
          %v6131 = vld [vmem:[%s25 + $0xd0] sm:$0xff]
          %v6132 = vld [vmem:[%s25 + $0xd8] sm:$0xff]
          %v6133 = vld [vmem:[%s25 + $0xe0] sm:$0xff]
          %v6134 = vld [vmem:[%s25 + $0xe8] sm:$0xff]
          %v6135 = vld [vmem:[%s25 + $0xf0] sm:$0xff]
          %v6136 = vld [vmem:[%s25 + $0xf8] sm:$0xff]
          %v6137 = vld [vmem:[#allocation40] sm:$0x1]
          %v6139 = vlaneseq
          %v6140 = vshrl.u32 %v6139, 7
          %v6141 = vsub.s32 0, %v6140
          %v6142 = vrot.slane %v6137, %v6141
          %6144 = vmatprep.subr.mxu0 0.0
          %6145 = vmatpush1.msra.mxu0 %v6105
          %6146 = vmatprep.subr.mxu0 0.0
          %6147 = vmatpush1.msra.mxu0 %v6106
          %6148 = vmatprep.subr.mxu0 0.0
          %6149 = vmatpush1.msra.mxu0 %v6107
          %6150 = vmatprep.subr.mxu0 0.0
          %6151 = vmatpush1.msra.mxu0 %v6108
          %6152 = vmatprep.subr.mxu0 0.0
          %6153 = vmatpush1.msra.mxu0 %v6109
          %6154 = vmatprep.subr.mxu0 0.0
          %6155 = vmatpush1.msra.mxu0 %v6110
          %6156 = vmatprep.subr.mxu0 0.0
          %6157 = vmatpush1.msra.mxu0 %v6111
          %6158 = vmatprep.subr.mxu0 0.0
          %6159 = vmatpush1.msra.mxu0 %v6112
          %6160 = vmatprep.subr.mxu0 0.0
          %6161 = vmatpush1.msra.mxu0 %v6113
          %6162 = vmatprep.subr.mxu0 0.0
          %6163 = vmatpush1.msra.mxu0 %v6114
          %6164 = vmatprep.subr.mxu0 0.0
          %6165 = vmatpush1.msra.mxu0 %v6115
          %6166 = vmatprep.subr.mxu0 0.0
          %6167 = vmatpush1.msra.mxu0 %v6116
          %6168 = vmatprep.subr.mxu0 0.0
          %6169 = vmatpush1.msra.mxu0 %v6117
          %6170 = vmatprep.subr.mxu0 0.0
          %6171 = vmatpush1.msra.mxu0 %v6118
          %6172 = vmatprep.subr.mxu0 0.0
          %6173 = vmatpush1.msra.mxu0 %v6119
          %6174 = vmatprep.subr.mxu0 0.0
          %6175 = vmatpush1.msra.mxu0 %v6120
          %6176 = vmatprep.subr.mxu0 0.0
          %6177 = vmatpush1.msra.mxu0 %v6121
          %6178 = vmatprep.subr.mxu0 0.0
          %6179 = vmatpush1.msra.mxu0 %v6122
          %6180 = vmatprep.subr.mxu0 0.0
          %6181 = vmatpush1.msra.mxu0 %v6123
          %6182 = vmatprep.subr.mxu0 0.0
          %6183 = vmatpush1.msra.mxu0 %v6124
          %6184 = vmatprep.subr.mxu0 0.0
          %6185 = vmatpush1.msra.mxu0 %v6125
          %6186 = vmatprep.subr.mxu0 0.0
          %6187 = vmatpush1.msra.mxu0 %v6126
          %6188 = vmatprep.subr.mxu0 0.0
          %6189 = vmatpush1.msra.mxu0 %v6127
          %6190 = vmatprep.subr.mxu0 0.0
          %6191 = vmatpush1.msra.mxu0 %v6128
          %6192 = vmatprep.subr.mxu0 0.0
          %6193 = vmatpush1.msra.mxu0 %v6129
          %6194 = vmatprep.subr.mxu0 0.0
          %6195 = vmatpush1.msra.mxu0 %v6130
          %6196 = vmatprep.subr.mxu0 0.0
          %6197 = vmatpush1.msra.mxu0 %v6131
          %6198 = vmatprep.subr.mxu0 0.0
          %6199 = vmatpush1.msra.mxu0 %v6132
          %6200 = vmatprep.subr.mxu0 0.0
          %6201 = vmatpush1.msra.mxu0 %v6133
          %6202 = vmatprep.subr.mxu0 0.0
          %6203 = vmatpush1.msra.mxu0 %v6134
          %6204 = vmatprep.subr.mxu0 0.0
          %6205 = vmatpush1.msra.mxu0 %v6135
          %6206 = vmatprep.subr.mxu0 0.0
          %6207 = vmatpush1.msra.mxu0 %v6136
          %6208 = vmatprep.mubr.f32.mxu0 %v6104
          %6209 = vmatmul.mubr.f32.gmra.mrb[0].mxu0 %v6103
          %v6210 = vpop.f32.mrb[0].mxu0
          %v6211 = vadd.f32 %v6142, %v6210
          %v6212 = vpop.f32.mrb[0].mxu0
          %6213 = vdwg.mxu0
          %v6214 = vmax.f32 %v6211, 0.0
          %vm6215 = vcmask 15360
          %6216 = vst.msk [vmem:[%s27] sm:$0xff] %vm6215, %v6214
        $region232: #{tpu_custom_call.1} parent=127 // pred_fallthru
          _
        // Predicated region
        $region233: #{tpu_custom_call.1} parent=127 // pred_check
          %p6217 = pneg %p647
        $region234: #{tpu_custom_call.1} parent=127 // pred_check_branch
          %6219 = sbr.rel (%p6217) target = $region236
        $region235: #{tpu_custom_call.1} parent=127 // pred_region
          _
        $region236: #{tpu_custom_call.1} parent=127 // pred_fallthru
          _
        // Predicated region
        $region237: #{tpu_custom_call.1} parent=127 // pred_check
          %p6220 = pneg %p647
        $region238: #{tpu_custom_call.1} parent=127 // pred_check_branch
          %6222 = sbr.rel (%p6220) target = $region240
        $region239: #{tpu_custom_call.1} parent=127 // pred_region
          _
        $region240: #{tpu_custom_call.1} parent=127 // pred_fallthru
          _
      $region128: #{tpu_custom_call.1} parent=5 // pred_fallthru
        _
      %p6223 = scmp.le.s32.totalorder 2, %s52
      // Predicated region
      $region241: #{tpu_custom_call.1} parent=5 // pred_check
        %p6224 = pneg %p6223
      $region242: #{tpu_custom_call.1} parent=5 // pred_check_branch
        %6226 = sbr.rel (%p6224) target = $region244
      $region243: #{tpu_custom_call.1} parent=5 // pred_region
        %s6227 = ssub.s32 %s52, 2
      $region244: #{tpu_custom_call.1} parent=5 // pred_fallthru
        _
    $region6: #{tpu_custom_call.1} parent=1 // loop_footer
      %s56 = sadd.s32 1, %s52
    $region7: #{tpu_custom_call.1} parent=1 // loop_footer_branch
      %51 = sbr.rel target = $region3
    $region8: #{tpu_custom_call.1} parent=1 // loop_exit
      _
    %6228 = vsyncpa [#allocation6], 1
    %s6229 = scalar_lea.sflag [#allocation6], 1
    %6230 = vsyncpa %s6229, 1
    %6231 = vsyncpa [#allocation8], 1
    %s6232 = scalar_lea.sflag [#allocation8], 1
    %6233 = vsyncpa %s6232, 1
    %6234 = vsyncpa [#allocation11], 1
    %6235 = vsyncpa [#allocation14], 1
    %6236 = vsyncpa [#allocation17], 1
    %6237 = vsyncpa [#allocation20], 1
    %6238 = vsyncpa [#allocation23], 1
    %6239 = vsyncpa [#allocation26], 1
    %6240 = vsyncpa [#allocation29], 1
    %6241 = vsyncpa [#allocation32], 1
    %6242 = vsyncpa [#allocation35], 1
    %6243 = vsyncpa [#allocation38], 1
    %6244 = vsyncpa [#allocation41], 1

</llo_original>
